<compile_context>
chip_gen: v7x
topology: tpu7x:2x2x1
jax: 0.10.0
libtpu: 0.0.40
codegen_flags: <defaults>
</compile_context>

<pallas_src>
import jax
import jax.numpy as jnp
import numpy as np
from jax.experimental import pallas as pl
from jax.experimental.pallas import tpu as pltpu

SEQ_DIM = 4
EPI_DIM = 10
C_IN = SEQ_DIM + EPI_DIM        # 14 input channels
L_IN = 23                       # sequence length (final conv output length 1)
D_IN = C_IN * L_IN              # 322 flattened input features
NEG_SLOPE = 0.2


# ----------------------------- small helpers -------------------------------

def _round_up(n, m):
    return ((n + m - 1) // m) * m


def _leaky(v):
    return jnp.where(v > 0, v, NEG_SLOPE * v)


def _const_spec(shape):
    zeros = (0,) * len(shape)
    return pl.BlockSpec(shape, lambda i, _z=zeros: _z)


# --------------------------------- kernel ----------------------------------

def _convnet_kernel(x_ref,
                    w1, b1, w2, b2, w3, b3, w4, b4, w5, b5, wlt, bl,
                    out_ref):
    """One batch block: x_ref (B_BLK, 322) f32 -> out_ref (1, B_BLK) f32."""

    def mm(h, w_ref):
        return jnp.dot(h.astype(jnp.bfloat16), w_ref[...],
                       preferred_element_type=jnp.float32)

    x = x_ref[...]                                        # (B_BLK, 322) f32

    # EncodeLayer1 (BN0 folded in, stride-2 in dense matrix) + LeakyReLU
    h = _leaky(mm(x, w1) + b1[...])                       # (B_BLK, 11*32=352)
    # EncodeLayer2 + LeakyReLU
    h = _leaky(mm(h, w2) + b2[...])                       # (B_BLK, 9*64=576)
    # EncodeLayer3 (stride-2, BN3 folded in) + LeakyReLU
    h = _leaky(mm(h, w3) + b3[...])                       # (B_BLK, 4*128=512)
    # conjoinedLayer1 conv: 2 positions x 256 channels
    h = mm(h, w4) + b4[...]                               # (B_BLK, 2*256=512)
    # MaxPool1d(3,pad=1,s=1) on length 2 -> both outputs = max(pos0,pos1); +ReLU
    h = jnp.maximum(jnp.maximum(h[:, :256], h[:, 256:]), 0.0)   # (B_BLK, 256)
    # conjoinedLayer2 conv (k=2 over two identical positions, folded);
    # MaxPool on a length-1 input is the identity; + ReLU
    h = jnp.maximum(mm(h, w5) + b5[...], 0.0)             # (B_BLK, 512)

    # conjoinedLinear(512->1) + sigmoid.  Contract feature axis of both
    # operands -> result is (1, B_BLK) lane-major, no in-kernel transpose.
    y = jax.lax.dot_general(
        wlt[...], h.astype(jnp.bfloat16),
        dimension_numbers=(((1,), (1,)), ((), ())),
        preferred_element_type=jnp.float32) + bl[...]     # (1, B_BLK)
    out_ref[...] = jax.nn.sigmoid(y)


# -------------------------------- wrapper -----------------------------------

_DP_ORDER = ["w1", "b1", "w2", "b2", "w3", "b3", "w4", "b4", "w5", "b5",
             "wlT", "bl"]


def convnet_forward(x_ncw, dense_params, b_blk=None):
    """x_ncw: (B, 14, 23) float32 (PyTorch NCW layout).  Returns (B, 1)."""
    b = int(x_ncw.shape[0])
    # Flatten exactly like torch's x.view(B, 14, 23): feature index = c*23 + l.
    x_flat = x_ncw.astype(jnp.float32).reshape(b, D_IN)

    if b_blk is None:
        # Large blocks amortise per-step overhead; cap to bound padding waste
        # and keep the input block comfortably within the VMEM budget.
        b_blk = min(512, max(128, _round_up(b, 128)))
    b_pad = _round_up(b, b_blk)
    if b_pad != b:
        x_flat = jnp.pad(x_flat, ((0, b_pad - b), (0, 0)))
    nblk = b_pad // b_blk

    p_vals = [dense_params[k] for k in _DP_ORDER]
    in_specs = [pl.BlockSpec((b_blk, D_IN), lambda i: (i, 0))]
    in_specs += [_const_spec(v.shape) for v in p_vals]

    macs = sum(int(np.prod(dense_params[k].shape))
               for k in ("w1", "w2", "w3", "w4", "w5", "wlT"))
    bytes_accessed = int(b_pad * D_IN * 4 + b_pad * 4
                         + sum(int(np.prod(v.shape)) * v.dtype.itemsize
                               for v in p_vals))

    out = pl.pallas_call(
        _convnet_kernel,
        out_shape=jax.ShapeDtypeStruct((nblk, b_blk), jnp.float32),
        grid_spec=pltpu.PrefetchScalarGridSpec(
            num_scalar_prefetch=0,
            grid=(nblk,),
            in_specs=in_specs,
            out_specs=pl.BlockSpec((1, b_blk), lambda i: (i, 0)),
        ),
        compiler_params=pltpu.CompilerParams(
            dimension_semantics=("parallel",)),
        cost_estimate=pl.CostEstimate(
            flops=2 * macs * b_pad,
            transcendentals=b_pad,
            bytes_accessed=bytes_accessed),
    )(x_flat, *p_vals)

    return out.reshape(b_pad, 1)[:b]


# ------------------ host-side conv -> dense matrix lowering -----------------

def _conv_as_dense(w_kio, l_in, stride, in_layout="lc"):
    """Dense matrix for a valid Conv1d.

    w_kio: (K, Cin, Cout).  Input flattened as (l, c)->l*Cin+c ("lc") or
    (c, l)->c*l_in+l ("cl"); output always flattened as (l, c)->l*Cout+c.
    """
    w = np.asarray(w_kio, np.float32)
    k, cin, cout = w.shape
    l_out = (l_in - k) // stride + 1
    dense = np.zeros((l_in * cin, l_out * cout), np.float32)
    for lo in range(l_out):
        for kk in range(k):
            li = lo * stride + kk
            cols = slice(lo * cout, (lo + 1) * cout)
            if in_layout == "lc":
                dense[li * cin:(li + 1) * cin, cols] = w[kk]
            else:  # "cl"
                dense[li::l_in, cols] = w[kk]
    return dense


def prepare_dense_params(p, eps=1e-5):
    """Fold BN (running stats) + conv weights into dense bf16 matmul operands."""
    g = lambda k: np.asarray(jax.device_get(p[k]), np.float32)

    # EncodeLayer1 (14->32, k3, s2); input BatchNorm1d(14) folded in.
    w1 = _conv_as_dense(g("e1_w"), L_IN, 2, in_layout="cl")        # (322, 352)
    b1 = np.tile(g("e1_b"), 11)
    s0 = g("bn0_gamma") / np.sqrt(g("bn0_var") + eps)
    t0 = g("bn0_beta") - g("bn0_mean") * s0
    b1 = np.repeat(t0, L_IN) @ w1 + b1                              # uses unscaled w1
    w1 = np.repeat(s0, L_IN)[:, None] * w1

    # EncodeLayer2 (32->64, k3, s1)
    w2 = _conv_as_dense(g("e2_w"), 11, 1)                           # (352, 576)
    b2 = np.tile(g("e2_b"), 9)

    # EncodeLayer3 (64->128, k3, s2); BatchNorm1d(128) folded in.
    w3 = _conv_as_dense(g("e3_w"), 9, 2)                            # (576, 512)
    b3 = np.tile(g("e3_b"), 4)
    s3 = g("bn3_gamma") / np.sqrt(g("bn3_var") + eps)
    t3 = g("bn3_beta") - g("bn3_mean") * s3
    s3f, t3f = np.tile(s3, 4), np.tile(t3, 4)
    w3 = w3 * s3f[None, :]
    b3 = b3 * s3f + t3f

    # conjoinedLayer1 conv (128->256, k3, s1)
    w4 = _conv_as_dense(g("c1_w"), 4, 1)                            # (512, 512)
    b4 = np.tile(g("c1_b"), 2)

    # conjoinedLayer2 conv (256->512, k2): both input positions identical after
    # the preceding MaxPool, so fold the two taps into one matrix.
    c2 = g("c2_w")
    w5 = c2[0] + c2[1]                                              # (256, 512)
    b5 = g("c2_b")

    # conjoinedLinear (512->1), stored transposed for a lane-major result row.
    wlt = g("lin_w").T                                              # (1, 512)
    bl = g("lin_b").reshape(1, 1)

    as_w = lambda a: jnp.asarray(a, jnp.bfloat16)
    as_b = lambda a: jnp.asarray(np.asarray(a).reshape(1, -1), jnp.float32)
    return dict(w1=as_w(w1), b1=as_b(b1), w2=as_w(w2), b2=as_b(b2),
                w3=as_w(w3), b3=as_b(b3), w4=as_w(w4), b4=as_b(b4),
                w5=as_w(w5), b5=as_b(b5),
                wlT=as_w(wlt), bl=jnp.asarray(bl, jnp.float32))


# ------------------------ deterministic parameter init ----------------------

def init_params(key):
    ks = jax.random.split(key, 20)

    def nrm(k, shape, scale):
        return (scale * jax.random.normal(k, shape)).astype(jnp.float32)

    def bn(kg, kb, km, kv, c):
        return ((1.0 + 0.1 * jax.random.normal(kg, (c,))).astype(jnp.float32),
                (0.1 * jax.random.normal(kb, (c,))).astype(jnp.float32),
                (0.1 * jax.random.normal(km, (c,))).astype(jnp.float32),
                (0.5 + jax.random.uniform(kv, (c,))).astype(jnp.float32))

    g0, be0, m0, v0 = bn(ks[0], ks[1], ks[2], ks[3], C_IN)
    g3, be3, m3, v3 = bn(ks[4], ks[5], ks[6], ks[7], 128)

    return dict(
        bn0_gamma=g0, bn0_beta=be0, bn0_mean=m0, bn0_var=v0,
        # Conv weights stored as (K, Cin, Cout) (torch (Cout, Cin, K) transposed).
        e1_w=nrm(ks[8], (3, C_IN, 32), 0.10),  e1_b=nrm(ks[9], (32,), 0.05),
        e2_w=nrm(ks[10], (3, 32, 64), 0.10),   e2_b=nrm(ks[11], (64,), 0.05),
        e3_w=nrm(ks[12], (3, 64, 128), 0.08),  e3_b=nrm(ks[13], (128,), 0.05),
        bn3_gamma=g3, bn3_beta=be3, bn3_mean=m3, bn3_var=v3,
        c1_w=nrm(ks[14], (3, 128, 256), 0.05), c1_b=nrm(ks[15], (256,), 0.05),
        c2_w=nrm(ks[16], (2, 256, 512), 0.05), c2_b=nrm(ks[17], (512,), 0.05),
        lin_w=nrm(ks[18], (512, 1), 0.02),     lin_b=nrm(ks[19], (1,), 0.02),
    )


# --------------------------- pure-JAX reference -----------------------------

def reference_forward(x_ncw, p, eps=1e-5):
    x = x_ncw.astype(jnp.float32)

    def bn(h, gamma, beta, mean, var):
        inv = (gamma / jnp.sqrt(var + eps)).reshape(1, -1, 1)
        return (h - mean.reshape(1, -1, 1)) * inv + beta.reshape(1, -1, 1)

    def conv(h, w_kio, bias, stride):
        w_oik = jnp.transpose(w_kio, (2, 1, 0))
        y = jax.lax.conv_general_dilated(
            h, w_oik, window_strides=(stride,), padding="VALID",
            dimension_numbers=("NCW", "OIW", "NCW"))
        return y + bias.reshape(1, -1, 1)

    def leaky(v):
        return jnp.where(v > 0, v, NEG_SLOPE * v)

    def maxpool3(h):
        l = h.shape[-1]
        pad = jnp.full(h.shape[:-1] + (1,), -jnp.inf, h.dtype)
        hp = jnp.concatenate([pad, h, pad], axis=-1)
        return jnp.maximum(jnp.maximum(hp[..., 0:l], hp[..., 1:l + 1]),
                           hp[..., 2:l + 2])

    h = bn(x, p["bn0_gamma"], p["bn0_beta"], p["bn0_mean"], p["bn0_var"])
    h = leaky(conv(h, p["e1_w"], p["e1_b"], 2))
    h = leaky(conv(h, p["e2_w"], p["e2_b"], 1))
    h = conv(h, p["e3_w"], p["e3_b"], 2)
    h = leaky(bn(h, p["bn3_gamma"], p["bn3_beta"], p["bn3_mean"], p["bn3_var"]))
    h = jnp.maximum(maxpool3(conv(h, p["c1_w"], p["c1_b"], 1)), 0.0)
    h = jnp.maximum(maxpool3(conv(h, p["c2_w"], p["c2_b"], 1)), 0.0)
    h = h.reshape(h.shape[0], -1)                      # (B, 512)
    y = h @ p["lin_w"] + p["lin_b"].reshape(1, 1)
    return jax.nn.sigmoid(y)


if __name__ == "__main__":
    key = jax.random.PRNGKey(0)
    k_x, k_p, k_x2 = jax.random.split(key, 3)
    params = init_params(k_p)
    dense = prepare_dense_params(params)

    # Input matching torch forward's x.view(B, seqDim+epiDim, -1) = (2, 14, 23)
    x = jax.random.normal(k_x, (2, C_IN, L_IN), jnp.float32)
    out = jax.block_until_ready(convnet_forward(x, dense))
    assert out.shape == (2, 1)
    ref = reference_forward(x, params)
    np.testing.assert_allclose(np.asarray(out), np.asarray(ref),
                               rtol=2e-2, atol=2e-2)

    # Multi-block grid path (2 grid steps, zero-padded final block).
    x2 = jax.random.normal(k_x2, (130, C_IN, L_IN), jnp.float32)
    out2 = jax.block_until_ready(convnet_forward(x2, dense, b_blk=128))
    assert out2.shape == (130, 1)
    ref2 = reference_forward(x2, params)
    np.testing.assert_allclose(np.asarray(out2), np.asarray(ref2),
                               rtol=2e-2, atol=2e-2)

    print("KERNEL_OK")
</pallas_src>

<mosaic_0001>
module attributes {stable_mosaic.version = 11 : i64} {
  func.func @_convnet_kernel(%arg0: i32, %arg1: memref<128x322xf32, #tpu.memory_space<vmem>>, %arg2: memref<322x352xbf16, #tpu.memory_space<vmem>>, %arg3: memref<1x352xf32, #tpu.memory_space<vmem>>, %arg4: memref<352x576xbf16, #tpu.memory_space<vmem>>, %arg5: memref<1x576xf32, #tpu.memory_space<vmem>>, %arg6: memref<576x512xbf16, #tpu.memory_space<vmem>>, %arg7: memref<1x512xf32, #tpu.memory_space<vmem>>, %arg8: memref<512x512xbf16, #tpu.memory_space<vmem>>, %arg9: memref<1x512xf32, #tpu.memory_space<vmem>>, %arg10: memref<256x512xbf16, #tpu.memory_space<vmem>>, %arg11: memref<1x512xf32, #tpu.memory_space<vmem>>, %arg12: memref<1x512xbf16, #tpu.memory_space<vmem>>, %arg13: memref<1x1xf32, #tpu.memory_space<vmem>>, %arg14: memref<1x128xf32, #tpu.memory_space<vmem>>) attributes {dimension_semantics = [#tpu.dimension_semantics<parallel>], iteration_bounds = array<i64: 1>, scalar_prefetch = 0 : i64, scratch_operands = 0 : i64, tpu.core_type = #tpu.core_type<tc>, window_params = [{transform_indices = @transform_0, window_bounds = array<i64: 128, 322>}, {pipeline_mode = #tpu.pipeline_mode<synchronous>, transform_indices = @transform_1, window_bounds = array<i64: 322, 352>}, {pipeline_mode = #tpu.pipeline_mode<synchronous>, transform_indices = @transform_2, window_bounds = array<i64: 1, 352>}, {pipeline_mode = #tpu.pipeline_mode<synchronous>, transform_indices = @transform_3, window_bounds = array<i64: 352, 576>}, {pipeline_mode = #tpu.pipeline_mode<synchronous>, transform_indices = @transform_4, window_bounds = array<i64: 1, 576>}, {pipeline_mode = #tpu.pipeline_mode<synchronous>, transform_indices = @transform_5, window_bounds = array<i64: 576, 512>}, {pipeline_mode = #tpu.pipeline_mode<synchronous>, transform_indices = @transform_6, window_bounds = array<i64: 1, 512>}, {pipeline_mode = #tpu.pipeline_mode<synchronous>, transform_indices = @transform_7, window_bounds = array<i64: 512, 512>}, {pipeline_mode = #tpu.pipeline_mode<synchronous>, transform_indices = @transform_8, window_bounds = array<i64: 1, 512>}, {pipeline_mode = #tpu.pipeline_mode<synchronous>, transform_indices = @transform_9, window_bounds = array<i64: 256, 512>}, {pipeline_mode = #tpu.pipeline_mode<synchronous>, transform_indices = @transform_10, window_bounds = array<i64: 1, 512>}, {pipeline_mode = #tpu.pipeline_mode<synchronous>, transform_indices = @transform_11, window_bounds = array<i64: 1, 512>}, {pipeline_mode = #tpu.pipeline_mode<synchronous>, transform_indices = @transform_12, window_bounds = array<i64: 1, 1>}, {transform_indices = @transform_13, window_bounds = array<i64: 1, 128>}]} {
    %c0 = arith.constant 0 : index
    %c0_0 = arith.constant 0 : index
    %0 = vector.load %arg1[%c0, %c0_0] : memref<128x322xf32, #tpu.memory_space<vmem>>, vector<128x322xf32>
    %1 = arith.truncf %0 : vector<128x322xf32> to vector<128x322xbf16>
    %c0_1 = arith.constant 0 : index
    %c0_2 = arith.constant 0 : index
    %2 = vector.load %arg2[%c0_1, %c0_2] : memref<322x352xbf16, #tpu.memory_space<vmem>>, vector<322x352xbf16>
    %cst = arith.constant dense<0.000000e+00> : vector<128x352xf32>
    %3 = tpu.matmul %1, %2, %cst {dimension_numbers = #tpu.dot_dimension_numbers<[1], [0], [0], [1], [0, 0, 1, 1], [], []>} : vector<128x322xbf16>, vector<322x352xbf16>, vector<128x352xf32> -> vector<128x352xf32>
    %c0_3 = arith.constant 0 : index
    %c0_4 = arith.constant 0 : index
    %4 = vector.load %arg3[%c0_3, %c0_4] : memref<1x352xf32, #tpu.memory_space<vmem>>, vector<1x352xf32>
    %5 = vector.broadcast %4 : vector<1x352xf32> to vector<128x352xf32>
    %6 = arith.addf %3, %5 : vector<128x352xf32>
    %cst_5 = arith.constant 0.000000e+00 : f32
    %7 = vector.broadcast %cst_5 : f32 to vector<128x352xf32>
    %8 = arith.cmpf ogt, %6, %7 : vector<128x352xf32>
    %cst_6 = arith.constant 2.000000e-01 : f32
    %9 = vector.broadcast %cst_6 : f32 to vector<128x352xf32>
    %10 = arith.mulf %9, %6 : vector<128x352xf32>
    %11 = arith.select %8, %6, %10 : vector<128x352xi1>, vector<128x352xf32>
    %12 = arith.truncf %11 : vector<128x352xf32> to vector<128x352xbf16>
    %c0_7 = arith.constant 0 : index
    %c0_8 = arith.constant 0 : index
    %13 = vector.load %arg4[%c0_7, %c0_8] : memref<352x576xbf16, #tpu.memory_space<vmem>>, vector<352x576xbf16>
    %cst_9 = arith.constant dense<0.000000e+00> : vector<128x576xf32>
    %14 = tpu.matmul %12, %13, %cst_9 {dimension_numbers = #tpu.dot_dimension_numbers<[1], [0], [0], [1], [0, 0, 1, 1], [], []>} : vector<128x352xbf16>, vector<352x576xbf16>, vector<128x576xf32> -> vector<128x576xf32>
    %c0_10 = arith.constant 0 : index
    %c0_11 = arith.constant 0 : index
    %15 = vector.load %arg5[%c0_10, %c0_11] : memref<1x576xf32, #tpu.memory_space<vmem>>, vector<1x576xf32>
    %16 = vector.broadcast %15 : vector<1x576xf32> to vector<128x576xf32>
    %17 = arith.addf %14, %16 : vector<128x576xf32>
    %cst_12 = arith.constant 0.000000e+00 : f32
    %18 = vector.broadcast %cst_12 : f32 to vector<128x576xf32>
    %19 = arith.cmpf ogt, %17, %18 : vector<128x576xf32>
    %cst_13 = arith.constant 2.000000e-01 : f32
    %20 = vector.broadcast %cst_13 : f32 to vector<128x576xf32>
    %21 = arith.mulf %20, %17 : vector<128x576xf32>
    %22 = arith.select %19, %17, %21 : vector<128x576xi1>, vector<128x576xf32>
    %23 = arith.truncf %22 : vector<128x576xf32> to vector<128x576xbf16>
    %c0_14 = arith.constant 0 : index
    %c0_15 = arith.constant 0 : index
    %24 = vector.load %arg6[%c0_14, %c0_15] : memref<576x512xbf16, #tpu.memory_space<vmem>>, vector<576x512xbf16>
    %cst_16 = arith.constant dense<0.000000e+00> : vector<128x512xf32>
    %25 = tpu.matmul %23, %24, %cst_16 {dimension_numbers = #tpu.dot_dimension_numbers<[1], [0], [0], [1], [0, 0, 1, 1], [], []>} : vector<128x576xbf16>, vector<576x512xbf16>, vector<128x512xf32> -> vector<128x512xf32>
    %c0_17 = arith.constant 0 : index
    %c0_18 = arith.constant 0 : index
    %26 = vector.load %arg7[%c0_17, %c0_18] : memref<1x512xf32, #tpu.memory_space<vmem>>, vector<1x512xf32>
    %27 = vector.broadcast %26 : vector<1x512xf32> to vector<128x512xf32>
    %28 = arith.addf %25, %27 : vector<128x512xf32>
    %cst_19 = arith.constant 0.000000e+00 : f32
    %29 = vector.broadcast %cst_19 : f32 to vector<128x512xf32>
    %30 = arith.cmpf ogt, %28, %29 : vector<128x512xf32>
    %cst_20 = arith.constant 2.000000e-01 : f32
    %31 = vector.broadcast %cst_20 : f32 to vector<128x512xf32>
    %32 = arith.mulf %31, %28 : vector<128x512xf32>
    %33 = arith.select %30, %28, %32 : vector<128x512xi1>, vector<128x512xf32>
    %34 = arith.truncf %33 : vector<128x512xf32> to vector<128x512xbf16>
    %c0_21 = arith.constant 0 : index
    %c0_22 = arith.constant 0 : index
    %35 = vector.load %arg8[%c0_21, %c0_22] : memref<512x512xbf16, #tpu.memory_space<vmem>>, vector<512x512xbf16>
    %cst_23 = arith.constant dense<0.000000e+00> : vector<128x512xf32>
    %36 = tpu.matmul %34, %35, %cst_23 {dimension_numbers = #tpu.dot_dimension_numbers<[1], [0], [0], [1], [0, 0, 1, 1], [], []>} : vector<128x512xbf16>, vector<512x512xbf16>, vector<128x512xf32> -> vector<128x512xf32>
    %c0_24 = arith.constant 0 : index
    %c0_25 = arith.constant 0 : index
    %37 = vector.load %arg9[%c0_24, %c0_25] : memref<1x512xf32, #tpu.memory_space<vmem>>, vector<1x512xf32>
    %38 = vector.broadcast %37 : vector<1x512xf32> to vector<128x512xf32>
    %39 = arith.addf %36, %38 : vector<128x512xf32>
    %40 = vector.extract_strided_slice %39 {offsets = [0, 0], sizes = [128, 256], strides = [1, 1]} : vector<128x512xf32> to vector<128x256xf32>
    %41 = vector.extract_strided_slice %39 {offsets = [0, 256], sizes = [128, 256], strides = [1, 1]} : vector<128x512xf32> to vector<128x256xf32>
    %42 = arith.maximumf %40, %41 : vector<128x256xf32>
    %cst_26 = arith.constant 0.000000e+00 : f32
    %43 = vector.broadcast %cst_26 : f32 to vector<128x256xf32>
    %44 = arith.maximumf %42, %43 : vector<128x256xf32>
    %45 = arith.truncf %44 : vector<128x256xf32> to vector<128x256xbf16>
    %c0_27 = arith.constant 0 : index
    %c0_28 = arith.constant 0 : index
    %46 = vector.load %arg10[%c0_27, %c0_28] : memref<256x512xbf16, #tpu.memory_space<vmem>>, vector<256x512xbf16>
    %cst_29 = arith.constant dense<0.000000e+00> : vector<128x512xf32>
    %47 = tpu.matmul %45, %46, %cst_29 {dimension_numbers = #tpu.dot_dimension_numbers<[1], [0], [0], [1], [0, 0, 1, 1], [], []>} : vector<128x256xbf16>, vector<256x512xbf16>, vector<128x512xf32> -> vector<128x512xf32>
    %c0_30 = arith.constant 0 : index
    %c0_31 = arith.constant 0 : index
    %48 = vector.load %arg11[%c0_30, %c0_31] : memref<1x512xf32, #tpu.memory_space<vmem>>, vector<1x512xf32>
    %49 = vector.broadcast %48 : vector<1x512xf32> to vector<128x512xf32>
    %50 = arith.addf %47, %49 : vector<128x512xf32>
    %cst_32 = arith.constant 0.000000e+00 : f32
    %51 = vector.broadcast %cst_32 : f32 to vector<128x512xf32>
    %52 = arith.maximumf %50, %51 : vector<128x512xf32>
    %c0_33 = arith.constant 0 : index
    %c0_34 = arith.constant 0 : index
    %53 = vector.load %arg12[%c0_33, %c0_34] : memref<1x512xbf16, #tpu.memory_space<vmem>>, vector<1x512xbf16>
    %54 = arith.truncf %52 : vector<128x512xf32> to vector<128x512xbf16>
    %cst_35 = arith.constant dense<0.000000e+00> : vector<1x128xf32>
    %55 = tpu.matmul %53, %54, %cst_35 {dimension_numbers = #tpu.dot_dimension_numbers<[1], [1], [0], [0], [0, 0, 1, 0], [], []>} : vector<1x512xbf16>, vector<128x512xbf16>, vector<1x128xf32> -> vector<1x128xf32>
    %c0_36 = arith.constant 0 : index
    %c0_37 = arith.constant 0 : index
    %56 = vector.load %arg13[%c0_36, %c0_37] : memref<1x1xf32, #tpu.memory_space<vmem>>, vector<1x1xf32>
    %57 = vector.broadcast %56 : vector<1x1xf32> to vector<1x128xf32>
    %58 = arith.addf %55, %57 : vector<1x128xf32>
    %59 = arith.negf %58 : vector<1x128xf32>
    %60 = math.exp %59 : vector<1x128xf32>
    %cst_38 = arith.constant 1.000000e+00 : f32
    %61 = vector.broadcast %cst_38 : f32 to vector<1x128xf32>
    %62 = arith.addf %61, %60 : vector<1x128xf32>
    %63 = arith.divf %61, %62 : vector<1x128xf32>
    %c0_39 = arith.constant 0 : index
    %c0_40 = arith.constant 0 : index
    %64 = vector.load %arg14[%c0_39, %c0_40] : memref<1x128xf32, #tpu.memory_space<vmem>>, vector<1x128xf32>
    tpu.vector_store %arg14[%c0_39, %c0_40], %63 {strides = array<i32>} : memref<1x128xf32, #tpu.memory_space<vmem>>, vector<1x128xf32>,
    return
  }
  func.func @transform_0(%arg0: i32) -> (i32, i32) {
    %c0_i32 = arith.constant 0 : i32
    %c0_i32_0 = arith.constant 0 : i32
    return %arg0, %c0_i32 : i32, i32
  }
  func.func @transform_1(%arg0: i32) -> (i32, i32) {
    %c0_i32 = arith.constant 0 : i32
    %c0_i32_0 = arith.constant 0 : i32
    %c0_i32_1 = arith.constant 0 : i32
    return %c0_i32, %c0_i32_0 : i32, i32
  }
  func.func @transform_2(%arg0: i32) -> (i32, i32) {
    %c0_i32 = arith.constant 0 : i32
    %c0_i32_0 = arith.constant 0 : i32
    %c0_i32_1 = arith.constant 0 : i32
    return %c0_i32, %c0_i32_0 : i32, i32
  }
  func.func @transform_3(%arg0: i32) -> (i32, i32) {
    %c0_i32 = arith.constant 0 : i32
    %c0_i32_0 = arith.constant 0 : i32
    %c0_i32_1 = arith.constant 0 : i32
    return %c0_i32, %c0_i32_0 : i32, i32
  }
  func.func @transform_4(%arg0: i32) -> (i32, i32) {
    %c0_i32 = arith.constant 0 : i32
    %c0_i32_0 = arith.constant 0 : i32
    %c0_i32_1 = arith.constant 0 : i32
    return %c0_i32, %c0_i32_0 : i32, i32
  }
  func.func @transform_5(%arg0: i32) -> (i32, i32) {
    %c0_i32 = arith.constant 0 : i32
    %c0_i32_0 = arith.constant 0 : i32
    %c0_i32_1 = arith.constant 0 : i32
    return %c0_i32, %c0_i32_0 : i32, i32
  }
  func.func @transform_6(%arg0: i32) -> (i32, i32) {
    %c0_i32 = arith.constant 0 : i32
    %c0_i32_0 = arith.constant 0 : i32
    %c0_i32_1 = arith.constant 0 : i32
    return %c0_i32, %c0_i32_0 : i32, i32
  }
  func.func @transform_7(%arg0: i32) -> (i32, i32) {
    %c0_i32 = arith.constant 0 : i32
    %c0_i32_0 = arith.constant 0 : i32
    %c0_i32_1 = arith.constant 0 : i32
    return %c0_i32, %c0_i32_0 : i32, i32
  }
  func.func @transform_8(%arg0: i32) -> (i32, i32) {
    %c0_i32 = arith.constant 0 : i32
    %c0_i32_0 = arith.constant 0 : i32
    %c0_i32_1 = arith.constant 0 : i32
    return %c0_i32, %c0_i32_0 : i32, i32
  }
  func.func @transform_9(%arg0: i32) -> (i32, i32) {
    %c0_i32 = arith.constant 0 : i32
    %c0_i32_0 = arith.constant 0 : i32
    %c0_i32_1 = arith.constant 0 : i32
    return %c0_i32, %c0_i32_0 : i32, i32
  }
  func.func @transform_10(%arg0: i32) -> (i32, i32) {
    %c0_i32 = arith.constant 0 : i32
    %c0_i32_0 = arith.constant 0 : i32
    %c0_i32_1 = arith.constant 0 : i32
    return %c0_i32, %c0_i32_0 : i32, i32
  }
  func.func @transform_11(%arg0: i32) -> (i32, i32) {
    %c0_i32 = arith.constant 0 : i32
    %c0_i32_0 = arith.constant 0 : i32
    %c0_i32_1 = arith.constant 0 : i32
    return %c0_i32, %c0_i32_0 : i32, i32
  }
  func.func @transform_12(%arg0: i32) -> (i32, i32) {
    %c0_i32 = arith.constant 0 : i32
    %c0_i32_0 = arith.constant 0 : i32
    %c0_i32_1 = arith.constant 0 : i32
    return %c0_i32, %c0_i32_0 : i32, i32
  }
  func.func @transform_13(%arg0: i32) -> (i32, i32) {
    %c0_i32 = arith.constant 0 : i32
    %c0_i32_0 = arith.constant 0 : i32
    return %arg0, %c0_i32 : i32, i32
  }
}

</mosaic_0001>

<llo_original>
// kernel: tpu_custom_call.1
$region0: #{tpu_custom_call.1}
  #allocation0 [shape = 'u32[]', space=smem, size = 0x4, offset = 0x4, fixed_abs, tag = 'smem constant byte address 0x4 - core index']
  #allocation1 [shape = 'u32[144,128]{1,0:T(1,128)}', space=vmem, size = 0x12000, scoped, tag = 'internal scratch']
  #allocation2 [shape = 'f32[1,1]{1,0:T(1,128)S(1)}', space=vmem, size = 0x200, scoped, tag = 'scoped memory for tpu_custom_call.1']
  %s0 = inlined_call_operand.vmem [shape: f32[128,322], index: 0, kind: input, shape index: {}]
  %s1 = inlined_call_operand.hbm [shape: bf16[322,352], index: 1, kind: input, shape index: {}]
  %s2 = inlined_call_operand.vmem [shape: f32[1,352], index: 2, kind: input, shape index: {}]
  %s3 = inlined_call_operand.vmem [shape: bf16[352,576], index: 3, kind: input, shape index: {}]
  %s4 = inlined_call_operand.vmem [shape: f32[1,576], index: 4, kind: input, shape index: {}]
  %s5 = inlined_call_operand.vmem [shape: bf16[576,512], index: 5, kind: input, shape index: {}]
  %s6 = inlined_call_operand.vmem [shape: f32[1,512], index: 6, kind: input, shape index: {}]
  %s7 = inlined_call_operand.vmem [shape: bf16[512,512], index: 7, kind: input, shape index: {}]
  %s8 = inlined_call_operand.vmem [shape: f32[1,512], index: 8, kind: input, shape index: {}]
  %s9 = inlined_call_operand.hbm [shape: bf16[256,512], index: 9, kind: input, shape index: {}]
  %s10 = inlined_call_operand.vmem [shape: f32[1,512], index: 10, kind: input, shape index: {}]
  %s11 = inlined_call_operand.vmem [shape: bf16[1,512], index: 11, kind: input, shape index: {}]
  %s12 = inlined_call_operand.<no memory space> [shape: f32[1,1], index: 12, kind: input, shape index: {}]
  %s13 = inlined_call_operand.hbm [shape: f32[1,128], index: 13, kind: output, shape index: {}]
  %s14 = sld [smem:[#allocation0]]
  $region70: #{tpu_custom_call.1} parent=0
    _
  %s16 = ssub.s32 1, %s14
  %s17 = scalar_select 0, %s16, %s14
  %v18 = vstv %s12
  %19 = vst [vmem:[#allocation2] sm:$0x1] %v18
  $region1: #{tpu_custom_call.1} parent=0
    #allocation3 [shape = 'u8[251904]{0}', space=vmem, size = 0x3d800, scoped, tag = 'input window, operand 1, single buffered']
    #allocation4 [shape = 's32[1]{0}', space=sflag, size = 0x4, scoped, tag = 'scoped memory for tpu_custom_call.1']
    #allocation5 [shape = 's32[1]{0}', space=sflag, size = 0x4, scoped, tag = 'scoped memory for tpu_custom_call.1']
    #allocation6 [shape = 'u8[262144]{0}', space=vmem, size = 0x40000, scoped, tag = 'input window, operand 9, single buffered']
    #allocation7 [shape = 's32[1]{0}', space=sflag, size = 0x4, scoped, tag = 'scoped memory for tpu_custom_call.1']
    #allocation8 [shape = 'u8[512]{0}', space=vmem, size = 0x400, scoped, tag = 'output window, operand 0, single buffered']
    %20 = vsyncpa [#allocation4], 0
    %21 = vsyncpa [#allocation7], 0
    %22 = vsyncpa [#allocation5], 0
    // Predicated region
    $region2: #{tpu_custom_call.1} parent=1 // pred_check
      _
    $region3: #{tpu_custom_call.1} parent=1 // pred_check_branch
      %24 = sbr.rel (0) target = $region5
    $region4: #{tpu_custom_call.1} parent=1 // pred_region
      _
    $region5: #{tpu_custom_call.1} parent=1 // pred_fallthru
      _
    // Predicated region
    $region6: #{tpu_custom_call.1} parent=1 // pred_check
      _
    $region7: #{tpu_custom_call.1} parent=1 // pred_check_branch
      %26 = sbr.rel (0) target = $region9
    $region8: #{tpu_custom_call.1} parent=1 // pred_region
      %s28 = ssub.s32 7872, 7872
      %29 = vsyncadd [#allocation4], %s28
      %s30 = sshll.u32 [#allocation3], 4
      %s31 = int_to_ptr.vmem [resolvable:$true] %s30
      %36 = dma.hbm_to_vmem [thread:$0]  %s1, 7872, %s31, [#allocation4], 192, 192, 12
    $region9: #{tpu_custom_call.1} parent=1 // pred_fallthru
      _
    // Predicated region
    $region10: #{tpu_custom_call.1} parent=1 // pred_check
      _
    $region11: #{tpu_custom_call.1} parent=1 // pred_check_branch
      %38 = sbr.rel (0) target = $region13
    $region12: #{tpu_custom_call.1} parent=1 // pred_region
      _
    $region13: #{tpu_custom_call.1} parent=1 // pred_fallthru
      _
    // Predicated region
    $region14: #{tpu_custom_call.1} parent=1 // pred_check
      _
    $region15: #{tpu_custom_call.1} parent=1 // pred_check_branch
      %40 = sbr.rel (0) target = $region17
    $region16: #{tpu_custom_call.1} parent=1 // pred_region
      _
    $region17: #{tpu_custom_call.1} parent=1 // pred_fallthru
      _
    // Predicated region
    $region18: #{tpu_custom_call.1} parent=1 // pred_check
      _
    $region19: #{tpu_custom_call.1} parent=1 // pred_check_branch
      %42 = sbr.rel (0) target = $region21
    $region20: #{tpu_custom_call.1} parent=1 // pred_region
      _
    $region21: #{tpu_custom_call.1} parent=1 // pred_fallthru
      _
    // Predicated region
    $region22: #{tpu_custom_call.1} parent=1 // pred_check
      _
    $region23: #{tpu_custom_call.1} parent=1 // pred_check_branch
      %44 = sbr.rel (0) target = $region25
    $region24: #{tpu_custom_call.1} parent=1 // pred_region
      _
    $region25: #{tpu_custom_call.1} parent=1 // pred_fallthru
      _
    // Predicated region
    $region26: #{tpu_custom_call.1} parent=1 // pred_check
      _
    $region27: #{tpu_custom_call.1} parent=1 // pred_check_branch
      %46 = sbr.rel (0) target = $region29
    $region28: #{tpu_custom_call.1} parent=1 // pred_region
      _
    $region29: #{tpu_custom_call.1} parent=1 // pred_fallthru
      _
    // Predicated region
    $region30: #{tpu_custom_call.1} parent=1 // pred_check
      _
    $region31: #{tpu_custom_call.1} parent=1 // pred_check_branch
      %48 = sbr.rel (0) target = $region33
    $region32: #{tpu_custom_call.1} parent=1 // pred_region
      _
    $region33: #{tpu_custom_call.1} parent=1 // pred_fallthru
      _
    // Predicated region
    $region34: #{tpu_custom_call.1} parent=1 // pred_check
      _
    $region35: #{tpu_custom_call.1} parent=1 // pred_check_branch
      %50 = sbr.rel (0) target = $region37
    $region36: #{tpu_custom_call.1} parent=1 // pred_region
      _
    $region37: #{tpu_custom_call.1} parent=1 // pred_fallthru
      _
    // Predicated region
    $region38: #{tpu_custom_call.1} parent=1 // pred_check
      _
    $region39: #{tpu_custom_call.1} parent=1 // pred_check_branch
      %52 = sbr.rel (0) target = $region41
    $region40: #{tpu_custom_call.1} parent=1 // pred_region
      %s54 = ssub.s32 8192, 8192
      %55 = vsyncadd [#allocation7], %s54
      %s56 = sshll.u32 [#allocation6], 4
      %s57 = int_to_ptr.vmem [resolvable:$true] %s56
      %62 = dma.hbm_to_vmem [thread:$0]  %s9, 8192, %s57, [#allocation7], 256, 256, 16
    $region41: #{tpu_custom_call.1} parent=1 // pred_fallthru
      _
    // Predicated region
    $region42: #{tpu_custom_call.1} parent=1 // pred_check
      _
    $region43: #{tpu_custom_call.1} parent=1 // pred_check_branch
      %64 = sbr.rel (0) target = $region45
    $region44: #{tpu_custom_call.1} parent=1 // pred_region
      _
    $region45: #{tpu_custom_call.1} parent=1 // pred_fallthru
      _
    // Predicated region
    $region46: #{tpu_custom_call.1} parent=1 // pred_check
      _
    $region47: #{tpu_custom_call.1} parent=1 // pred_check_branch
      %66 = sbr.rel (0) target = $region49
    $region48: #{tpu_custom_call.1} parent=1 // pred_region
      _
    $region49: #{tpu_custom_call.1} parent=1 // pred_fallthru
      _
    // Predicated region
    $region50: #{tpu_custom_call.1} parent=1 // pred_check
      _
    $region51: #{tpu_custom_call.1} parent=1 // pred_check_branch
      %68 = sbr.rel (0) target = $region53
    $region52: #{tpu_custom_call.1} parent=1 // pred_region
      _
    $region53: #{tpu_custom_call.1} parent=1 // pred_fallthru
      _
    // Predicated region
    $region54: #{tpu_custom_call.1} parent=1 // pred_check
      _
    $region55: #{tpu_custom_call.1} parent=1 // pred_check_branch
      %70 = sbr.rel (0) target = $region57
    $region56: #{tpu_custom_call.1} parent=1 // pred_region
      %71 = dma.done [#allocation4], 7872
    $region57: #{tpu_custom_call.1} parent=1 // pred_fallthru
      _
    // Predicated region
    $region58: #{tpu_custom_call.1} parent=1 // pred_check
      _
    $region59: #{tpu_custom_call.1} parent=1 // pred_check_branch
      %73 = sbr.rel (0) target = $region61
    $region60: #{tpu_custom_call.1} parent=1 // pred_region
      %74 = dma.done [#allocation7], 8192
    $region61: #{tpu_custom_call.1} parent=1 // pred_fallthru
      _
    %v76 = vld [vmem:[%s0] sm:$0xff]
    %v77 = vld [vmem:[%s0 + $0x8] sm:$0xff]
    %v78 = vld [vmem:[%s0 + $0x10] sm:$0xff]
    %v79 = vld [vmem:[%s0 + $0x18] sm:$0xff]
    %v80 = vld [vmem:[%s0 + $0x20] sm:$0xff]
    %v81 = vld [vmem:[%s0 + $0x28] sm:$0xff]
    %v82 = vld [vmem:[%s0 + $0x30] sm:$0xff]
    %v83 = vld [vmem:[%s0 + $0x38] sm:$0xff]
    %v84 = vld [vmem:[%s0 + $0x40] sm:$0xff]
    %v85 = vld [vmem:[%s0 + $0x48] sm:$0xff]
    %v86 = vld [vmem:[%s0 + $0x50] sm:$0xff]
    %v87 = vld [vmem:[%s0 + $0x58] sm:$0xff]
    %v88 = vld [vmem:[%s0 + $0x60] sm:$0xff]
    %v89 = vld [vmem:[%s0 + $0x68] sm:$0xff]
    %v90 = vld [vmem:[%s0 + $0x70] sm:$0xff]
    %v91 = vld [vmem:[%s0 + $0x78] sm:$0xff]
    %v92 = vld [vmem:[%s0 + $0x80] sm:$0xff]
    %v93 = vld [vmem:[%s0 + $0x88] sm:$0xff]
    %v94 = vld [vmem:[%s0 + $0x90] sm:$0xff]
    %v95 = vld [vmem:[%s0 + $0x98] sm:$0xff]
    %v96 = vld [vmem:[%s0 + $0xa0] sm:$0xff]
    %v97 = vld [vmem:[%s0 + $0xa8] sm:$0xff]
    %v98 = vld [vmem:[%s0 + $0xb0] sm:$0xff]
    %v99 = vld [vmem:[%s0 + $0xb8] sm:$0xff]
    %v100 = vld [vmem:[%s0 + $0xc0] sm:$0xff]
    %v101 = vld [vmem:[%s0 + $0xc8] sm:$0xff]
    %v102 = vld [vmem:[%s0 + $0xd0] sm:$0xff]
    %v103 = vld [vmem:[%s0 + $0xd8] sm:$0xff]
    %v104 = vld [vmem:[%s0 + $0xe0] sm:$0xff]
    %v105 = vld [vmem:[%s0 + $0xe8] sm:$0xff]
    %v106 = vld [vmem:[%s0 + $0xf0] sm:$0xff]
    %v107 = vld [vmem:[%s0 + $0xf8] sm:$0xff]
    %v108 = vld [vmem:[%s0 + $0x100] sm:$0xff]
    %v109 = vld [vmem:[%s0 + $0x108] sm:$0xff]
    %v110 = vld [vmem:[%s0 + $0x110] sm:$0xff]
    %v111 = vld [vmem:[%s0 + $0x118] sm:$0xff]
    %v112 = vld [vmem:[%s0 + $0x120] sm:$0xff]
    %v113 = vld [vmem:[%s0 + $0x128] sm:$0xff]
    %v114 = vld [vmem:[%s0 + $0x130] sm:$0xff]
    %v115 = vld [vmem:[%s0 + $0x138] sm:$0xff]
    %v116 = vld [vmem:[%s0 + $0x140] sm:$0xff]
    %v117 = vld [vmem:[%s0 + $0x148] sm:$0xff]
    %v118 = vld [vmem:[%s0 + $0x150] sm:$0xff]
    %v119 = vld [vmem:[%s0 + $0x158] sm:$0xff]
    %v120 = vld [vmem:[%s0 + $0x160] sm:$0xff]
    %v121 = vld [vmem:[%s0 + $0x168] sm:$0xff]
    %v122 = vld [vmem:[%s0 + $0x170] sm:$0xff]
    %v123 = vld [vmem:[%s0 + $0x178] sm:$0xff]
    %v124 = vpack.c.bf16 %v79, %v76
    %v125 = vpack.c.bf16 %v80, %v77
    %v126 = vpack.c.bf16 %v81, %v78
    %v127 = vpack.c.bf16 %v85, %v82
    %v128 = vpack.c.bf16 %v86, %v83
    %v129 = vpack.c.bf16 %v87, %v84
    %v130 = vpack.c.bf16 %v91, %v88
    %v131 = vpack.c.bf16 %v92, %v89
    %v132 = vpack.c.bf16 %v93, %v90
    %v133 = vpack.c.bf16 %v97, %v94
    %v134 = vpack.c.bf16 %v98, %v95
    %v135 = vpack.c.bf16 %v99, %v96
    %v136 = vpack.c.bf16 %v103, %v100
    %v137 = vpack.c.bf16 %v104, %v101
    %v138 = vpack.c.bf16 %v105, %v102
    %v139 = vpack.c.bf16 %v109, %v106
    %v140 = vpack.c.bf16 %v110, %v107
    %v141 = vpack.c.bf16 %v111, %v108
    %v142 = vpack.c.bf16 %v115, %v112
    %v143 = vpack.c.bf16 %v116, %v113
    %v144 = vpack.c.bf16 %v117, %v114
    %v145 = vpack.c.bf16 %v121, %v118
    %v146 = vpack.c.bf16 %v122, %v119
    %v147 = vpack.c.bf16 %v123, %v120
    %v148 = vld [vmem:[#allocation3] sm:$0xff]
    %v149 = vld [vmem:[#allocation3 + $0x8] sm:$0xf]
    %v150 = vld [vmem:[#allocation3 + $0xc] sm:$0xff]
    %v151 = vld [vmem:[#allocation3 + $0x14] sm:$0xf]
    %v152 = vld [vmem:[#allocation3 + $0x18] sm:$0xff]
    %v153 = vld [vmem:[#allocation3 + $0x20] sm:$0xf]
    %v154 = vld [vmem:[#allocation3 + $0x24] sm:$0xff]
    %v155 = vld [vmem:[#allocation3 + $0x2c] sm:$0xf]
    %v156 = vld [vmem:[#allocation3 + $0x30] sm:$0xff]
    %v157 = vld [vmem:[#allocation3 + $0x38] sm:$0xf]
    %v158 = vld [vmem:[#allocation3 + $0x3c] sm:$0xff]
    %v159 = vld [vmem:[#allocation3 + $0x44] sm:$0xf]
    %v160 = vld [vmem:[#allocation3 + $0x48] sm:$0xff]
    %v161 = vld [vmem:[#allocation3 + $0x50] sm:$0xf]
    %v162 = vld [vmem:[#allocation3 + $0x54] sm:$0xff]
    %v163 = vld [vmem:[#allocation3 + $0x5c] sm:$0xf]
    %v164 = vld [vmem:[#allocation3 + $0x60] sm:$0xff]
    %v165 = vld [vmem:[#allocation3 + $0x68] sm:$0xf]
    %v166 = vld [vmem:[#allocation3 + $0x6c] sm:$0xff]
    %v167 = vld [vmem:[#allocation3 + $0x74] sm:$0xf]
    %v168 = vld [vmem:[#allocation3 + $0x78] sm:$0xff]
    %v169 = vld [vmem:[#allocation3 + $0x80] sm:$0xf]
    %v170 = vld [vmem:[#allocation3 + $0x84] sm:$0xff]
    %v171 = vld [vmem:[#allocation3 + $0x8c] sm:$0xf]
    %v172 = vld [vmem:[#allocation3 + $0x90] sm:$0xff]
    %v173 = vld [vmem:[#allocation3 + $0x98] sm:$0xf]
    %v174 = vld [vmem:[#allocation3 + $0x9c] sm:$0xff]
    %v175 = vld [vmem:[#allocation3 + $0xa4] sm:$0xf]
    %v176 = vld [vmem:[#allocation3 + $0xa8] sm:$0xff]
    %v177 = vld [vmem:[#allocation3 + $0xb0] sm:$0xf]
    %v178 = vld [vmem:[#allocation3 + $0xb4] sm:$0xff]
    %v179 = vld [vmem:[#allocation3 + $0xbc] sm:$0xf]
    %v180 = vld [vmem:[#allocation3 + $0xc0] sm:$0xff]
    %v181 = vld [vmem:[#allocation3 + $0xc8] sm:$0xf]
    %v182 = vld [vmem:[#allocation3 + $0xcc] sm:$0xff]
    %v183 = vld [vmem:[#allocation3 + $0xd4] sm:$0xf]
    %v184 = vld [vmem:[#allocation3 + $0xd8] sm:$0xff]
    %v185 = vld [vmem:[#allocation3 + $0xe0] sm:$0xf]
    %v186 = vld [vmem:[#allocation3 + $0xe4] sm:$0xff]
    %v187 = vld [vmem:[#allocation3 + $0xec] sm:$0xf]
    %v188 = vld [vmem:[#allocation3 + $0xf0] sm:$0xff]
    %v189 = vld [vmem:[#allocation3 + $0xf8] sm:$0xf]
    %v190 = vld [vmem:[#allocation3 + $0xfc] sm:$0xff]
    %v191 = vld [vmem:[#allocation3 + $0x104] sm:$0xf]
    %v192 = vld [vmem:[#allocation3 + $0x108] sm:$0xff]
    %v193 = vld [vmem:[#allocation3 + $0x110] sm:$0xf]
    %v194 = vld [vmem:[#allocation3 + $0x114] sm:$0xff]
    %v195 = vld [vmem:[#allocation3 + $0x11c] sm:$0xf]
    %v196 = vld [vmem:[#allocation3 + $0x120] sm:$0xff]
    %v197 = vld [vmem:[#allocation3 + $0x128] sm:$0xf]
    %v198 = vld [vmem:[#allocation3 + $0x12c] sm:$0xff]
    %v199 = vld [vmem:[#allocation3 + $0x134] sm:$0xf]
    %v200 = vld [vmem:[#allocation3 + $0x138] sm:$0xff]
    %v201 = vld [vmem:[#allocation3 + $0x140] sm:$0xf]
    %v202 = vld [vmem:[#allocation3 + $0x144] sm:$0xff]
    %v203 = vld [vmem:[#allocation3 + $0x14c] sm:$0xf]
    %v204 = vld [vmem:[#allocation3 + $0x150] sm:$0xff]
    %v205 = vld [vmem:[#allocation3 + $0x158] sm:$0xf]
    %v206 = vld [vmem:[#allocation3 + $0x15c] sm:$0xff]
    %v207 = vld [vmem:[#allocation3 + $0x164] sm:$0xf]
    %v208 = vld [vmem:[#allocation3 + $0x168] sm:$0xff]
    %v209 = vld [vmem:[#allocation3 + $0x170] sm:$0xf]
    %v210 = vld [vmem:[#allocation3 + $0x174] sm:$0xff]
    %v211 = vld [vmem:[#allocation3 + $0x17c] sm:$0xf]
    %v212 = vld [vmem:[#allocation3 + $0x180] sm:$0xff]
    %v213 = vld [vmem:[#allocation3 + $0x188] sm:$0xf]
    %v214 = vld [vmem:[#allocation3 + $0x18c] sm:$0xff]
    %v215 = vld [vmem:[#allocation3 + $0x194] sm:$0xf]
    %v216 = vld [vmem:[#allocation3 + $0x198] sm:$0xff]
    %v217 = vld [vmem:[#allocation3 + $0x1a0] sm:$0xf]
    %v218 = vld [vmem:[#allocation3 + $0x1a4] sm:$0xff]
    %v219 = vld [vmem:[#allocation3 + $0x1ac] sm:$0xf]
    %v220 = vld [vmem:[#allocation3 + $0x1b0] sm:$0xff]
    %v221 = vld [vmem:[#allocation3 + $0x1b8] sm:$0xf]
    %v222 = vld [vmem:[#allocation3 + $0x1bc] sm:$0xff]
    %v223 = vld [vmem:[#allocation3 + $0x1c4] sm:$0xf]
    %v224 = vld [vmem:[#allocation3 + $0x1c8] sm:$0xff]
    %v225 = vld [vmem:[#allocation3 + $0x1d0] sm:$0xf]
    %v226 = vld [vmem:[#allocation3 + $0x1d4] sm:$0xff]
    %v227 = vld [vmem:[#allocation3 + $0x1dc] sm:$0xf]
    %v228 = vld [vmem:[#allocation3 + $0x1e0] sm:$0x11]
    %v229 = vld [vmem:[#allocation3 + $0x1e8] sm:$0x1]
    %v230 = vld [vmem:[%s2] sm:$0x7]
    %v232 = vlaneseq
    %v233 = vshrl.u32 %v232, 7
    %v234 = vsub.s32 0, %v233
    %v235 = vrot.slane %v230, %v234
    %v236 = vlaneseq
    %v237 = vshrl.u32 %v236, 7
    %v238 = vsub.s32 1, %v237
    %v239 = vrot.slane %v230, %v238
    %v240 = vlaneseq
    %v241 = vshrl.u32 %v240, 7
    %v242 = vsub.s32 2, %v241
    %v243 = vrot.slane %v230, %v242
    %v329 = vunpack.c.l.b16 %v148
    %v330 = vunpack.c.h.b16 %v148
    %v331 = vunpack.c.l.b16 %v149
    %v332 = vunpack.c.l.b16 %v150
    %v333 = vunpack.c.h.b16 %v150
    %v334 = vunpack.c.l.b16 %v151
    %v335 = vunpack.c.l.b16 %v152
    %v336 = vunpack.c.h.b16 %v152
    %v337 = vunpack.c.l.b16 %v153
    %v338 = vunpack.c.l.b16 %v154
    %v339 = vunpack.c.h.b16 %v154
    %v340 = vunpack.c.l.b16 %v155
    %v341 = vunpack.c.l.b16 %v156
    %v342 = vunpack.c.h.b16 %v156
    %v343 = vunpack.c.l.b16 %v157
    %v344 = vunpack.c.l.b16 %v158
    %v345 = vunpack.c.h.b16 %v158
    %v346 = vunpack.c.l.b16 %v159
    %v347 = vunpack.c.l.b16 %v160
    %v348 = vunpack.c.h.b16 %v160
    %v349 = vunpack.c.l.b16 %v161
    %v350 = vunpack.c.l.b16 %v162
    %v351 = vunpack.c.h.b16 %v162
    %v352 = vunpack.c.l.b16 %v163
    %v353 = vunpack.c.l.b16 %v164
    %v354 = vunpack.c.h.b16 %v164
    %v355 = vunpack.c.l.b16 %v165
    %v356 = vunpack.c.l.b16 %v166
    %v357 = vunpack.c.h.b16 %v166
    %v358 = vunpack.c.l.b16 %v167
    %v359 = vunpack.c.l.b16 %v168
    %v360 = vunpack.c.h.b16 %v168
    %v361 = vunpack.c.l.b16 %v169
    %v362 = vunpack.c.l.b16 %v170
    %v363 = vunpack.c.h.b16 %v170
    %v364 = vunpack.c.l.b16 %v171
    %v365 = vunpack.c.l.b16 %v172
    %v366 = vunpack.c.h.b16 %v172
    %v367 = vunpack.c.l.b16 %v173
    %v368 = vunpack.c.l.b16 %v174
    %v369 = vunpack.c.h.b16 %v174
    %v370 = vunpack.c.l.b16 %v175
    %v371 = vunpack.c.l.b16 %v176
    %v372 = vunpack.c.h.b16 %v176
    %v373 = vunpack.c.l.b16 %v177
    %v374 = vunpack.c.l.b16 %v178
    %v375 = vunpack.c.h.b16 %v178
    %v376 = vunpack.c.l.b16 %v179
    %v377 = vunpack.c.l.b16 %v180
    %v378 = vunpack.c.h.b16 %v180
    %v379 = vunpack.c.l.b16 %v181
    %v380 = vunpack.c.l.b16 %v182
    %v381 = vunpack.c.h.b16 %v182
    %v382 = vunpack.c.l.b16 %v183
    %v383 = vunpack.c.l.b16 %v184
    %v384 = vunpack.c.h.b16 %v184
    %v385 = vunpack.c.l.b16 %v185
    %v386 = vunpack.c.l.b16 %v186
    %v387 = vunpack.c.h.b16 %v186
    %v388 = vunpack.c.l.b16 %v187
    %v389 = vunpack.c.l.b16 %v188
    %v390 = vunpack.c.h.b16 %v188
    %v391 = vunpack.c.l.b16 %v189
    %v392 = vunpack.c.l.b16 %v190
    %v393 = vunpack.c.h.b16 %v190
    %v394 = vunpack.c.l.b16 %v191
    %v395 = vunpack.c.l.b16 %v192
    %v396 = vunpack.c.h.b16 %v192
    %v397 = vunpack.c.l.b16 %v193
    %v398 = vunpack.c.l.b16 %v194
    %v399 = vunpack.c.h.b16 %v194
    %v400 = vunpack.c.l.b16 %v195
    %v401 = vunpack.c.l.b16 %v196
    %v402 = vunpack.c.h.b16 %v196
    %v403 = vunpack.c.l.b16 %v197
    %v404 = vunpack.c.l.b16 %v198
    %v405 = vunpack.c.h.b16 %v198
    %v406 = vunpack.c.l.b16 %v199
    %v407 = vunpack.c.l.b16 %v200
    %v408 = vunpack.c.h.b16 %v200
    %v409 = vunpack.c.l.b16 %v201
    %v410 = vunpack.c.l.b16 %v202
    %v411 = vunpack.c.h.b16 %v202
    %v412 = vunpack.c.l.b16 %v203
    %v413 = vunpack.c.l.b16 %v204
    %v414 = vunpack.c.h.b16 %v204
    %v415 = vunpack.c.l.b16 %v205
    %v416 = vunpack.c.l.b16 %v206
    %v417 = vunpack.c.h.b16 %v206
    %v418 = vunpack.c.l.b16 %v207
    %v419 = vunpack.c.l.b16 %v208
    %v420 = vunpack.c.h.b16 %v208
    %v421 = vunpack.c.l.b16 %v209
    %v422 = vunpack.c.l.b16 %v210
    %v423 = vunpack.c.h.b16 %v210
    %v424 = vunpack.c.l.b16 %v211
    %v425 = vunpack.c.l.b16 %v212
    %v426 = vunpack.c.h.b16 %v212
    %v427 = vunpack.c.l.b16 %v213
    %v428 = vunpack.c.l.b16 %v214
    %v429 = vunpack.c.h.b16 %v214
    %v430 = vunpack.c.l.b16 %v215
    %v431 = vunpack.c.l.b16 %v216
    %v432 = vunpack.c.h.b16 %v216
    %v433 = vunpack.c.l.b16 %v217
    %v434 = vunpack.c.l.b16 %v218
    %v435 = vunpack.c.h.b16 %v218
    %v436 = vunpack.c.l.b16 %v219
    %v437 = vunpack.c.l.b16 %v220
    %v438 = vunpack.c.h.b16 %v220
    %v439 = vunpack.c.l.b16 %v221
    %v440 = vunpack.c.l.b16 %v222
    %v441 = vunpack.c.h.b16 %v222
    %v442 = vunpack.c.l.b16 %v223
    %v443 = vunpack.c.l.b16 %v224
    %v444 = vunpack.c.h.b16 %v224
    %v445 = vunpack.c.l.b16 %v225
    %v446 = vunpack.c.l.b16 %v226
    %v447 = vunpack.c.h.b16 %v226
    %v448 = vunpack.c.l.b16 %v227
    %v449 = vunpack.c.l.b16 %v228
    %v450 = vunpack.c.h.b16 %v228
    %v451 = vunpack.c.l.b16 %v229
    %v452 = vpack.c.b16 %v332, %v329
    %v453 = vpack.c.b16 %v333, %v330
    %v454 = vpack.c.b16 %v334, %v331
    %v455 = vpack.c.b16 %v338, %v335
    %v456 = vpack.c.b16 %v339, %v336
    %v457 = vpack.c.b16 %v340, %v337
    %v458 = vpack.c.b16 %v344, %v341
    %v459 = vpack.c.b16 %v345, %v342
    %v460 = vpack.c.b16 %v346, %v343
    %v461 = vpack.c.b16 %v350, %v347
    %v462 = vpack.c.b16 %v351, %v348
    %v463 = vpack.c.b16 %v352, %v349
    %v464 = vpack.c.b16 %v356, %v353
    %v465 = vpack.c.b16 %v357, %v354
    %v466 = vpack.c.b16 %v358, %v355
    %v467 = vpack.c.b16 %v362, %v359
    %v468 = vpack.c.b16 %v363, %v360
    %v469 = vpack.c.b16 %v364, %v361
    %v470 = vpack.c.b16 %v368, %v365
    %v471 = vpack.c.b16 %v369, %v366
    %v472 = vpack.c.b16 %v370, %v367
    %v473 = vpack.c.b16 %v374, %v371
    %v474 = vpack.c.b16 %v375, %v372
    %v475 = vpack.c.b16 %v376, %v373
    %v476 = vpack.c.b16 %v380, %v377
    %v477 = vpack.c.b16 %v381, %v378
    %v478 = vpack.c.b16 %v382, %v379
    %v479 = vpack.c.b16 %v386, %v383
    %v480 = vpack.c.b16 %v387, %v384
    %v481 = vpack.c.b16 %v388, %v385
    %v482 = vpack.c.b16 %v392, %v389
    %v483 = vpack.c.b16 %v393, %v390
    %v484 = vpack.c.b16 %v394, %v391
    %v485 = vpack.c.b16 %v398, %v395
    %v486 = vpack.c.b16 %v399, %v396
    %v487 = vpack.c.b16 %v400, %v397
    %v488 = vpack.c.b16 %v404, %v401
    %v489 = vpack.c.b16 %v405, %v402
    %v490 = vpack.c.b16 %v406, %v403
    %v491 = vpack.c.b16 %v410, %v407
    %v492 = vpack.c.b16 %v411, %v408
    %v493 = vpack.c.b16 %v412, %v409
    %v494 = vpack.c.b16 %v416, %v413
    %v495 = vpack.c.b16 %v417, %v414
    %v496 = vpack.c.b16 %v418, %v415
    %v497 = vpack.c.b16 %v422, %v419
    %v498 = vpack.c.b16 %v423, %v420
    %v499 = vpack.c.b16 %v424, %v421
    %v500 = vpack.c.b16 %v428, %v425
    %v501 = vpack.c.b16 %v429, %v426
    %v502 = vpack.c.b16 %v430, %v427
    %v503 = vpack.c.b16 %v434, %v431
    %v504 = vpack.c.b16 %v435, %v432
    %v505 = vpack.c.b16 %v436, %v433
    %v506 = vpack.c.b16 %v440, %v437
    %v507 = vpack.c.b16 %v441, %v438
    %v508 = vpack.c.b16 %v442, %v439
    %v509 = vpack.c.b16 %v446, %v443
    %v510 = vpack.c.b16 %v447, %v444
    %v511 = vpack.c.b16 %v448, %v445
    %v512 = vpack.c.b16 %v449, %v449
    %v513 = vpack.c.b16 %v450, %v450
    %v514 = vpack.c.b16 %v451, %v451
    %vm575 = vcmask 539648
    %v577 = vsel %vm575, %v126, 0
    %v580 = vsel %vm575, %v129, 0
    %v583 = vsel %vm575, %v132, 0
    %v586 = vsel %vm575, %v135, 0
    %v589 = vsel %vm575, %v138, 0
    %v592 = vsel %vm575, %v141, 0
    %v595 = vsel %vm575, %v144, 0
    %v598 = vsel %vm575, %v147, 0
    %vm600 = vcmask 1040384
    %v602 = vsel %vm600, %v512, 0
    %v605 = vsel %vm600, %v513, 0
    %v608 = vsel %vm600, %v514, 0
    %610 = vmatprep.subr.bf16.mxu0 %v453
    %611 = vmatpush1.bf16.msra.mxu0 %v452
    %612 = vmatprep.subr.bf16.mxu0 %v456
    %613 = vmatpush1.bf16.msra.mxu0 %v455
    %614 = vmatprep.subr.bf16.mxu0 %v459
    %615 = vmatpush1.bf16.msra.mxu0 %v458
    %616 = vmatprep.subr.bf16.mxu0 %v462
    %617 = vmatpush1.bf16.msra.mxu0 %v461
    %618 = vmatprep.subr.bf16.mxu0 %v465
    %619 = vmatpush1.bf16.msra.mxu0 %v464
    %620 = vmatprep.subr.bf16.mxu0 %v468
    %621 = vmatpush1.bf16.msra.mxu0 %v467
    %622 = vmatprep.subr.bf16.mxu0 %v471
    %623 = vmatpush1.bf16.msra.mxu0 %v470
    %624 = vmatprep.subr.bf16.mxu0 %v474
    %625 = vmatpush1.bf16.msra.mxu0 %v473
    %626 = vmatprep.subr.bf16.mxu0 %v477
    %627 = vmatpush1.bf16.msra.mxu0 %v476
    %628 = vmatprep.subr.bf16.mxu0 %v480
    %629 = vmatpush1.bf16.msra.mxu0 %v479
    %630 = vmatprep.subr.bf16.mxu0 %v483
    %631 = vmatpush1.bf16.msra.mxu0 %v482
    %632 = vmatprep.subr.bf16.mxu0 %v486
    %633 = vmatpush1.bf16.msra.mxu0 %v485
    %634 = vmatprep.subr.bf16.mxu0 %v489
    %635 = vmatpush1.bf16.msra.mxu0 %v488
    %636 = vmatprep.subr.bf16.mxu0 %v492
    %637 = vmatpush1.bf16.msra.mxu0 %v491
    %638 = vmatprep.subr.bf16.mxu0 %v495
    %639 = vmatpush1.bf16.msra.mxu0 %v494
    %640 = vmatprep.subr.bf16.mxu0 %v498
    %641 = vmatpush1.bf16.msra.mxu0 %v497
    %642 = vmatprep.mubr.bf16.mxu0 %v125
    %643 = vmatmul.mubr.bf16.gmra.mrb[0].mxu0 %v124
    %v644 = vpop.f32.mrb[0].mxu0
    %v645 = vadd.f32 %v235, %v644
    %v646 = vpop.f32.mrb[0].mxu0
    %v647 = vadd.f32 %v239, %v646
    %v648 = vpop.f32.mrb[0].mxu0
    %v649 = vadd.f32 %v235, %v648
    %v650 = vpop.f32.mrb[0].mxu0
    %v651 = vadd.f32 %v239, %v650
    %652 = vmatprep.mubr.bf16.mxu0 %v128
    %653 = vmatmul.mubr.bf16.gmra.mrb[0].mxu0 %v127
    %v654 = vpop.f32.mrb[0].mxu0
    %v655 = vadd.f32 %v235, %v654
    %v656 = vpop.f32.mrb[0].mxu0
    %v657 = vadd.f32 %v239, %v656
    %v658 = vpop.f32.mrb[0].mxu0
    %v659 = vadd.f32 %v235, %v658
    %v660 = vpop.f32.mrb[0].mxu0
    %v661 = vadd.f32 %v239, %v660
    %662 = vmatprep.mubr.bf16.mxu0 %v131
    %663 = vmatmul.mubr.bf16.gmra.mrb[0].mxu0 %v130
    %v664 = vpop.f32.mrb[0].mxu0
    %v665 = vadd.f32 %v235, %v664
    %v666 = vpop.f32.mrb[0].mxu0
    %v667 = vadd.f32 %v239, %v666
    %v668 = vpop.f32.mrb[0].mxu0
    %v669 = vadd.f32 %v235, %v668
    %v670 = vpop.f32.mrb[0].mxu0
    %v671 = vadd.f32 %v239, %v670
    %672 = vmatprep.mubr.bf16.mxu0 %v134
    %673 = vmatmul.mubr.bf16.gmra.mrb[0].mxu0 %v133
    %v674 = vpop.f32.mrb[0].mxu0
    %v675 = vadd.f32 %v235, %v674
    %v676 = vpop.f32.mrb[0].mxu0
    %v677 = vadd.f32 %v239, %v676
    %v678 = vpop.f32.mrb[0].mxu0
    %v679 = vadd.f32 %v235, %v678
    %v680 = vpop.f32.mrb[0].mxu0
    %v681 = vadd.f32 %v239, %v680
    %682 = vmatprep.mubr.bf16.mxu0 %v137
    %683 = vmatmul.mubr.bf16.gmra.mrb[0].mxu0 %v136
    %v684 = vpop.f32.mrb[0].mxu0
    %v685 = vadd.f32 %v235, %v684
    %v686 = vpop.f32.mrb[0].mxu0
    %v687 = vadd.f32 %v239, %v686
    %v688 = vpop.f32.mrb[0].mxu0
    %v689 = vadd.f32 %v235, %v688
    %v690 = vpop.f32.mrb[0].mxu0
    %v691 = vadd.f32 %v239, %v690
    %692 = vmatprep.mubr.bf16.mxu0 %v140
    %693 = vmatmul.mubr.bf16.gmra.mrb[0].mxu0 %v139
    %v694 = vpop.f32.mrb[0].mxu0
    %v695 = vadd.f32 %v235, %v694
    %v696 = vpop.f32.mrb[0].mxu0
    %v697 = vadd.f32 %v239, %v696
    %v698 = vpop.f32.mrb[0].mxu0
    %v699 = vadd.f32 %v235, %v698
    %v700 = vpop.f32.mrb[0].mxu0
    %v701 = vadd.f32 %v239, %v700
    %702 = vmatprep.mubr.bf16.mxu0 %v143
    %703 = vmatmul.mubr.bf16.gmra.mrb[0].mxu0 %v142
    %v704 = vpop.f32.mrb[0].mxu0
    %v705 = vadd.f32 %v235, %v704
    %v706 = vpop.f32.mrb[0].mxu0
    %v707 = vadd.f32 %v239, %v706
    %v708 = vpop.f32.mrb[0].mxu0
    %v709 = vadd.f32 %v235, %v708
    %v710 = vpop.f32.mrb[0].mxu0
    %v711 = vadd.f32 %v239, %v710
    %712 = vmatprep.mubr.bf16.mxu0 %v146
    %713 = vmatmul.mubr.bf16.gmra.mrb[0].mxu0 %v145
    %v714 = vpop.f32.mrb[0].mxu0
    %v715 = vadd.f32 %v235, %v714
    %v716 = vpop.f32.mrb[0].mxu0
    %v717 = vadd.f32 %v239, %v716
    %v718 = vpop.f32.mrb[0].mxu0
    %v719 = vadd.f32 %v235, %v718
    %v720 = vpop.f32.mrb[0].mxu0
    %v721 = vadd.f32 %v239, %v720
    %722 = vdwg.mxu0
    %723 = vmatprep.subr.bf16.mxu0 %v501
    %724 = vmatpush1.bf16.msra.mxu0 %v500
    %725 = vmatprep.subr.bf16.mxu0 %v504
    %726 = vmatpush1.bf16.msra.mxu0 %v503
    %727 = vmatprep.subr.bf16.mxu0 %v507
    %728 = vmatpush1.bf16.msra.mxu0 %v506
    %729 = vmatprep.subr.bf16.mxu0 %v510
    %730 = vmatpush1.bf16.msra.mxu0 %v509
    %731 = vmatprep.subr.bf16.mxu0 %v605
    %732 = vmatpush1.bf16.msra.mxu0 %v602
    %733 = vmatprep.subr.bf16.mxu0 0
    %734 = vmatpush1.bf16.msra.mxu0 0
    %735 = vmatprep.subr.bf16.mxu0 0
    %736 = vmatpush1.bf16.msra.mxu0 0
    %737 = vmatprep.subr.bf16.mxu0 0
    %738 = vmatpush1.bf16.msra.mxu0 0
    %739 = vmatprep.subr.bf16.mxu0 0
    %740 = vmatpush1.bf16.msra.mxu0 0
    %741 = vmatprep.subr.bf16.mxu0 0
    %742 = vmatpush1.bf16.msra.mxu0 0
    %743 = vmatprep.subr.bf16.mxu0 0
    %744 = vmatpush1.bf16.msra.mxu0 0
    %745 = vmatprep.subr.bf16.mxu0 0
    %746 = vmatpush1.bf16.msra.mxu0 0
    %747 = vmatprep.subr.bf16.mxu0 0
    %748 = vmatpush1.bf16.msra.mxu0 0
    %749 = vmatprep.subr.bf16.mxu0 0
    %750 = vmatpush1.bf16.msra.mxu0 0
    %751 = vmatprep.subr.bf16.mxu0 0
    %752 = vmatpush1.bf16.msra.mxu0 0
    %753 = vmatprep.subr.bf16.mxu0 0
    %754 = vmatpush1.bf16.msra.mxu0 0
    %755 = vmatprep.mubr.bf16.mxu0 0
    %756 = vmatmul.mubr.bf16.gmra.mrb[0].mxu0 %v577
    %v757 = vpop.f32.mrb[0].mxu0
    %v758 = vadd.f32 %v645, %v757
    %v759 = vpop.f32.mrb[0].mxu0
    %v760 = vadd.f32 %v647, %v759
    %v761 = vpop.f32.mrb[0].mxu0
    %v762 = vadd.f32 %v649, %v761
    %v763 = vpop.f32.mrb[0].mxu0
    %v764 = vadd.f32 %v651, %v763
    %765 = vmatprep.mubr.bf16.mxu0 0
    %766 = vmatmul.mubr.bf16.gmra.mrb[0].mxu0 %v580
    %v767 = vpop.f32.mrb[0].mxu0
    %v768 = vadd.f32 %v655, %v767
    %v769 = vpop.f32.mrb[0].mxu0
    %v770 = vadd.f32 %v657, %v769
    %v771 = vpop.f32.mrb[0].mxu0
    %v772 = vadd.f32 %v659, %v771
    %v773 = vpop.f32.mrb[0].mxu0
    %v774 = vadd.f32 %v661, %v773
    %775 = vmatprep.mubr.bf16.mxu0 0
    %776 = vmatmul.mubr.bf16.gmra.mrb[0].mxu0 %v583
    %v777 = vpop.f32.mrb[0].mxu0
    %v778 = vadd.f32 %v665, %v777
    %v779 = vpop.f32.mrb[0].mxu0
    %v780 = vadd.f32 %v667, %v779
    %v781 = vpop.f32.mrb[0].mxu0
    %v782 = vadd.f32 %v669, %v781
    %v783 = vpop.f32.mrb[0].mxu0
    %v784 = vadd.f32 %v671, %v783
    %785 = vmatprep.mubr.bf16.mxu0 0
    %786 = vmatmul.mubr.bf16.gmra.mrb[0].mxu0 %v586
    %v787 = vpop.f32.mrb[0].mxu0
    %v788 = vadd.f32 %v675, %v787
    %v789 = vpop.f32.mrb[0].mxu0
    %v790 = vadd.f32 %v677, %v789
    %v791 = vpop.f32.mrb[0].mxu0
    %v792 = vadd.f32 %v679, %v791
    %v793 = vpop.f32.mrb[0].mxu0
    %v794 = vadd.f32 %v681, %v793
    %795 = vmatprep.mubr.bf16.mxu0 0
    %796 = vmatmul.mubr.bf16.gmra.mrb[0].mxu0 %v589
    %v797 = vpop.f32.mrb[0].mxu0
    %v798 = vadd.f32 %v685, %v797
    %v799 = vpop.f32.mrb[0].mxu0
    %v800 = vadd.f32 %v687, %v799
    %v801 = vpop.f32.mrb[0].mxu0
    %v802 = vadd.f32 %v689, %v801
    %v803 = vpop.f32.mrb[0].mxu0
    %v804 = vadd.f32 %v691, %v803
    %805 = vmatprep.mubr.bf16.mxu0 0
    %806 = vmatmul.mubr.bf16.gmra.mrb[0].mxu0 %v592
    %v807 = vpop.f32.mrb[0].mxu0
    %v808 = vadd.f32 %v695, %v807
    %v809 = vpop.f32.mrb[0].mxu0
    %v810 = vadd.f32 %v697, %v809
    %v811 = vpop.f32.mrb[0].mxu0
    %v812 = vadd.f32 %v699, %v811
    %v813 = vpop.f32.mrb[0].mxu0
    %v814 = vadd.f32 %v701, %v813
    %815 = vmatprep.mubr.bf16.mxu0 0
    %816 = vmatmul.mubr.bf16.gmra.mrb[0].mxu0 %v595
    %v817 = vpop.f32.mrb[0].mxu0
    %v818 = vadd.f32 %v705, %v817
    %v819 = vpop.f32.mrb[0].mxu0
    %v820 = vadd.f32 %v707, %v819
    %v821 = vpop.f32.mrb[0].mxu0
    %v822 = vadd.f32 %v709, %v821
    %v823 = vpop.f32.mrb[0].mxu0
    %v824 = vadd.f32 %v711, %v823
    %825 = vmatprep.mubr.bf16.mxu0 0
    %826 = vmatmul.mubr.bf16.gmra.mrb[0].mxu0 %v598
    %v827 = vpop.f32.mrb[0].mxu0
    %v828 = vadd.f32 %v715, %v827
    %v829 = vpop.f32.mrb[0].mxu0
    %v830 = vadd.f32 %v717, %v829
    %v831 = vpop.f32.mrb[0].mxu0
    %v832 = vadd.f32 %v719, %v831
    %v833 = vpop.f32.mrb[0].mxu0
    %v834 = vadd.f32 %v721, %v833
    %835 = vdwg.mxu0
    %836 = vmatprep.subr.bf16.mxu0 0
    %837 = vmatpush1.bf16.msra.mxu0 %v454
    %838 = vmatprep.subr.bf16.mxu0 0
    %839 = vmatpush1.bf16.msra.mxu0 %v457
    %840 = vmatprep.subr.bf16.mxu0 0
    %841 = vmatpush1.bf16.msra.mxu0 %v460
    %842 = vmatprep.subr.bf16.mxu0 0
    %843 = vmatpush1.bf16.msra.mxu0 %v463
    %844 = vmatprep.subr.bf16.mxu0 0
    %845 = vmatpush1.bf16.msra.mxu0 %v466
    %846 = vmatprep.subr.bf16.mxu0 0
    %847 = vmatpush1.bf16.msra.mxu0 %v469
    %848 = vmatprep.subr.bf16.mxu0 0
    %849 = vmatpush1.bf16.msra.mxu0 %v472
    %850 = vmatprep.subr.bf16.mxu0 0
    %851 = vmatpush1.bf16.msra.mxu0 %v475
    %852 = vmatprep.subr.bf16.mxu0 0
    %853 = vmatpush1.bf16.msra.mxu0 %v478
    %854 = vmatprep.subr.bf16.mxu0 0
    %855 = vmatpush1.bf16.msra.mxu0 %v481
    %856 = vmatprep.subr.bf16.mxu0 0
    %857 = vmatpush1.bf16.msra.mxu0 %v484
    %858 = vmatprep.subr.bf16.mxu0 0
    %859 = vmatpush1.bf16.msra.mxu0 %v487
    %860 = vmatprep.subr.bf16.mxu0 0
    %861 = vmatpush1.bf16.msra.mxu0 %v490
    %862 = vmatprep.subr.bf16.mxu0 0
    %863 = vmatpush1.bf16.msra.mxu0 %v493
    %864 = vmatprep.subr.bf16.mxu0 0
    %865 = vmatpush1.bf16.msra.mxu0 %v496
    %866 = vmatprep.subr.bf16.mxu0 0
    %867 = vmatpush1.bf16.msra.mxu0 %v499
    %868 = vmatprep.mubr.bf16.mxu0 %v125
    %869 = vmatmul.mubr.bf16.gmra.mrb[0].mxu0 %v124
    %v870 = vpop.f32.mrb[0].mxu0
    %v871 = vadd.f32 %v243, %v870
    %v872 = vpop.f32.mrb[0].mxu0
    %v873 = vpop.f32.mrb[0].mxu0
    %v874 = vadd.f32 %v243, %v873
    %v875 = vpop.f32.mrb[0].mxu0
    %876 = vmatprep.mubr.bf16.mxu0 %v128
    %877 = vmatmul.mubr.bf16.gmra.mrb[0].mxu0 %v127
    %v878 = vpop.f32.mrb[0].mxu0
    %v879 = vadd.f32 %v243, %v878
    %v880 = vpop.f32.mrb[0].mxu0
    %v881 = vpop.f32.mrb[0].mxu0
    %v882 = vadd.f32 %v243, %v881
    %v883 = vpop.f32.mrb[0].mxu0
    %884 = vmatprep.mubr.bf16.mxu0 %v131
    %885 = vmatmul.mubr.bf16.gmra.mrb[0].mxu0 %v130
    %v886 = vpop.f32.mrb[0].mxu0
    %v887 = vadd.f32 %v243, %v886
    %v888 = vpop.f32.mrb[0].mxu0
    %v889 = vpop.f32.mrb[0].mxu0
    %v890 = vadd.f32 %v243, %v889
    %v891 = vpop.f32.mrb[0].mxu0
    %892 = vmatprep.mubr.bf16.mxu0 %v134
    %893 = vmatmul.mubr.bf16.gmra.mrb[0].mxu0 %v133
    %v894 = vpop.f32.mrb[0].mxu0
    %v895 = vadd.f32 %v243, %v894
    %v896 = vpop.f32.mrb[0].mxu0
    %v897 = vpop.f32.mrb[0].mxu0
    %v898 = vadd.f32 %v243, %v897
    %v899 = vpop.f32.mrb[0].mxu0
    %900 = vmatprep.mubr.bf16.mxu0 %v137
    %901 = vmatmul.mubr.bf16.gmra.mrb[0].mxu0 %v136
    %v902 = vpop.f32.mrb[0].mxu0
    %v903 = vadd.f32 %v243, %v902
    %v904 = vpop.f32.mrb[0].mxu0
    %v905 = vpop.f32.mrb[0].mxu0
    %v906 = vadd.f32 %v243, %v905
    %v907 = vpop.f32.mrb[0].mxu0
    %908 = vmatprep.mubr.bf16.mxu0 %v140
    %909 = vmatmul.mubr.bf16.gmra.mrb[0].mxu0 %v139
    %v910 = vpop.f32.mrb[0].mxu0
    %v911 = vadd.f32 %v243, %v910
    %v912 = vpop.f32.mrb[0].mxu0
    %v913 = vpop.f32.mrb[0].mxu0
    %v914 = vadd.f32 %v243, %v913
    %v915 = vpop.f32.mrb[0].mxu0
    %916 = vmatprep.mubr.bf16.mxu0 %v143
    %917 = vmatmul.mubr.bf16.gmra.mrb[0].mxu0 %v142
    %v918 = vpop.f32.mrb[0].mxu0
    %v919 = vadd.f32 %v243, %v918
    %v920 = vpop.f32.mrb[0].mxu0
    %v921 = vpop.f32.mrb[0].mxu0
    %v922 = vadd.f32 %v243, %v921
    %v923 = vpop.f32.mrb[0].mxu0
    %924 = vmatprep.mubr.bf16.mxu0 %v146
    %925 = vmatmul.mubr.bf16.gmra.mrb[0].mxu0 %v145
    %v926 = vpop.f32.mrb[0].mxu0
    %v927 = vadd.f32 %v243, %v926
    %v928 = vpop.f32.mrb[0].mxu0
    %v929 = vpop.f32.mrb[0].mxu0
    %v930 = vadd.f32 %v243, %v929
    %v931 = vpop.f32.mrb[0].mxu0
    %932 = vdwg.mxu0
    %933 = vmatprep.subr.bf16.mxu0 0
    %934 = vmatpush1.bf16.msra.mxu0 %v502
    %935 = vmatprep.subr.bf16.mxu0 0
    %936 = vmatpush1.bf16.msra.mxu0 %v505
    %937 = vmatprep.subr.bf16.mxu0 0
    %938 = vmatpush1.bf16.msra.mxu0 %v508
    %939 = vmatprep.subr.bf16.mxu0 0
    %940 = vmatpush1.bf16.msra.mxu0 %v511
    %941 = vmatprep.subr.bf16.mxu0 0
    %942 = vmatpush1.bf16.msra.mxu0 %v608
    %943 = vmatprep.subr.bf16.mxu0 0
    %944 = vmatpush1.bf16.msra.mxu0 0
    %945 = vmatprep.subr.bf16.mxu0 0
    %946 = vmatpush1.bf16.msra.mxu0 0
    %947 = vmatprep.subr.bf16.mxu0 0
    %948 = vmatpush1.bf16.msra.mxu0 0
    %949 = vmatprep.subr.bf16.mxu0 0
    %950 = vmatpush1.bf16.msra.mxu0 0
    %951 = vmatprep.subr.bf16.mxu0 0
    %952 = vmatpush1.bf16.msra.mxu0 0
    %953 = vmatprep.subr.bf16.mxu0 0
    %954 = vmatpush1.bf16.msra.mxu0 0
    %955 = vmatprep.subr.bf16.mxu0 0
    %956 = vmatpush1.bf16.msra.mxu0 0
    %957 = vmatprep.subr.bf16.mxu0 0
    %958 = vmatpush1.bf16.msra.mxu0 0
    %959 = vmatprep.subr.bf16.mxu0 0
    %960 = vmatpush1.bf16.msra.mxu0 0
    %961 = vmatprep.subr.bf16.mxu0 0
    %962 = vmatpush1.bf16.msra.mxu0 0
    %963 = vmatprep.subr.bf16.mxu0 0
    %964 = vmatpush1.bf16.msra.mxu0 0
    %965 = vmatprep.mubr.bf16.mxu0 0
    %966 = vmatmul.mubr.bf16.gmra.mrb[0].mxu0 %v577
    %v967 = vpop.f32.mrb[0].mxu0
    %v968 = vadd.f32 %v871, %v967
    %v969 = vpop.f32.mrb[0].mxu0
    %v970 = vpop.f32.mrb[0].mxu0
    %v971 = vadd.f32 %v874, %v970
    %v972 = vpop.f32.mrb[0].mxu0
    %973 = vmatprep.mubr.bf16.mxu0 0
    %974 = vmatmul.mubr.bf16.gmra.mrb[0].mxu0 %v580
    %v975 = vpop.f32.mrb[0].mxu0
    %v976 = vadd.f32 %v879, %v975
    %v977 = vpop.f32.mrb[0].mxu0
    %v978 = vpop.f32.mrb[0].mxu0
    %v979 = vadd.f32 %v882, %v978
    %v980 = vpop.f32.mrb[0].mxu0
    %981 = vmatprep.mubr.bf16.mxu0 0
    %982 = vmatmul.mubr.bf16.gmra.mrb[0].mxu0 %v583
    %v983 = vpop.f32.mrb[0].mxu0
    %v984 = vadd.f32 %v887, %v983
    %v985 = vpop.f32.mrb[0].mxu0
    %v986 = vpop.f32.mrb[0].mxu0
    %v987 = vadd.f32 %v890, %v986
    %v988 = vpop.f32.mrb[0].mxu0
    %989 = vmatprep.mubr.bf16.mxu0 0
    %990 = vmatmul.mubr.bf16.gmra.mrb[0].mxu0 %v586
    %v991 = vpop.f32.mrb[0].mxu0
    %v992 = vadd.f32 %v895, %v991
    %v993 = vpop.f32.mrb[0].mxu0
    %v994 = vpop.f32.mrb[0].mxu0
    %v995 = vadd.f32 %v898, %v994
    %v996 = vpop.f32.mrb[0].mxu0
    %997 = vmatprep.mubr.bf16.mxu0 0
    %998 = vmatmul.mubr.bf16.gmra.mrb[0].mxu0 %v589
    %v999 = vpop.f32.mrb[0].mxu0
    %v1000 = vadd.f32 %v903, %v999
    %v1001 = vpop.f32.mrb[0].mxu0
    %v1002 = vpop.f32.mrb[0].mxu0
    %v1003 = vadd.f32 %v906, %v1002
    %v1004 = vpop.f32.mrb[0].mxu0
    %1005 = vmatprep.mubr.bf16.mxu0 0
    %1006 = vmatmul.mubr.bf16.gmra.mrb[0].mxu0 %v592
    %v1007 = vpop.f32.mrb[0].mxu0
    %v1008 = vadd.f32 %v911, %v1007
    %v1009 = vpop.f32.mrb[0].mxu0
    %v1010 = vpop.f32.mrb[0].mxu0
    %v1011 = vadd.f32 %v914, %v1010
    %v1012 = vpop.f32.mrb[0].mxu0
    %1013 = vmatprep.mubr.bf16.mxu0 0
    %1014 = vmatmul.mubr.bf16.gmra.mrb[0].mxu0 %v595
    %v1015 = vpop.f32.mrb[0].mxu0
    %v1016 = vadd.f32 %v919, %v1015
    %v1017 = vpop.f32.mrb[0].mxu0
    %v1018 = vpop.f32.mrb[0].mxu0
    %v1019 = vadd.f32 %v922, %v1018
    %v1020 = vpop.f32.mrb[0].mxu0
    %1021 = vmatprep.mubr.bf16.mxu0 0
    %1022 = vmatmul.mubr.bf16.gmra.mrb[0].mxu0 %v598
    %v1023 = vpop.f32.mrb[0].mxu0
    %v1024 = vadd.f32 %v927, %v1023
    %v1025 = vpop.f32.mrb[0].mxu0
    %v1026 = vpop.f32.mrb[0].mxu0
    %v1027 = vadd.f32 %v930, %v1026
    %v1028 = vpop.f32.mrb[0].mxu0
    %1029 = vdwg.mxu0
    %vm1030 = vcmp.gt.f32.partialorder %v758, 0.0
    %vm1031 = vcmp.gt.f32.partialorder %v760, 0.0
    %vm1032 = vcmp.gt.f32.partialorder %v968, 0.0
    %vm1033 = vcmp.gt.f32.partialorder %v762, 0.0
    %vm1034 = vcmp.gt.f32.partialorder %v764, 0.0
    %vm1035 = vcmp.gt.f32.partialorder %v971, 0.0
    %vm1036 = vcmp.gt.f32.partialorder %v768, 0.0
    %vm1037 = vcmp.gt.f32.partialorder %v770, 0.0
    %vm1038 = vcmp.gt.f32.partialorder %v976, 0.0
    %vm1039 = vcmp.gt.f32.partialorder %v772, 0.0
    %vm1040 = vcmp.gt.f32.partialorder %v774, 0.0
    %vm1041 = vcmp.gt.f32.partialorder %v979, 0.0
    %vm1042 = vcmp.gt.f32.partialorder %v778, 0.0
    %vm1043 = vcmp.gt.f32.partialorder %v780, 0.0
    %vm1044 = vcmp.gt.f32.partialorder %v984, 0.0
    %vm1045 = vcmp.gt.f32.partialorder %v782, 0.0
    %vm1046 = vcmp.gt.f32.partialorder %v784, 0.0
    %vm1047 = vcmp.gt.f32.partialorder %v987, 0.0
    %vm1048 = vcmp.gt.f32.partialorder %v788, 0.0
    %vm1049 = vcmp.gt.f32.partialorder %v790, 0.0
    %vm1050 = vcmp.gt.f32.partialorder %v992, 0.0
    %vm1051 = vcmp.gt.f32.partialorder %v792, 0.0
    %vm1052 = vcmp.gt.f32.partialorder %v794, 0.0
    %vm1053 = vcmp.gt.f32.partialorder %v995, 0.0
    %vm1054 = vcmp.gt.f32.partialorder %v798, 0.0
    %vm1055 = vcmp.gt.f32.partialorder %v800, 0.0
    %vm1056 = vcmp.gt.f32.partialorder %v1000, 0.0
    %vm1057 = vcmp.gt.f32.partialorder %v802, 0.0
    %vm1058 = vcmp.gt.f32.partialorder %v804, 0.0
    %vm1059 = vcmp.gt.f32.partialorder %v1003, 0.0
    %vm1060 = vcmp.gt.f32.partialorder %v808, 0.0
    %vm1061 = vcmp.gt.f32.partialorder %v810, 0.0
    %vm1062 = vcmp.gt.f32.partialorder %v1008, 0.0
    %vm1063 = vcmp.gt.f32.partialorder %v812, 0.0
    %vm1064 = vcmp.gt.f32.partialorder %v814, 0.0
    %vm1065 = vcmp.gt.f32.partialorder %v1011, 0.0
    %vm1066 = vcmp.gt.f32.partialorder %v818, 0.0
    %vm1067 = vcmp.gt.f32.partialorder %v820, 0.0
    %vm1068 = vcmp.gt.f32.partialorder %v1016, 0.0
    %vm1069 = vcmp.gt.f32.partialorder %v822, 0.0
    %vm1070 = vcmp.gt.f32.partialorder %v824, 0.0
    %vm1071 = vcmp.gt.f32.partialorder %v1019, 0.0
    %vm1072 = vcmp.gt.f32.partialorder %v828, 0.0
    %vm1073 = vcmp.gt.f32.partialorder %v830, 0.0
    %vm1074 = vcmp.gt.f32.partialorder %v1024, 0.0
    %vm1075 = vcmp.gt.f32.partialorder %v832, 0.0
    %vm1076 = vcmp.gt.f32.partialorder %v834, 0.0
    %vm1077 = vcmp.gt.f32.partialorder %v1027, 0.0
    %v1078 = vmul.f32 %v758, 0.2
    %v1079 = vmul.f32 %v760, 0.2
    %v1080 = vmul.f32 %v968, 0.2
    %v1081 = vmul.f32 %v762, 0.2
    %v1082 = vmul.f32 %v764, 0.2
    %v1083 = vmul.f32 %v971, 0.2
    %v1084 = vmul.f32 %v768, 0.2
    %v1085 = vmul.f32 %v770, 0.2
    %v1086 = vmul.f32 %v976, 0.2
    %v1087 = vmul.f32 %v772, 0.2
    %v1088 = vmul.f32 %v774, 0.2
    %v1089 = vmul.f32 %v979, 0.2
    %v1090 = vmul.f32 %v778, 0.2
    %v1091 = vmul.f32 %v780, 0.2
    %v1092 = vmul.f32 %v984, 0.2
    %v1093 = vmul.f32 %v782, 0.2
    %v1094 = vmul.f32 %v784, 0.2
    %v1095 = vmul.f32 %v987, 0.2
    %v1096 = vmul.f32 %v788, 0.2
    %v1097 = vmul.f32 %v790, 0.2
    %v1098 = vmul.f32 %v992, 0.2
    %v1099 = vmul.f32 %v792, 0.2
    %v1100 = vmul.f32 %v794, 0.2
    %v1101 = vmul.f32 %v995, 0.2
    %v1102 = vmul.f32 %v798, 0.2
    %v1103 = vmul.f32 %v800, 0.2
    %v1104 = vmul.f32 %v1000, 0.2
    %v1105 = vmul.f32 %v802, 0.2
    %v1106 = vmul.f32 %v804, 0.2
    %v1107 = vmul.f32 %v1003, 0.2
    %v1108 = vmul.f32 %v808, 0.2
    %v1109 = vmul.f32 %v810, 0.2
    %v1110 = vmul.f32 %v1008, 0.2
    %v1111 = vmul.f32 %v812, 0.2
    %v1112 = vmul.f32 %v814, 0.2
    %v1113 = vmul.f32 %v1011, 0.2
    %v1114 = vmul.f32 %v818, 0.2
    %v1115 = vmul.f32 %v820, 0.2
    %v1116 = vmul.f32 %v1016, 0.2
    %v1117 = vmul.f32 %v822, 0.2
    %v1118 = vmul.f32 %v824, 0.2
    %v1119 = vmul.f32 %v1019, 0.2
    %v1120 = vmul.f32 %v828, 0.2
    %v1121 = vmul.f32 %v830, 0.2
    %v1122 = vmul.f32 %v1024, 0.2
    %v1123 = vmul.f32 %v832, 0.2
    %v1124 = vmul.f32 %v834, 0.2
    %v1125 = vmul.f32 %v1027, 0.2
    %v1126 = vsel %vm1030, %v758, %v1078
    %v1127 = vsel %vm1031, %v760, %v1079
    %v1128 = vsel %vm1032, %v968, %v1080
    %v1129 = vsel %vm1033, %v762, %v1081
    %v1130 = vsel %vm1034, %v764, %v1082
    %v1131 = vsel %vm1035, %v971, %v1083
    %v1132 = vsel %vm1036, %v768, %v1084
    %v1133 = vsel %vm1037, %v770, %v1085
    %v1134 = vsel %vm1038, %v976, %v1086
    %v1135 = vsel %vm1039, %v772, %v1087
    %v1136 = vsel %vm1040, %v774, %v1088
    %v1137 = vsel %vm1041, %v979, %v1089
    %v1138 = vsel %vm1042, %v778, %v1090
    %v1139 = vsel %vm1043, %v780, %v1091
    %v1140 = vsel %vm1044, %v984, %v1092
    %v1141 = vsel %vm1045, %v782, %v1093
    %v1142 = vsel %vm1046, %v784, %v1094
    %v1143 = vsel %vm1047, %v987, %v1095
    %v1144 = vsel %vm1048, %v788, %v1096
    %v1145 = vsel %vm1049, %v790, %v1097
    %v1146 = vsel %vm1050, %v992, %v1098
    %v1147 = vsel %vm1051, %v792, %v1099
    %v1148 = vsel %vm1052, %v794, %v1100
    %v1149 = vsel %vm1053, %v995, %v1101
    %v1150 = vsel %vm1054, %v798, %v1102
    %v1151 = vsel %vm1055, %v800, %v1103
    %v1152 = vsel %vm1056, %v1000, %v1104
    %v1153 = vsel %vm1057, %v802, %v1105
    %v1154 = vsel %vm1058, %v804, %v1106
    %v1155 = vsel %vm1059, %v1003, %v1107
    %v1156 = vsel %vm1060, %v808, %v1108
    %v1157 = vsel %vm1061, %v810, %v1109
    %v1158 = vsel %vm1062, %v1008, %v1110
    %v1159 = vsel %vm1063, %v812, %v1111
    %v1160 = vsel %vm1064, %v814, %v1112
    %v1161 = vsel %vm1065, %v1011, %v1113
    %v1162 = vsel %vm1066, %v818, %v1114
    %v1163 = vsel %vm1067, %v820, %v1115
    %v1164 = vsel %vm1068, %v1016, %v1116
    %v1165 = vsel %vm1069, %v822, %v1117
    %v1166 = vsel %vm1070, %v824, %v1118
    %v1167 = vsel %vm1071, %v1019, %v1119
    %v1168 = vsel %vm1072, %v828, %v1120
    %v1169 = vsel %vm1073, %v830, %v1121
    %v1170 = vsel %vm1074, %v1024, %v1122
    %v1171 = vsel %vm1075, %v832, %v1123
    %v1172 = vsel %vm1076, %v834, %v1124
    %v1173 = vsel %vm1077, %v1027, %v1125
    %v1174 = vpack.c.bf16 %v1129, %v1126
    %v1175 = vpack.c.bf16 %v1130, %v1127
    %v1176 = vpack.c.bf16 %v1131, %v1128
    %v1177 = vpack.c.bf16 %v1135, %v1132
    %v1178 = vpack.c.bf16 %v1136, %v1133
    %v1179 = vpack.c.bf16 %v1137, %v1134
    %v1180 = vpack.c.bf16 %v1141, %v1138
    %v1181 = vpack.c.bf16 %v1142, %v1139
    %v1182 = vpack.c.bf16 %v1143, %v1140
    %v1183 = vpack.c.bf16 %v1147, %v1144
    %v1184 = vpack.c.bf16 %v1148, %v1145
    %v1185 = vpack.c.bf16 %v1149, %v1146
    %v1186 = vpack.c.bf16 %v1153, %v1150
    %v1187 = vpack.c.bf16 %v1154, %v1151
    %v1188 = vpack.c.bf16 %v1155, %v1152
    %v1189 = vpack.c.bf16 %v1159, %v1156
    %v1190 = vpack.c.bf16 %v1160, %v1157
    %v1191 = vpack.c.bf16 %v1161, %v1158
    %v1192 = vpack.c.bf16 %v1165, %v1162
    %v1193 = vpack.c.bf16 %v1166, %v1163
    %v1194 = vpack.c.bf16 %v1167, %v1164
    %v1195 = vpack.c.bf16 %v1171, %v1168
    %v1196 = vpack.c.bf16 %v1172, %v1169
    %v1197 = vpack.c.bf16 %v1173, %v1170
    %v1198 = vld [vmem:[%s3] sm:$0xff]
    %v1199 = vld [vmem:[%s3 + $0x8] sm:$0xff]
    %v1200 = vld [vmem:[%s3 + $0x10] sm:$0xf]
    %v1201 = vld [vmem:[%s3 + $0x14] sm:$0xff]
    %v1202 = vld [vmem:[%s3 + $0x1c] sm:$0xff]
    %v1203 = vld [vmem:[%s3 + $0x24] sm:$0xf]
    %v1204 = vld [vmem:[%s3 + $0x28] sm:$0xff]
    %v1205 = vld [vmem:[%s3 + $0x30] sm:$0xff]
    %v1206 = vld [vmem:[%s3 + $0x38] sm:$0xf]
    %v1207 = vld [vmem:[%s3 + $0x3c] sm:$0xff]
    %v1208 = vld [vmem:[%s3 + $0x44] sm:$0xff]
    %v1209 = vld [vmem:[%s3 + $0x4c] sm:$0xf]
    %v1210 = vld [vmem:[%s3 + $0x50] sm:$0xff]
    %v1211 = vld [vmem:[%s3 + $0x58] sm:$0xff]
    %v1212 = vld [vmem:[%s3 + $0x60] sm:$0xf]
    %v1213 = vld [vmem:[%s3 + $0x64] sm:$0xff]
    %v1214 = vld [vmem:[%s3 + $0x6c] sm:$0xff]
    %v1215 = vld [vmem:[%s3 + $0x74] sm:$0xf]
    %v1216 = vld [vmem:[%s3 + $0x78] sm:$0xff]
    %v1217 = vld [vmem:[%s3 + $0x80] sm:$0xff]
    %v1218 = vld [vmem:[%s3 + $0x88] sm:$0xf]
    %v1219 = vld [vmem:[%s3 + $0x8c] sm:$0xff]
    %v1220 = vld [vmem:[%s3 + $0x94] sm:$0xff]
    %v1221 = vld [vmem:[%s3 + $0x9c] sm:$0xf]
    %v1222 = vld [vmem:[%s3 + $0xa0] sm:$0xff]
    %v1223 = vld [vmem:[%s3 + $0xa8] sm:$0xff]
    %v1224 = vld [vmem:[%s3 + $0xb0] sm:$0xf]
    %v1225 = vld [vmem:[%s3 + $0xb4] sm:$0xff]
    %v1226 = vld [vmem:[%s3 + $0xbc] sm:$0xff]
    %v1227 = vld [vmem:[%s3 + $0xc4] sm:$0xf]
    %v1228 = vld [vmem:[%s3 + $0xc8] sm:$0xff]
    %v1229 = vld [vmem:[%s3 + $0xd0] sm:$0xff]
    %v1230 = vld [vmem:[%s3 + $0xd8] sm:$0xf]
    %v1231 = vld [vmem:[%s3 + $0xdc] sm:$0xff]
    %v1232 = vld [vmem:[%s3 + $0xe4] sm:$0xff]
    %v1233 = vld [vmem:[%s3 + $0xec] sm:$0xf]
    %v1234 = vld [vmem:[%s3 + $0xf0] sm:$0xff]
    %v1235 = vld [vmem:[%s3 + $0xf8] sm:$0xff]
    %v1236 = vld [vmem:[%s3 + $0x100] sm:$0xf]
    %v1237 = vld [vmem:[%s3 + $0x104] sm:$0xff]
    %v1238 = vld [vmem:[%s3 + $0x10c] sm:$0xff]
    %v1239 = vld [vmem:[%s3 + $0x114] sm:$0xf]
    %v1240 = vld [vmem:[%s3 + $0x118] sm:$0xff]
    %v1241 = vld [vmem:[%s3 + $0x120] sm:$0xff]
    %v1242 = vld [vmem:[%s3 + $0x128] sm:$0xf]
    %v1243 = vld [vmem:[%s3 + $0x12c] sm:$0xff]
    %v1244 = vld [vmem:[%s3 + $0x134] sm:$0xff]
    %v1245 = vld [vmem:[%s3 + $0x13c] sm:$0xf]
    %v1246 = vld [vmem:[%s3 + $0x140] sm:$0xff]
    %v1247 = vld [vmem:[%s3 + $0x148] sm:$0xff]
    %v1248 = vld [vmem:[%s3 + $0x150] sm:$0xf]
    %v1249 = vld [vmem:[%s3 + $0x154] sm:$0xff]
    %v1250 = vld [vmem:[%s3 + $0x15c] sm:$0xff]
    %v1251 = vld [vmem:[%s3 + $0x164] sm:$0xf]
    %v1252 = vld [vmem:[%s3 + $0x168] sm:$0xff]
    %v1253 = vld [vmem:[%s3 + $0x170] sm:$0xff]
    %v1254 = vld [vmem:[%s3 + $0x178] sm:$0xf]
    %v1255 = vld [vmem:[%s3 + $0x17c] sm:$0xff]
    %v1256 = vld [vmem:[%s3 + $0x184] sm:$0xff]
    %v1257 = vld [vmem:[%s3 + $0x18c] sm:$0xf]
    %v1258 = vld [vmem:[%s3 + $0x190] sm:$0xff]
    %v1259 = vld [vmem:[%s3 + $0x198] sm:$0xff]
    %v1260 = vld [vmem:[%s3 + $0x1a0] sm:$0xf]
    %v1261 = vld [vmem:[%s3 + $0x1a4] sm:$0xff]
    %v1262 = vld [vmem:[%s3 + $0x1ac] sm:$0xff]
    %v1263 = vld [vmem:[%s3 + $0x1b4] sm:$0xf]
    %v1264 = vld [vmem:[%s3 + $0x1b8] sm:$0xff]
    %v1265 = vld [vmem:[%s3 + $0x1c0] sm:$0xff]
    %v1266 = vld [vmem:[%s3 + $0x1c8] sm:$0xf]
    %v1267 = vld [vmem:[%s3 + $0x1cc] sm:$0xff]
    %v1268 = vld [vmem:[%s3 + $0x1d4] sm:$0xff]
    %v1269 = vld [vmem:[%s3 + $0x1dc] sm:$0xf]
    %v1270 = vld [vmem:[%s3 + $0x1e0] sm:$0xff]
    %v1271 = vld [vmem:[%s3 + $0x1e8] sm:$0xff]
    %v1272 = vld [vmem:[%s3 + $0x1f0] sm:$0xf]
    %v1273 = vld [vmem:[%s3 + $0x1f4] sm:$0xff]
    %v1274 = vld [vmem:[%s3 + $0x1fc] sm:$0xff]
    %v1275 = vld [vmem:[%s3 + $0x204] sm:$0xf]
    %v1276 = vld [vmem:[%s3 + $0x208] sm:$0xff]
    %v1277 = vld [vmem:[%s3 + $0x210] sm:$0xff]
    %v1278 = vld [vmem:[%s3 + $0x218] sm:$0xf]
    %v1279 = vld [vmem:[%s3 + $0x21c] sm:$0xff]
    %v1280 = vld [vmem:[%s3 + $0x224] sm:$0xff]
    %v1281 = vld [vmem:[%s3 + $0x22c] sm:$0xf]
    %v1282 = vld [vmem:[%s3 + $0x230] sm:$0xff]
    %v1283 = vld [vmem:[%s3 + $0x238] sm:$0xff]
    %v1284 = vld [vmem:[%s3 + $0x240] sm:$0xf]
    %v1285 = vld [vmem:[%s3 + $0x244] sm:$0xff]
    %v1286 = vld [vmem:[%s3 + $0x24c] sm:$0xff]
    %v1287 = vld [vmem:[%s3 + $0x254] sm:$0xf]
    %v1288 = vld [vmem:[%s3 + $0x258] sm:$0xff]
    %v1289 = vld [vmem:[%s3 + $0x260] sm:$0xff]
    %v1290 = vld [vmem:[%s3 + $0x268] sm:$0xf]
    %v1291 = vld [vmem:[%s3 + $0x26c] sm:$0xff]
    %v1292 = vld [vmem:[%s3 + $0x274] sm:$0xff]
    %v1293 = vld [vmem:[%s3 + $0x27c] sm:$0xf]
    %v1294 = vld [vmem:[%s3 + $0x280] sm:$0xff]
    %v1295 = vld [vmem:[%s3 + $0x288] sm:$0xff]
    %v1296 = vld [vmem:[%s3 + $0x290] sm:$0xf]
    %v1297 = vld [vmem:[%s3 + $0x294] sm:$0xff]
    %v1298 = vld [vmem:[%s3 + $0x29c] sm:$0xff]
    %v1299 = vld [vmem:[%s3 + $0x2a4] sm:$0xf]
    %v1300 = vld [vmem:[%s3 + $0x2a8] sm:$0xff]
    %v1301 = vld [vmem:[%s3 + $0x2b0] sm:$0xff]
    %v1302 = vld [vmem:[%s3 + $0x2b8] sm:$0xf]
    %v1303 = vld [vmem:[%s3 + $0x2bc] sm:$0xff]
    %v1304 = vld [vmem:[%s3 + $0x2c4] sm:$0xff]
    %v1305 = vld [vmem:[%s3 + $0x2cc] sm:$0xf]
    %v1306 = vld [vmem:[%s3 + $0x2d0] sm:$0xff]
    %v1307 = vld [vmem:[%s3 + $0x2d8] sm:$0xff]
    %v1308 = vld [vmem:[%s3 + $0x2e0] sm:$0xf]
    %v1309 = vld [vmem:[%s3 + $0x2e4] sm:$0xff]
    %v1310 = vld [vmem:[%s3 + $0x2ec] sm:$0xff]
    %v1311 = vld [vmem:[%s3 + $0x2f4] sm:$0xf]
    %v1312 = vld [vmem:[%s3 + $0x2f8] sm:$0xff]
    %v1313 = vld [vmem:[%s3 + $0x300] sm:$0xff]
    %v1314 = vld [vmem:[%s3 + $0x308] sm:$0xf]
    %v1315 = vld [vmem:[%s3 + $0x30c] sm:$0xff]
    %v1316 = vld [vmem:[%s3 + $0x314] sm:$0xff]
    %v1317 = vld [vmem:[%s3 + $0x31c] sm:$0xf]
    %v1318 = vld [vmem:[%s3 + $0x320] sm:$0xff]
    %v1319 = vld [vmem:[%s3 + $0x328] sm:$0xff]
    %v1320 = vld [vmem:[%s3 + $0x330] sm:$0xf]
    %v1321 = vld [vmem:[%s3 + $0x334] sm:$0xff]
    %v1322 = vld [vmem:[%s3 + $0x33c] sm:$0xff]
    %v1323 = vld [vmem:[%s3 + $0x344] sm:$0xf]
    %v1324 = vld [vmem:[%s3 + $0x348] sm:$0xff]
    %v1325 = vld [vmem:[%s3 + $0x350] sm:$0xff]
    %v1326 = vld [vmem:[%s3 + $0x358] sm:$0xf]
    %v1327 = vld [vmem:[%s3 + $0x35c] sm:$0xff]
    %v1328 = vld [vmem:[%s3 + $0x364] sm:$0xff]
    %v1329 = vld [vmem:[%s3 + $0x36c] sm:$0xf]
    %v1330 = vld [vmem:[%s4] sm:$0x1f]
    %v1332 = vlaneseq
    %v1333 = vshrl.u32 %v1332, 7
    %v1334 = vsub.s32 0, %v1333
    %v1335 = vrot.slane %v1330, %v1334
    %v1336 = vlaneseq
    %v1337 = vshrl.u32 %v1336, 7
    %v1338 = vsub.s32 1, %v1337
    %v1339 = vrot.slane %v1330, %v1338
    %v1340 = vlaneseq
    %v1341 = vshrl.u32 %v1340, 7
    %v1342 = vsub.s32 2, %v1341
    %v1343 = vrot.slane %v1330, %v1342
    %v1344 = vlaneseq
    %v1345 = vshrl.u32 %v1344, 7
    %v1346 = vsub.s32 3, %v1345
    %v1347 = vrot.slane %v1330, %v1346
    %v1348 = vlaneseq
    %v1349 = vshrl.u32 %v1348, 7
    %v1350 = vsub.s32 4, %v1349
    %v1351 = vrot.slane %v1330, %v1350
    %v1489 = vunpack.c.l.b16 %v1198
    %v1490 = vunpack.c.h.b16 %v1198
    %v1491 = vunpack.c.l.b16 %v1199
    %v1492 = vunpack.c.h.b16 %v1199
    %v1493 = vunpack.c.l.b16 %v1200
    %v1494 = vunpack.c.l.b16 %v1201
    %v1495 = vunpack.c.h.b16 %v1201
    %v1496 = vunpack.c.l.b16 %v1202
    %v1497 = vunpack.c.h.b16 %v1202
    %v1498 = vunpack.c.l.b16 %v1203
    %v1499 = vunpack.c.l.b16 %v1204
    %v1500 = vunpack.c.h.b16 %v1204
    %v1501 = vunpack.c.l.b16 %v1205
    %v1502 = vunpack.c.h.b16 %v1205
    %v1503 = vunpack.c.l.b16 %v1206
    %v1504 = vunpack.c.l.b16 %v1207
    %v1505 = vunpack.c.h.b16 %v1207
    %v1506 = vunpack.c.l.b16 %v1208
    %v1507 = vunpack.c.h.b16 %v1208
    %v1508 = vunpack.c.l.b16 %v1209
    %v1509 = vunpack.c.l.b16 %v1210
    %v1510 = vunpack.c.h.b16 %v1210
    %v1511 = vunpack.c.l.b16 %v1211
    %v1512 = vunpack.c.h.b16 %v1211
    %v1513 = vunpack.c.l.b16 %v1212
    %v1514 = vunpack.c.l.b16 %v1213
    %v1515 = vunpack.c.h.b16 %v1213
    %v1516 = vunpack.c.l.b16 %v1214
    %v1517 = vunpack.c.h.b16 %v1214
    %v1518 = vunpack.c.l.b16 %v1215
    %v1519 = vunpack.c.l.b16 %v1216
    %v1520 = vunpack.c.h.b16 %v1216
    %v1521 = vunpack.c.l.b16 %v1217
    %v1522 = vunpack.c.h.b16 %v1217
    %v1523 = vunpack.c.l.b16 %v1218
    %v1524 = vunpack.c.l.b16 %v1219
    %v1525 = vunpack.c.h.b16 %v1219
    %v1526 = vunpack.c.l.b16 %v1220
    %v1527 = vunpack.c.h.b16 %v1220
    %v1528 = vunpack.c.l.b16 %v1221
    %v1529 = vunpack.c.l.b16 %v1222
    %v1530 = vunpack.c.h.b16 %v1222
    %v1531 = vunpack.c.l.b16 %v1223
    %v1532 = vunpack.c.h.b16 %v1223
    %v1533 = vunpack.c.l.b16 %v1224
    %v1534 = vunpack.c.l.b16 %v1225
    %v1535 = vunpack.c.h.b16 %v1225
    %v1536 = vunpack.c.l.b16 %v1226
    %v1537 = vunpack.c.h.b16 %v1226
    %v1538 = vunpack.c.l.b16 %v1227
    %v1539 = vunpack.c.l.b16 %v1228
    %v1540 = vunpack.c.h.b16 %v1228
    %v1541 = vunpack.c.l.b16 %v1229
    %v1542 = vunpack.c.h.b16 %v1229
    %v1543 = vunpack.c.l.b16 %v1230
    %v1544 = vunpack.c.l.b16 %v1231
    %v1545 = vunpack.c.h.b16 %v1231
    %v1546 = vunpack.c.l.b16 %v1232
    %v1547 = vunpack.c.h.b16 %v1232
    %v1548 = vunpack.c.l.b16 %v1233
    %v1549 = vunpack.c.l.b16 %v1234
    %v1550 = vunpack.c.h.b16 %v1234
    %v1551 = vunpack.c.l.b16 %v1235
    %v1552 = vunpack.c.h.b16 %v1235
    %v1553 = vunpack.c.l.b16 %v1236
    %v1554 = vunpack.c.l.b16 %v1237
    %v1555 = vunpack.c.h.b16 %v1237
    %v1556 = vunpack.c.l.b16 %v1238
    %v1557 = vunpack.c.h.b16 %v1238
    %v1558 = vunpack.c.l.b16 %v1239
    %v1559 = vunpack.c.l.b16 %v1240
    %v1560 = vunpack.c.h.b16 %v1240
    %v1561 = vunpack.c.l.b16 %v1241
    %v1562 = vunpack.c.h.b16 %v1241
    %v1563 = vunpack.c.l.b16 %v1242
    %v1564 = vunpack.c.l.b16 %v1243
    %v1565 = vunpack.c.h.b16 %v1243
    %v1566 = vunpack.c.l.b16 %v1244
    %v1567 = vunpack.c.h.b16 %v1244
    %v1568 = vunpack.c.l.b16 %v1245
    %v1569 = vunpack.c.l.b16 %v1246
    %v1570 = vunpack.c.h.b16 %v1246
    %v1571 = vunpack.c.l.b16 %v1247
    %v1572 = vunpack.c.h.b16 %v1247
    %v1573 = vunpack.c.l.b16 %v1248
    %v1574 = vunpack.c.l.b16 %v1249
    %v1575 = vunpack.c.h.b16 %v1249
    %v1576 = vunpack.c.l.b16 %v1250
    %v1577 = vunpack.c.h.b16 %v1250
    %v1578 = vunpack.c.l.b16 %v1251
    %v1579 = vunpack.c.l.b16 %v1252
    %v1580 = vunpack.c.h.b16 %v1252
    %v1581 = vunpack.c.l.b16 %v1253
    %v1582 = vunpack.c.h.b16 %v1253
    %v1583 = vunpack.c.l.b16 %v1254
    %v1584 = vunpack.c.l.b16 %v1255
    %v1585 = vunpack.c.h.b16 %v1255
    %v1586 = vunpack.c.l.b16 %v1256
    %v1587 = vunpack.c.h.b16 %v1256
    %v1588 = vunpack.c.l.b16 %v1257
    %v1589 = vunpack.c.l.b16 %v1258
    %v1590 = vunpack.c.h.b16 %v1258
    %v1591 = vunpack.c.l.b16 %v1259
    %v1592 = vunpack.c.h.b16 %v1259
    %v1593 = vunpack.c.l.b16 %v1260
    %v1594 = vunpack.c.l.b16 %v1261
    %v1595 = vunpack.c.h.b16 %v1261
    %v1596 = vunpack.c.l.b16 %v1262
    %v1597 = vunpack.c.h.b16 %v1262
    %v1598 = vunpack.c.l.b16 %v1263
    %v1599 = vunpack.c.l.b16 %v1264
    %v1600 = vunpack.c.h.b16 %v1264
    %v1601 = vunpack.c.l.b16 %v1265
    %v1602 = vunpack.c.h.b16 %v1265
    %v1603 = vunpack.c.l.b16 %v1266
    %v1604 = vunpack.c.l.b16 %v1267
    %v1605 = vunpack.c.h.b16 %v1267
    %v1606 = vunpack.c.l.b16 %v1268
    %v1607 = vunpack.c.h.b16 %v1268
    %v1608 = vunpack.c.l.b16 %v1269
    %v1609 = vunpack.c.l.b16 %v1270
    %v1610 = vunpack.c.h.b16 %v1270
    %v1611 = vunpack.c.l.b16 %v1271
    %v1612 = vunpack.c.h.b16 %v1271
    %v1613 = vunpack.c.l.b16 %v1272
    %v1614 = vunpack.c.l.b16 %v1273
    %v1615 = vunpack.c.h.b16 %v1273
    %v1616 = vunpack.c.l.b16 %v1274
    %v1617 = vunpack.c.h.b16 %v1274
    %v1618 = vunpack.c.l.b16 %v1275
    %v1619 = vunpack.c.l.b16 %v1276
    %v1620 = vunpack.c.h.b16 %v1276
    %v1621 = vunpack.c.l.b16 %v1277
    %v1622 = vunpack.c.h.b16 %v1277
    %v1623 = vunpack.c.l.b16 %v1278
    %v1624 = vunpack.c.l.b16 %v1279
    %v1625 = vunpack.c.h.b16 %v1279
    %v1626 = vunpack.c.l.b16 %v1280
    %v1627 = vunpack.c.h.b16 %v1280
    %v1628 = vunpack.c.l.b16 %v1281
    %v1629 = vunpack.c.l.b16 %v1282
    %v1630 = vunpack.c.h.b16 %v1282
    %v1631 = vunpack.c.l.b16 %v1283
    %v1632 = vunpack.c.h.b16 %v1283
    %v1633 = vunpack.c.l.b16 %v1284
    %v1634 = vunpack.c.l.b16 %v1285
    %v1635 = vunpack.c.h.b16 %v1285
    %v1636 = vunpack.c.l.b16 %v1286
    %v1637 = vunpack.c.h.b16 %v1286
    %v1638 = vunpack.c.l.b16 %v1287
    %v1639 = vunpack.c.l.b16 %v1288
    %v1640 = vunpack.c.h.b16 %v1288
    %v1641 = vunpack.c.l.b16 %v1289
    %v1642 = vunpack.c.h.b16 %v1289
    %v1643 = vunpack.c.l.b16 %v1290
    %v1644 = vunpack.c.l.b16 %v1291
    %v1645 = vunpack.c.h.b16 %v1291
    %v1646 = vunpack.c.l.b16 %v1292
    %v1647 = vunpack.c.h.b16 %v1292
    %v1648 = vunpack.c.l.b16 %v1293
    %v1649 = vunpack.c.l.b16 %v1294
    %v1650 = vunpack.c.h.b16 %v1294
    %v1651 = vunpack.c.l.b16 %v1295
    %v1652 = vunpack.c.h.b16 %v1295
    %v1653 = vunpack.c.l.b16 %v1296
    %v1654 = vunpack.c.l.b16 %v1297
    %v1655 = vunpack.c.h.b16 %v1297
    %v1656 = vunpack.c.l.b16 %v1298
    %v1657 = vunpack.c.h.b16 %v1298
    %v1658 = vunpack.c.l.b16 %v1299
    %v1659 = vunpack.c.l.b16 %v1300
    %v1660 = vunpack.c.h.b16 %v1300
    %v1661 = vunpack.c.l.b16 %v1301
    %v1662 = vunpack.c.h.b16 %v1301
    %v1663 = vunpack.c.l.b16 %v1302
    %v1664 = vunpack.c.l.b16 %v1303
    %v1665 = vunpack.c.h.b16 %v1303
    %v1666 = vunpack.c.l.b16 %v1304
    %v1667 = vunpack.c.h.b16 %v1304
    %v1668 = vunpack.c.l.b16 %v1305
    %v1669 = vunpack.c.l.b16 %v1306
    %v1670 = vunpack.c.h.b16 %v1306
    %v1671 = vunpack.c.l.b16 %v1307
    %v1672 = vunpack.c.h.b16 %v1307
    %v1673 = vunpack.c.l.b16 %v1308
    %v1674 = vunpack.c.l.b16 %v1309
    %v1675 = vunpack.c.h.b16 %v1309
    %v1676 = vunpack.c.l.b16 %v1310
    %v1677 = vunpack.c.h.b16 %v1310
    %v1678 = vunpack.c.l.b16 %v1311
    %v1679 = vunpack.c.l.b16 %v1312
    %v1680 = vunpack.c.h.b16 %v1312
    %v1681 = vunpack.c.l.b16 %v1313
    %v1682 = vunpack.c.h.b16 %v1313
    %v1683 = vunpack.c.l.b16 %v1314
    %v1684 = vunpack.c.l.b16 %v1315
    %v1685 = vunpack.c.h.b16 %v1315
    %v1686 = vunpack.c.l.b16 %v1316
    %v1687 = vunpack.c.h.b16 %v1316
    %v1688 = vunpack.c.l.b16 %v1317
    %v1689 = vunpack.c.l.b16 %v1318
    %v1690 = vunpack.c.h.b16 %v1318
    %v1691 = vunpack.c.l.b16 %v1319
    %v1692 = vunpack.c.h.b16 %v1319
    %v1693 = vunpack.c.l.b16 %v1320
    %v1694 = vunpack.c.l.b16 %v1321
    %v1695 = vunpack.c.h.b16 %v1321
    %v1696 = vunpack.c.l.b16 %v1322
    %v1697 = vunpack.c.h.b16 %v1322
    %v1698 = vunpack.c.l.b16 %v1323
    %v1699 = vunpack.c.l.b16 %v1324
    %v1700 = vunpack.c.h.b16 %v1324
    %v1701 = vunpack.c.l.b16 %v1325
    %v1702 = vunpack.c.h.b16 %v1325
    %v1703 = vunpack.c.l.b16 %v1326
    %v1704 = vunpack.c.l.b16 %v1327
    %v1705 = vunpack.c.h.b16 %v1327
    %v1706 = vunpack.c.l.b16 %v1328
    %v1707 = vunpack.c.h.b16 %v1328
    %v1708 = vunpack.c.l.b16 %v1329
    %v1709 = vpack.c.b16 %v1494, %v1489
    %v1710 = vpack.c.b16 %v1495, %v1490
    %v1711 = vpack.c.b16 %v1496, %v1491
    %v1712 = vpack.c.b16 %v1497, %v1492
    %v1713 = vpack.c.b16 %v1498, %v1493
    %v1714 = vpack.c.b16 %v1504, %v1499
    %v1715 = vpack.c.b16 %v1505, %v1500
    %v1716 = vpack.c.b16 %v1506, %v1501
    %v1717 = vpack.c.b16 %v1507, %v1502
    %v1718 = vpack.c.b16 %v1508, %v1503
    %v1719 = vpack.c.b16 %v1514, %v1509
    %v1720 = vpack.c.b16 %v1515, %v1510
    %v1721 = vpack.c.b16 %v1516, %v1511
    %v1722 = vpack.c.b16 %v1517, %v1512
    %v1723 = vpack.c.b16 %v1518, %v1513
    %v1724 = vpack.c.b16 %v1524, %v1519
    %v1725 = vpack.c.b16 %v1525, %v1520
    %v1726 = vpack.c.b16 %v1526, %v1521
    %v1727 = vpack.c.b16 %v1527, %v1522
    %v1728 = vpack.c.b16 %v1528, %v1523
    %v1729 = vpack.c.b16 %v1534, %v1529
    %v1730 = vpack.c.b16 %v1535, %v1530
    %v1731 = vpack.c.b16 %v1536, %v1531
    %v1732 = vpack.c.b16 %v1537, %v1532
    %v1733 = vpack.c.b16 %v1538, %v1533
    %v1734 = vpack.c.b16 %v1544, %v1539
    %v1735 = vpack.c.b16 %v1545, %v1540
    %v1736 = vpack.c.b16 %v1546, %v1541
    %v1737 = vpack.c.b16 %v1547, %v1542
    %v1738 = vpack.c.b16 %v1548, %v1543
    %v1739 = vpack.c.b16 %v1554, %v1549
    %v1740 = vpack.c.b16 %v1555, %v1550
    %v1741 = vpack.c.b16 %v1556, %v1551
    %v1742 = vpack.c.b16 %v1557, %v1552
    %v1743 = vpack.c.b16 %v1558, %v1553
    %v1744 = vpack.c.b16 %v1564, %v1559
    %v1745 = vpack.c.b16 %v1565, %v1560
    %v1746 = vpack.c.b16 %v1566, %v1561
    %v1747 = vpack.c.b16 %v1567, %v1562
    %v1748 = vpack.c.b16 %v1568, %v1563
    %v1749 = vpack.c.b16 %v1574, %v1569
    %v1750 = vpack.c.b16 %v1575, %v1570
    %v1751 = vpack.c.b16 %v1576, %v1571
    %v1752 = vpack.c.b16 %v1577, %v1572
    %v1753 = vpack.c.b16 %v1578, %v1573
    %v1754 = vpack.c.b16 %v1584, %v1579
    %v1755 = vpack.c.b16 %v1585, %v1580
    %v1756 = vpack.c.b16 %v1586, %v1581
    %v1757 = vpack.c.b16 %v1587, %v1582
    %v1758 = vpack.c.b16 %v1588, %v1583
    %v1759 = vpack.c.b16 %v1594, %v1589
    %v1760 = vpack.c.b16 %v1595, %v1590
    %v1761 = vpack.c.b16 %v1596, %v1591
    %v1762 = vpack.c.b16 %v1597, %v1592
    %v1763 = vpack.c.b16 %v1598, %v1593
    %v1764 = vpack.c.b16 %v1604, %v1599
    %v1765 = vpack.c.b16 %v1605, %v1600
    %v1766 = vpack.c.b16 %v1606, %v1601
    %v1767 = vpack.c.b16 %v1607, %v1602
    %v1768 = vpack.c.b16 %v1608, %v1603
    %v1769 = vpack.c.b16 %v1614, %v1609
    %v1770 = vpack.c.b16 %v1615, %v1610
    %v1771 = vpack.c.b16 %v1616, %v1611
    %v1772 = vpack.c.b16 %v1617, %v1612
    %v1773 = vpack.c.b16 %v1618, %v1613
    %v1774 = vpack.c.b16 %v1624, %v1619
    %v1775 = vpack.c.b16 %v1625, %v1620
    %v1776 = vpack.c.b16 %v1626, %v1621
    %v1777 = vpack.c.b16 %v1627, %v1622
    %v1778 = vpack.c.b16 %v1628, %v1623
    %v1779 = vpack.c.b16 %v1634, %v1629
    %v1780 = vpack.c.b16 %v1635, %v1630
    %v1781 = vpack.c.b16 %v1636, %v1631
    %v1782 = vpack.c.b16 %v1637, %v1632
    %v1783 = vpack.c.b16 %v1638, %v1633
    %v1784 = vpack.c.b16 %v1644, %v1639
    %v1785 = vpack.c.b16 %v1645, %v1640
    %v1786 = vpack.c.b16 %v1646, %v1641
    %v1787 = vpack.c.b16 %v1647, %v1642
    %v1788 = vpack.c.b16 %v1648, %v1643
    %v1789 = vpack.c.b16 %v1654, %v1649
    %v1790 = vpack.c.b16 %v1655, %v1650
    %v1791 = vpack.c.b16 %v1656, %v1651
    %v1792 = vpack.c.b16 %v1657, %v1652
    %v1793 = vpack.c.b16 %v1658, %v1653
    %v1794 = vpack.c.b16 %v1664, %v1659
    %v1795 = vpack.c.b16 %v1665, %v1660
    %v1796 = vpack.c.b16 %v1666, %v1661
    %v1797 = vpack.c.b16 %v1667, %v1662
    %v1798 = vpack.c.b16 %v1668, %v1663
    %v1799 = vpack.c.b16 %v1674, %v1669
    %v1800 = vpack.c.b16 %v1675, %v1670
    %v1801 = vpack.c.b16 %v1676, %v1671
    %v1802 = vpack.c.b16 %v1677, %v1672
    %v1803 = vpack.c.b16 %v1678, %v1673
    %v1804 = vpack.c.b16 %v1684, %v1679
    %v1805 = vpack.c.b16 %v1685, %v1680
    %v1806 = vpack.c.b16 %v1686, %v1681
    %v1807 = vpack.c.b16 %v1687, %v1682
    %v1808 = vpack.c.b16 %v1688, %v1683
    %v1809 = vpack.c.b16 %v1694, %v1689
    %v1810 = vpack.c.b16 %v1695, %v1690
    %v1811 = vpack.c.b16 %v1696, %v1691
    %v1812 = vpack.c.b16 %v1697, %v1692
    %v1813 = vpack.c.b16 %v1698, %v1693
    %v1814 = vpack.c.b16 %v1704, %v1699
    %v1815 = vpack.c.b16 %v1705, %v1700
    %v1816 = vpack.c.b16 %v1706, %v1701
    %v1817 = vpack.c.b16 %v1707, %v1702
    %v1818 = vpack.c.b16 %v1708, %v1703
    %vm1929 = vcmask 785408
    %v1931 = vsel %vm1929, %v1176, 0
    %v1934 = vsel %vm1929, %v1179, 0
    %v1937 = vsel %vm1929, %v1182, 0
    %v1940 = vsel %vm1929, %v1185, 0
    %v1943 = vsel %vm1929, %v1188, 0
    %v1946 = vsel %vm1929, %v1191, 0
    %v1949 = vsel %vm1929, %v1194, 0
    %v1952 = vsel %vm1929, %v1197, 0
    %1954 = vmatprep.subr.bf16.mxu0 %v1710
    %1955 = vmatpush1.bf16.msra.mxu0 %v1709
    %1956 = vmatprep.subr.bf16.mxu0 %v1715
    %1957 = vmatpush1.bf16.msra.mxu0 %v1714
    %1958 = vmatprep.subr.bf16.mxu0 %v1720
    %1959 = vmatpush1.bf16.msra.mxu0 %v1719
    %1960 = vmatprep.subr.bf16.mxu0 %v1725
    %1961 = vmatpush1.bf16.msra.mxu0 %v1724
    %1962 = vmatprep.subr.bf16.mxu0 %v1730
    %1963 = vmatpush1.bf16.msra.mxu0 %v1729
    %1964 = vmatprep.subr.bf16.mxu0 %v1735
    %1965 = vmatpush1.bf16.msra.mxu0 %v1734
    %1966 = vmatprep.subr.bf16.mxu0 %v1740
    %1967 = vmatpush1.bf16.msra.mxu0 %v1739
    %1968 = vmatprep.subr.bf16.mxu0 %v1745
    %1969 = vmatpush1.bf16.msra.mxu0 %v1744
    %1970 = vmatprep.subr.bf16.mxu0 %v1750
    %1971 = vmatpush1.bf16.msra.mxu0 %v1749
    %1972 = vmatprep.subr.bf16.mxu0 %v1755
    %1973 = vmatpush1.bf16.msra.mxu0 %v1754
    %1974 = vmatprep.subr.bf16.mxu0 %v1760
    %1975 = vmatpush1.bf16.msra.mxu0 %v1759
    %1976 = vmatprep.subr.bf16.mxu0 %v1765
    %1977 = vmatpush1.bf16.msra.mxu0 %v1764
    %1978 = vmatprep.subr.bf16.mxu0 %v1770
    %1979 = vmatpush1.bf16.msra.mxu0 %v1769
    %1980 = vmatprep.subr.bf16.mxu0 %v1775
    %1981 = vmatpush1.bf16.msra.mxu0 %v1774
    %1982 = vmatprep.subr.bf16.mxu0 %v1780
    %1983 = vmatpush1.bf16.msra.mxu0 %v1779
    %1984 = vmatprep.subr.bf16.mxu0 %v1785
    %1985 = vmatpush1.bf16.msra.mxu0 %v1784
    %1986 = vmatprep.mubr.bf16.mxu0 %v1175
    %1987 = vmatmul.mubr.bf16.gmra.mrb[0].mxu0 %v1174
    %v1988 = vpop.f32.mrb[0].mxu0
    %v1989 = vadd.f32 %v1335, %v1988
    %v1990 = vpop.f32.mrb[0].mxu0
    %v1991 = vadd.f32 %v1339, %v1990
    %v1992 = vpop.f32.mrb[0].mxu0
    %v1993 = vadd.f32 %v1335, %v1992
    %v1994 = vpop.f32.mrb[0].mxu0
    %v1995 = vadd.f32 %v1339, %v1994
    %1996 = vmatprep.mubr.bf16.mxu0 %v1178
    %1997 = vmatmul.mubr.bf16.gmra.mrb[0].mxu0 %v1177
    %v1998 = vpop.f32.mrb[0].mxu0
    %v1999 = vadd.f32 %v1335, %v1998
    %v2000 = vpop.f32.mrb[0].mxu0
    %v2001 = vadd.f32 %v1339, %v2000
    %v2002 = vpop.f32.mrb[0].mxu0
    %v2003 = vadd.f32 %v1335, %v2002
    %v2004 = vpop.f32.mrb[0].mxu0
    %v2005 = vadd.f32 %v1339, %v2004
    %2006 = vmatprep.mubr.bf16.mxu0 %v1181
    %2007 = vmatmul.mubr.bf16.gmra.mrb[0].mxu0 %v1180
    %v2008 = vpop.f32.mrb[0].mxu0
    %v2009 = vadd.f32 %v1335, %v2008
    %v2010 = vpop.f32.mrb[0].mxu0
    %v2011 = vadd.f32 %v1339, %v2010
    %v2012 = vpop.f32.mrb[0].mxu0
    %v2013 = vadd.f32 %v1335, %v2012
    %v2014 = vpop.f32.mrb[0].mxu0
    %v2015 = vadd.f32 %v1339, %v2014
    %2016 = vmatprep.mubr.bf16.mxu0 %v1184
    %2017 = vmatmul.mubr.bf16.gmra.mrb[0].mxu0 %v1183
    %v2018 = vpop.f32.mrb[0].mxu0
    %v2019 = vadd.f32 %v1335, %v2018
    %v2020 = vpop.f32.mrb[0].mxu0
    %v2021 = vadd.f32 %v1339, %v2020
    %v2022 = vpop.f32.mrb[0].mxu0
    %v2023 = vadd.f32 %v1335, %v2022
    %v2024 = vpop.f32.mrb[0].mxu0
    %v2025 = vadd.f32 %v1339, %v2024
    %2026 = vmatprep.mubr.bf16.mxu0 %v1187
    %2027 = vmatmul.mubr.bf16.gmra.mrb[0].mxu0 %v1186
    %v2028 = vpop.f32.mrb[0].mxu0
    %v2029 = vadd.f32 %v1335, %v2028
    %v2030 = vpop.f32.mrb[0].mxu0
    %v2031 = vadd.f32 %v1339, %v2030
    %v2032 = vpop.f32.mrb[0].mxu0
    %v2033 = vadd.f32 %v1335, %v2032
    %v2034 = vpop.f32.mrb[0].mxu0
    %v2035 = vadd.f32 %v1339, %v2034
    %2036 = vmatprep.mubr.bf16.mxu0 %v1190
    %2037 = vmatmul.mubr.bf16.gmra.mrb[0].mxu0 %v1189
    %v2038 = vpop.f32.mrb[0].mxu0
    %v2039 = vadd.f32 %v1335, %v2038
    %v2040 = vpop.f32.mrb[0].mxu0
    %v2041 = vadd.f32 %v1339, %v2040
    %v2042 = vpop.f32.mrb[0].mxu0
    %v2043 = vadd.f32 %v1335, %v2042
    %v2044 = vpop.f32.mrb[0].mxu0
    %v2045 = vadd.f32 %v1339, %v2044
    %2046 = vmatprep.mubr.bf16.mxu0 %v1193
    %2047 = vmatmul.mubr.bf16.gmra.mrb[0].mxu0 %v1192
    %v2048 = vpop.f32.mrb[0].mxu0
    %v2049 = vadd.f32 %v1335, %v2048
    %v2050 = vpop.f32.mrb[0].mxu0
    %v2051 = vadd.f32 %v1339, %v2050
    %v2052 = vpop.f32.mrb[0].mxu0
    %v2053 = vadd.f32 %v1335, %v2052
    %v2054 = vpop.f32.mrb[0].mxu0
    %v2055 = vadd.f32 %v1339, %v2054
    %2056 = vmatprep.mubr.bf16.mxu0 %v1196
    %2057 = vmatmul.mubr.bf16.gmra.mrb[0].mxu0 %v1195
    %v2058 = vpop.f32.mrb[0].mxu0
    %v2059 = vadd.f32 %v1335, %v2058
    %v2060 = vpop.f32.mrb[0].mxu0
    %v2061 = vadd.f32 %v1339, %v2060
    %v2062 = vpop.f32.mrb[0].mxu0
    %v2063 = vadd.f32 %v1335, %v2062
    %v2064 = vpop.f32.mrb[0].mxu0
    %v2065 = vadd.f32 %v1339, %v2064
    %2066 = vdwg.mxu0
    %2067 = vmatprep.subr.bf16.mxu0 %v1790
    %2068 = vmatpush1.bf16.msra.mxu0 %v1789
    %2069 = vmatprep.subr.bf16.mxu0 %v1795
    %2070 = vmatpush1.bf16.msra.mxu0 %v1794
    %2071 = vmatprep.subr.bf16.mxu0 %v1800
    %2072 = vmatpush1.bf16.msra.mxu0 %v1799
    %2073 = vmatprep.subr.bf16.mxu0 %v1805
    %2074 = vmatpush1.bf16.msra.mxu0 %v1804
    %2075 = vmatprep.subr.bf16.mxu0 %v1810
    %2076 = vmatpush1.bf16.msra.mxu0 %v1809
    %2077 = vmatprep.subr.bf16.mxu0 %v1815
    %2078 = vmatpush1.bf16.msra.mxu0 %v1814
    %2079 = vmatprep.subr.bf16.mxu0 0
    %2080 = vmatpush1.bf16.msra.mxu0 0
    %2081 = vmatprep.subr.bf16.mxu0 0
    %2082 = vmatpush1.bf16.msra.mxu0 0
    %2083 = vmatprep.subr.bf16.mxu0 0
    %2084 = vmatpush1.bf16.msra.mxu0 0
    %2085 = vmatprep.subr.bf16.mxu0 0
    %2086 = vmatpush1.bf16.msra.mxu0 0
    %2087 = vmatprep.subr.bf16.mxu0 0
    %2088 = vmatpush1.bf16.msra.mxu0 0
    %2089 = vmatprep.subr.bf16.mxu0 0
    %2090 = vmatpush1.bf16.msra.mxu0 0
    %2091 = vmatprep.subr.bf16.mxu0 0
    %2092 = vmatpush1.bf16.msra.mxu0 0
    %2093 = vmatprep.subr.bf16.mxu0 0
    %2094 = vmatpush1.bf16.msra.mxu0 0
    %2095 = vmatprep.subr.bf16.mxu0 0
    %2096 = vmatpush1.bf16.msra.mxu0 0
    %2097 = vmatprep.subr.bf16.mxu0 0
    %2098 = vmatpush1.bf16.msra.mxu0 0
    %2099 = vmatprep.mubr.bf16.mxu0 0
    %2100 = vmatmul.mubr.bf16.gmra.mrb[0].mxu0 %v1931
    %v2101 = vpop.f32.mrb[0].mxu0
    %v2102 = vadd.f32 %v1989, %v2101
    %v2103 = vpop.f32.mrb[0].mxu0
    %v2104 = vadd.f32 %v1991, %v2103
    %v2105 = vpop.f32.mrb[0].mxu0
    %v2106 = vadd.f32 %v1993, %v2105
    %v2107 = vpop.f32.mrb[0].mxu0
    %v2108 = vadd.f32 %v1995, %v2107
    %2109 = vmatprep.mubr.bf16.mxu0 0
    %2110 = vmatmul.mubr.bf16.gmra.mrb[0].mxu0 %v1934
    %v2111 = vpop.f32.mrb[0].mxu0
    %v2112 = vadd.f32 %v1999, %v2111
    %v2113 = vpop.f32.mrb[0].mxu0
    %v2114 = vadd.f32 %v2001, %v2113
    %v2115 = vpop.f32.mrb[0].mxu0
    %v2116 = vadd.f32 %v2003, %v2115
    %v2117 = vpop.f32.mrb[0].mxu0
    %v2118 = vadd.f32 %v2005, %v2117
    %2119 = vmatprep.mubr.bf16.mxu0 0
    %2120 = vmatmul.mubr.bf16.gmra.mrb[0].mxu0 %v1937
    %v2121 = vpop.f32.mrb[0].mxu0
    %v2122 = vadd.f32 %v2009, %v2121
    %v2123 = vpop.f32.mrb[0].mxu0
    %v2124 = vadd.f32 %v2011, %v2123
    %v2125 = vpop.f32.mrb[0].mxu0
    %v2126 = vadd.f32 %v2013, %v2125
    %v2127 = vpop.f32.mrb[0].mxu0
    %v2128 = vadd.f32 %v2015, %v2127
    %2129 = vmatprep.mubr.bf16.mxu0 0
    %2130 = vmatmul.mubr.bf16.gmra.mrb[0].mxu0 %v1940
    %v2131 = vpop.f32.mrb[0].mxu0
    %v2132 = vadd.f32 %v2019, %v2131
    %v2133 = vpop.f32.mrb[0].mxu0
    %v2134 = vadd.f32 %v2021, %v2133
    %v2135 = vpop.f32.mrb[0].mxu0
    %v2136 = vadd.f32 %v2023, %v2135
    %v2137 = vpop.f32.mrb[0].mxu0
    %v2138 = vadd.f32 %v2025, %v2137
    %2139 = vmatprep.mubr.bf16.mxu0 0
    %2140 = vmatmul.mubr.bf16.gmra.mrb[0].mxu0 %v1943
    %v2141 = vpop.f32.mrb[0].mxu0
    %v2142 = vadd.f32 %v2029, %v2141
    %v2143 = vpop.f32.mrb[0].mxu0
    %v2144 = vadd.f32 %v2031, %v2143
    %v2145 = vpop.f32.mrb[0].mxu0
    %v2146 = vadd.f32 %v2033, %v2145
    %v2147 = vpop.f32.mrb[0].mxu0
    %v2148 = vadd.f32 %v2035, %v2147
    %2149 = vmatprep.mubr.bf16.mxu0 0
    %2150 = vmatmul.mubr.bf16.gmra.mrb[0].mxu0 %v1946
    %v2151 = vpop.f32.mrb[0].mxu0
    %v2152 = vadd.f32 %v2039, %v2151
    %v2153 = vpop.f32.mrb[0].mxu0
    %v2154 = vadd.f32 %v2041, %v2153
    %v2155 = vpop.f32.mrb[0].mxu0
    %v2156 = vadd.f32 %v2043, %v2155
    %v2157 = vpop.f32.mrb[0].mxu0
    %v2158 = vadd.f32 %v2045, %v2157
    %2159 = vmatprep.mubr.bf16.mxu0 0
    %2160 = vmatmul.mubr.bf16.gmra.mrb[0].mxu0 %v1949
    %v2161 = vpop.f32.mrb[0].mxu0
    %v2162 = vadd.f32 %v2049, %v2161
    %v2163 = vpop.f32.mrb[0].mxu0
    %v2164 = vadd.f32 %v2051, %v2163
    %v2165 = vpop.f32.mrb[0].mxu0
    %v2166 = vadd.f32 %v2053, %v2165
    %v2167 = vpop.f32.mrb[0].mxu0
    %v2168 = vadd.f32 %v2055, %v2167
    %2169 = vmatprep.mubr.bf16.mxu0 0
    %2170 = vmatmul.mubr.bf16.gmra.mrb[0].mxu0 %v1952
    %v2171 = vpop.f32.mrb[0].mxu0
    %v2172 = vadd.f32 %v2059, %v2171
    %v2173 = vpop.f32.mrb[0].mxu0
    %v2174 = vadd.f32 %v2061, %v2173
    %v2175 = vpop.f32.mrb[0].mxu0
    %v2176 = vadd.f32 %v2063, %v2175
    %v2177 = vpop.f32.mrb[0].mxu0
    %v2178 = vadd.f32 %v2065, %v2177
    %2179 = vdwg.mxu0
    %2180 = vmatprep.subr.bf16.mxu0 %v1712
    %2181 = vmatpush1.bf16.msra.mxu0 %v1711
    %2182 = vmatprep.subr.bf16.mxu0 %v1717
    %2183 = vmatpush1.bf16.msra.mxu0 %v1716
    %2184 = vmatprep.subr.bf16.mxu0 %v1722
    %2185 = vmatpush1.bf16.msra.mxu0 %v1721
    %2186 = vmatprep.subr.bf16.mxu0 %v1727
    %2187 = vmatpush1.bf16.msra.mxu0 %v1726
    %2188 = vmatprep.subr.bf16.mxu0 %v1732
    %2189 = vmatpush1.bf16.msra.mxu0 %v1731
    %2190 = vmatprep.subr.bf16.mxu0 %v1737
    %2191 = vmatpush1.bf16.msra.mxu0 %v1736
    %2192 = vmatprep.subr.bf16.mxu0 %v1742
    %2193 = vmatpush1.bf16.msra.mxu0 %v1741
    %2194 = vmatprep.subr.bf16.mxu0 %v1747
    %2195 = vmatpush1.bf16.msra.mxu0 %v1746
    %2196 = vmatprep.subr.bf16.mxu0 %v1752
    %2197 = vmatpush1.bf16.msra.mxu0 %v1751
    %2198 = vmatprep.subr.bf16.mxu0 %v1757
    %2199 = vmatpush1.bf16.msra.mxu0 %v1756
    %2200 = vmatprep.subr.bf16.mxu0 %v1762
    %2201 = vmatpush1.bf16.msra.mxu0 %v1761
    %2202 = vmatprep.subr.bf16.mxu0 %v1767
    %2203 = vmatpush1.bf16.msra.mxu0 %v1766
    %2204 = vmatprep.subr.bf16.mxu0 %v1772
    %2205 = vmatpush1.bf16.msra.mxu0 %v1771
    %2206 = vmatprep.subr.bf16.mxu0 %v1777
    %2207 = vmatpush1.bf16.msra.mxu0 %v1776
    %2208 = vmatprep.subr.bf16.mxu0 %v1782
    %2209 = vmatpush1.bf16.msra.mxu0 %v1781
    %2210 = vmatprep.subr.bf16.mxu0 %v1787
    %2211 = vmatpush1.bf16.msra.mxu0 %v1786
    %2212 = vmatprep.mubr.bf16.mxu0 %v1175
    %2213 = vmatmul.mubr.bf16.gmra.mrb[0].mxu0 %v1174
    %v2214 = vpop.f32.mrb[0].mxu0
    %v2215 = vadd.f32 %v1343, %v2214
    %v2216 = vpop.f32.mrb[0].mxu0
    %v2217 = vadd.f32 %v1347, %v2216
    %v2218 = vpop.f32.mrb[0].mxu0
    %v2219 = vadd.f32 %v1343, %v2218
    %v2220 = vpop.f32.mrb[0].mxu0
    %v2221 = vadd.f32 %v1347, %v2220
    %2222 = vmatprep.mubr.bf16.mxu0 %v1178
    %2223 = vmatmul.mubr.bf16.gmra.mrb[0].mxu0 %v1177
    %v2224 = vpop.f32.mrb[0].mxu0
    %v2225 = vadd.f32 %v1343, %v2224
    %v2226 = vpop.f32.mrb[0].mxu0
    %v2227 = vadd.f32 %v1347, %v2226
    %v2228 = vpop.f32.mrb[0].mxu0
    %v2229 = vadd.f32 %v1343, %v2228
    %v2230 = vpop.f32.mrb[0].mxu0
    %v2231 = vadd.f32 %v1347, %v2230
    %2232 = vmatprep.mubr.bf16.mxu0 %v1181
    %2233 = vmatmul.mubr.bf16.gmra.mrb[0].mxu0 %v1180
    %v2234 = vpop.f32.mrb[0].mxu0
    %v2235 = vadd.f32 %v1343, %v2234
    %v2236 = vpop.f32.mrb[0].mxu0
    %v2237 = vadd.f32 %v1347, %v2236
    %v2238 = vpop.f32.mrb[0].mxu0
    %v2239 = vadd.f32 %v1343, %v2238
    %v2240 = vpop.f32.mrb[0].mxu0
    %v2241 = vadd.f32 %v1347, %v2240
    %2242 = vmatprep.mubr.bf16.mxu0 %v1184
    %2243 = vmatmul.mubr.bf16.gmra.mrb[0].mxu0 %v1183
    %v2244 = vpop.f32.mrb[0].mxu0
    %v2245 = vadd.f32 %v1343, %v2244
    %v2246 = vpop.f32.mrb[0].mxu0
    %v2247 = vadd.f32 %v1347, %v2246
    %v2248 = vpop.f32.mrb[0].mxu0
    %v2249 = vadd.f32 %v1343, %v2248
    %v2250 = vpop.f32.mrb[0].mxu0
    %v2251 = vadd.f32 %v1347, %v2250
    %2252 = vmatprep.mubr.bf16.mxu0 %v1187
    %2253 = vmatmul.mubr.bf16.gmra.mrb[0].mxu0 %v1186
    %v2254 = vpop.f32.mrb[0].mxu0
    %v2255 = vadd.f32 %v1343, %v2254
    %v2256 = vpop.f32.mrb[0].mxu0
    %v2257 = vadd.f32 %v1347, %v2256
    %v2258 = vpop.f32.mrb[0].mxu0
    %v2259 = vadd.f32 %v1343, %v2258
    %v2260 = vpop.f32.mrb[0].mxu0
    %v2261 = vadd.f32 %v1347, %v2260
    %2262 = vmatprep.mubr.bf16.mxu0 %v1190
    %2263 = vmatmul.mubr.bf16.gmra.mrb[0].mxu0 %v1189
    %v2264 = vpop.f32.mrb[0].mxu0
    %v2265 = vadd.f32 %v1343, %v2264
    %v2266 = vpop.f32.mrb[0].mxu0
    %v2267 = vadd.f32 %v1347, %v2266
    %v2268 = vpop.f32.mrb[0].mxu0
    %v2269 = vadd.f32 %v1343, %v2268
    %v2270 = vpop.f32.mrb[0].mxu0
    %v2271 = vadd.f32 %v1347, %v2270
    %2272 = vmatprep.mubr.bf16.mxu0 %v1193
    %2273 = vmatmul.mubr.bf16.gmra.mrb[0].mxu0 %v1192
    %v2274 = vpop.f32.mrb[0].mxu0
    %v2275 = vadd.f32 %v1343, %v2274
    %v2276 = vpop.f32.mrb[0].mxu0
    %v2277 = vadd.f32 %v1347, %v2276
    %v2278 = vpop.f32.mrb[0].mxu0
    %v2279 = vadd.f32 %v1343, %v2278
    %v2280 = vpop.f32.mrb[0].mxu0
    %v2281 = vadd.f32 %v1347, %v2280
    %2282 = vmatprep.mubr.bf16.mxu0 %v1196
    %2283 = vmatmul.mubr.bf16.gmra.mrb[0].mxu0 %v1195
    %v2284 = vpop.f32.mrb[0].mxu0
    %v2285 = vadd.f32 %v1343, %v2284
    %v2286 = vpop.f32.mrb[0].mxu0
    %v2287 = vadd.f32 %v1347, %v2286
    %v2288 = vpop.f32.mrb[0].mxu0
    %v2289 = vadd.f32 %v1343, %v2288
    %v2290 = vpop.f32.mrb[0].mxu0
    %v2291 = vadd.f32 %v1347, %v2290
    %2292 = vdwg.mxu0
    %2293 = vmatprep.subr.bf16.mxu0 %v1792
    %2294 = vmatpush1.bf16.msra.mxu0 %v1791
    %2295 = vmatprep.subr.bf16.mxu0 %v1797
    %2296 = vmatpush1.bf16.msra.mxu0 %v1796
    %2297 = vmatprep.subr.bf16.mxu0 %v1802
    %2298 = vmatpush1.bf16.msra.mxu0 %v1801
    %2299 = vmatprep.subr.bf16.mxu0 %v1807
    %2300 = vmatpush1.bf16.msra.mxu0 %v1806
    %2301 = vmatprep.subr.bf16.mxu0 %v1812
    %2302 = vmatpush1.bf16.msra.mxu0 %v1811
    %2303 = vmatprep.subr.bf16.mxu0 %v1817
    %2304 = vmatpush1.bf16.msra.mxu0 %v1816
    %2305 = vmatprep.subr.bf16.mxu0 0
    %2306 = vmatpush1.bf16.msra.mxu0 0
    %2307 = vmatprep.subr.bf16.mxu0 0
    %2308 = vmatpush1.bf16.msra.mxu0 0
    %2309 = vmatprep.subr.bf16.mxu0 0
    %2310 = vmatpush1.bf16.msra.mxu0 0
    %2311 = vmatprep.subr.bf16.mxu0 0
    %2312 = vmatpush1.bf16.msra.mxu0 0
    %2313 = vmatprep.subr.bf16.mxu0 0
    %2314 = vmatpush1.bf16.msra.mxu0 0
    %2315 = vmatprep.subr.bf16.mxu0 0
    %2316 = vmatpush1.bf16.msra.mxu0 0
    %2317 = vmatprep.subr.bf16.mxu0 0
    %2318 = vmatpush1.bf16.msra.mxu0 0
    %2319 = vmatprep.subr.bf16.mxu0 0
    %2320 = vmatpush1.bf16.msra.mxu0 0
    %2321 = vmatprep.subr.bf16.mxu0 0
    %2322 = vmatpush1.bf16.msra.mxu0 0
    %2323 = vmatprep.subr.bf16.mxu0 0
    %2324 = vmatpush1.bf16.msra.mxu0 0
    %2325 = vmatprep.mubr.bf16.mxu0 0
    %2326 = vmatmul.mubr.bf16.gmra.mrb[0].mxu0 %v1931
    %v2327 = vpop.f32.mrb[0].mxu0
    %v2328 = vadd.f32 %v2215, %v2327
    %v2329 = vpop.f32.mrb[0].mxu0
    %v2330 = vadd.f32 %v2217, %v2329
    %v2331 = vpop.f32.mrb[0].mxu0
    %v2332 = vadd.f32 %v2219, %v2331
    %v2333 = vpop.f32.mrb[0].mxu0
    %v2334 = vadd.f32 %v2221, %v2333
    %2335 = vmatprep.mubr.bf16.mxu0 0
    %2336 = vmatmul.mubr.bf16.gmra.mrb[0].mxu0 %v1934
    %v2337 = vpop.f32.mrb[0].mxu0
    %v2338 = vadd.f32 %v2225, %v2337
    %v2339 = vpop.f32.mrb[0].mxu0
    %v2340 = vadd.f32 %v2227, %v2339
    %v2341 = vpop.f32.mrb[0].mxu0
    %v2342 = vadd.f32 %v2229, %v2341
    %v2343 = vpop.f32.mrb[0].mxu0
    %v2344 = vadd.f32 %v2231, %v2343
    %2345 = vmatprep.mubr.bf16.mxu0 0
    %2346 = vmatmul.mubr.bf16.gmra.mrb[0].mxu0 %v1937
    %v2347 = vpop.f32.mrb[0].mxu0
    %v2348 = vadd.f32 %v2235, %v2347
    %v2349 = vpop.f32.mrb[0].mxu0
    %v2350 = vadd.f32 %v2237, %v2349
    %v2351 = vpop.f32.mrb[0].mxu0
    %v2352 = vadd.f32 %v2239, %v2351
    %v2353 = vpop.f32.mrb[0].mxu0
    %v2354 = vadd.f32 %v2241, %v2353
    %2355 = vmatprep.mubr.bf16.mxu0 0
    %2356 = vmatmul.mubr.bf16.gmra.mrb[0].mxu0 %v1940
    %v2357 = vpop.f32.mrb[0].mxu0
    %v2358 = vadd.f32 %v2245, %v2357
    %v2359 = vpop.f32.mrb[0].mxu0
    %v2360 = vadd.f32 %v2247, %v2359
    %v2361 = vpop.f32.mrb[0].mxu0
    %v2362 = vadd.f32 %v2249, %v2361
    %v2363 = vpop.f32.mrb[0].mxu0
    %v2364 = vadd.f32 %v2251, %v2363
    %2365 = vmatprep.mubr.bf16.mxu0 0
    %2366 = vmatmul.mubr.bf16.gmra.mrb[0].mxu0 %v1943
    %v2367 = vpop.f32.mrb[0].mxu0
    %v2368 = vadd.f32 %v2255, %v2367
    %v2369 = vpop.f32.mrb[0].mxu0
    %v2370 = vadd.f32 %v2257, %v2369
    %v2371 = vpop.f32.mrb[0].mxu0
    %v2372 = vadd.f32 %v2259, %v2371
    %v2373 = vpop.f32.mrb[0].mxu0
    %v2374 = vadd.f32 %v2261, %v2373
    %2375 = vmatprep.mubr.bf16.mxu0 0
    %2376 = vmatmul.mubr.bf16.gmra.mrb[0].mxu0 %v1946
    %v2377 = vpop.f32.mrb[0].mxu0
    %v2378 = vadd.f32 %v2265, %v2377
    %v2379 = vpop.f32.mrb[0].mxu0
    %v2380 = vadd.f32 %v2267, %v2379
    %v2381 = vpop.f32.mrb[0].mxu0
    %v2382 = vadd.f32 %v2269, %v2381
    %v2383 = vpop.f32.mrb[0].mxu0
    %v2384 = vadd.f32 %v2271, %v2383
    %2385 = vmatprep.mubr.bf16.mxu0 0
    %2386 = vmatmul.mubr.bf16.gmra.mrb[0].mxu0 %v1949
    %v2387 = vpop.f32.mrb[0].mxu0
    %v2388 = vadd.f32 %v2275, %v2387
    %v2389 = vpop.f32.mrb[0].mxu0
    %v2390 = vadd.f32 %v2277, %v2389
    %v2391 = vpop.f32.mrb[0].mxu0
    %v2392 = vadd.f32 %v2279, %v2391
    %v2393 = vpop.f32.mrb[0].mxu0
    %v2394 = vadd.f32 %v2281, %v2393
    %2395 = vmatprep.mubr.bf16.mxu0 0
    %2396 = vmatmul.mubr.bf16.gmra.mrb[0].mxu0 %v1952
    %v2397 = vpop.f32.mrb[0].mxu0
    %v2398 = vadd.f32 %v2285, %v2397
    %v2399 = vpop.f32.mrb[0].mxu0
    %v2400 = vadd.f32 %v2287, %v2399
    %v2401 = vpop.f32.mrb[0].mxu0
    %v2402 = vadd.f32 %v2289, %v2401
    %v2403 = vpop.f32.mrb[0].mxu0
    %v2404 = vadd.f32 %v2291, %v2403
    %2405 = vdwg.mxu0
    %2406 = vmatprep.subr.bf16.mxu0 0
    %2407 = vmatpush1.bf16.msra.mxu0 %v1713
    %2408 = vmatprep.subr.bf16.mxu0 0
    %2409 = vmatpush1.bf16.msra.mxu0 %v1718
    %2410 = vmatprep.subr.bf16.mxu0 0
    %2411 = vmatpush1.bf16.msra.mxu0 %v1723
    %2412 = vmatprep.subr.bf16.mxu0 0
    %2413 = vmatpush1.bf16.msra.mxu0 %v1728
    %2414 = vmatprep.subr.bf16.mxu0 0
    %2415 = vmatpush1.bf16.msra.mxu0 %v1733
    %2416 = vmatprep.subr.bf16.mxu0 0
    %2417 = vmatpush1.bf16.msra.mxu0 %v1738
    %2418 = vmatprep.subr.bf16.mxu0 0
    %2419 = vmatpush1.bf16.msra.mxu0 %v1743
    %2420 = vmatprep.subr.bf16.mxu0 0
    %2421 = vmatpush1.bf16.msra.mxu0 %v1748
    %2422 = vmatprep.subr.bf16.mxu0 0
    %2423 = vmatpush1.bf16.msra.mxu0 %v1753
    %2424 = vmatprep.subr.bf16.mxu0 0
    %2425 = vmatpush1.bf16.msra.mxu0 %v1758
    %2426 = vmatprep.subr.bf16.mxu0 0
    %2427 = vmatpush1.bf16.msra.mxu0 %v1763
    %2428 = vmatprep.subr.bf16.mxu0 0
    %2429 = vmatpush1.bf16.msra.mxu0 %v1768
    %2430 = vmatprep.subr.bf16.mxu0 0
    %2431 = vmatpush1.bf16.msra.mxu0 %v1773
    %2432 = vmatprep.subr.bf16.mxu0 0
    %2433 = vmatpush1.bf16.msra.mxu0 %v1778
    %2434 = vmatprep.subr.bf16.mxu0 0
    %2435 = vmatpush1.bf16.msra.mxu0 %v1783
    %2436 = vmatprep.subr.bf16.mxu0 0
    %2437 = vmatpush1.bf16.msra.mxu0 %v1788
    %2438 = vmatprep.mubr.bf16.mxu0 %v1175
    %2439 = vmatmul.mubr.bf16.gmra.mrb[0].mxu0 %v1174
    %v2440 = vpop.f32.mrb[0].mxu0
    %v2441 = vadd.f32 %v1351, %v2440
    %v2442 = vpop.f32.mrb[0].mxu0
    %v2443 = vpop.f32.mrb[0].mxu0
    %v2444 = vadd.f32 %v1351, %v2443
    %v2445 = vpop.f32.mrb[0].mxu0
    %2446 = vmatprep.mubr.bf16.mxu0 %v1178
    %2447 = vmatmul.mubr.bf16.gmra.mrb[0].mxu0 %v1177
    %v2448 = vpop.f32.mrb[0].mxu0
    %v2449 = vadd.f32 %v1351, %v2448
    %v2450 = vpop.f32.mrb[0].mxu0
    %v2451 = vpop.f32.mrb[0].mxu0
    %v2452 = vadd.f32 %v1351, %v2451
    %v2453 = vpop.f32.mrb[0].mxu0
    %2454 = vmatprep.mubr.bf16.mxu0 %v1181
    %2455 = vmatmul.mubr.bf16.gmra.mrb[0].mxu0 %v1180
    %v2456 = vpop.f32.mrb[0].mxu0
    %v2457 = vadd.f32 %v1351, %v2456
    %v2458 = vpop.f32.mrb[0].mxu0
    %v2459 = vpop.f32.mrb[0].mxu0
    %v2460 = vadd.f32 %v1351, %v2459
    %v2461 = vpop.f32.mrb[0].mxu0
    %2462 = vmatprep.mubr.bf16.mxu0 %v1184
    %2463 = vmatmul.mubr.bf16.gmra.mrb[0].mxu0 %v1183
    %v2464 = vpop.f32.mrb[0].mxu0
    %v2465 = vadd.f32 %v1351, %v2464
    %v2466 = vpop.f32.mrb[0].mxu0
    %v2467 = vpop.f32.mrb[0].mxu0
    %v2468 = vadd.f32 %v1351, %v2467
    %v2469 = vpop.f32.mrb[0].mxu0
    %2470 = vmatprep.mubr.bf16.mxu0 %v1187
    %2471 = vmatmul.mubr.bf16.gmra.mrb[0].mxu0 %v1186
    %v2472 = vpop.f32.mrb[0].mxu0
    %v2473 = vadd.f32 %v1351, %v2472
    %v2474 = vpop.f32.mrb[0].mxu0
    %v2475 = vpop.f32.mrb[0].mxu0
    %v2476 = vadd.f32 %v1351, %v2475
    %v2477 = vpop.f32.mrb[0].mxu0
    %2478 = vmatprep.mubr.bf16.mxu0 %v1190
    %2479 = vmatmul.mubr.bf16.gmra.mrb[0].mxu0 %v1189
    %v2480 = vpop.f32.mrb[0].mxu0
    %v2481 = vadd.f32 %v1351, %v2480
    %v2482 = vpop.f32.mrb[0].mxu0
    %v2483 = vpop.f32.mrb[0].mxu0
    %v2484 = vadd.f32 %v1351, %v2483
    %v2485 = vpop.f32.mrb[0].mxu0
    %2486 = vmatprep.mubr.bf16.mxu0 %v1193
    %2487 = vmatmul.mubr.bf16.gmra.mrb[0].mxu0 %v1192
    %v2488 = vpop.f32.mrb[0].mxu0
    %v2489 = vadd.f32 %v1351, %v2488
    %v2490 = vpop.f32.mrb[0].mxu0
    %v2491 = vpop.f32.mrb[0].mxu0
    %v2492 = vadd.f32 %v1351, %v2491
    %v2493 = vpop.f32.mrb[0].mxu0
    %2494 = vmatprep.mubr.bf16.mxu0 %v1196
    %2495 = vmatmul.mubr.bf16.gmra.mrb[0].mxu0 %v1195
    %v2496 = vpop.f32.mrb[0].mxu0
    %v2497 = vadd.f32 %v1351, %v2496
    %v2498 = vpop.f32.mrb[0].mxu0
    %v2499 = vpop.f32.mrb[0].mxu0
    %v2500 = vadd.f32 %v1351, %v2499
    %v2501 = vpop.f32.mrb[0].mxu0
    %2502 = vdwg.mxu0
    %2503 = vmatprep.subr.bf16.mxu0 0
    %2504 = vmatpush1.bf16.msra.mxu0 %v1793
    %2505 = vmatprep.subr.bf16.mxu0 0
    %2506 = vmatpush1.bf16.msra.mxu0 %v1798
    %2507 = vmatprep.subr.bf16.mxu0 0
    %2508 = vmatpush1.bf16.msra.mxu0 %v1803
    %2509 = vmatprep.subr.bf16.mxu0 0
    %2510 = vmatpush1.bf16.msra.mxu0 %v1808
    %2511 = vmatprep.subr.bf16.mxu0 0
    %2512 = vmatpush1.bf16.msra.mxu0 %v1813
    %2513 = vmatprep.subr.bf16.mxu0 0
    %2514 = vmatpush1.bf16.msra.mxu0 %v1818
    %2515 = vmatprep.subr.bf16.mxu0 0
    %2516 = vmatpush1.bf16.msra.mxu0 0
    %2517 = vmatprep.subr.bf16.mxu0 0
    %2518 = vmatpush1.bf16.msra.mxu0 0
    %2519 = vmatprep.subr.bf16.mxu0 0
    %2520 = vmatpush1.bf16.msra.mxu0 0
    %2521 = vmatprep.subr.bf16.mxu0 0
    %2522 = vmatpush1.bf16.msra.mxu0 0
    %2523 = vmatprep.subr.bf16.mxu0 0
    %2524 = vmatpush1.bf16.msra.mxu0 0
    %2525 = vmatprep.subr.bf16.mxu0 0
    %2526 = vmatpush1.bf16.msra.mxu0 0
    %2527 = vmatprep.subr.bf16.mxu0 0
    %2528 = vmatpush1.bf16.msra.mxu0 0
    %2529 = vmatprep.subr.bf16.mxu0 0
    %2530 = vmatpush1.bf16.msra.mxu0 0
    %2531 = vmatprep.subr.bf16.mxu0 0
    %2532 = vmatpush1.bf16.msra.mxu0 0
    %2533 = vmatprep.subr.bf16.mxu0 0
    %2534 = vmatpush1.bf16.msra.mxu0 0
    %2535 = vmatprep.mubr.bf16.mxu0 0
    %2536 = vmatmul.mubr.bf16.gmra.mrb[0].mxu0 %v1931
    %v2537 = vpop.f32.mrb[0].mxu0
    %v2538 = vadd.f32 %v2441, %v2537
    %v2539 = vpop.f32.mrb[0].mxu0
    %v2540 = vpop.f32.mrb[0].mxu0
    %v2541 = vadd.f32 %v2444, %v2540
    %v2542 = vpop.f32.mrb[0].mxu0
    %2543 = vmatprep.mubr.bf16.mxu0 0
    %2544 = vmatmul.mubr.bf16.gmra.mrb[0].mxu0 %v1934
    %v2545 = vpop.f32.mrb[0].mxu0
    %v2546 = vadd.f32 %v2449, %v2545
    %v2547 = vpop.f32.mrb[0].mxu0
    %v2548 = vpop.f32.mrb[0].mxu0
    %v2549 = vadd.f32 %v2452, %v2548
    %v2550 = vpop.f32.mrb[0].mxu0
    %2551 = vmatprep.mubr.bf16.mxu0 0
    %2552 = vmatmul.mubr.bf16.gmra.mrb[0].mxu0 %v1937
    %v2553 = vpop.f32.mrb[0].mxu0
    %v2554 = vadd.f32 %v2457, %v2553
    %v2555 = vpop.f32.mrb[0].mxu0
    %v2556 = vpop.f32.mrb[0].mxu0
    %v2557 = vadd.f32 %v2460, %v2556
    %v2558 = vpop.f32.mrb[0].mxu0
    %2559 = vmatprep.mubr.bf16.mxu0 0
    %2560 = vmatmul.mubr.bf16.gmra.mrb[0].mxu0 %v1940
    %v2561 = vpop.f32.mrb[0].mxu0
    %v2562 = vadd.f32 %v2465, %v2561
    %v2563 = vpop.f32.mrb[0].mxu0
    %v2564 = vpop.f32.mrb[0].mxu0
    %v2565 = vadd.f32 %v2468, %v2564
    %v2566 = vpop.f32.mrb[0].mxu0
    %2567 = vmatprep.mubr.bf16.mxu0 0
    %2568 = vmatmul.mubr.bf16.gmra.mrb[0].mxu0 %v1943
    %v2569 = vpop.f32.mrb[0].mxu0
    %v2570 = vadd.f32 %v2473, %v2569
    %v2571 = vpop.f32.mrb[0].mxu0
    %v2572 = vpop.f32.mrb[0].mxu0
    %v2573 = vadd.f32 %v2476, %v2572
    %v2574 = vpop.f32.mrb[0].mxu0
    %2575 = vmatprep.mubr.bf16.mxu0 0
    %2576 = vmatmul.mubr.bf16.gmra.mrb[0].mxu0 %v1946
    %v2577 = vpop.f32.mrb[0].mxu0
    %v2578 = vadd.f32 %v2481, %v2577
    %v2579 = vpop.f32.mrb[0].mxu0
    %v2580 = vpop.f32.mrb[0].mxu0
    %v2581 = vadd.f32 %v2484, %v2580
    %v2582 = vpop.f32.mrb[0].mxu0
    %2583 = vmatprep.mubr.bf16.mxu0 0
    %2584 = vmatmul.mubr.bf16.gmra.mrb[0].mxu0 %v1949
    %v2585 = vpop.f32.mrb[0].mxu0
    %v2586 = vadd.f32 %v2489, %v2585
    %v2587 = vpop.f32.mrb[0].mxu0
    %v2588 = vpop.f32.mrb[0].mxu0
    %v2589 = vadd.f32 %v2492, %v2588
    %v2590 = vpop.f32.mrb[0].mxu0
    %2591 = vmatprep.mubr.bf16.mxu0 0
    %2592 = vmatmul.mubr.bf16.gmra.mrb[0].mxu0 %v1952
    %v2593 = vpop.f32.mrb[0].mxu0
    %v2594 = vadd.f32 %v2497, %v2593
    %v2595 = vpop.f32.mrb[0].mxu0
    %v2596 = vpop.f32.mrb[0].mxu0
    %v2597 = vadd.f32 %v2500, %v2596
    %v2598 = vpop.f32.mrb[0].mxu0
    %2599 = vdwg.mxu0
    %vm2600 = vcmp.gt.f32.partialorder %v2102, 0.0
    %vm2601 = vcmp.gt.f32.partialorder %v2104, 0.0
    %vm2602 = vcmp.gt.f32.partialorder %v2328, 0.0
    %vm2603 = vcmp.gt.f32.partialorder %v2330, 0.0
    %vm2604 = vcmp.gt.f32.partialorder %v2538, 0.0
    %vm2605 = vcmp.gt.f32.partialorder %v2106, 0.0
    %vm2606 = vcmp.gt.f32.partialorder %v2108, 0.0
    %vm2607 = vcmp.gt.f32.partialorder %v2332, 0.0
    %vm2608 = vcmp.gt.f32.partialorder %v2334, 0.0
    %vm2609 = vcmp.gt.f32.partialorder %v2541, 0.0
    %vm2610 = vcmp.gt.f32.partialorder %v2112, 0.0
    %vm2611 = vcmp.gt.f32.partialorder %v2114, 0.0
    %vm2612 = vcmp.gt.f32.partialorder %v2338, 0.0
    %vm2613 = vcmp.gt.f32.partialorder %v2340, 0.0
    %vm2614 = vcmp.gt.f32.partialorder %v2546, 0.0
    %vm2615 = vcmp.gt.f32.partialorder %v2116, 0.0
    %vm2616 = vcmp.gt.f32.partialorder %v2118, 0.0
    %vm2617 = vcmp.gt.f32.partialorder %v2342, 0.0
    %vm2618 = vcmp.gt.f32.partialorder %v2344, 0.0
    %vm2619 = vcmp.gt.f32.partialorder %v2549, 0.0
    %vm2620 = vcmp.gt.f32.partialorder %v2122, 0.0
    %vm2621 = vcmp.gt.f32.partialorder %v2124, 0.0
    %vm2622 = vcmp.gt.f32.partialorder %v2348, 0.0
    %vm2623 = vcmp.gt.f32.partialorder %v2350, 0.0
    %vm2624 = vcmp.gt.f32.partialorder %v2554, 0.0
    %vm2625 = vcmp.gt.f32.partialorder %v2126, 0.0
    %vm2626 = vcmp.gt.f32.partialorder %v2128, 0.0
    %vm2627 = vcmp.gt.f32.partialorder %v2352, 0.0
    %vm2628 = vcmp.gt.f32.partialorder %v2354, 0.0
    %vm2629 = vcmp.gt.f32.partialorder %v2557, 0.0
    %vm2630 = vcmp.gt.f32.partialorder %v2132, 0.0
    %vm2631 = vcmp.gt.f32.partialorder %v2134, 0.0
    %vm2632 = vcmp.gt.f32.partialorder %v2358, 0.0
    %vm2633 = vcmp.gt.f32.partialorder %v2360, 0.0
    %vm2634 = vcmp.gt.f32.partialorder %v2562, 0.0
    %vm2635 = vcmp.gt.f32.partialorder %v2136, 0.0
    %vm2636 = vcmp.gt.f32.partialorder %v2138, 0.0
    %vm2637 = vcmp.gt.f32.partialorder %v2362, 0.0
    %vm2638 = vcmp.gt.f32.partialorder %v2364, 0.0
    %vm2639 = vcmp.gt.f32.partialorder %v2565, 0.0
    %vm2640 = vcmp.gt.f32.partialorder %v2142, 0.0
    %vm2641 = vcmp.gt.f32.partialorder %v2144, 0.0
    %vm2642 = vcmp.gt.f32.partialorder %v2368, 0.0
    %vm2643 = vcmp.gt.f32.partialorder %v2370, 0.0
    %vm2644 = vcmp.gt.f32.partialorder %v2570, 0.0
    %vm2645 = vcmp.gt.f32.partialorder %v2146, 0.0
    %vm2646 = vcmp.gt.f32.partialorder %v2148, 0.0
    %vm2647 = vcmp.gt.f32.partialorder %v2372, 0.0
    %vm2648 = vcmp.gt.f32.partialorder %v2374, 0.0
    %vm2649 = vcmp.gt.f32.partialorder %v2573, 0.0
    %vm2650 = vcmp.gt.f32.partialorder %v2152, 0.0
    %vm2651 = vcmp.gt.f32.partialorder %v2154, 0.0
    %vm2652 = vcmp.gt.f32.partialorder %v2378, 0.0
    %vm2653 = vcmp.gt.f32.partialorder %v2380, 0.0
    %vm2654 = vcmp.gt.f32.partialorder %v2578, 0.0
    %vm2655 = vcmp.gt.f32.partialorder %v2156, 0.0
    %vm2656 = vcmp.gt.f32.partialorder %v2158, 0.0
    %vm2657 = vcmp.gt.f32.partialorder %v2382, 0.0
    %vm2658 = vcmp.gt.f32.partialorder %v2384, 0.0
    %vm2659 = vcmp.gt.f32.partialorder %v2581, 0.0
    %vm2660 = vcmp.gt.f32.partialorder %v2162, 0.0
    %vm2661 = vcmp.gt.f32.partialorder %v2164, 0.0
    %vm2662 = vcmp.gt.f32.partialorder %v2388, 0.0
    %vm2663 = vcmp.gt.f32.partialorder %v2390, 0.0
    %vm2664 = vcmp.gt.f32.partialorder %v2586, 0.0
    %vm2665 = vcmp.gt.f32.partialorder %v2166, 0.0
    %vm2666 = vcmp.gt.f32.partialorder %v2168, 0.0
    %vm2667 = vcmp.gt.f32.partialorder %v2392, 0.0
    %vm2668 = vcmp.gt.f32.partialorder %v2394, 0.0
    %vm2669 = vcmp.gt.f32.partialorder %v2589, 0.0
    %vm2670 = vcmp.gt.f32.partialorder %v2172, 0.0
    %vm2671 = vcmp.gt.f32.partialorder %v2174, 0.0
    %vm2672 = vcmp.gt.f32.partialorder %v2398, 0.0
    %vm2673 = vcmp.gt.f32.partialorder %v2400, 0.0
    %vm2674 = vcmp.gt.f32.partialorder %v2594, 0.0
    %vm2675 = vcmp.gt.f32.partialorder %v2176, 0.0
    %vm2676 = vcmp.gt.f32.partialorder %v2178, 0.0
    %vm2677 = vcmp.gt.f32.partialorder %v2402, 0.0
    %vm2678 = vcmp.gt.f32.partialorder %v2404, 0.0
    %vm2679 = vcmp.gt.f32.partialorder %v2597, 0.0
    %v2680 = vmul.f32 %v2102, 0.2
    %v2681 = vmul.f32 %v2104, 0.2
    %v2682 = vmul.f32 %v2328, 0.2
    %v2683 = vmul.f32 %v2330, 0.2
    %v2684 = vmul.f32 %v2538, 0.2
    %v2685 = vmul.f32 %v2106, 0.2
    %v2686 = vmul.f32 %v2108, 0.2
    %v2687 = vmul.f32 %v2332, 0.2
    %v2688 = vmul.f32 %v2334, 0.2
    %v2689 = vmul.f32 %v2541, 0.2
    %v2690 = vmul.f32 %v2112, 0.2
    %v2691 = vmul.f32 %v2114, 0.2
    %v2692 = vmul.f32 %v2338, 0.2
    %v2693 = vmul.f32 %v2340, 0.2
    %v2694 = vmul.f32 %v2546, 0.2
    %v2695 = vmul.f32 %v2116, 0.2
    %v2696 = vmul.f32 %v2118, 0.2
    %v2697 = vmul.f32 %v2342, 0.2
    %v2698 = vmul.f32 %v2344, 0.2
    %v2699 = vmul.f32 %v2549, 0.2
    %v2700 = vmul.f32 %v2122, 0.2
    %v2701 = vmul.f32 %v2124, 0.2
    %v2702 = vmul.f32 %v2348, 0.2
    %v2703 = vmul.f32 %v2350, 0.2
    %v2704 = vmul.f32 %v2554, 0.2
    %v2705 = vmul.f32 %v2126, 0.2
    %v2706 = vmul.f32 %v2128, 0.2
    %v2707 = vmul.f32 %v2352, 0.2
    %v2708 = vmul.f32 %v2354, 0.2
    %v2709 = vmul.f32 %v2557, 0.2
    %v2710 = vmul.f32 %v2132, 0.2
    %v2711 = vmul.f32 %v2134, 0.2
    %v2712 = vmul.f32 %v2358, 0.2
    %v2713 = vmul.f32 %v2360, 0.2
    %v2714 = vmul.f32 %v2562, 0.2
    %v2715 = vmul.f32 %v2136, 0.2
    %v2716 = vmul.f32 %v2138, 0.2
    %v2717 = vmul.f32 %v2362, 0.2
    %v2718 = vmul.f32 %v2364, 0.2
    %v2719 = vmul.f32 %v2565, 0.2
    %v2720 = vmul.f32 %v2142, 0.2
    %v2721 = vmul.f32 %v2144, 0.2
    %v2722 = vmul.f32 %v2368, 0.2
    %v2723 = vmul.f32 %v2370, 0.2
    %v2724 = vmul.f32 %v2570, 0.2
    %v2725 = vmul.f32 %v2146, 0.2
    %v2726 = vmul.f32 %v2148, 0.2
    %v2727 = vmul.f32 %v2372, 0.2
    %v2728 = vmul.f32 %v2374, 0.2
    %v2729 = vmul.f32 %v2573, 0.2
    %v2730 = vmul.f32 %v2152, 0.2
    %v2731 = vmul.f32 %v2154, 0.2
    %v2732 = vmul.f32 %v2378, 0.2
    %v2733 = vmul.f32 %v2380, 0.2
    %v2734 = vmul.f32 %v2578, 0.2
    %v2735 = vmul.f32 %v2156, 0.2
    %v2736 = vmul.f32 %v2158, 0.2
    %v2737 = vmul.f32 %v2382, 0.2
    %v2738 = vmul.f32 %v2384, 0.2
    %v2739 = vmul.f32 %v2581, 0.2
    %v2740 = vmul.f32 %v2162, 0.2
    %v2741 = vmul.f32 %v2164, 0.2
    %v2742 = vmul.f32 %v2388, 0.2
    %v2743 = vmul.f32 %v2390, 0.2
    %v2744 = vmul.f32 %v2586, 0.2
    %v2745 = vmul.f32 %v2166, 0.2
    %v2746 = vmul.f32 %v2168, 0.2
    %v2747 = vmul.f32 %v2392, 0.2
    %v2748 = vmul.f32 %v2394, 0.2
    %v2749 = vmul.f32 %v2589, 0.2
    %v2750 = vmul.f32 %v2172, 0.2
    %v2751 = vmul.f32 %v2174, 0.2
    %v2752 = vmul.f32 %v2398, 0.2
    %v2753 = vmul.f32 %v2400, 0.2
    %v2754 = vmul.f32 %v2594, 0.2
    %v2755 = vmul.f32 %v2176, 0.2
    %v2756 = vmul.f32 %v2178, 0.2
    %v2757 = vmul.f32 %v2402, 0.2
    %v2758 = vmul.f32 %v2404, 0.2
    %v2759 = vmul.f32 %v2597, 0.2
    %v2760 = vsel %vm2600, %v2102, %v2680
    %v2761 = vsel %vm2601, %v2104, %v2681
    %v2762 = vsel %vm2602, %v2328, %v2682
    %v2763 = vsel %vm2603, %v2330, %v2683
    %v2764 = vsel %vm2604, %v2538, %v2684
    %v2765 = vsel %vm2605, %v2106, %v2685
    %v2766 = vsel %vm2606, %v2108, %v2686
    %v2767 = vsel %vm2607, %v2332, %v2687
    %v2768 = vsel %vm2608, %v2334, %v2688
    %v2769 = vsel %vm2609, %v2541, %v2689
    %v2770 = vsel %vm2610, %v2112, %v2690
    %v2771 = vsel %vm2611, %v2114, %v2691
    %v2772 = vsel %vm2612, %v2338, %v2692
    %v2773 = vsel %vm2613, %v2340, %v2693
    %v2774 = vsel %vm2614, %v2546, %v2694
    %v2775 = vsel %vm2615, %v2116, %v2695
    %v2776 = vsel %vm2616, %v2118, %v2696
    %v2777 = vsel %vm2617, %v2342, %v2697
    %v2778 = vsel %vm2618, %v2344, %v2698
    %v2779 = vsel %vm2619, %v2549, %v2699
    %v2780 = vsel %vm2620, %v2122, %v2700
    %v2781 = vsel %vm2621, %v2124, %v2701
    %v2782 = vsel %vm2622, %v2348, %v2702
    %v2783 = vsel %vm2623, %v2350, %v2703
    %v2784 = vsel %vm2624, %v2554, %v2704
    %v2785 = vsel %vm2625, %v2126, %v2705
    %v2786 = vsel %vm2626, %v2128, %v2706
    %v2787 = vsel %vm2627, %v2352, %v2707
    %v2788 = vsel %vm2628, %v2354, %v2708
    %v2789 = vsel %vm2629, %v2557, %v2709
    %v2790 = vsel %vm2630, %v2132, %v2710
    %v2791 = vsel %vm2631, %v2134, %v2711
    %v2792 = vsel %vm2632, %v2358, %v2712
    %v2793 = vsel %vm2633, %v2360, %v2713
    %v2794 = vsel %vm2634, %v2562, %v2714
    %v2795 = vsel %vm2635, %v2136, %v2715
    %v2796 = vsel %vm2636, %v2138, %v2716
    %v2797 = vsel %vm2637, %v2362, %v2717
    %v2798 = vsel %vm2638, %v2364, %v2718
    %v2799 = vsel %vm2639, %v2565, %v2719
    %v2800 = vsel %vm2640, %v2142, %v2720
    %v2801 = vsel %vm2641, %v2144, %v2721
    %v2802 = vsel %vm2642, %v2368, %v2722
    %v2803 = vsel %vm2643, %v2370, %v2723
    %v2804 = vsel %vm2644, %v2570, %v2724
    %v2805 = vsel %vm2645, %v2146, %v2725
    %v2806 = vsel %vm2646, %v2148, %v2726
    %v2807 = vsel %vm2647, %v2372, %v2727
    %v2808 = vsel %vm2648, %v2374, %v2728
    %v2809 = vsel %vm2649, %v2573, %v2729
    %v2810 = vsel %vm2650, %v2152, %v2730
    %v2811 = vsel %vm2651, %v2154, %v2731
    %v2812 = vsel %vm2652, %v2378, %v2732
    %v2813 = vsel %vm2653, %v2380, %v2733
    %v2814 = vsel %vm2654, %v2578, %v2734
    %v2815 = vsel %vm2655, %v2156, %v2735
    %v2816 = vsel %vm2656, %v2158, %v2736
    %v2817 = vsel %vm2657, %v2382, %v2737
    %v2818 = vsel %vm2658, %v2384, %v2738
    %v2819 = vsel %vm2659, %v2581, %v2739
    %v2820 = vsel %vm2660, %v2162, %v2740
    %v2821 = vsel %vm2661, %v2164, %v2741
    %v2822 = vsel %vm2662, %v2388, %v2742
    %v2823 = vsel %vm2663, %v2390, %v2743
    %v2824 = vsel %vm2664, %v2586, %v2744
    %v2825 = vsel %vm2665, %v2166, %v2745
    %v2826 = vsel %vm2666, %v2168, %v2746
    %v2827 = vsel %vm2667, %v2392, %v2747
    %v2828 = vsel %vm2668, %v2394, %v2748
    %v2829 = vsel %vm2669, %v2589, %v2749
    %v2830 = vsel %vm2670, %v2172, %v2750
    %v2831 = vsel %vm2671, %v2174, %v2751
    %v2832 = vsel %vm2672, %v2398, %v2752
    %v2833 = vsel %vm2673, %v2400, %v2753
    %v2834 = vsel %vm2674, %v2594, %v2754
    %v2835 = vsel %vm2675, %v2176, %v2755
    %v2836 = vsel %vm2676, %v2178, %v2756
    %v2837 = vsel %vm2677, %v2402, %v2757
    %v2838 = vsel %vm2678, %v2404, %v2758
    %v2839 = vsel %vm2679, %v2597, %v2759
    %v2840 = vpack.c.bf16 %v2765, %v2760
    %v2841 = vpack.c.bf16 %v2766, %v2761
    %v2842 = vpack.c.bf16 %v2767, %v2762
    %v2843 = vpack.c.bf16 %v2768, %v2763
    %v2844 = vpack.c.bf16 %v2769, %v2764
    %v2845 = vpack.c.bf16 %v2775, %v2770
    %v2846 = vpack.c.bf16 %v2776, %v2771
    %v2847 = vpack.c.bf16 %v2777, %v2772
    %v2848 = vpack.c.bf16 %v2778, %v2773
    %v2849 = vpack.c.bf16 %v2779, %v2774
    %v2850 = vpack.c.bf16 %v2785, %v2780
    %v2851 = vpack.c.bf16 %v2786, %v2781
    %v2852 = vpack.c.bf16 %v2787, %v2782
    %v2853 = vpack.c.bf16 %v2788, %v2783
    %v2854 = vpack.c.bf16 %v2789, %v2784
    %v2855 = vpack.c.bf16 %v2795, %v2790
    %v2856 = vpack.c.bf16 %v2796, %v2791
    %v2857 = vpack.c.bf16 %v2797, %v2792
    %v2858 = vpack.c.bf16 %v2798, %v2793
    %v2859 = vpack.c.bf16 %v2799, %v2794
    %v2860 = vpack.c.bf16 %v2805, %v2800
    %v2861 = vpack.c.bf16 %v2806, %v2801
    %v2862 = vpack.c.bf16 %v2807, %v2802
    %v2863 = vpack.c.bf16 %v2808, %v2803
    %v2864 = vpack.c.bf16 %v2809, %v2804
    %v2865 = vpack.c.bf16 %v2815, %v2810
    %v2866 = vpack.c.bf16 %v2816, %v2811
    %v2867 = vpack.c.bf16 %v2817, %v2812
    %v2868 = vpack.c.bf16 %v2818, %v2813
    %v2869 = vpack.c.bf16 %v2819, %v2814
    %v2870 = vpack.c.bf16 %v2825, %v2820
    %v2871 = vpack.c.bf16 %v2826, %v2821
    %v2872 = vpack.c.bf16 %v2827, %v2822
    %v2873 = vpack.c.bf16 %v2828, %v2823
    %v2874 = vpack.c.bf16 %v2829, %v2824
    %v2875 = vpack.c.bf16 %v2835, %v2830
    %v2876 = vpack.c.bf16 %v2836, %v2831
    %v2877 = vpack.c.bf16 %v2837, %v2832
    %v2878 = vpack.c.bf16 %v2838, %v2833
    %v2879 = vpack.c.bf16 %v2839, %v2834
    %v2880 = vld [vmem:[%s5] sm:$0xff]
    %v2881 = vld [vmem:[%s5 + $0x8] sm:$0xff]
    %v2882 = vld [vmem:[%s5 + $0x10] sm:$0xff]
    %v2883 = vld [vmem:[%s5 + $0x18] sm:$0xff]
    %v2884 = vld [vmem:[%s5 + $0x20] sm:$0xff]
    %v2885 = vld [vmem:[%s5 + $0x28] sm:$0xff]
    %v2886 = vld [vmem:[%s5 + $0x30] sm:$0xff]
    %v2887 = vld [vmem:[%s5 + $0x38] sm:$0xff]
    %v2888 = vld [vmem:[%s5 + $0x40] sm:$0xff]
    %v2889 = vld [vmem:[%s5 + $0x48] sm:$0xff]
    %v2890 = vld [vmem:[%s5 + $0x50] sm:$0xff]
    %v2891 = vld [vmem:[%s5 + $0x58] sm:$0xff]
    %v2892 = vld [vmem:[%s5 + $0x60] sm:$0xff]
    %v2893 = vld [vmem:[%s5 + $0x68] sm:$0xff]
    %v2894 = vld [vmem:[%s5 + $0x70] sm:$0xff]
    %v2895 = vld [vmem:[%s5 + $0x78] sm:$0xff]
    %v2896 = vld [vmem:[%s5 + $0x80] sm:$0xff]
    %v2897 = vld [vmem:[%s5 + $0x88] sm:$0xff]
    %v2898 = vld [vmem:[%s5 + $0x90] sm:$0xff]
    %v2899 = vld [vmem:[%s5 + $0x98] sm:$0xff]
    %v2900 = vld [vmem:[%s5 + $0xa0] sm:$0xff]
    %v2901 = vld [vmem:[%s5 + $0xa8] sm:$0xff]
    %v2902 = vld [vmem:[%s5 + $0xb0] sm:$0xff]
    %v2903 = vld [vmem:[%s5 + $0xb8] sm:$0xff]
    %v2904 = vld [vmem:[%s5 + $0xc0] sm:$0xff]
    %v2905 = vld [vmem:[%s5 + $0xc8] sm:$0xff]
    %v2906 = vld [vmem:[%s5 + $0xd0] sm:$0xff]
    %v2907 = vld [vmem:[%s5 + $0xd8] sm:$0xff]
    %v2908 = vld [vmem:[%s5 + $0xe0] sm:$0xff]
    %v2909 = vld [vmem:[%s5 + $0xe8] sm:$0xff]
    %v2910 = vld [vmem:[%s5 + $0xf0] sm:$0xff]
    %v2911 = vld [vmem:[%s5 + $0xf8] sm:$0xff]
    %v2912 = vld [vmem:[%s5 + $0x100] sm:$0xff]
    %v2913 = vld [vmem:[%s5 + $0x108] sm:$0xff]
    %v2914 = vld [vmem:[%s5 + $0x110] sm:$0xff]
    %v2915 = vld [vmem:[%s5 + $0x118] sm:$0xff]
    %v2916 = vld [vmem:[%s5 + $0x120] sm:$0xff]
    %v2917 = vld [vmem:[%s5 + $0x128] sm:$0xff]
    %v2918 = vld [vmem:[%s5 + $0x130] sm:$0xff]
    %v2919 = vld [vmem:[%s5 + $0x138] sm:$0xff]
    %v2920 = vld [vmem:[%s5 + $0x140] sm:$0xff]
    %v2921 = vld [vmem:[%s5 + $0x148] sm:$0xff]
    %v2922 = vld [vmem:[%s5 + $0x150] sm:$0xff]
    %v2923 = vld [vmem:[%s5 + $0x158] sm:$0xff]
    %v2924 = vld [vmem:[%s5 + $0x160] sm:$0xff]
    %v2925 = vld [vmem:[%s5 + $0x168] sm:$0xff]
    %v2926 = vld [vmem:[%s5 + $0x170] sm:$0xff]
    %v2927 = vld [vmem:[%s5 + $0x178] sm:$0xff]
    %v2928 = vld [vmem:[%s5 + $0x180] sm:$0xff]
    %v2929 = vld [vmem:[%s5 + $0x188] sm:$0xff]
    %v2930 = vld [vmem:[%s5 + $0x190] sm:$0xff]
    %v2931 = vld [vmem:[%s5 + $0x198] sm:$0xff]
    %v2932 = vld [vmem:[%s5 + $0x1a0] sm:$0xff]
    %v2933 = vld [vmem:[%s5 + $0x1a8] sm:$0xff]
    %v2934 = vld [vmem:[%s5 + $0x1b0] sm:$0xff]
    %v2935 = vld [vmem:[%s5 + $0x1b8] sm:$0xff]
    %v2936 = vld [vmem:[%s5 + $0x1c0] sm:$0xff]
    %v2937 = vld [vmem:[%s5 + $0x1c8] sm:$0xff]
    %v2938 = vld [vmem:[%s5 + $0x1d0] sm:$0xff]
    %v2939 = vld [vmem:[%s5 + $0x1d8] sm:$0xff]
    %v2940 = vld [vmem:[%s5 + $0x1e0] sm:$0xff]
    %v2941 = vld [vmem:[%s5 + $0x1e8] sm:$0xff]
    %v2942 = vld [vmem:[%s5 + $0x1f0] sm:$0xff]
    %v2943 = vld [vmem:[%s5 + $0x1f8] sm:$0xff]
    %v2944 = vld [vmem:[%s5 + $0x200] sm:$0xff]
    %v2945 = vld [vmem:[%s5 + $0x208] sm:$0xff]
    %v2946 = vld [vmem:[%s5 + $0x210] sm:$0xff]
    %v2947 = vld [vmem:[%s5 + $0x218] sm:$0xff]
    %v2948 = vld [vmem:[%s5 + $0x220] sm:$0xff]
    %v2949 = vld [vmem:[%s5 + $0x228] sm:$0xff]
    %v2950 = vld [vmem:[%s5 + $0x230] sm:$0xff]
    %v2951 = vld [vmem:[%s5 + $0x238] sm:$0xff]
    %v2952 = vld [vmem:[%s5 + $0x240] sm:$0xff]
    %v2953 = vld [vmem:[%s5 + $0x248] sm:$0xff]
    %v2954 = vld [vmem:[%s5 + $0x250] sm:$0xff]
    %v2955 = vld [vmem:[%s5 + $0x258] sm:$0xff]
    %v2956 = vld [vmem:[%s5 + $0x260] sm:$0xff]
    %v2957 = vld [vmem:[%s5 + $0x268] sm:$0xff]
    %v2958 = vld [vmem:[%s5 + $0x270] sm:$0xff]
    %v2959 = vld [vmem:[%s5 + $0x278] sm:$0xff]
    %v2960 = vld [vmem:[%s5 + $0x280] sm:$0xff]
    %v2961 = vld [vmem:[%s5 + $0x288] sm:$0xff]
    %v2962 = vld [vmem:[%s5 + $0x290] sm:$0xff]
    %v2963 = vld [vmem:[%s5 + $0x298] sm:$0xff]
    %v2964 = vld [vmem:[%s5 + $0x2a0] sm:$0xff]
    %v2965 = vld [vmem:[%s5 + $0x2a8] sm:$0xff]
    %v2966 = vld [vmem:[%s5 + $0x2b0] sm:$0xff]
    %v2967 = vld [vmem:[%s5 + $0x2b8] sm:$0xff]
    %v2968 = vld [vmem:[%s5 + $0x2c0] sm:$0xff]
    %v2969 = vld [vmem:[%s5 + $0x2c8] sm:$0xff]
    %v2970 = vld [vmem:[%s5 + $0x2d0] sm:$0xff]
    %v2971 = vld [vmem:[%s5 + $0x2d8] sm:$0xff]
    %v2972 = vld [vmem:[%s5 + $0x2e0] sm:$0xff]
    %v2973 = vld [vmem:[%s5 + $0x2e8] sm:$0xff]
    %v2974 = vld [vmem:[%s5 + $0x2f0] sm:$0xff]
    %v2975 = vld [vmem:[%s5 + $0x2f8] sm:$0xff]
    %v2976 = vld [vmem:[%s5 + $0x300] sm:$0xff]
    %v2977 = vld [vmem:[%s5 + $0x308] sm:$0xff]
    %v2978 = vld [vmem:[%s5 + $0x310] sm:$0xff]
    %v2979 = vld [vmem:[%s5 + $0x318] sm:$0xff]
    %v2980 = vld [vmem:[%s5 + $0x320] sm:$0xff]
    %v2981 = vld [vmem:[%s5 + $0x328] sm:$0xff]
    %v2982 = vld [vmem:[%s5 + $0x330] sm:$0xff]
    %v2983 = vld [vmem:[%s5 + $0x338] sm:$0xff]
    %v2984 = vld [vmem:[%s5 + $0x340] sm:$0xff]
    %v2985 = vld [vmem:[%s5 + $0x348] sm:$0xff]
    %v2986 = vld [vmem:[%s5 + $0x350] sm:$0xff]
    %v2987 = vld [vmem:[%s5 + $0x358] sm:$0xff]
    %v2988 = vld [vmem:[%s5 + $0x360] sm:$0xff]
    %v2989 = vld [vmem:[%s5 + $0x368] sm:$0xff]
    %v2990 = vld [vmem:[%s5 + $0x370] sm:$0xff]
    %v2991 = vld [vmem:[%s5 + $0x378] sm:$0xff]
    %v2992 = vld [vmem:[%s5 + $0x380] sm:$0xff]
    %v2993 = vld [vmem:[%s5 + $0x388] sm:$0xff]
    %v2994 = vld [vmem:[%s5 + $0x390] sm:$0xff]
    %v2995 = vld [vmem:[%s5 + $0x398] sm:$0xff]
    %v2996 = vld [vmem:[%s5 + $0x3a0] sm:$0xff]
    %v2997 = vld [vmem:[%s5 + $0x3a8] sm:$0xff]
    %v2998 = vld [vmem:[%s5 + $0x3b0] sm:$0xff]
    %v2999 = vld [vmem:[%s5 + $0x3b8] sm:$0xff]
    %v3000 = vld [vmem:[%s5 + $0x3c0] sm:$0xff]
    %v3001 = vld [vmem:[%s5 + $0x3c8] sm:$0xff]
    %v3002 = vld [vmem:[%s5 + $0x3d0] sm:$0xff]
    %v3003 = vld [vmem:[%s5 + $0x3d8] sm:$0xff]
    %v3004 = vld [vmem:[%s5 + $0x3e0] sm:$0xff]
    %v3005 = vld [vmem:[%s5 + $0x3e8] sm:$0xff]
    %v3006 = vld [vmem:[%s5 + $0x3f0] sm:$0xff]
    %v3007 = vld [vmem:[%s5 + $0x3f8] sm:$0xff]
    %v3008 = vld [vmem:[%s5 + $0x400] sm:$0xff]
    %v3009 = vld [vmem:[%s5 + $0x408] sm:$0xff]
    %v3010 = vld [vmem:[%s5 + $0x410] sm:$0xff]
    %v3011 = vld [vmem:[%s5 + $0x418] sm:$0xff]
    %v3012 = vld [vmem:[%s5 + $0x420] sm:$0xff]
    %v3013 = vld [vmem:[%s5 + $0x428] sm:$0xff]
    %v3014 = vld [vmem:[%s5 + $0x430] sm:$0xff]
    %v3015 = vld [vmem:[%s5 + $0x438] sm:$0xff]
    %v3016 = vld [vmem:[%s5 + $0x440] sm:$0xff]
    %v3017 = vld [vmem:[%s5 + $0x448] sm:$0xff]
    %v3018 = vld [vmem:[%s5 + $0x450] sm:$0xff]
    %v3019 = vld [vmem:[%s5 + $0x458] sm:$0xff]
    %v3020 = vld [vmem:[%s5 + $0x460] sm:$0xff]
    %v3021 = vld [vmem:[%s5 + $0x468] sm:$0xff]
    %v3022 = vld [vmem:[%s5 + $0x470] sm:$0xff]
    %v3023 = vld [vmem:[%s5 + $0x478] sm:$0xff]
    %v3024 = vld [vmem:[%s6] sm:$0xf]
    %v3026 = vlaneseq
    %v3027 = vshrl.u32 %v3026, 7
    %v3028 = vsub.s32 0, %v3027
    %v3029 = vrot.slane %v3024, %v3028
    %v3030 = vlaneseq
    %v3031 = vshrl.u32 %v3030, 7
    %v3032 = vsub.s32 1, %v3031
    %v3033 = vrot.slane %v3024, %v3032
    %v3034 = vlaneseq
    %v3035 = vshrl.u32 %v3034, 7
    %v3036 = vsub.s32 2, %v3035
    %v3037 = vrot.slane %v3024, %v3036
    %v3038 = vlaneseq
    %v3039 = vshrl.u32 %v3038, 7
    %v3040 = vsub.s32 3, %v3039
    %v3041 = vrot.slane %v3024, %v3040
    %v3190 = vunpack.c.l.b16 %v2880
    %v3191 = vunpack.c.h.b16 %v2880
    %v3192 = vunpack.c.l.b16 %v2881
    %v3193 = vunpack.c.h.b16 %v2881
    %v3194 = vunpack.c.l.b16 %v2882
    %v3195 = vunpack.c.h.b16 %v2882
    %v3196 = vunpack.c.l.b16 %v2883
    %v3197 = vunpack.c.h.b16 %v2883
    %v3198 = vunpack.c.l.b16 %v2884
    %v3199 = vunpack.c.h.b16 %v2884
    %v3200 = vunpack.c.l.b16 %v2885
    %v3201 = vunpack.c.h.b16 %v2885
    %v3202 = vunpack.c.l.b16 %v2886
    %v3203 = vunpack.c.h.b16 %v2886
    %v3204 = vunpack.c.l.b16 %v2887
    %v3205 = vunpack.c.h.b16 %v2887
    %v3206 = vunpack.c.l.b16 %v2888
    %v3207 = vunpack.c.h.b16 %v2888
    %v3208 = vunpack.c.l.b16 %v2889
    %v3209 = vunpack.c.h.b16 %v2889
    %v3210 = vunpack.c.l.b16 %v2890
    %v3211 = vunpack.c.h.b16 %v2890
    %v3212 = vunpack.c.l.b16 %v2891
    %v3213 = vunpack.c.h.b16 %v2891
    %v3214 = vunpack.c.l.b16 %v2892
    %v3215 = vunpack.c.h.b16 %v2892
    %v3216 = vunpack.c.l.b16 %v2893
    %v3217 = vunpack.c.h.b16 %v2893
    %v3218 = vunpack.c.l.b16 %v2894
    %v3219 = vunpack.c.h.b16 %v2894
    %v3220 = vunpack.c.l.b16 %v2895
    %v3221 = vunpack.c.h.b16 %v2895
    %v3222 = vunpack.c.l.b16 %v2896
    %v3223 = vunpack.c.h.b16 %v2896
    %v3224 = vunpack.c.l.b16 %v2897
    %v3225 = vunpack.c.h.b16 %v2897
    %v3226 = vunpack.c.l.b16 %v2898
    %v3227 = vunpack.c.h.b16 %v2898
    %v3228 = vunpack.c.l.b16 %v2899
    %v3229 = vunpack.c.h.b16 %v2899
    %v3230 = vunpack.c.l.b16 %v2900
    %v3231 = vunpack.c.h.b16 %v2900
    %v3232 = vunpack.c.l.b16 %v2901
    %v3233 = vunpack.c.h.b16 %v2901
    %v3234 = vunpack.c.l.b16 %v2902
    %v3235 = vunpack.c.h.b16 %v2902
    %v3236 = vunpack.c.l.b16 %v2903
    %v3237 = vunpack.c.h.b16 %v2903
    %v3238 = vunpack.c.l.b16 %v2904
    %v3239 = vunpack.c.h.b16 %v2904
    %v3240 = vunpack.c.l.b16 %v2905
    %v3241 = vunpack.c.h.b16 %v2905
    %v3242 = vunpack.c.l.b16 %v2906
    %v3243 = vunpack.c.h.b16 %v2906
    %v3244 = vunpack.c.l.b16 %v2907
    %v3245 = vunpack.c.h.b16 %v2907
    %v3246 = vunpack.c.l.b16 %v2908
    %v3247 = vunpack.c.h.b16 %v2908
    %v3248 = vunpack.c.l.b16 %v2909
    %v3249 = vunpack.c.h.b16 %v2909
    %v3250 = vunpack.c.l.b16 %v2910
    %v3251 = vunpack.c.h.b16 %v2910
    %v3252 = vunpack.c.l.b16 %v2911
    %v3253 = vunpack.c.h.b16 %v2911
    %v3254 = vunpack.c.l.b16 %v2912
    %v3255 = vunpack.c.h.b16 %v2912
    %v3256 = vunpack.c.l.b16 %v2913
    %v3257 = vunpack.c.h.b16 %v2913
    %v3258 = vunpack.c.l.b16 %v2914
    %v3259 = vunpack.c.h.b16 %v2914
    %v3260 = vunpack.c.l.b16 %v2915
    %v3261 = vunpack.c.h.b16 %v2915
    %v3262 = vunpack.c.l.b16 %v2916
    %v3263 = vunpack.c.h.b16 %v2916
    %v3264 = vunpack.c.l.b16 %v2917
    %v3265 = vunpack.c.h.b16 %v2917
    %v3266 = vunpack.c.l.b16 %v2918
    %v3267 = vunpack.c.h.b16 %v2918
    %v3268 = vunpack.c.l.b16 %v2919
    %v3269 = vunpack.c.h.b16 %v2919
    %v3270 = vunpack.c.l.b16 %v2920
    %v3271 = vunpack.c.h.b16 %v2920
    %v3272 = vunpack.c.l.b16 %v2921
    %v3273 = vunpack.c.h.b16 %v2921
    %v3274 = vunpack.c.l.b16 %v2922
    %v3275 = vunpack.c.h.b16 %v2922
    %v3276 = vunpack.c.l.b16 %v2923
    %v3277 = vunpack.c.h.b16 %v2923
    %v3278 = vunpack.c.l.b16 %v2924
    %v3279 = vunpack.c.h.b16 %v2924
    %v3280 = vunpack.c.l.b16 %v2925
    %v3281 = vunpack.c.h.b16 %v2925
    %v3282 = vunpack.c.l.b16 %v2926
    %v3283 = vunpack.c.h.b16 %v2926
    %v3284 = vunpack.c.l.b16 %v2927
    %v3285 = vunpack.c.h.b16 %v2927
    %v3286 = vunpack.c.l.b16 %v2928
    %v3287 = vunpack.c.h.b16 %v2928
    %v3288 = vunpack.c.l.b16 %v2929
    %v3289 = vunpack.c.h.b16 %v2929
    %v3290 = vunpack.c.l.b16 %v2930
    %v3291 = vunpack.c.h.b16 %v2930
    %v3292 = vunpack.c.l.b16 %v2931
    %v3293 = vunpack.c.h.b16 %v2931
    %v3294 = vunpack.c.l.b16 %v2932
    %v3295 = vunpack.c.h.b16 %v2932
    %v3296 = vunpack.c.l.b16 %v2933
    %v3297 = vunpack.c.h.b16 %v2933
    %v3298 = vunpack.c.l.b16 %v2934
    %v3299 = vunpack.c.h.b16 %v2934
    %v3300 = vunpack.c.l.b16 %v2935
    %v3301 = vunpack.c.h.b16 %v2935
    %v3302 = vunpack.c.l.b16 %v2936
    %v3303 = vunpack.c.h.b16 %v2936
    %v3304 = vunpack.c.l.b16 %v2937
    %v3305 = vunpack.c.h.b16 %v2937
    %v3306 = vunpack.c.l.b16 %v2938
    %v3307 = vunpack.c.h.b16 %v2938
    %v3308 = vunpack.c.l.b16 %v2939
    %v3309 = vunpack.c.h.b16 %v2939
    %v3310 = vunpack.c.l.b16 %v2940
    %v3311 = vunpack.c.h.b16 %v2940
    %v3312 = vunpack.c.l.b16 %v2941
    %v3313 = vunpack.c.h.b16 %v2941
    %v3314 = vunpack.c.l.b16 %v2942
    %v3315 = vunpack.c.h.b16 %v2942
    %v3316 = vunpack.c.l.b16 %v2943
    %v3317 = vunpack.c.h.b16 %v2943
    %v3318 = vunpack.c.l.b16 %v2944
    %v3319 = vunpack.c.h.b16 %v2944
    %v3320 = vunpack.c.l.b16 %v2945
    %v3321 = vunpack.c.h.b16 %v2945
    %v3322 = vunpack.c.l.b16 %v2946
    %v3323 = vunpack.c.h.b16 %v2946
    %v3324 = vunpack.c.l.b16 %v2947
    %v3325 = vunpack.c.h.b16 %v2947
    %v3326 = vunpack.c.l.b16 %v2948
    %v3327 = vunpack.c.h.b16 %v2948
    %v3328 = vunpack.c.l.b16 %v2949
    %v3329 = vunpack.c.h.b16 %v2949
    %v3330 = vunpack.c.l.b16 %v2950
    %v3331 = vunpack.c.h.b16 %v2950
    %v3332 = vunpack.c.l.b16 %v2951
    %v3333 = vunpack.c.h.b16 %v2951
    %v3334 = vunpack.c.l.b16 %v2952
    %v3335 = vunpack.c.h.b16 %v2952
    %v3336 = vunpack.c.l.b16 %v2953
    %v3337 = vunpack.c.h.b16 %v2953
    %v3338 = vunpack.c.l.b16 %v2954
    %v3339 = vunpack.c.h.b16 %v2954
    %v3340 = vunpack.c.l.b16 %v2955
    %v3341 = vunpack.c.h.b16 %v2955
    %v3342 = vunpack.c.l.b16 %v2956
    %v3343 = vunpack.c.h.b16 %v2956
    %v3344 = vunpack.c.l.b16 %v2957
    %v3345 = vunpack.c.h.b16 %v2957
    %v3346 = vunpack.c.l.b16 %v2958
    %v3347 = vunpack.c.h.b16 %v2958
    %v3348 = vunpack.c.l.b16 %v2959
    %v3349 = vunpack.c.h.b16 %v2959
    %v3350 = vunpack.c.l.b16 %v2960
    %v3351 = vunpack.c.h.b16 %v2960
    %v3352 = vunpack.c.l.b16 %v2961
    %v3353 = vunpack.c.h.b16 %v2961
    %v3354 = vunpack.c.l.b16 %v2962
    %v3355 = vunpack.c.h.b16 %v2962
    %v3356 = vunpack.c.l.b16 %v2963
    %v3357 = vunpack.c.h.b16 %v2963
    %v3358 = vunpack.c.l.b16 %v2964
    %v3359 = vunpack.c.h.b16 %v2964
    %v3360 = vunpack.c.l.b16 %v2965
    %v3361 = vunpack.c.h.b16 %v2965
    %v3362 = vunpack.c.l.b16 %v2966
    %v3363 = vunpack.c.h.b16 %v2966
    %v3364 = vunpack.c.l.b16 %v2967
    %v3365 = vunpack.c.h.b16 %v2967
    %v3366 = vunpack.c.l.b16 %v2968
    %v3367 = vunpack.c.h.b16 %v2968
    %v3368 = vunpack.c.l.b16 %v2969
    %v3369 = vunpack.c.h.b16 %v2969
    %v3370 = vunpack.c.l.b16 %v2970
    %v3371 = vunpack.c.h.b16 %v2970
    %v3372 = vunpack.c.l.b16 %v2971
    %v3373 = vunpack.c.h.b16 %v2971
    %v3374 = vunpack.c.l.b16 %v2972
    %v3375 = vunpack.c.h.b16 %v2972
    %v3376 = vunpack.c.l.b16 %v2973
    %v3377 = vunpack.c.h.b16 %v2973
    %v3378 = vunpack.c.l.b16 %v2974
    %v3379 = vunpack.c.h.b16 %v2974
    %v3380 = vunpack.c.l.b16 %v2975
    %v3381 = vunpack.c.h.b16 %v2975
    %v3382 = vunpack.c.l.b16 %v2976
    %v3383 = vunpack.c.h.b16 %v2976
    %v3384 = vunpack.c.l.b16 %v2977
    %v3385 = vunpack.c.h.b16 %v2977
    %v3386 = vunpack.c.l.b16 %v2978
    %v3387 = vunpack.c.h.b16 %v2978
    %v3388 = vunpack.c.l.b16 %v2979
    %v3389 = vunpack.c.h.b16 %v2979
    %v3390 = vunpack.c.l.b16 %v2980
    %v3391 = vunpack.c.h.b16 %v2980
    %v3392 = vunpack.c.l.b16 %v2981
    %v3393 = vunpack.c.h.b16 %v2981
    %v3394 = vunpack.c.l.b16 %v2982
    %v3395 = vunpack.c.h.b16 %v2982
    %v3396 = vunpack.c.l.b16 %v2983
    %v3397 = vunpack.c.h.b16 %v2983
    %v3398 = vunpack.c.l.b16 %v2984
    %v3399 = vunpack.c.h.b16 %v2984
    %v3400 = vunpack.c.l.b16 %v2985
    %v3401 = vunpack.c.h.b16 %v2985
    %v3402 = vunpack.c.l.b16 %v2986
    %v3403 = vunpack.c.h.b16 %v2986
    %v3404 = vunpack.c.l.b16 %v2987
    %v3405 = vunpack.c.h.b16 %v2987
    %v3406 = vunpack.c.l.b16 %v2988
    %v3407 = vunpack.c.h.b16 %v2988
    %v3408 = vunpack.c.l.b16 %v2989
    %v3409 = vunpack.c.h.b16 %v2989
    %v3410 = vunpack.c.l.b16 %v2990
    %v3411 = vunpack.c.h.b16 %v2990
    %v3412 = vunpack.c.l.b16 %v2991
    %v3413 = vunpack.c.h.b16 %v2991
    %v3414 = vunpack.c.l.b16 %v2992
    %v3415 = vunpack.c.h.b16 %v2992
    %v3416 = vunpack.c.l.b16 %v2993
    %v3417 = vunpack.c.h.b16 %v2993
    %v3418 = vunpack.c.l.b16 %v2994
    %v3419 = vunpack.c.h.b16 %v2994
    %v3420 = vunpack.c.l.b16 %v2995
    %v3421 = vunpack.c.h.b16 %v2995
    %v3422 = vunpack.c.l.b16 %v2996
    %v3423 = vunpack.c.h.b16 %v2996
    %v3424 = vunpack.c.l.b16 %v2997
    %v3425 = vunpack.c.h.b16 %v2997
    %v3426 = vunpack.c.l.b16 %v2998
    %v3427 = vunpack.c.h.b16 %v2998
    %v3428 = vunpack.c.l.b16 %v2999
    %v3429 = vunpack.c.h.b16 %v2999
    %v3430 = vunpack.c.l.b16 %v3000
    %v3431 = vunpack.c.h.b16 %v3000
    %v3432 = vunpack.c.l.b16 %v3001
    %v3433 = vunpack.c.h.b16 %v3001
    %v3434 = vunpack.c.l.b16 %v3002
    %v3435 = vunpack.c.h.b16 %v3002
    %v3436 = vunpack.c.l.b16 %v3003
    %v3437 = vunpack.c.h.b16 %v3003
    %v3438 = vunpack.c.l.b16 %v3004
    %v3439 = vunpack.c.h.b16 %v3004
    %v3440 = vunpack.c.l.b16 %v3005
    %v3441 = vunpack.c.h.b16 %v3005
    %v3442 = vunpack.c.l.b16 %v3006
    %v3443 = vunpack.c.h.b16 %v3006
    %v3444 = vunpack.c.l.b16 %v3007
    %v3445 = vunpack.c.h.b16 %v3007
    %v3446 = vunpack.c.l.b16 %v3008
    %v3447 = vunpack.c.h.b16 %v3008
    %v3448 = vunpack.c.l.b16 %v3009
    %v3449 = vunpack.c.h.b16 %v3009
    %v3450 = vunpack.c.l.b16 %v3010
    %v3451 = vunpack.c.h.b16 %v3010
    %v3452 = vunpack.c.l.b16 %v3011
    %v3453 = vunpack.c.h.b16 %v3011
    %v3454 = vunpack.c.l.b16 %v3012
    %v3455 = vunpack.c.h.b16 %v3012
    %v3456 = vunpack.c.l.b16 %v3013
    %v3457 = vunpack.c.h.b16 %v3013
    %v3458 = vunpack.c.l.b16 %v3014
    %v3459 = vunpack.c.h.b16 %v3014
    %v3460 = vunpack.c.l.b16 %v3015
    %v3461 = vunpack.c.h.b16 %v3015
    %v3462 = vunpack.c.l.b16 %v3016
    %v3463 = vunpack.c.h.b16 %v3016
    %v3464 = vunpack.c.l.b16 %v3017
    %v3465 = vunpack.c.h.b16 %v3017
    %v3466 = vunpack.c.l.b16 %v3018
    %v3467 = vunpack.c.h.b16 %v3018
    %v3468 = vunpack.c.l.b16 %v3019
    %v3469 = vunpack.c.h.b16 %v3019
    %v3470 = vunpack.c.l.b16 %v3020
    %v3471 = vunpack.c.h.b16 %v3020
    %v3472 = vunpack.c.l.b16 %v3021
    %v3473 = vunpack.c.h.b16 %v3021
    %v3474 = vunpack.c.l.b16 %v3022
    %v3475 = vunpack.c.h.b16 %v3022
    %v3476 = vunpack.c.l.b16 %v3023
    %v3477 = vunpack.c.h.b16 %v3023
    %v3478 = vpack.c.b16 %v3194, %v3190
    %v3479 = vpack.c.b16 %v3195, %v3191
    %v3480 = vpack.c.b16 %v3196, %v3192
    %v3481 = vpack.c.b16 %v3197, %v3193
    %v3482 = vpack.c.b16 %v3202, %v3198
    %v3483 = vpack.c.b16 %v3203, %v3199
    %v3484 = vpack.c.b16 %v3204, %v3200
    %v3485 = vpack.c.b16 %v3205, %v3201
    %v3486 = vpack.c.b16 %v3210, %v3206
    %v3487 = vpack.c.b16 %v3211, %v3207
    %v3488 = vpack.c.b16 %v3212, %v3208
    %v3489 = vpack.c.b16 %v3213, %v3209
    %v3490 = vpack.c.b16 %v3218, %v3214
    %v3491 = vpack.c.b16 %v3219, %v3215
    %v3492 = vpack.c.b16 %v3220, %v3216
    %v3493 = vpack.c.b16 %v3221, %v3217
    %v3494 = vpack.c.b16 %v3226, %v3222
    %v3495 = vpack.c.b16 %v3227, %v3223
    %v3496 = vpack.c.b16 %v3228, %v3224
    %v3497 = vpack.c.b16 %v3229, %v3225
    %v3498 = vpack.c.b16 %v3234, %v3230
    %v3499 = vpack.c.b16 %v3235, %v3231
    %v3500 = vpack.c.b16 %v3236, %v3232
    %v3501 = vpack.c.b16 %v3237, %v3233
    %v3502 = vpack.c.b16 %v3242, %v3238
    %v3503 = vpack.c.b16 %v3243, %v3239
    %v3504 = vpack.c.b16 %v3244, %v3240
    %v3505 = vpack.c.b16 %v3245, %v3241
    %v3506 = vpack.c.b16 %v3250, %v3246
    %v3507 = vpack.c.b16 %v3251, %v3247
    %v3508 = vpack.c.b16 %v3252, %v3248
    %v3509 = vpack.c.b16 %v3253, %v3249
    %v3510 = vpack.c.b16 %v3258, %v3254
    %v3511 = vpack.c.b16 %v3259, %v3255
    %v3512 = vpack.c.b16 %v3260, %v3256
    %v3513 = vpack.c.b16 %v3261, %v3257
    %v3514 = vpack.c.b16 %v3266, %v3262
    %v3515 = vpack.c.b16 %v3267, %v3263
    %v3516 = vpack.c.b16 %v3268, %v3264
    %v3517 = vpack.c.b16 %v3269, %v3265
    %v3518 = vpack.c.b16 %v3274, %v3270
    %v3519 = vpack.c.b16 %v3275, %v3271
    %v3520 = vpack.c.b16 %v3276, %v3272
    %v3521 = vpack.c.b16 %v3277, %v3273
    %v3522 = vpack.c.b16 %v3282, %v3278
    %v3523 = vpack.c.b16 %v3283, %v3279
    %v3524 = vpack.c.b16 %v3284, %v3280
    %v3525 = vpack.c.b16 %v3285, %v3281
    %v3526 = vpack.c.b16 %v3290, %v3286
    %v3527 = vpack.c.b16 %v3291, %v3287
    %v3528 = vpack.c.b16 %v3292, %v3288
    %v3529 = vpack.c.b16 %v3293, %v3289
    %v3530 = vpack.c.b16 %v3298, %v3294
    %v3531 = vpack.c.b16 %v3299, %v3295
    %v3532 = vpack.c.b16 %v3300, %v3296
    %v3533 = vpack.c.b16 %v3301, %v3297
    %v3534 = vpack.c.b16 %v3306, %v3302
    %v3535 = vpack.c.b16 %v3307, %v3303
    %v3536 = vpack.c.b16 %v3308, %v3304
    %v3537 = vpack.c.b16 %v3309, %v3305
    %v3538 = vpack.c.b16 %v3314, %v3310
    %v3539 = vpack.c.b16 %v3315, %v3311
    %v3540 = vpack.c.b16 %v3316, %v3312
    %v3541 = vpack.c.b16 %v3317, %v3313
    %v3542 = vpack.c.b16 %v3322, %v3318
    %v3543 = vpack.c.b16 %v3323, %v3319
    %v3544 = vpack.c.b16 %v3324, %v3320
    %v3545 = vpack.c.b16 %v3325, %v3321
    %v3546 = vpack.c.b16 %v3330, %v3326
    %v3547 = vpack.c.b16 %v3331, %v3327
    %v3548 = vpack.c.b16 %v3332, %v3328
    %v3549 = vpack.c.b16 %v3333, %v3329
    %v3550 = vpack.c.b16 %v3338, %v3334
    %v3551 = vpack.c.b16 %v3339, %v3335
    %v3552 = vpack.c.b16 %v3340, %v3336
    %v3553 = vpack.c.b16 %v3341, %v3337
    %v3554 = vpack.c.b16 %v3346, %v3342
    %v3555 = vpack.c.b16 %v3347, %v3343
    %v3556 = vpack.c.b16 %v3348, %v3344
    %v3557 = vpack.c.b16 %v3349, %v3345
    %v3558 = vpack.c.b16 %v3354, %v3350
    %v3559 = vpack.c.b16 %v3355, %v3351
    %v3560 = vpack.c.b16 %v3356, %v3352
    %v3561 = vpack.c.b16 %v3357, %v3353
    %v3562 = vpack.c.b16 %v3362, %v3358
    %v3563 = vpack.c.b16 %v3363, %v3359
    %v3564 = vpack.c.b16 %v3364, %v3360
    %v3565 = vpack.c.b16 %v3365, %v3361
    %v3566 = vpack.c.b16 %v3370, %v3366
    %v3567 = vpack.c.b16 %v3371, %v3367
    %v3568 = vpack.c.b16 %v3372, %v3368
    %v3569 = vpack.c.b16 %v3373, %v3369
    %v3570 = vpack.c.b16 %v3378, %v3374
    %v3571 = vpack.c.b16 %v3379, %v3375
    %v3572 = vpack.c.b16 %v3380, %v3376
    %v3573 = vpack.c.b16 %v3381, %v3377
    %v3574 = vpack.c.b16 %v3386, %v3382
    %v3575 = vpack.c.b16 %v3387, %v3383
    %v3576 = vpack.c.b16 %v3388, %v3384
    %v3577 = vpack.c.b16 %v3389, %v3385
    %v3578 = vpack.c.b16 %v3394, %v3390
    %v3579 = vpack.c.b16 %v3395, %v3391
    %v3580 = vpack.c.b16 %v3396, %v3392
    %v3581 = vpack.c.b16 %v3397, %v3393
    %v3582 = vpack.c.b16 %v3402, %v3398
    %v3583 = vpack.c.b16 %v3403, %v3399
    %v3584 = vpack.c.b16 %v3404, %v3400
    %v3585 = vpack.c.b16 %v3405, %v3401
    %v3586 = vpack.c.b16 %v3410, %v3406
    %v3587 = vpack.c.b16 %v3411, %v3407
    %v3588 = vpack.c.b16 %v3412, %v3408
    %v3589 = vpack.c.b16 %v3413, %v3409
    %v3590 = vpack.c.b16 %v3418, %v3414
    %v3591 = vpack.c.b16 %v3419, %v3415
    %v3592 = vpack.c.b16 %v3420, %v3416
    %v3593 = vpack.c.b16 %v3421, %v3417
    %v3594 = vpack.c.b16 %v3426, %v3422
    %v3595 = vpack.c.b16 %v3427, %v3423
    %v3596 = vpack.c.b16 %v3428, %v3424
    %v3597 = vpack.c.b16 %v3429, %v3425
    %v3598 = vpack.c.b16 %v3434, %v3430
    %v3599 = vpack.c.b16 %v3435, %v3431
    %v3600 = vpack.c.b16 %v3436, %v3432
    %v3601 = vpack.c.b16 %v3437, %v3433
    %v3602 = vpack.c.b16 %v3442, %v3438
    %v3603 = vpack.c.b16 %v3443, %v3439
    %v3604 = vpack.c.b16 %v3444, %v3440
    %v3605 = vpack.c.b16 %v3445, %v3441
    %v3606 = vpack.c.b16 %v3450, %v3446
    %v3607 = vpack.c.b16 %v3451, %v3447
    %v3608 = vpack.c.b16 %v3452, %v3448
    %v3609 = vpack.c.b16 %v3453, %v3449
    %v3610 = vpack.c.b16 %v3458, %v3454
    %v3611 = vpack.c.b16 %v3459, %v3455
    %v3612 = vpack.c.b16 %v3460, %v3456
    %v3613 = vpack.c.b16 %v3461, %v3457
    %v3614 = vpack.c.b16 %v3466, %v3462
    %v3615 = vpack.c.b16 %v3467, %v3463
    %v3616 = vpack.c.b16 %v3468, %v3464
    %v3617 = vpack.c.b16 %v3469, %v3465
    %v3618 = vpack.c.b16 %v3474, %v3470
    %v3619 = vpack.c.b16 %v3475, %v3471
    %v3620 = vpack.c.b16 %v3476, %v3472
    %v3621 = vpack.c.b16 %v3477, %v3473
    %vm3766 = vcmask 523264
    %v3768 = vsel %vm3766, %v2844, 0
    %v3771 = vsel %vm3766, %v2849, 0
    %v3774 = vsel %vm3766, %v2854, 0
    %v3777 = vsel %vm3766, %v2859, 0
    %v3780 = vsel %vm3766, %v2864, 0
    %v3783 = vsel %vm3766, %v2869, 0
    %v3786 = vsel %vm3766, %v2874, 0
    %v3789 = vsel %vm3766, %v2879, 0
    %3791 = vmatprep.subr.bf16.mxu0 %v3479
    %3792 = vmatpush1.bf16.msra.mxu0 %v3478
    %3793 = vmatprep.subr.bf16.mxu0 %v3483
    %3794 = vmatpush1.bf16.msra.mxu0 %v3482
    %3795 = vmatprep.subr.bf16.mxu0 %v3487
    %3796 = vmatpush1.bf16.msra.mxu0 %v3486
    %3797 = vmatprep.subr.bf16.mxu0 %v3491
    %3798 = vmatpush1.bf16.msra.mxu0 %v3490
    %3799 = vmatprep.subr.bf16.mxu0 %v3495
    %3800 = vmatpush1.bf16.msra.mxu0 %v3494
    %3801 = vmatprep.subr.bf16.mxu0 %v3499
    %3802 = vmatpush1.bf16.msra.mxu0 %v3498
    %3803 = vmatprep.subr.bf16.mxu0 %v3503
    %3804 = vmatpush1.bf16.msra.mxu0 %v3502
    %3805 = vmatprep.subr.bf16.mxu0 %v3507
    %3806 = vmatpush1.bf16.msra.mxu0 %v3506
    %3807 = vmatprep.subr.bf16.mxu0 %v3511
    %3808 = vmatpush1.bf16.msra.mxu0 %v3510
    %3809 = vmatprep.subr.bf16.mxu0 %v3515
    %3810 = vmatpush1.bf16.msra.mxu0 %v3514
    %3811 = vmatprep.subr.bf16.mxu0 %v3519
    %3812 = vmatpush1.bf16.msra.mxu0 %v3518
    %3813 = vmatprep.subr.bf16.mxu0 %v3523
    %3814 = vmatpush1.bf16.msra.mxu0 %v3522
    %3815 = vmatprep.subr.bf16.mxu0 %v3527
    %3816 = vmatpush1.bf16.msra.mxu0 %v3526
    %3817 = vmatprep.subr.bf16.mxu0 %v3531
    %3818 = vmatpush1.bf16.msra.mxu0 %v3530
    %3819 = vmatprep.subr.bf16.mxu0 %v3535
    %3820 = vmatpush1.bf16.msra.mxu0 %v3534
    %3821 = vmatprep.subr.bf16.mxu0 %v3539
    %3822 = vmatpush1.bf16.msra.mxu0 %v3538
    %3823 = vmatprep.mubr.bf16.mxu0 %v2841
    %3824 = vmatmul.mubr.bf16.gmra.mrb[0].mxu0 %v2840
    %v3825 = vpop.f32.mrb[0].mxu0
    %v3826 = vadd.f32 %v3029, %v3825
    %v3827 = vpop.f32.mrb[0].mxu0
    %v3828 = vadd.f32 %v3033, %v3827
    %v3829 = vpop.f32.mrb[0].mxu0
    %v3830 = vadd.f32 %v3029, %v3829
    %v3831 = vpop.f32.mrb[0].mxu0
    %v3832 = vadd.f32 %v3033, %v3831
    %3833 = vmatprep.mubr.bf16.mxu0 %v2846
    %3834 = vmatmul.mubr.bf16.gmra.mrb[0].mxu0 %v2845
    %v3835 = vpop.f32.mrb[0].mxu0
    %v3836 = vadd.f32 %v3029, %v3835
    %v3837 = vpop.f32.mrb[0].mxu0
    %v3838 = vadd.f32 %v3033, %v3837
    %v3839 = vpop.f32.mrb[0].mxu0
    %v3840 = vadd.f32 %v3029, %v3839
    %v3841 = vpop.f32.mrb[0].mxu0
    %v3842 = vadd.f32 %v3033, %v3841
    %3843 = vmatprep.mubr.bf16.mxu0 %v2851
    %3844 = vmatmul.mubr.bf16.gmra.mrb[0].mxu0 %v2850
    %v3845 = vpop.f32.mrb[0].mxu0
    %v3846 = vadd.f32 %v3029, %v3845
    %v3847 = vpop.f32.mrb[0].mxu0
    %v3848 = vadd.f32 %v3033, %v3847
    %v3849 = vpop.f32.mrb[0].mxu0
    %v3850 = vadd.f32 %v3029, %v3849
    %v3851 = vpop.f32.mrb[0].mxu0
    %v3852 = vadd.f32 %v3033, %v3851
    %3853 = vmatprep.mubr.bf16.mxu0 %v2856
    %3854 = vmatmul.mubr.bf16.gmra.mrb[0].mxu0 %v2855
    %v3855 = vpop.f32.mrb[0].mxu0
    %v3856 = vadd.f32 %v3029, %v3855
    %v3857 = vpop.f32.mrb[0].mxu0
    %v3858 = vadd.f32 %v3033, %v3857
    %v3859 = vpop.f32.mrb[0].mxu0
    %v3860 = vadd.f32 %v3029, %v3859
    %v3861 = vpop.f32.mrb[0].mxu0
    %v3862 = vadd.f32 %v3033, %v3861
    %3863 = vmatprep.mubr.bf16.mxu0 %v2861
    %3864 = vmatmul.mubr.bf16.gmra.mrb[0].mxu0 %v2860
    %v3865 = vpop.f32.mrb[0].mxu0
    %v3866 = vadd.f32 %v3029, %v3865
    %v3867 = vpop.f32.mrb[0].mxu0
    %v3868 = vadd.f32 %v3033, %v3867
    %v3869 = vpop.f32.mrb[0].mxu0
    %v3870 = vadd.f32 %v3029, %v3869
    %v3871 = vpop.f32.mrb[0].mxu0
    %v3872 = vadd.f32 %v3033, %v3871
    %3873 = vmatprep.mubr.bf16.mxu0 %v2866
    %3874 = vmatmul.mubr.bf16.gmra.mrb[0].mxu0 %v2865
    %v3875 = vpop.f32.mrb[0].mxu0
    %v3876 = vadd.f32 %v3029, %v3875
    %v3877 = vpop.f32.mrb[0].mxu0
    %v3878 = vadd.f32 %v3033, %v3877
    %v3879 = vpop.f32.mrb[0].mxu0
    %v3880 = vadd.f32 %v3029, %v3879
    %v3881 = vpop.f32.mrb[0].mxu0
    %v3882 = vadd.f32 %v3033, %v3881
    %3883 = vmatprep.mubr.bf16.mxu0 %v2871
    %3884 = vmatmul.mubr.bf16.gmra.mrb[0].mxu0 %v2870
    %v3885 = vpop.f32.mrb[0].mxu0
    %v3886 = vadd.f32 %v3029, %v3885
    %v3887 = vpop.f32.mrb[0].mxu0
    %v3888 = vadd.f32 %v3033, %v3887
    %v3889 = vpop.f32.mrb[0].mxu0
    %v3890 = vadd.f32 %v3029, %v3889
    %v3891 = vpop.f32.mrb[0].mxu0
    %v3892 = vadd.f32 %v3033, %v3891
    %3893 = vmatprep.mubr.bf16.mxu0 %v2876
    %3894 = vmatmul.mubr.bf16.gmra.mrb[0].mxu0 %v2875
    %v3895 = vpop.f32.mrb[0].mxu0
    %v3896 = vadd.f32 %v3029, %v3895
    %v3897 = vpop.f32.mrb[0].mxu0
    %v3898 = vadd.f32 %v3033, %v3897
    %v3899 = vpop.f32.mrb[0].mxu0
    %v3900 = vadd.f32 %v3029, %v3899
    %v3901 = vpop.f32.mrb[0].mxu0
    %v3902 = vadd.f32 %v3033, %v3901
    %3903 = vdwg.mxu0
    %3904 = vmatprep.subr.bf16.mxu0 %v3543
    %3905 = vmatpush1.bf16.msra.mxu0 %v3542
    %3906 = vmatprep.subr.bf16.mxu0 %v3547
    %3907 = vmatpush1.bf16.msra.mxu0 %v3546
    %3908 = vmatprep.subr.bf16.mxu0 %v3551
    %3909 = vmatpush1.bf16.msra.mxu0 %v3550
    %3910 = vmatprep.subr.bf16.mxu0 %v3555
    %3911 = vmatpush1.bf16.msra.mxu0 %v3554
    %3912 = vmatprep.subr.bf16.mxu0 %v3559
    %3913 = vmatpush1.bf16.msra.mxu0 %v3558
    %3914 = vmatprep.subr.bf16.mxu0 %v3563
    %3915 = vmatpush1.bf16.msra.mxu0 %v3562
    %3916 = vmatprep.subr.bf16.mxu0 %v3567
    %3917 = vmatpush1.bf16.msra.mxu0 %v3566
    %3918 = vmatprep.subr.bf16.mxu0 %v3571
    %3919 = vmatpush1.bf16.msra.mxu0 %v3570
    %3920 = vmatprep.subr.bf16.mxu0 %v3575
    %3921 = vmatpush1.bf16.msra.mxu0 %v3574
    %3922 = vmatprep.subr.bf16.mxu0 %v3579
    %3923 = vmatpush1.bf16.msra.mxu0 %v3578
    %3924 = vmatprep.subr.bf16.mxu0 %v3583
    %3925 = vmatpush1.bf16.msra.mxu0 %v3582
    %3926 = vmatprep.subr.bf16.mxu0 %v3587
    %3927 = vmatpush1.bf16.msra.mxu0 %v3586
    %3928 = vmatprep.subr.bf16.mxu0 %v3591
    %3929 = vmatpush1.bf16.msra.mxu0 %v3590
    %3930 = vmatprep.subr.bf16.mxu0 %v3595
    %3931 = vmatpush1.bf16.msra.mxu0 %v3594
    %3932 = vmatprep.subr.bf16.mxu0 %v3599
    %3933 = vmatpush1.bf16.msra.mxu0 %v3598
    %3934 = vmatprep.subr.bf16.mxu0 %v3603
    %3935 = vmatpush1.bf16.msra.mxu0 %v3602
    %3936 = vmatprep.mubr.bf16.mxu0 %v2843
    %3937 = vmatmul.mubr.bf16.gmra.mrb[0].mxu0 %v2842
    %v3938 = vpop.f32.mrb[0].mxu0
    %v3939 = vadd.f32 %v3826, %v3938
    %v3940 = vpop.f32.mrb[0].mxu0
    %v3941 = vadd.f32 %v3828, %v3940
    %v3942 = vpop.f32.mrb[0].mxu0
    %v3943 = vadd.f32 %v3830, %v3942
    %v3944 = vpop.f32.mrb[0].mxu0
    %v3945 = vadd.f32 %v3832, %v3944
    %3946 = vmatprep.mubr.bf16.mxu0 %v2848
    %3947 = vmatmul.mubr.bf16.gmra.mrb[0].mxu0 %v2847
    %v3948 = vpop.f32.mrb[0].mxu0
    %v3949 = vadd.f32 %v3836, %v3948
    %v3950 = vpop.f32.mrb[0].mxu0
    %v3951 = vadd.f32 %v3838, %v3950
    %v3952 = vpop.f32.mrb[0].mxu0
    %v3953 = vadd.f32 %v3840, %v3952
    %v3954 = vpop.f32.mrb[0].mxu0
    %v3955 = vadd.f32 %v3842, %v3954
    %3956 = vmatprep.mubr.bf16.mxu0 %v2853
    %3957 = vmatmul.mubr.bf16.gmra.mrb[0].mxu0 %v2852
    %v3958 = vpop.f32.mrb[0].mxu0
    %v3959 = vadd.f32 %v3846, %v3958
    %v3960 = vpop.f32.mrb[0].mxu0
    %v3961 = vadd.f32 %v3848, %v3960
    %v3962 = vpop.f32.mrb[0].mxu0
    %v3963 = vadd.f32 %v3850, %v3962
    %v3964 = vpop.f32.mrb[0].mxu0
    %v3965 = vadd.f32 %v3852, %v3964
    %3966 = vmatprep.mubr.bf16.mxu0 %v2858
    %3967 = vmatmul.mubr.bf16.gmra.mrb[0].mxu0 %v2857
    %v3968 = vpop.f32.mrb[0].mxu0
    %v3969 = vadd.f32 %v3856, %v3968
    %v3970 = vpop.f32.mrb[0].mxu0
    %v3971 = vadd.f32 %v3858, %v3970
    %v3972 = vpop.f32.mrb[0].mxu0
    %v3973 = vadd.f32 %v3860, %v3972
    %v3974 = vpop.f32.mrb[0].mxu0
    %v3975 = vadd.f32 %v3862, %v3974
    %3976 = vmatprep.mubr.bf16.mxu0 %v2863
    %3977 = vmatmul.mubr.bf16.gmra.mrb[0].mxu0 %v2862
    %v3978 = vpop.f32.mrb[0].mxu0
    %v3979 = vadd.f32 %v3866, %v3978
    %v3980 = vpop.f32.mrb[0].mxu0
    %v3981 = vadd.f32 %v3868, %v3980
    %v3982 = vpop.f32.mrb[0].mxu0
    %v3983 = vadd.f32 %v3870, %v3982
    %v3984 = vpop.f32.mrb[0].mxu0
    %v3985 = vadd.f32 %v3872, %v3984
    %3986 = vmatprep.mubr.bf16.mxu0 %v2868
    %3987 = vmatmul.mubr.bf16.gmra.mrb[0].mxu0 %v2867
    %v3988 = vpop.f32.mrb[0].mxu0
    %v3989 = vadd.f32 %v3876, %v3988
    %v3990 = vpop.f32.mrb[0].mxu0
    %v3991 = vadd.f32 %v3878, %v3990
    %v3992 = vpop.f32.mrb[0].mxu0
    %v3993 = vadd.f32 %v3880, %v3992
    %v3994 = vpop.f32.mrb[0].mxu0
    %v3995 = vadd.f32 %v3882, %v3994
    %3996 = vmatprep.mubr.bf16.mxu0 %v2873
    %3997 = vmatmul.mubr.bf16.gmra.mrb[0].mxu0 %v2872
    %v3998 = vpop.f32.mrb[0].mxu0
    %v3999 = vadd.f32 %v3886, %v3998
    %v4000 = vpop.f32.mrb[0].mxu0
    %v4001 = vadd.f32 %v3888, %v4000
    %v4002 = vpop.f32.mrb[0].mxu0
    %v4003 = vadd.f32 %v3890, %v4002
    %v4004 = vpop.f32.mrb[0].mxu0
    %v4005 = vadd.f32 %v3892, %v4004
    %4006 = vmatprep.mubr.bf16.mxu0 %v2878
    %4007 = vmatmul.mubr.bf16.gmra.mrb[0].mxu0 %v2877
    %v4008 = vpop.f32.mrb[0].mxu0
    %v4009 = vadd.f32 %v3896, %v4008
    %v4010 = vpop.f32.mrb[0].mxu0
    %v4011 = vadd.f32 %v3898, %v4010
    %v4012 = vpop.f32.mrb[0].mxu0
    %v4013 = vadd.f32 %v3900, %v4012
    %v4014 = vpop.f32.mrb[0].mxu0
    %v4015 = vadd.f32 %v3902, %v4014
    %4016 = vdwg.mxu0
    %4017 = vmatprep.subr.bf16.mxu0 %v3607
    %4018 = vmatpush1.bf16.msra.mxu0 %v3606
    %4019 = vmatprep.subr.bf16.mxu0 %v3611
    %4020 = vmatpush1.bf16.msra.mxu0 %v3610
    %4021 = vmatprep.subr.bf16.mxu0 %v3615
    %4022 = vmatpush1.bf16.msra.mxu0 %v3614
    %4023 = vmatprep.subr.bf16.mxu0 %v3619
    %4024 = vmatpush1.bf16.msra.mxu0 %v3618
    %4025 = vmatprep.subr.bf16.mxu0 0
    %4026 = vmatpush1.bf16.msra.mxu0 0
    %4027 = vmatprep.subr.bf16.mxu0 0
    %4028 = vmatpush1.bf16.msra.mxu0 0
    %4029 = vmatprep.subr.bf16.mxu0 0
    %4030 = vmatpush1.bf16.msra.mxu0 0
    %4031 = vmatprep.subr.bf16.mxu0 0
    %4032 = vmatpush1.bf16.msra.mxu0 0
    %4033 = vmatprep.subr.bf16.mxu0 0
    %4034 = vmatpush1.bf16.msra.mxu0 0
    %4035 = vmatprep.subr.bf16.mxu0 0
    %4036 = vmatpush1.bf16.msra.mxu0 0
    %4037 = vmatprep.subr.bf16.mxu0 0
    %4038 = vmatpush1.bf16.msra.mxu0 0
    %4039 = vmatprep.subr.bf16.mxu0 0
    %4040 = vmatpush1.bf16.msra.mxu0 0
    %4041 = vmatprep.subr.bf16.mxu0 0
    %4042 = vmatpush1.bf16.msra.mxu0 0
    %4043 = vmatprep.subr.bf16.mxu0 0
    %4044 = vmatpush1.bf16.msra.mxu0 0
    %4045 = vmatprep.subr.bf16.mxu0 0
    %4046 = vmatpush1.bf16.msra.mxu0 0
    %4047 = vmatprep.subr.bf16.mxu0 0
    %4048 = vmatpush1.bf16.msra.mxu0 0
    %4049 = vmatprep.mubr.bf16.mxu0 0
    %4050 = vmatmul.mubr.bf16.gmra.mrb[0].mxu0 %v3768
    %v4051 = vpop.f32.mrb[0].mxu0
    %v4052 = vadd.f32 %v3939, %v4051
    %v4053 = vpop.f32.mrb[0].mxu0
    %v4054 = vadd.f32 %v3941, %v4053
    %v4055 = vpop.f32.mrb[0].mxu0
    %v4056 = vadd.f32 %v3943, %v4055
    %v4057 = vpop.f32.mrb[0].mxu0
    %v4058 = vadd.f32 %v3945, %v4057
    %4059 = vmatprep.mubr.bf16.mxu0 0
    %4060 = vmatmul.mubr.bf16.gmra.mrb[0].mxu0 %v3771
    %v4061 = vpop.f32.mrb[0].mxu0
    %v4062 = vadd.f32 %v3949, %v4061
    %v4063 = vpop.f32.mrb[0].mxu0
    %v4064 = vadd.f32 %v3951, %v4063
    %v4065 = vpop.f32.mrb[0].mxu0
    %v4066 = vadd.f32 %v3953, %v4065
    %v4067 = vpop.f32.mrb[0].mxu0
    %v4068 = vadd.f32 %v3955, %v4067
    %4069 = vmatprep.mubr.bf16.mxu0 0
    %4070 = vmatmul.mubr.bf16.gmra.mrb[0].mxu0 %v3774
    %v4071 = vpop.f32.mrb[0].mxu0
    %v4072 = vadd.f32 %v3959, %v4071
    %v4073 = vpop.f32.mrb[0].mxu0
    %v4074 = vadd.f32 %v3961, %v4073
    %v4075 = vpop.f32.mrb[0].mxu0
    %v4076 = vadd.f32 %v3963, %v4075
    %v4077 = vpop.f32.mrb[0].mxu0
    %v4078 = vadd.f32 %v3965, %v4077
    %4079 = vmatprep.mubr.bf16.mxu0 0
    %4080 = vmatmul.mubr.bf16.gmra.mrb[0].mxu0 %v3777
    %v4081 = vpop.f32.mrb[0].mxu0
    %v4082 = vadd.f32 %v3969, %v4081
    %v4083 = vpop.f32.mrb[0].mxu0
    %v4084 = vadd.f32 %v3971, %v4083
    %v4085 = vpop.f32.mrb[0].mxu0
    %v4086 = vadd.f32 %v3973, %v4085
    %v4087 = vpop.f32.mrb[0].mxu0
    %v4088 = vadd.f32 %v3975, %v4087
    %4089 = vmatprep.mubr.bf16.mxu0 0
    %4090 = vmatmul.mubr.bf16.gmra.mrb[0].mxu0 %v3780
    %v4091 = vpop.f32.mrb[0].mxu0
    %v4092 = vadd.f32 %v3979, %v4091
    %v4093 = vpop.f32.mrb[0].mxu0
    %v4094 = vadd.f32 %v3981, %v4093
    %v4095 = vpop.f32.mrb[0].mxu0
    %v4096 = vadd.f32 %v3983, %v4095
    %v4097 = vpop.f32.mrb[0].mxu0
    %v4098 = vadd.f32 %v3985, %v4097
    %4099 = vmatprep.mubr.bf16.mxu0 0
    %4100 = vmatmul.mubr.bf16.gmra.mrb[0].mxu0 %v3783
    %v4101 = vpop.f32.mrb[0].mxu0
    %v4102 = vadd.f32 %v3989, %v4101
    %v4103 = vpop.f32.mrb[0].mxu0
    %v4104 = vadd.f32 %v3991, %v4103
    %v4105 = vpop.f32.mrb[0].mxu0
    %v4106 = vadd.f32 %v3993, %v4105
    %v4107 = vpop.f32.mrb[0].mxu0
    %v4108 = vadd.f32 %v3995, %v4107
    %4109 = vmatprep.mubr.bf16.mxu0 0
    %4110 = vmatmul.mubr.bf16.gmra.mrb[0].mxu0 %v3786
    %v4111 = vpop.f32.mrb[0].mxu0
    %v4112 = vadd.f32 %v3999, %v4111
    %v4113 = vpop.f32.mrb[0].mxu0
    %v4114 = vadd.f32 %v4001, %v4113
    %v4115 = vpop.f32.mrb[0].mxu0
    %v4116 = vadd.f32 %v4003, %v4115
    %v4117 = vpop.f32.mrb[0].mxu0
    %v4118 = vadd.f32 %v4005, %v4117
    %4119 = vmatprep.mubr.bf16.mxu0 0
    %4120 = vmatmul.mubr.bf16.gmra.mrb[0].mxu0 %v3789
    %v4121 = vpop.f32.mrb[0].mxu0
    %v4122 = vadd.f32 %v4009, %v4121
    %v4123 = vpop.f32.mrb[0].mxu0
    %v4124 = vadd.f32 %v4011, %v4123
    %v4125 = vpop.f32.mrb[0].mxu0
    %v4126 = vadd.f32 %v4013, %v4125
    %v4127 = vpop.f32.mrb[0].mxu0
    %v4128 = vadd.f32 %v4015, %v4127
    %4129 = vdwg.mxu0
    %4130 = vmatprep.subr.bf16.mxu0 %v3481
    %4131 = vmatpush1.bf16.msra.mxu0 %v3480
    %4132 = vmatprep.subr.bf16.mxu0 %v3485
    %4133 = vmatpush1.bf16.msra.mxu0 %v3484
    %4134 = vmatprep.subr.bf16.mxu0 %v3489
    %4135 = vmatpush1.bf16.msra.mxu0 %v3488
    %4136 = vmatprep.subr.bf16.mxu0 %v3493
    %4137 = vmatpush1.bf16.msra.mxu0 %v3492
    %4138 = vmatprep.subr.bf16.mxu0 %v3497
    %4139 = vmatpush1.bf16.msra.mxu0 %v3496
    %4140 = vmatprep.subr.bf16.mxu0 %v3501
    %4141 = vmatpush1.bf16.msra.mxu0 %v3500
    %4142 = vmatprep.subr.bf16.mxu0 %v3505
    %4143 = vmatpush1.bf16.msra.mxu0 %v3504
    %4144 = vmatprep.subr.bf16.mxu0 %v3509
    %4145 = vmatpush1.bf16.msra.mxu0 %v3508
    %4146 = vmatprep.subr.bf16.mxu0 %v3513
    %4147 = vmatpush1.bf16.msra.mxu0 %v3512
    %4148 = vmatprep.subr.bf16.mxu0 %v3517
    %4149 = vmatpush1.bf16.msra.mxu0 %v3516
    %4150 = vmatprep.subr.bf16.mxu0 %v3521
    %4151 = vmatpush1.bf16.msra.mxu0 %v3520
    %4152 = vmatprep.subr.bf16.mxu0 %v3525
    %4153 = vmatpush1.bf16.msra.mxu0 %v3524
    %4154 = vmatprep.subr.bf16.mxu0 %v3529
    %4155 = vmatpush1.bf16.msra.mxu0 %v3528
    %4156 = vmatprep.subr.bf16.mxu0 %v3533
    %4157 = vmatpush1.bf16.msra.mxu0 %v3532
    %4158 = vmatprep.subr.bf16.mxu0 %v3537
    %4159 = vmatpush1.bf16.msra.mxu0 %v3536
    %4160 = vmatprep.subr.bf16.mxu0 %v3541
    %4161 = vmatpush1.bf16.msra.mxu0 %v3540
    %4162 = vmatprep.mubr.bf16.mxu0 %v2841
    %4163 = vmatmul.mubr.bf16.gmra.mrb[0].mxu0 %v2840
    %v4164 = vpop.f32.mrb[0].mxu0
    %v4165 = vadd.f32 %v3037, %v4164
    %v4166 = vpop.f32.mrb[0].mxu0
    %v4167 = vadd.f32 %v3041, %v4166
    %v4168 = vpop.f32.mrb[0].mxu0
    %v4169 = vadd.f32 %v3037, %v4168
    %v4170 = vpop.f32.mrb[0].mxu0
    %v4171 = vadd.f32 %v3041, %v4170
    %4172 = vmatprep.mubr.bf16.mxu0 %v2846
    %4173 = vmatmul.mubr.bf16.gmra.mrb[0].mxu0 %v2845
    %v4174 = vpop.f32.mrb[0].mxu0
    %v4175 = vadd.f32 %v3037, %v4174
    %v4176 = vpop.f32.mrb[0].mxu0
    %v4177 = vadd.f32 %v3041, %v4176
    %v4178 = vpop.f32.mrb[0].mxu0
    %v4179 = vadd.f32 %v3037, %v4178
    %v4180 = vpop.f32.mrb[0].mxu0
    %v4181 = vadd.f32 %v3041, %v4180
    %4182 = vmatprep.mubr.bf16.mxu0 %v2851
    %4183 = vmatmul.mubr.bf16.gmra.mrb[0].mxu0 %v2850
    %v4184 = vpop.f32.mrb[0].mxu0
    %v4185 = vadd.f32 %v3037, %v4184
    %v4186 = vpop.f32.mrb[0].mxu0
    %v4187 = vadd.f32 %v3041, %v4186
    %v4188 = vpop.f32.mrb[0].mxu0
    %v4189 = vadd.f32 %v3037, %v4188
    %v4190 = vpop.f32.mrb[0].mxu0
    %v4191 = vadd.f32 %v3041, %v4190
    %4192 = vmatprep.mubr.bf16.mxu0 %v2856
    %4193 = vmatmul.mubr.bf16.gmra.mrb[0].mxu0 %v2855
    %v4194 = vpop.f32.mrb[0].mxu0
    %v4195 = vadd.f32 %v3037, %v4194
    %v4196 = vpop.f32.mrb[0].mxu0
    %v4197 = vadd.f32 %v3041, %v4196
    %v4198 = vpop.f32.mrb[0].mxu0
    %v4199 = vadd.f32 %v3037, %v4198
    %v4200 = vpop.f32.mrb[0].mxu0
    %v4201 = vadd.f32 %v3041, %v4200
    %4202 = vmatprep.mubr.bf16.mxu0 %v2861
    %4203 = vmatmul.mubr.bf16.gmra.mrb[0].mxu0 %v2860
    %v4204 = vpop.f32.mrb[0].mxu0
    %v4205 = vadd.f32 %v3037, %v4204
    %v4206 = vpop.f32.mrb[0].mxu0
    %v4207 = vadd.f32 %v3041, %v4206
    %v4208 = vpop.f32.mrb[0].mxu0
    %v4209 = vadd.f32 %v3037, %v4208
    %v4210 = vpop.f32.mrb[0].mxu0
    %v4211 = vadd.f32 %v3041, %v4210
    %4212 = vmatprep.mubr.bf16.mxu0 %v2866
    %4213 = vmatmul.mubr.bf16.gmra.mrb[0].mxu0 %v2865
    %v4214 = vpop.f32.mrb[0].mxu0
    %v4215 = vadd.f32 %v3037, %v4214
    %v4216 = vpop.f32.mrb[0].mxu0
    %v4217 = vadd.f32 %v3041, %v4216
    %v4218 = vpop.f32.mrb[0].mxu0
    %v4219 = vadd.f32 %v3037, %v4218
    %v4220 = vpop.f32.mrb[0].mxu0
    %v4221 = vadd.f32 %v3041, %v4220
    %4222 = vmatprep.mubr.bf16.mxu0 %v2871
    %4223 = vmatmul.mubr.bf16.gmra.mrb[0].mxu0 %v2870
    %v4224 = vpop.f32.mrb[0].mxu0
    %v4225 = vadd.f32 %v3037, %v4224
    %v4226 = vpop.f32.mrb[0].mxu0
    %v4227 = vadd.f32 %v3041, %v4226
    %v4228 = vpop.f32.mrb[0].mxu0
    %v4229 = vadd.f32 %v3037, %v4228
    %v4230 = vpop.f32.mrb[0].mxu0
    %v4231 = vadd.f32 %v3041, %v4230
    %4232 = vmatprep.mubr.bf16.mxu0 %v2876
    %4233 = vmatmul.mubr.bf16.gmra.mrb[0].mxu0 %v2875
    %v4234 = vpop.f32.mrb[0].mxu0
    %v4235 = vadd.f32 %v3037, %v4234
    %v4236 = vpop.f32.mrb[0].mxu0
    %v4237 = vadd.f32 %v3041, %v4236
    %v4238 = vpop.f32.mrb[0].mxu0
    %v4239 = vadd.f32 %v3037, %v4238
    %v4240 = vpop.f32.mrb[0].mxu0
    %v4241 = vadd.f32 %v3041, %v4240
    %4242 = vdwg.mxu0
    %4243 = vmatprep.subr.bf16.mxu0 %v3545
    %4244 = vmatpush1.bf16.msra.mxu0 %v3544
    %4245 = vmatprep.subr.bf16.mxu0 %v3549
    %4246 = vmatpush1.bf16.msra.mxu0 %v3548
    %4247 = vmatprep.subr.bf16.mxu0 %v3553
    %4248 = vmatpush1.bf16.msra.mxu0 %v3552
    %4249 = vmatprep.subr.bf16.mxu0 %v3557
    %4250 = vmatpush1.bf16.msra.mxu0 %v3556
    %4251 = vmatprep.subr.bf16.mxu0 %v3561
    %4252 = vmatpush1.bf16.msra.mxu0 %v3560
    %4253 = vmatprep.subr.bf16.mxu0 %v3565
    %4254 = vmatpush1.bf16.msra.mxu0 %v3564
    %4255 = vmatprep.subr.bf16.mxu0 %v3569
    %4256 = vmatpush1.bf16.msra.mxu0 %v3568
    %4257 = vmatprep.subr.bf16.mxu0 %v3573
    %4258 = vmatpush1.bf16.msra.mxu0 %v3572
    %4259 = vmatprep.subr.bf16.mxu0 %v3577
    %4260 = vmatpush1.bf16.msra.mxu0 %v3576
    %4261 = vmatprep.subr.bf16.mxu0 %v3581
    %4262 = vmatpush1.bf16.msra.mxu0 %v3580
    %4263 = vmatprep.subr.bf16.mxu0 %v3585
    %4264 = vmatpush1.bf16.msra.mxu0 %v3584
    %4265 = vmatprep.subr.bf16.mxu0 %v3589
    %4266 = vmatpush1.bf16.msra.mxu0 %v3588
    %4267 = vmatprep.subr.bf16.mxu0 %v3593
    %4268 = vmatpush1.bf16.msra.mxu0 %v3592
    %4269 = vmatprep.subr.bf16.mxu0 %v3597
    %4270 = vmatpush1.bf16.msra.mxu0 %v3596
    %4271 = vmatprep.subr.bf16.mxu0 %v3601
    %4272 = vmatpush1.bf16.msra.mxu0 %v3600
    %4273 = vmatprep.subr.bf16.mxu0 %v3605
    %4274 = vmatpush1.bf16.msra.mxu0 %v3604
    %4275 = vmatprep.mubr.bf16.mxu0 %v2843
    %4276 = vmatmul.mubr.bf16.gmra.mrb[0].mxu0 %v2842
    %v4277 = vpop.f32.mrb[0].mxu0
    %v4278 = vadd.f32 %v4165, %v4277
    %v4279 = vpop.f32.mrb[0].mxu0
    %v4280 = vadd.f32 %v4167, %v4279
    %v4281 = vpop.f32.mrb[0].mxu0
    %v4282 = vadd.f32 %v4169, %v4281
    %v4283 = vpop.f32.mrb[0].mxu0
    %v4284 = vadd.f32 %v4171, %v4283
    %4285 = vmatprep.mubr.bf16.mxu0 %v2848
    %4286 = vmatmul.mubr.bf16.gmra.mrb[0].mxu0 %v2847
    %v4287 = vpop.f32.mrb[0].mxu0
    %v4288 = vadd.f32 %v4175, %v4287
    %v4289 = vpop.f32.mrb[0].mxu0
    %v4290 = vadd.f32 %v4177, %v4289
    %v4291 = vpop.f32.mrb[0].mxu0
    %v4292 = vadd.f32 %v4179, %v4291
    %v4293 = vpop.f32.mrb[0].mxu0
    %v4294 = vadd.f32 %v4181, %v4293
    %4295 = vmatprep.mubr.bf16.mxu0 %v2853
    %4296 = vmatmul.mubr.bf16.gmra.mrb[0].mxu0 %v2852
    %v4297 = vpop.f32.mrb[0].mxu0
    %v4298 = vadd.f32 %v4185, %v4297
    %v4299 = vpop.f32.mrb[0].mxu0
    %v4300 = vadd.f32 %v4187, %v4299
    %v4301 = vpop.f32.mrb[0].mxu0
    %v4302 = vadd.f32 %v4189, %v4301
    %v4303 = vpop.f32.mrb[0].mxu0
    %v4304 = vadd.f32 %v4191, %v4303
    %4305 = vmatprep.mubr.bf16.mxu0 %v2858
    %4306 = vmatmul.mubr.bf16.gmra.mrb[0].mxu0 %v2857
    %v4307 = vpop.f32.mrb[0].mxu0
    %v4308 = vadd.f32 %v4195, %v4307
    %v4309 = vpop.f32.mrb[0].mxu0
    %v4310 = vadd.f32 %v4197, %v4309
    %v4311 = vpop.f32.mrb[0].mxu0
    %v4312 = vadd.f32 %v4199, %v4311
    %v4313 = vpop.f32.mrb[0].mxu0
    %v4314 = vadd.f32 %v4201, %v4313
    %4315 = vmatprep.mubr.bf16.mxu0 %v2863
    %4316 = vmatmul.mubr.bf16.gmra.mrb[0].mxu0 %v2862
    %v4317 = vpop.f32.mrb[0].mxu0
    %v4318 = vadd.f32 %v4205, %v4317
    %v4319 = vpop.f32.mrb[0].mxu0
    %v4320 = vadd.f32 %v4207, %v4319
    %v4321 = vpop.f32.mrb[0].mxu0
    %v4322 = vadd.f32 %v4209, %v4321
    %v4323 = vpop.f32.mrb[0].mxu0
    %v4324 = vadd.f32 %v4211, %v4323
    %4325 = vmatprep.mubr.bf16.mxu0 %v2868
    %4326 = vmatmul.mubr.bf16.gmra.mrb[0].mxu0 %v2867
    %v4327 = vpop.f32.mrb[0].mxu0
    %v4328 = vadd.f32 %v4215, %v4327
    %v4329 = vpop.f32.mrb[0].mxu0
    %v4330 = vadd.f32 %v4217, %v4329
    %v4331 = vpop.f32.mrb[0].mxu0
    %v4332 = vadd.f32 %v4219, %v4331
    %v4333 = vpop.f32.mrb[0].mxu0
    %v4334 = vadd.f32 %v4221, %v4333
    %4335 = vmatprep.mubr.bf16.mxu0 %v2873
    %4336 = vmatmul.mubr.bf16.gmra.mrb[0].mxu0 %v2872
    %v4337 = vpop.f32.mrb[0].mxu0
    %v4338 = vadd.f32 %v4225, %v4337
    %v4339 = vpop.f32.mrb[0].mxu0
    %v4340 = vadd.f32 %v4227, %v4339
    %v4341 = vpop.f32.mrb[0].mxu0
    %v4342 = vadd.f32 %v4229, %v4341
    %v4343 = vpop.f32.mrb[0].mxu0
    %v4344 = vadd.f32 %v4231, %v4343
    %4345 = vmatprep.mubr.bf16.mxu0 %v2878
    %4346 = vmatmul.mubr.bf16.gmra.mrb[0].mxu0 %v2877
    %v4347 = vpop.f32.mrb[0].mxu0
    %v4348 = vadd.f32 %v4235, %v4347
    %v4349 = vpop.f32.mrb[0].mxu0
    %v4350 = vadd.f32 %v4237, %v4349
    %v4351 = vpop.f32.mrb[0].mxu0
    %v4352 = vadd.f32 %v4239, %v4351
    %v4353 = vpop.f32.mrb[0].mxu0
    %v4354 = vadd.f32 %v4241, %v4353
    %4355 = vdwg.mxu0
    %4356 = vmatprep.subr.bf16.mxu0 %v3609
    %4357 = vmatpush1.bf16.msra.mxu0 %v3608
    %4358 = vmatprep.subr.bf16.mxu0 %v3613
    %4359 = vmatpush1.bf16.msra.mxu0 %v3612
    %4360 = vmatprep.subr.bf16.mxu0 %v3617
    %4361 = vmatpush1.bf16.msra.mxu0 %v3616
    %4362 = vmatprep.subr.bf16.mxu0 %v3621
    %4363 = vmatpush1.bf16.msra.mxu0 %v3620
    %4364 = vmatprep.subr.bf16.mxu0 0
    %4365 = vmatpush1.bf16.msra.mxu0 0
    %4366 = vmatprep.subr.bf16.mxu0 0
    %4367 = vmatpush1.bf16.msra.mxu0 0
    %4368 = vmatprep.subr.bf16.mxu0 0
    %4369 = vmatpush1.bf16.msra.mxu0 0
    %4370 = vmatprep.subr.bf16.mxu0 0
    %4371 = vmatpush1.bf16.msra.mxu0 0
    %4372 = vmatprep.subr.bf16.mxu0 0
    %4373 = vmatpush1.bf16.msra.mxu0 0
    %4374 = vmatprep.subr.bf16.mxu0 0
    %4375 = vmatpush1.bf16.msra.mxu0 0
    %4376 = vmatprep.subr.bf16.mxu0 0
    %4377 = vmatpush1.bf16.msra.mxu0 0
    %4378 = vmatprep.subr.bf16.mxu0 0
    %4379 = vmatpush1.bf16.msra.mxu0 0
    %4380 = vmatprep.subr.bf16.mxu0 0
    %4381 = vmatpush1.bf16.msra.mxu0 0
    %4382 = vmatprep.subr.bf16.mxu0 0
    %4383 = vmatpush1.bf16.msra.mxu0 0
    %4384 = vmatprep.subr.bf16.mxu0 0
    %4385 = vmatpush1.bf16.msra.mxu0 0
    %4386 = vmatprep.subr.bf16.mxu0 0
    %4387 = vmatpush1.bf16.msra.mxu0 0
    %4388 = vmatprep.mubr.bf16.mxu0 0
    %4389 = vmatmul.mubr.bf16.gmra.mrb[0].mxu0 %v3768
    %v4390 = vpop.f32.mrb[0].mxu0
    %v4391 = vadd.f32 %v4278, %v4390
    %v4392 = vpop.f32.mrb[0].mxu0
    %v4393 = vadd.f32 %v4280, %v4392
    %v4394 = vpop.f32.mrb[0].mxu0
    %v4395 = vadd.f32 %v4282, %v4394
    %v4396 = vpop.f32.mrb[0].mxu0
    %v4397 = vadd.f32 %v4284, %v4396
    %4398 = vmatprep.mubr.bf16.mxu0 0
    %4399 = vmatmul.mubr.bf16.gmra.mrb[0].mxu0 %v3771
    %v4400 = vpop.f32.mrb[0].mxu0
    %v4401 = vadd.f32 %v4288, %v4400
    %v4402 = vpop.f32.mrb[0].mxu0
    %v4403 = vadd.f32 %v4290, %v4402
    %v4404 = vpop.f32.mrb[0].mxu0
    %v4405 = vadd.f32 %v4292, %v4404
    %v4406 = vpop.f32.mrb[0].mxu0
    %v4407 = vadd.f32 %v4294, %v4406
    %4408 = vmatprep.mubr.bf16.mxu0 0
    %4409 = vmatmul.mubr.bf16.gmra.mrb[0].mxu0 %v3774
    %v4410 = vpop.f32.mrb[0].mxu0
    %v4411 = vadd.f32 %v4298, %v4410
    %v4412 = vpop.f32.mrb[0].mxu0
    %v4413 = vadd.f32 %v4300, %v4412
    %v4414 = vpop.f32.mrb[0].mxu0
    %v4415 = vadd.f32 %v4302, %v4414
    %v4416 = vpop.f32.mrb[0].mxu0
    %v4417 = vadd.f32 %v4304, %v4416
    %4418 = vmatprep.mubr.bf16.mxu0 0
    %4419 = vmatmul.mubr.bf16.gmra.mrb[0].mxu0 %v3777
    %v4420 = vpop.f32.mrb[0].mxu0
    %v4421 = vadd.f32 %v4308, %v4420
    %v4422 = vpop.f32.mrb[0].mxu0
    %v4423 = vadd.f32 %v4310, %v4422
    %v4424 = vpop.f32.mrb[0].mxu0
    %v4425 = vadd.f32 %v4312, %v4424
    %v4426 = vpop.f32.mrb[0].mxu0
    %v4427 = vadd.f32 %v4314, %v4426
    %4428 = vmatprep.mubr.bf16.mxu0 0
    %4429 = vmatmul.mubr.bf16.gmra.mrb[0].mxu0 %v3780
    %v4430 = vpop.f32.mrb[0].mxu0
    %v4431 = vadd.f32 %v4318, %v4430
    %v4432 = vpop.f32.mrb[0].mxu0
    %v4433 = vadd.f32 %v4320, %v4432
    %v4434 = vpop.f32.mrb[0].mxu0
    %v4435 = vadd.f32 %v4322, %v4434
    %v4436 = vpop.f32.mrb[0].mxu0
    %v4437 = vadd.f32 %v4324, %v4436
    %4438 = vmatprep.mubr.bf16.mxu0 0
    %4439 = vmatmul.mubr.bf16.gmra.mrb[0].mxu0 %v3783
    %v4440 = vpop.f32.mrb[0].mxu0
    %v4441 = vadd.f32 %v4328, %v4440
    %v4442 = vpop.f32.mrb[0].mxu0
    %v4443 = vadd.f32 %v4330, %v4442
    %v4444 = vpop.f32.mrb[0].mxu0
    %v4445 = vadd.f32 %v4332, %v4444
    %v4446 = vpop.f32.mrb[0].mxu0
    %v4447 = vadd.f32 %v4334, %v4446
    %4448 = vmatprep.mubr.bf16.mxu0 0
    %4449 = vmatmul.mubr.bf16.gmra.mrb[0].mxu0 %v3786
    %v4450 = vpop.f32.mrb[0].mxu0
    %v4451 = vadd.f32 %v4338, %v4450
    %v4452 = vpop.f32.mrb[0].mxu0
    %v4453 = vadd.f32 %v4340, %v4452
    %v4454 = vpop.f32.mrb[0].mxu0
    %v4455 = vadd.f32 %v4342, %v4454
    %v4456 = vpop.f32.mrb[0].mxu0
    %v4457 = vadd.f32 %v4344, %v4456
    %4458 = vmatprep.mubr.bf16.mxu0 0
    %4459 = vmatmul.mubr.bf16.gmra.mrb[0].mxu0 %v3789
    %v4460 = vpop.f32.mrb[0].mxu0
    %v4461 = vadd.f32 %v4348, %v4460
    %v4462 = vpop.f32.mrb[0].mxu0
    %v4463 = vadd.f32 %v4350, %v4462
    %v4464 = vpop.f32.mrb[0].mxu0
    %v4465 = vadd.f32 %v4352, %v4464
    %v4466 = vpop.f32.mrb[0].mxu0
    %v4467 = vadd.f32 %v4354, %v4466
    %4468 = vdwg.mxu0
    %vm4469 = vcmp.gt.f32.partialorder %v4052, 0.0
    %vm4470 = vcmp.gt.f32.partialorder %v4054, 0.0
    %vm4471 = vcmp.gt.f32.partialorder %v4391, 0.0
    %vm4472 = vcmp.gt.f32.partialorder %v4393, 0.0
    %vm4473 = vcmp.gt.f32.partialorder %v4056, 0.0
    %vm4474 = vcmp.gt.f32.partialorder %v4058, 0.0
    %vm4475 = vcmp.gt.f32.partialorder %v4395, 0.0
    %vm4476 = vcmp.gt.f32.partialorder %v4397, 0.0
    %vm4477 = vcmp.gt.f32.partialorder %v4062, 0.0
    %vm4478 = vcmp.gt.f32.partialorder %v4064, 0.0
    %vm4479 = vcmp.gt.f32.partialorder %v4401, 0.0
    %vm4480 = vcmp.gt.f32.partialorder %v4403, 0.0
    %vm4481 = vcmp.gt.f32.partialorder %v4066, 0.0
    %vm4482 = vcmp.gt.f32.partialorder %v4068, 0.0
    %vm4483 = vcmp.gt.f32.partialorder %v4405, 0.0
    %vm4484 = vcmp.gt.f32.partialorder %v4407, 0.0
    %vm4485 = vcmp.gt.f32.partialorder %v4072, 0.0
    %vm4486 = vcmp.gt.f32.partialorder %v4074, 0.0
    %vm4487 = vcmp.gt.f32.partialorder %v4411, 0.0
    %vm4488 = vcmp.gt.f32.partialorder %v4413, 0.0
    %vm4489 = vcmp.gt.f32.partialorder %v4076, 0.0
    %vm4490 = vcmp.gt.f32.partialorder %v4078, 0.0
    %vm4491 = vcmp.gt.f32.partialorder %v4415, 0.0
    %vm4492 = vcmp.gt.f32.partialorder %v4417, 0.0
    %vm4493 = vcmp.gt.f32.partialorder %v4082, 0.0
    %vm4494 = vcmp.gt.f32.partialorder %v4084, 0.0
    %vm4495 = vcmp.gt.f32.partialorder %v4421, 0.0
    %vm4496 = vcmp.gt.f32.partialorder %v4423, 0.0
    %vm4497 = vcmp.gt.f32.partialorder %v4086, 0.0
    %vm4498 = vcmp.gt.f32.partialorder %v4088, 0.0
    %vm4499 = vcmp.gt.f32.partialorder %v4425, 0.0
    %vm4500 = vcmp.gt.f32.partialorder %v4427, 0.0
    %vm4501 = vcmp.gt.f32.partialorder %v4092, 0.0
    %vm4502 = vcmp.gt.f32.partialorder %v4094, 0.0
    %vm4503 = vcmp.gt.f32.partialorder %v4431, 0.0
    %vm4504 = vcmp.gt.f32.partialorder %v4433, 0.0
    %vm4505 = vcmp.gt.f32.partialorder %v4096, 0.0
    %vm4506 = vcmp.gt.f32.partialorder %v4098, 0.0
    %vm4507 = vcmp.gt.f32.partialorder %v4435, 0.0
    %vm4508 = vcmp.gt.f32.partialorder %v4437, 0.0
    %vm4509 = vcmp.gt.f32.partialorder %v4102, 0.0
    %vm4510 = vcmp.gt.f32.partialorder %v4104, 0.0
    %vm4511 = vcmp.gt.f32.partialorder %v4441, 0.0
    %vm4512 = vcmp.gt.f32.partialorder %v4443, 0.0
    %vm4513 = vcmp.gt.f32.partialorder %v4106, 0.0
    %vm4514 = vcmp.gt.f32.partialorder %v4108, 0.0
    %vm4515 = vcmp.gt.f32.partialorder %v4445, 0.0
    %vm4516 = vcmp.gt.f32.partialorder %v4447, 0.0
    %vm4517 = vcmp.gt.f32.partialorder %v4112, 0.0
    %vm4518 = vcmp.gt.f32.partialorder %v4114, 0.0
    %vm4519 = vcmp.gt.f32.partialorder %v4451, 0.0
    %vm4520 = vcmp.gt.f32.partialorder %v4453, 0.0
    %vm4521 = vcmp.gt.f32.partialorder %v4116, 0.0
    %vm4522 = vcmp.gt.f32.partialorder %v4118, 0.0
    %vm4523 = vcmp.gt.f32.partialorder %v4455, 0.0
    %vm4524 = vcmp.gt.f32.partialorder %v4457, 0.0
    %vm4525 = vcmp.gt.f32.partialorder %v4122, 0.0
    %vm4526 = vcmp.gt.f32.partialorder %v4124, 0.0
    %vm4527 = vcmp.gt.f32.partialorder %v4461, 0.0
    %vm4528 = vcmp.gt.f32.partialorder %v4463, 0.0
    %vm4529 = vcmp.gt.f32.partialorder %v4126, 0.0
    %vm4530 = vcmp.gt.f32.partialorder %v4128, 0.0
    %vm4531 = vcmp.gt.f32.partialorder %v4465, 0.0
    %vm4532 = vcmp.gt.f32.partialorder %v4467, 0.0
    %v4533 = vmul.f32 %v4052, 0.2
    %v4534 = vmul.f32 %v4054, 0.2
    %v4535 = vmul.f32 %v4391, 0.2
    %v4536 = vmul.f32 %v4393, 0.2
    %v4537 = vmul.f32 %v4056, 0.2
    %v4538 = vmul.f32 %v4058, 0.2
    %v4539 = vmul.f32 %v4395, 0.2
    %v4540 = vmul.f32 %v4397, 0.2
    %v4541 = vmul.f32 %v4062, 0.2
    %v4542 = vmul.f32 %v4064, 0.2
    %v4543 = vmul.f32 %v4401, 0.2
    %v4544 = vmul.f32 %v4403, 0.2
    %v4545 = vmul.f32 %v4066, 0.2
    %v4546 = vmul.f32 %v4068, 0.2
    %v4547 = vmul.f32 %v4405, 0.2
    %v4548 = vmul.f32 %v4407, 0.2
    %v4549 = vmul.f32 %v4072, 0.2
    %v4550 = vmul.f32 %v4074, 0.2
    %v4551 = vmul.f32 %v4411, 0.2
    %v4552 = vmul.f32 %v4413, 0.2
    %v4553 = vmul.f32 %v4076, 0.2
    %v4554 = vmul.f32 %v4078, 0.2
    %v4555 = vmul.f32 %v4415, 0.2
    %v4556 = vmul.f32 %v4417, 0.2
    %v4557 = vmul.f32 %v4082, 0.2
    %v4558 = vmul.f32 %v4084, 0.2
    %v4559 = vmul.f32 %v4421, 0.2
    %v4560 = vmul.f32 %v4423, 0.2
    %v4561 = vmul.f32 %v4086, 0.2
    %v4562 = vmul.f32 %v4088, 0.2
    %v4563 = vmul.f32 %v4425, 0.2
    %v4564 = vmul.f32 %v4427, 0.2
    %v4565 = vmul.f32 %v4092, 0.2
    %v4566 = vmul.f32 %v4094, 0.2
    %v4567 = vmul.f32 %v4431, 0.2
    %v4568 = vmul.f32 %v4433, 0.2
    %v4569 = vmul.f32 %v4096, 0.2
    %v4570 = vmul.f32 %v4098, 0.2
    %v4571 = vmul.f32 %v4435, 0.2
    %v4572 = vmul.f32 %v4437, 0.2
    %v4573 = vmul.f32 %v4102, 0.2
    %v4574 = vmul.f32 %v4104, 0.2
    %v4575 = vmul.f32 %v4441, 0.2
    %v4576 = vmul.f32 %v4443, 0.2
    %v4577 = vmul.f32 %v4106, 0.2
    %v4578 = vmul.f32 %v4108, 0.2
    %v4579 = vmul.f32 %v4445, 0.2
    %v4580 = vmul.f32 %v4447, 0.2
    %v4581 = vmul.f32 %v4112, 0.2
    %v4582 = vmul.f32 %v4114, 0.2
    %v4583 = vmul.f32 %v4451, 0.2
    %v4584 = vmul.f32 %v4453, 0.2
    %v4585 = vmul.f32 %v4116, 0.2
    %v4586 = vmul.f32 %v4118, 0.2
    %v4587 = vmul.f32 %v4455, 0.2
    %v4588 = vmul.f32 %v4457, 0.2
    %v4589 = vmul.f32 %v4122, 0.2
    %v4590 = vmul.f32 %v4124, 0.2
    %v4591 = vmul.f32 %v4461, 0.2
    %v4592 = vmul.f32 %v4463, 0.2
    %v4593 = vmul.f32 %v4126, 0.2
    %v4594 = vmul.f32 %v4128, 0.2
    %v4595 = vmul.f32 %v4465, 0.2
    %v4596 = vmul.f32 %v4467, 0.2
    %v4597 = vsel %vm4469, %v4052, %v4533
    %v4598 = vsel %vm4470, %v4054, %v4534
    %v4599 = vsel %vm4471, %v4391, %v4535
    %v4600 = vsel %vm4472, %v4393, %v4536
    %v4601 = vsel %vm4473, %v4056, %v4537
    %v4602 = vsel %vm4474, %v4058, %v4538
    %v4603 = vsel %vm4475, %v4395, %v4539
    %v4604 = vsel %vm4476, %v4397, %v4540
    %v4605 = vsel %vm4477, %v4062, %v4541
    %v4606 = vsel %vm4478, %v4064, %v4542
    %v4607 = vsel %vm4479, %v4401, %v4543
    %v4608 = vsel %vm4480, %v4403, %v4544
    %v4609 = vsel %vm4481, %v4066, %v4545
    %v4610 = vsel %vm4482, %v4068, %v4546
    %v4611 = vsel %vm4483, %v4405, %v4547
    %v4612 = vsel %vm4484, %v4407, %v4548
    %v4613 = vsel %vm4485, %v4072, %v4549
    %v4614 = vsel %vm4486, %v4074, %v4550
    %v4615 = vsel %vm4487, %v4411, %v4551
    %v4616 = vsel %vm4488, %v4413, %v4552
    %v4617 = vsel %vm4489, %v4076, %v4553
    %v4618 = vsel %vm4490, %v4078, %v4554
    %v4619 = vsel %vm4491, %v4415, %v4555
    %v4620 = vsel %vm4492, %v4417, %v4556
    %v4621 = vsel %vm4493, %v4082, %v4557
    %v4622 = vsel %vm4494, %v4084, %v4558
    %v4623 = vsel %vm4495, %v4421, %v4559
    %v4624 = vsel %vm4496, %v4423, %v4560
    %v4625 = vsel %vm4497, %v4086, %v4561
    %v4626 = vsel %vm4498, %v4088, %v4562
    %v4627 = vsel %vm4499, %v4425, %v4563
    %v4628 = vsel %vm4500, %v4427, %v4564
    %v4629 = vsel %vm4501, %v4092, %v4565
    %v4630 = vsel %vm4502, %v4094, %v4566
    %v4631 = vsel %vm4503, %v4431, %v4567
    %v4632 = vsel %vm4504, %v4433, %v4568
    %v4633 = vsel %vm4505, %v4096, %v4569
    %v4634 = vsel %vm4506, %v4098, %v4570
    %v4635 = vsel %vm4507, %v4435, %v4571
    %v4636 = vsel %vm4508, %v4437, %v4572
    %v4637 = vsel %vm4509, %v4102, %v4573
    %v4638 = vsel %vm4510, %v4104, %v4574
    %v4639 = vsel %vm4511, %v4441, %v4575
    %v4640 = vsel %vm4512, %v4443, %v4576
    %v4641 = vsel %vm4513, %v4106, %v4577
    %v4642 = vsel %vm4514, %v4108, %v4578
    %v4643 = vsel %vm4515, %v4445, %v4579
    %v4644 = vsel %vm4516, %v4447, %v4580
    %v4645 = vsel %vm4517, %v4112, %v4581
    %v4646 = vsel %vm4518, %v4114, %v4582
    %v4647 = vsel %vm4519, %v4451, %v4583
    %v4648 = vsel %vm4520, %v4453, %v4584
    %v4649 = vsel %vm4521, %v4116, %v4585
    %v4650 = vsel %vm4522, %v4118, %v4586
    %v4651 = vsel %vm4523, %v4455, %v4587
    %v4652 = vsel %vm4524, %v4457, %v4588
    %v4653 = vsel %vm4525, %v4122, %v4589
    %v4654 = vsel %vm4526, %v4124, %v4590
    %v4655 = vsel %vm4527, %v4461, %v4591
    %v4656 = vsel %vm4528, %v4463, %v4592
    %v4657 = vsel %vm4529, %v4126, %v4593
    %v4658 = vsel %vm4530, %v4128, %v4594
    %v4659 = vsel %vm4531, %v4465, %v4595
    %v4660 = vsel %vm4532, %v4467, %v4596
    %v4661 = vpack.c.bf16 %v4601, %v4597
    %v4662 = vpack.c.bf16 %v4602, %v4598
    %v4663 = vpack.c.bf16 %v4603, %v4599
    %v4664 = vpack.c.bf16 %v4604, %v4600
    %v4665 = vpack.c.bf16 %v4609, %v4605
    %v4666 = vpack.c.bf16 %v4610, %v4606
    %v4667 = vpack.c.bf16 %v4611, %v4607
    %v4668 = vpack.c.bf16 %v4612, %v4608
    %v4669 = vpack.c.bf16 %v4617, %v4613
    %v4670 = vpack.c.bf16 %v4618, %v4614
    %v4671 = vpack.c.bf16 %v4619, %v4615
    %v4672 = vpack.c.bf16 %v4620, %v4616
    %v4673 = vpack.c.bf16 %v4625, %v4621
    %v4674 = vpack.c.bf16 %v4626, %v4622
    %v4675 = vpack.c.bf16 %v4627, %v4623
    %v4676 = vpack.c.bf16 %v4628, %v4624
    %v4677 = vpack.c.bf16 %v4633, %v4629
    %v4678 = vpack.c.bf16 %v4634, %v4630
    %v4679 = vpack.c.bf16 %v4635, %v4631
    %v4680 = vpack.c.bf16 %v4636, %v4632
    %v4681 = vpack.c.bf16 %v4641, %v4637
    %v4682 = vpack.c.bf16 %v4642, %v4638
    %v4683 = vpack.c.bf16 %v4643, %v4639
    %v4684 = vpack.c.bf16 %v4644, %v4640
    %v4685 = vpack.c.bf16 %v4649, %v4645
    %v4686 = vpack.c.bf16 %v4650, %v4646
    %v4687 = vpack.c.bf16 %v4651, %v4647
    %v4688 = vpack.c.bf16 %v4652, %v4648
    %v4689 = vpack.c.bf16 %v4657, %v4653
    %v4690 = vpack.c.bf16 %v4658, %v4654
    %v4691 = vpack.c.bf16 %v4659, %v4655
    %v4692 = vpack.c.bf16 %v4660, %v4656
    %v4693 = vld [vmem:[%s7] sm:$0xff]
    %v4694 = vld [vmem:[%s7 + $0x8] sm:$0xff]
    %v4695 = vld [vmem:[%s7 + $0x10] sm:$0xff]
    %v4696 = vld [vmem:[%s7 + $0x18] sm:$0xff]
    %v4697 = vld [vmem:[%s7 + $0x20] sm:$0xff]
    %v4698 = vld [vmem:[%s7 + $0x28] sm:$0xff]
    %v4699 = vld [vmem:[%s7 + $0x30] sm:$0xff]
    %v4700 = vld [vmem:[%s7 + $0x38] sm:$0xff]
    %v4701 = vld [vmem:[%s7 + $0x40] sm:$0xff]
    %v4702 = vld [vmem:[%s7 + $0x48] sm:$0xff]
    %v4703 = vld [vmem:[%s7 + $0x50] sm:$0xff]
    %v4704 = vld [vmem:[%s7 + $0x58] sm:$0xff]
    %v4705 = vld [vmem:[%s7 + $0x60] sm:$0xff]
    %v4706 = vld [vmem:[%s7 + $0x68] sm:$0xff]
    %v4707 = vld [vmem:[%s7 + $0x70] sm:$0xff]
    %v4708 = vld [vmem:[%s7 + $0x78] sm:$0xff]
    %v4709 = vld [vmem:[%s7 + $0x80] sm:$0xff]
    %v4710 = vld [vmem:[%s7 + $0x88] sm:$0xff]
    %v4711 = vld [vmem:[%s7 + $0x90] sm:$0xff]
    %v4712 = vld [vmem:[%s7 + $0x98] sm:$0xff]
    %v4713 = vld [vmem:[%s7 + $0xa0] sm:$0xff]
    %v4714 = vld [vmem:[%s7 + $0xa8] sm:$0xff]
    %v4715 = vld [vmem:[%s7 + $0xb0] sm:$0xff]
    %v4716 = vld [vmem:[%s7 + $0xb8] sm:$0xff]
    %v4717 = vld [vmem:[%s7 + $0xc0] sm:$0xff]
    %v4718 = vld [vmem:[%s7 + $0xc8] sm:$0xff]
    %v4719 = vld [vmem:[%s7 + $0xd0] sm:$0xff]
    %v4720 = vld [vmem:[%s7 + $0xd8] sm:$0xff]
    %v4721 = vld [vmem:[%s7 + $0xe0] sm:$0xff]
    %v4722 = vld [vmem:[%s7 + $0xe8] sm:$0xff]
    %v4723 = vld [vmem:[%s7 + $0xf0] sm:$0xff]
    %v4724 = vld [vmem:[%s7 + $0xf8] sm:$0xff]
    %v4725 = vld [vmem:[%s7 + $0x100] sm:$0xff]
    %v4726 = vld [vmem:[%s7 + $0x108] sm:$0xff]
    %v4727 = vld [vmem:[%s7 + $0x110] sm:$0xff]
    %v4728 = vld [vmem:[%s7 + $0x118] sm:$0xff]
    %v4729 = vld [vmem:[%s7 + $0x120] sm:$0xff]
    %v4730 = vld [vmem:[%s7 + $0x128] sm:$0xff]
    %v4731 = vld [vmem:[%s7 + $0x130] sm:$0xff]
    %v4732 = vld [vmem:[%s7 + $0x138] sm:$0xff]
    %v4733 = vld [vmem:[%s7 + $0x140] sm:$0xff]
    %v4734 = vld [vmem:[%s7 + $0x148] sm:$0xff]
    %v4735 = vld [vmem:[%s7 + $0x150] sm:$0xff]
    %v4736 = vld [vmem:[%s7 + $0x158] sm:$0xff]
    %v4737 = vld [vmem:[%s7 + $0x160] sm:$0xff]
    %v4738 = vld [vmem:[%s7 + $0x168] sm:$0xff]
    %v4739 = vld [vmem:[%s7 + $0x170] sm:$0xff]
    %v4740 = vld [vmem:[%s7 + $0x178] sm:$0xff]
    %v4741 = vld [vmem:[%s7 + $0x180] sm:$0xff]
    %v4742 = vld [vmem:[%s7 + $0x188] sm:$0xff]
    %v4743 = vld [vmem:[%s7 + $0x190] sm:$0xff]
    %v4744 = vld [vmem:[%s7 + $0x198] sm:$0xff]
    %v4745 = vld [vmem:[%s7 + $0x1a0] sm:$0xff]
    %v4746 = vld [vmem:[%s7 + $0x1a8] sm:$0xff]
    %v4747 = vld [vmem:[%s7 + $0x1b0] sm:$0xff]
    %v4748 = vld [vmem:[%s7 + $0x1b8] sm:$0xff]
    %v4749 = vld [vmem:[%s7 + $0x1c0] sm:$0xff]
    %v4750 = vld [vmem:[%s7 + $0x1c8] sm:$0xff]
    %v4751 = vld [vmem:[%s7 + $0x1d0] sm:$0xff]
    %v4752 = vld [vmem:[%s7 + $0x1d8] sm:$0xff]
    %v4753 = vld [vmem:[%s7 + $0x1e0] sm:$0xff]
    %v4754 = vld [vmem:[%s7 + $0x1e8] sm:$0xff]
    %v4755 = vld [vmem:[%s7 + $0x1f0] sm:$0xff]
    %v4756 = vld [vmem:[%s7 + $0x1f8] sm:$0xff]
    %v4757 = vld [vmem:[%s7 + $0x200] sm:$0xff]
    %v4758 = vld [vmem:[%s7 + $0x208] sm:$0xff]
    %v4759 = vld [vmem:[%s7 + $0x210] sm:$0xff]
    %v4760 = vld [vmem:[%s7 + $0x218] sm:$0xff]
    %v4761 = vld [vmem:[%s7 + $0x220] sm:$0xff]
    %v4762 = vld [vmem:[%s7 + $0x228] sm:$0xff]
    %v4763 = vld [vmem:[%s7 + $0x230] sm:$0xff]
    %v4764 = vld [vmem:[%s7 + $0x238] sm:$0xff]
    %v4765 = vld [vmem:[%s7 + $0x240] sm:$0xff]
    %v4766 = vld [vmem:[%s7 + $0x248] sm:$0xff]
    %v4767 = vld [vmem:[%s7 + $0x250] sm:$0xff]
    %v4768 = vld [vmem:[%s7 + $0x258] sm:$0xff]
    %v4769 = vld [vmem:[%s7 + $0x260] sm:$0xff]
    %v4770 = vld [vmem:[%s7 + $0x268] sm:$0xff]
    %v4771 = vld [vmem:[%s7 + $0x270] sm:$0xff]
    %v4772 = vld [vmem:[%s7 + $0x278] sm:$0xff]
    %v4773 = vld [vmem:[%s7 + $0x280] sm:$0xff]
    %v4774 = vld [vmem:[%s7 + $0x288] sm:$0xff]
    %v4775 = vld [vmem:[%s7 + $0x290] sm:$0xff]
    %v4776 = vld [vmem:[%s7 + $0x298] sm:$0xff]
    %v4777 = vld [vmem:[%s7 + $0x2a0] sm:$0xff]
    %v4778 = vld [vmem:[%s7 + $0x2a8] sm:$0xff]
    %v4779 = vld [vmem:[%s7 + $0x2b0] sm:$0xff]
    %v4780 = vld [vmem:[%s7 + $0x2b8] sm:$0xff]
    %v4781 = vld [vmem:[%s7 + $0x2c0] sm:$0xff]
    %v4782 = vld [vmem:[%s7 + $0x2c8] sm:$0xff]
    %v4783 = vld [vmem:[%s7 + $0x2d0] sm:$0xff]
    %v4784 = vld [vmem:[%s7 + $0x2d8] sm:$0xff]
    %v4785 = vld [vmem:[%s7 + $0x2e0] sm:$0xff]
    %v4786 = vld [vmem:[%s7 + $0x2e8] sm:$0xff]
    %v4787 = vld [vmem:[%s7 + $0x2f0] sm:$0xff]
    %v4788 = vld [vmem:[%s7 + $0x2f8] sm:$0xff]
    %v4789 = vld [vmem:[%s7 + $0x300] sm:$0xff]
    %v4790 = vld [vmem:[%s7 + $0x308] sm:$0xff]
    %v4791 = vld [vmem:[%s7 + $0x310] sm:$0xff]
    %v4792 = vld [vmem:[%s7 + $0x318] sm:$0xff]
    %v4793 = vld [vmem:[%s7 + $0x320] sm:$0xff]
    %v4794 = vld [vmem:[%s7 + $0x328] sm:$0xff]
    %v4795 = vld [vmem:[%s7 + $0x330] sm:$0xff]
    %v4796 = vld [vmem:[%s7 + $0x338] sm:$0xff]
    %v4797 = vld [vmem:[%s7 + $0x340] sm:$0xff]
    %v4798 = vld [vmem:[%s7 + $0x348] sm:$0xff]
    %v4799 = vld [vmem:[%s7 + $0x350] sm:$0xff]
    %v4800 = vld [vmem:[%s7 + $0x358] sm:$0xff]
    %v4801 = vld [vmem:[%s7 + $0x360] sm:$0xff]
    %v4802 = vld [vmem:[%s7 + $0x368] sm:$0xff]
    %v4803 = vld [vmem:[%s7 + $0x370] sm:$0xff]
    %v4804 = vld [vmem:[%s7 + $0x378] sm:$0xff]
    %v4805 = vld [vmem:[%s7 + $0x380] sm:$0xff]
    %v4806 = vld [vmem:[%s7 + $0x388] sm:$0xff]
    %v4807 = vld [vmem:[%s7 + $0x390] sm:$0xff]
    %v4808 = vld [vmem:[%s7 + $0x398] sm:$0xff]
    %v4809 = vld [vmem:[%s7 + $0x3a0] sm:$0xff]
    %v4810 = vld [vmem:[%s7 + $0x3a8] sm:$0xff]
    %v4811 = vld [vmem:[%s7 + $0x3b0] sm:$0xff]
    %v4812 = vld [vmem:[%s7 + $0x3b8] sm:$0xff]
    %v4813 = vld [vmem:[%s7 + $0x3c0] sm:$0xff]
    %v4814 = vld [vmem:[%s7 + $0x3c8] sm:$0xff]
    %v4815 = vld [vmem:[%s7 + $0x3d0] sm:$0xff]
    %v4816 = vld [vmem:[%s7 + $0x3d8] sm:$0xff]
    %v4817 = vld [vmem:[%s7 + $0x3e0] sm:$0xff]
    %v4818 = vld [vmem:[%s7 + $0x3e8] sm:$0xff]
    %v4819 = vld [vmem:[%s7 + $0x3f0] sm:$0xff]
    %v4820 = vld [vmem:[%s7 + $0x3f8] sm:$0xff]
    %v4821 = vld [vmem:[%s8] sm:$0xf]
    %v4823 = vlaneseq
    %v4824 = vshrl.u32 %v4823, 7
    %v4825 = vsub.s32 0, %v4824
    %v4826 = vrot.slane %v4821, %v4825
    %v4827 = vlaneseq
    %v4828 = vshrl.u32 %v4827, 7
    %v4829 = vsub.s32 1, %v4828
    %v4830 = vrot.slane %v4821, %v4829
    %v4831 = vlaneseq
    %v4832 = vshrl.u32 %v4831, 7
    %v4833 = vsub.s32 2, %v4832
    %v4834 = vrot.slane %v4821, %v4833
    %v4835 = vlaneseq
    %v4836 = vshrl.u32 %v4835, 7
    %v4837 = vsub.s32 3, %v4836
    %v4838 = vrot.slane %v4821, %v4837
    %v4971 = vunpack.c.l.b16 %v4693
    %v4972 = vunpack.c.h.b16 %v4693
    %v4973 = vunpack.c.l.b16 %v4694
    %v4974 = vunpack.c.h.b16 %v4694
    %v4975 = vunpack.c.l.b16 %v4695
    %v4976 = vunpack.c.h.b16 %v4695
    %v4977 = vunpack.c.l.b16 %v4696
    %v4978 = vunpack.c.h.b16 %v4696
    %v4979 = vunpack.c.l.b16 %v4697
    %v4980 = vunpack.c.h.b16 %v4697
    %v4981 = vunpack.c.l.b16 %v4698
    %v4982 = vunpack.c.h.b16 %v4698
    %v4983 = vunpack.c.l.b16 %v4699
    %v4984 = vunpack.c.h.b16 %v4699
    %v4985 = vunpack.c.l.b16 %v4700
    %v4986 = vunpack.c.h.b16 %v4700
    %v4987 = vunpack.c.l.b16 %v4701
    %v4988 = vunpack.c.h.b16 %v4701
    %v4989 = vunpack.c.l.b16 %v4702
    %v4990 = vunpack.c.h.b16 %v4702
    %v4991 = vunpack.c.l.b16 %v4703
    %v4992 = vunpack.c.h.b16 %v4703
    %v4993 = vunpack.c.l.b16 %v4704
    %v4994 = vunpack.c.h.b16 %v4704
    %v4995 = vunpack.c.l.b16 %v4705
    %v4996 = vunpack.c.h.b16 %v4705
    %v4997 = vunpack.c.l.b16 %v4706
    %v4998 = vunpack.c.h.b16 %v4706
    %v4999 = vunpack.c.l.b16 %v4707
    %v5000 = vunpack.c.h.b16 %v4707
    %v5001 = vunpack.c.l.b16 %v4708
    %v5002 = vunpack.c.h.b16 %v4708
    %v5003 = vunpack.c.l.b16 %v4709
    %v5004 = vunpack.c.h.b16 %v4709
    %v5005 = vunpack.c.l.b16 %v4710
    %v5006 = vunpack.c.h.b16 %v4710
    %v5007 = vunpack.c.l.b16 %v4711
    %v5008 = vunpack.c.h.b16 %v4711
    %v5009 = vunpack.c.l.b16 %v4712
    %v5010 = vunpack.c.h.b16 %v4712
    %v5011 = vunpack.c.l.b16 %v4713
    %v5012 = vunpack.c.h.b16 %v4713
    %v5013 = vunpack.c.l.b16 %v4714
    %v5014 = vunpack.c.h.b16 %v4714
    %v5015 = vunpack.c.l.b16 %v4715
    %v5016 = vunpack.c.h.b16 %v4715
    %v5017 = vunpack.c.l.b16 %v4716
    %v5018 = vunpack.c.h.b16 %v4716
    %v5019 = vunpack.c.l.b16 %v4717
    %v5020 = vunpack.c.h.b16 %v4717
    %v5021 = vunpack.c.l.b16 %v4718
    %v5022 = vunpack.c.h.b16 %v4718
    %v5023 = vunpack.c.l.b16 %v4719
    %v5024 = vunpack.c.h.b16 %v4719
    %v5025 = vunpack.c.l.b16 %v4720
    %v5026 = vunpack.c.h.b16 %v4720
    %v5027 = vunpack.c.l.b16 %v4721
    %v5028 = vunpack.c.h.b16 %v4721
    %v5029 = vunpack.c.l.b16 %v4722
    %v5030 = vunpack.c.h.b16 %v4722
    %v5031 = vunpack.c.l.b16 %v4723
    %v5032 = vunpack.c.h.b16 %v4723
    %v5033 = vunpack.c.l.b16 %v4724
    %v5034 = vunpack.c.h.b16 %v4724
    %v5035 = vunpack.c.l.b16 %v4725
    %v5036 = vunpack.c.h.b16 %v4725
    %v5037 = vunpack.c.l.b16 %v4726
    %v5038 = vunpack.c.h.b16 %v4726
    %v5039 = vunpack.c.l.b16 %v4727
    %v5040 = vunpack.c.h.b16 %v4727
    %v5041 = vunpack.c.l.b16 %v4728
    %v5042 = vunpack.c.h.b16 %v4728
    %v5043 = vunpack.c.l.b16 %v4729
    %v5044 = vunpack.c.h.b16 %v4729
    %v5045 = vunpack.c.l.b16 %v4730
    %v5046 = vunpack.c.h.b16 %v4730
    %v5047 = vunpack.c.l.b16 %v4731
    %v5048 = vunpack.c.h.b16 %v4731
    %v5049 = vunpack.c.l.b16 %v4732
    %v5050 = vunpack.c.h.b16 %v4732
    %v5051 = vunpack.c.l.b16 %v4733
    %v5052 = vunpack.c.h.b16 %v4733
    %v5053 = vunpack.c.l.b16 %v4734
    %v5054 = vunpack.c.h.b16 %v4734
    %v5055 = vunpack.c.l.b16 %v4735
    %v5056 = vunpack.c.h.b16 %v4735
    %v5057 = vunpack.c.l.b16 %v4736
    %v5058 = vunpack.c.h.b16 %v4736
    %v5059 = vunpack.c.l.b16 %v4737
    %v5060 = vunpack.c.h.b16 %v4737
    %v5061 = vunpack.c.l.b16 %v4738
    %v5062 = vunpack.c.h.b16 %v4738
    %v5063 = vunpack.c.l.b16 %v4739
    %v5064 = vunpack.c.h.b16 %v4739
    %v5065 = vunpack.c.l.b16 %v4740
    %v5066 = vunpack.c.h.b16 %v4740
    %v5067 = vunpack.c.l.b16 %v4741
    %v5068 = vunpack.c.h.b16 %v4741
    %v5069 = vunpack.c.l.b16 %v4742
    %v5070 = vunpack.c.h.b16 %v4742
    %v5071 = vunpack.c.l.b16 %v4743
    %v5072 = vunpack.c.h.b16 %v4743
    %v5073 = vunpack.c.l.b16 %v4744
    %v5074 = vunpack.c.h.b16 %v4744
    %v5075 = vunpack.c.l.b16 %v4745
    %v5076 = vunpack.c.h.b16 %v4745
    %v5077 = vunpack.c.l.b16 %v4746
    %v5078 = vunpack.c.h.b16 %v4746
    %v5079 = vunpack.c.l.b16 %v4747
    %v5080 = vunpack.c.h.b16 %v4747
    %v5081 = vunpack.c.l.b16 %v4748
    %v5082 = vunpack.c.h.b16 %v4748
    %v5083 = vunpack.c.l.b16 %v4749
    %v5084 = vunpack.c.h.b16 %v4749
    %v5085 = vunpack.c.l.b16 %v4750
    %v5086 = vunpack.c.h.b16 %v4750
    %v5087 = vunpack.c.l.b16 %v4751
    %v5088 = vunpack.c.h.b16 %v4751
    %v5089 = vunpack.c.l.b16 %v4752
    %v5090 = vunpack.c.h.b16 %v4752
    %v5091 = vunpack.c.l.b16 %v4753
    %v5092 = vunpack.c.h.b16 %v4753
    %v5093 = vunpack.c.l.b16 %v4754
    %v5094 = vunpack.c.h.b16 %v4754
    %v5095 = vunpack.c.l.b16 %v4755
    %v5096 = vunpack.c.h.b16 %v4755
    %v5097 = vunpack.c.l.b16 %v4756
    %v5098 = vunpack.c.h.b16 %v4756
    %v5099 = vunpack.c.l.b16 %v4757
    %v5100 = vunpack.c.h.b16 %v4757
    %v5101 = vunpack.c.l.b16 %v4758
    %v5102 = vunpack.c.h.b16 %v4758
    %v5103 = vunpack.c.l.b16 %v4759
    %v5104 = vunpack.c.h.b16 %v4759
    %v5105 = vunpack.c.l.b16 %v4760
    %v5106 = vunpack.c.h.b16 %v4760
    %v5107 = vunpack.c.l.b16 %v4761
    %v5108 = vunpack.c.h.b16 %v4761
    %v5109 = vunpack.c.l.b16 %v4762
    %v5110 = vunpack.c.h.b16 %v4762
    %v5111 = vunpack.c.l.b16 %v4763
    %v5112 = vunpack.c.h.b16 %v4763
    %v5113 = vunpack.c.l.b16 %v4764
    %v5114 = vunpack.c.h.b16 %v4764
    %v5115 = vunpack.c.l.b16 %v4765
    %v5116 = vunpack.c.h.b16 %v4765
    %v5117 = vunpack.c.l.b16 %v4766
    %v5118 = vunpack.c.h.b16 %v4766
    %v5119 = vunpack.c.l.b16 %v4767
    %v5120 = vunpack.c.h.b16 %v4767
    %v5121 = vunpack.c.l.b16 %v4768
    %v5122 = vunpack.c.h.b16 %v4768
    %v5123 = vunpack.c.l.b16 %v4769
    %v5124 = vunpack.c.h.b16 %v4769
    %v5125 = vunpack.c.l.b16 %v4770
    %v5126 = vunpack.c.h.b16 %v4770
    %v5127 = vunpack.c.l.b16 %v4771
    %v5128 = vunpack.c.h.b16 %v4771
    %v5129 = vunpack.c.l.b16 %v4772
    %v5130 = vunpack.c.h.b16 %v4772
    %v5131 = vunpack.c.l.b16 %v4773
    %v5132 = vunpack.c.h.b16 %v4773
    %v5133 = vunpack.c.l.b16 %v4774
    %v5134 = vunpack.c.h.b16 %v4774
    %v5135 = vunpack.c.l.b16 %v4775
    %v5136 = vunpack.c.h.b16 %v4775
    %v5137 = vunpack.c.l.b16 %v4776
    %v5138 = vunpack.c.h.b16 %v4776
    %v5139 = vunpack.c.l.b16 %v4777
    %v5140 = vunpack.c.h.b16 %v4777
    %v5141 = vunpack.c.l.b16 %v4778
    %v5142 = vunpack.c.h.b16 %v4778
    %v5143 = vunpack.c.l.b16 %v4779
    %v5144 = vunpack.c.h.b16 %v4779
    %v5145 = vunpack.c.l.b16 %v4780
    %v5146 = vunpack.c.h.b16 %v4780
    %v5147 = vunpack.c.l.b16 %v4781
    %v5148 = vunpack.c.h.b16 %v4781
    %v5149 = vunpack.c.l.b16 %v4782
    %v5150 = vunpack.c.h.b16 %v4782
    %v5151 = vunpack.c.l.b16 %v4783
    %v5152 = vunpack.c.h.b16 %v4783
    %v5153 = vunpack.c.l.b16 %v4784
    %v5154 = vunpack.c.h.b16 %v4784
    %v5155 = vunpack.c.l.b16 %v4785
    %v5156 = vunpack.c.h.b16 %v4785
    %v5157 = vunpack.c.l.b16 %v4786
    %v5158 = vunpack.c.h.b16 %v4786
    %v5159 = vunpack.c.l.b16 %v4787
    %v5160 = vunpack.c.h.b16 %v4787
    %v5161 = vunpack.c.l.b16 %v4788
    %v5162 = vunpack.c.h.b16 %v4788
    %v5163 = vunpack.c.l.b16 %v4789
    %v5164 = vunpack.c.h.b16 %v4789
    %v5165 = vunpack.c.l.b16 %v4790
    %v5166 = vunpack.c.h.b16 %v4790
    %v5167 = vunpack.c.l.b16 %v4791
    %v5168 = vunpack.c.h.b16 %v4791
    %v5169 = vunpack.c.l.b16 %v4792
    %v5170 = vunpack.c.h.b16 %v4792
    %v5171 = vunpack.c.l.b16 %v4793
    %v5172 = vunpack.c.h.b16 %v4793
    %v5173 = vunpack.c.l.b16 %v4794
    %v5174 = vunpack.c.h.b16 %v4794
    %v5175 = vunpack.c.l.b16 %v4795
    %v5176 = vunpack.c.h.b16 %v4795
    %v5177 = vunpack.c.l.b16 %v4796
    %v5178 = vunpack.c.h.b16 %v4796
    %v5179 = vunpack.c.l.b16 %v4797
    %v5180 = vunpack.c.h.b16 %v4797
    %v5181 = vunpack.c.l.b16 %v4798
    %v5182 = vunpack.c.h.b16 %v4798
    %v5183 = vunpack.c.l.b16 %v4799
    %v5184 = vunpack.c.h.b16 %v4799
    %v5185 = vunpack.c.l.b16 %v4800
    %v5186 = vunpack.c.h.b16 %v4800
    %v5187 = vunpack.c.l.b16 %v4801
    %v5188 = vunpack.c.h.b16 %v4801
    %v5189 = vunpack.c.l.b16 %v4802
    %v5190 = vunpack.c.h.b16 %v4802
    %v5191 = vunpack.c.l.b16 %v4803
    %v5192 = vunpack.c.h.b16 %v4803
    %v5193 = vunpack.c.l.b16 %v4804
    %v5194 = vunpack.c.h.b16 %v4804
    %v5195 = vunpack.c.l.b16 %v4805
    %v5196 = vunpack.c.h.b16 %v4805
    %v5197 = vunpack.c.l.b16 %v4806
    %v5198 = vunpack.c.h.b16 %v4806
    %v5199 = vunpack.c.l.b16 %v4807
    %v5200 = vunpack.c.h.b16 %v4807
    %v5201 = vunpack.c.l.b16 %v4808
    %v5202 = vunpack.c.h.b16 %v4808
    %v5203 = vunpack.c.l.b16 %v4809
    %v5204 = vunpack.c.h.b16 %v4809
    %v5205 = vunpack.c.l.b16 %v4810
    %v5206 = vunpack.c.h.b16 %v4810
    %v5207 = vunpack.c.l.b16 %v4811
    %v5208 = vunpack.c.h.b16 %v4811
    %v5209 = vunpack.c.l.b16 %v4812
    %v5210 = vunpack.c.h.b16 %v4812
    %v5211 = vunpack.c.l.b16 %v4813
    %v5212 = vunpack.c.h.b16 %v4813
    %v5213 = vunpack.c.l.b16 %v4814
    %v5214 = vunpack.c.h.b16 %v4814
    %v5215 = vunpack.c.l.b16 %v4815
    %v5216 = vunpack.c.h.b16 %v4815
    %v5217 = vunpack.c.l.b16 %v4816
    %v5218 = vunpack.c.h.b16 %v4816
    %v5219 = vunpack.c.l.b16 %v4817
    %v5220 = vunpack.c.h.b16 %v4817
    %v5221 = vunpack.c.l.b16 %v4818
    %v5222 = vunpack.c.h.b16 %v4818
    %v5223 = vunpack.c.l.b16 %v4819
    %v5224 = vunpack.c.h.b16 %v4819
    %v5225 = vunpack.c.l.b16 %v4820
    %v5226 = vunpack.c.h.b16 %v4820
    %v5227 = vpack.c.b16 %v4975, %v4971
    %v5228 = vpack.c.b16 %v4976, %v4972
    %v5229 = vpack.c.b16 %v4977, %v4973
    %v5230 = vpack.c.b16 %v4978, %v4974
    %v5231 = vpack.c.b16 %v4983, %v4979
    %v5232 = vpack.c.b16 %v4984, %v4980
    %v5233 = vpack.c.b16 %v4985, %v4981
    %v5234 = vpack.c.b16 %v4986, %v4982
    %v5235 = vpack.c.b16 %v4991, %v4987
    %v5236 = vpack.c.b16 %v4992, %v4988
    %v5237 = vpack.c.b16 %v4993, %v4989
    %v5238 = vpack.c.b16 %v4994, %v4990
    %v5239 = vpack.c.b16 %v4999, %v4995
    %v5240 = vpack.c.b16 %v5000, %v4996
    %v5241 = vpack.c.b16 %v5001, %v4997
    %v5242 = vpack.c.b16 %v5002, %v4998
    %v5243 = vpack.c.b16 %v5007, %v5003
    %v5244 = vpack.c.b16 %v5008, %v5004
    %v5245 = vpack.c.b16 %v5009, %v5005
    %v5246 = vpack.c.b16 %v5010, %v5006
    %v5247 = vpack.c.b16 %v5015, %v5011
    %v5248 = vpack.c.b16 %v5016, %v5012
    %v5249 = vpack.c.b16 %v5017, %v5013
    %v5250 = vpack.c.b16 %v5018, %v5014
    %v5251 = vpack.c.b16 %v5023, %v5019
    %v5252 = vpack.c.b16 %v5024, %v5020
    %v5253 = vpack.c.b16 %v5025, %v5021
    %v5254 = vpack.c.b16 %v5026, %v5022
    %v5255 = vpack.c.b16 %v5031, %v5027
    %v5256 = vpack.c.b16 %v5032, %v5028
    %v5257 = vpack.c.b16 %v5033, %v5029
    %v5258 = vpack.c.b16 %v5034, %v5030
    %v5259 = vpack.c.b16 %v5039, %v5035
    %v5260 = vpack.c.b16 %v5040, %v5036
    %v5261 = vpack.c.b16 %v5041, %v5037
    %v5262 = vpack.c.b16 %v5042, %v5038
    %v5263 = vpack.c.b16 %v5047, %v5043
    %v5264 = vpack.c.b16 %v5048, %v5044
    %v5265 = vpack.c.b16 %v5049, %v5045
    %v5266 = vpack.c.b16 %v5050, %v5046
    %v5267 = vpack.c.b16 %v5055, %v5051
    %v5268 = vpack.c.b16 %v5056, %v5052
    %v5269 = vpack.c.b16 %v5057, %v5053
    %v5270 = vpack.c.b16 %v5058, %v5054
    %v5271 = vpack.c.b16 %v5063, %v5059
    %v5272 = vpack.c.b16 %v5064, %v5060
    %v5273 = vpack.c.b16 %v5065, %v5061
    %v5274 = vpack.c.b16 %v5066, %v5062
    %v5275 = vpack.c.b16 %v5071, %v5067
    %v5276 = vpack.c.b16 %v5072, %v5068
    %v5277 = vpack.c.b16 %v5073, %v5069
    %v5278 = vpack.c.b16 %v5074, %v5070
    %v5279 = vpack.c.b16 %v5079, %v5075
    %v5280 = vpack.c.b16 %v5080, %v5076
    %v5281 = vpack.c.b16 %v5081, %v5077
    %v5282 = vpack.c.b16 %v5082, %v5078
    %v5283 = vpack.c.b16 %v5087, %v5083
    %v5284 = vpack.c.b16 %v5088, %v5084
    %v5285 = vpack.c.b16 %v5089, %v5085
    %v5286 = vpack.c.b16 %v5090, %v5086
    %v5287 = vpack.c.b16 %v5095, %v5091
    %v5288 = vpack.c.b16 %v5096, %v5092
    %v5289 = vpack.c.b16 %v5097, %v5093
    %v5290 = vpack.c.b16 %v5098, %v5094
    %v5291 = vpack.c.b16 %v5103, %v5099
    %v5292 = vpack.c.b16 %v5104, %v5100
    %v5293 = vpack.c.b16 %v5105, %v5101
    %v5294 = vpack.c.b16 %v5106, %v5102
    %v5295 = vpack.c.b16 %v5111, %v5107
    %v5296 = vpack.c.b16 %v5112, %v5108
    %v5297 = vpack.c.b16 %v5113, %v5109
    %v5298 = vpack.c.b16 %v5114, %v5110
    %v5299 = vpack.c.b16 %v5119, %v5115
    %v5300 = vpack.c.b16 %v5120, %v5116
    %v5301 = vpack.c.b16 %v5121, %v5117
    %v5302 = vpack.c.b16 %v5122, %v5118
    %v5303 = vpack.c.b16 %v5127, %v5123
    %v5304 = vpack.c.b16 %v5128, %v5124
    %v5305 = vpack.c.b16 %v5129, %v5125
    %v5306 = vpack.c.b16 %v5130, %v5126
    %v5307 = vpack.c.b16 %v5135, %v5131
    %v5308 = vpack.c.b16 %v5136, %v5132
    %v5309 = vpack.c.b16 %v5137, %v5133
    %v5310 = vpack.c.b16 %v5138, %v5134
    %v5311 = vpack.c.b16 %v5143, %v5139
    %v5312 = vpack.c.b16 %v5144, %v5140
    %v5313 = vpack.c.b16 %v5145, %v5141
    %v5314 = vpack.c.b16 %v5146, %v5142
    %v5315 = vpack.c.b16 %v5151, %v5147
    %v5316 = vpack.c.b16 %v5152, %v5148
    %v5317 = vpack.c.b16 %v5153, %v5149
    %v5318 = vpack.c.b16 %v5154, %v5150
    %v5319 = vpack.c.b16 %v5159, %v5155
    %v5320 = vpack.c.b16 %v5160, %v5156
    %v5321 = vpack.c.b16 %v5161, %v5157
    %v5322 = vpack.c.b16 %v5162, %v5158
    %v5323 = vpack.c.b16 %v5167, %v5163
    %v5324 = vpack.c.b16 %v5168, %v5164
    %v5325 = vpack.c.b16 %v5169, %v5165
    %v5326 = vpack.c.b16 %v5170, %v5166
    %v5327 = vpack.c.b16 %v5175, %v5171
    %v5328 = vpack.c.b16 %v5176, %v5172
    %v5329 = vpack.c.b16 %v5177, %v5173
    %v5330 = vpack.c.b16 %v5178, %v5174
    %v5331 = vpack.c.b16 %v5183, %v5179
    %v5332 = vpack.c.b16 %v5184, %v5180
    %v5333 = vpack.c.b16 %v5185, %v5181
    %v5334 = vpack.c.b16 %v5186, %v5182
    %v5335 = vpack.c.b16 %v5191, %v5187
    %v5336 = vpack.c.b16 %v5192, %v5188
    %v5337 = vpack.c.b16 %v5193, %v5189
    %v5338 = vpack.c.b16 %v5194, %v5190
    %v5339 = vpack.c.b16 %v5199, %v5195
    %v5340 = vpack.c.b16 %v5200, %v5196
    %v5341 = vpack.c.b16 %v5201, %v5197
    %v5342 = vpack.c.b16 %v5202, %v5198
    %v5343 = vpack.c.b16 %v5207, %v5203
    %v5344 = vpack.c.b16 %v5208, %v5204
    %v5345 = vpack.c.b16 %v5209, %v5205
    %v5346 = vpack.c.b16 %v5210, %v5206
    %v5347 = vpack.c.b16 %v5215, %v5211
    %v5348 = vpack.c.b16 %v5216, %v5212
    %v5349 = vpack.c.b16 %v5217, %v5213
    %v5350 = vpack.c.b16 %v5218, %v5214
    %v5351 = vpack.c.b16 %v5223, %v5219
    %v5352 = vpack.c.b16 %v5224, %v5220
    %v5353 = vpack.c.b16 %v5225, %v5221
    %v5354 = vpack.c.b16 %v5226, %v5222
    %5483 = vmatprep.subr.bf16.mxu0 %v5228
    %5484 = vmatpush1.bf16.msra.mxu0 %v5227
    %5485 = vmatprep.subr.bf16.mxu0 %v5232
    %5486 = vmatpush1.bf16.msra.mxu0 %v5231
    %5487 = vmatprep.subr.bf16.mxu0 %v5236
    %5488 = vmatpush1.bf16.msra.mxu0 %v5235
    %5489 = vmatprep.subr.bf16.mxu0 %v5240
    %5490 = vmatpush1.bf16.msra.mxu0 %v5239
    %5491 = vmatprep.subr.bf16.mxu0 %v5244
    %5492 = vmatpush1.bf16.msra.mxu0 %v5243
    %5493 = vmatprep.subr.bf16.mxu0 %v5248
    %5494 = vmatpush1.bf16.msra.mxu0 %v5247
    %5495 = vmatprep.subr.bf16.mxu0 %v5252
    %5496 = vmatpush1.bf16.msra.mxu0 %v5251
    %5497 = vmatprep.subr.bf16.mxu0 %v5256
    %5498 = vmatpush1.bf16.msra.mxu0 %v5255
    %5499 = vmatprep.subr.bf16.mxu0 %v5260
    %5500 = vmatpush1.bf16.msra.mxu0 %v5259
    %5501 = vmatprep.subr.bf16.mxu0 %v5264
    %5502 = vmatpush1.bf16.msra.mxu0 %v5263
    %5503 = vmatprep.subr.bf16.mxu0 %v5268
    %5504 = vmatpush1.bf16.msra.mxu0 %v5267
    %5505 = vmatprep.subr.bf16.mxu0 %v5272
    %5506 = vmatpush1.bf16.msra.mxu0 %v5271
    %5507 = vmatprep.subr.bf16.mxu0 %v5276
    %5508 = vmatpush1.bf16.msra.mxu0 %v5275
    %5509 = vmatprep.subr.bf16.mxu0 %v5280
    %5510 = vmatpush1.bf16.msra.mxu0 %v5279
    %5511 = vmatprep.subr.bf16.mxu0 %v5284
    %5512 = vmatpush1.bf16.msra.mxu0 %v5283
    %5513 = vmatprep.subr.bf16.mxu0 %v5288
    %5514 = vmatpush1.bf16.msra.mxu0 %v5287
    %5515 = vmatprep.mubr.bf16.mxu0 %v4662
    %5516 = vmatmul.mubr.bf16.gmra.mrb[0].mxu0 %v4661
    %v5517 = vpop.f32.mrb[0].mxu0
    %v5518 = vadd.f32 %v4826, %v5517
    %v5519 = vpop.f32.mrb[0].mxu0
    %v5520 = vadd.f32 %v4830, %v5519
    %v5521 = vpop.f32.mrb[0].mxu0
    %v5522 = vadd.f32 %v4826, %v5521
    %v5523 = vpop.f32.mrb[0].mxu0
    %v5524 = vadd.f32 %v4830, %v5523
    %5525 = vmatprep.mubr.bf16.mxu0 %v4666
    %5526 = vmatmul.mubr.bf16.gmra.mrb[0].mxu0 %v4665
    %v5527 = vpop.f32.mrb[0].mxu0
    %v5528 = vadd.f32 %v4826, %v5527
    %v5529 = vpop.f32.mrb[0].mxu0
    %v5530 = vadd.f32 %v4830, %v5529
    %v5531 = vpop.f32.mrb[0].mxu0
    %v5532 = vadd.f32 %v4826, %v5531
    %v5533 = vpop.f32.mrb[0].mxu0
    %v5534 = vadd.f32 %v4830, %v5533
    %5535 = vmatprep.mubr.bf16.mxu0 %v4670
    %5536 = vmatmul.mubr.bf16.gmra.mrb[0].mxu0 %v4669
    %v5537 = vpop.f32.mrb[0].mxu0
    %v5538 = vadd.f32 %v4826, %v5537
    %v5539 = vpop.f32.mrb[0].mxu0
    %v5540 = vadd.f32 %v4830, %v5539
    %v5541 = vpop.f32.mrb[0].mxu0
    %v5542 = vadd.f32 %v4826, %v5541
    %v5543 = vpop.f32.mrb[0].mxu0
    %v5544 = vadd.f32 %v4830, %v5543
    %5545 = vmatprep.mubr.bf16.mxu0 %v4674
    %5546 = vmatmul.mubr.bf16.gmra.mrb[0].mxu0 %v4673
    %v5547 = vpop.f32.mrb[0].mxu0
    %v5548 = vadd.f32 %v4826, %v5547
    %v5549 = vpop.f32.mrb[0].mxu0
    %v5550 = vadd.f32 %v4830, %v5549
    %v5551 = vpop.f32.mrb[0].mxu0
    %v5552 = vadd.f32 %v4826, %v5551
    %v5553 = vpop.f32.mrb[0].mxu0
    %v5554 = vadd.f32 %v4830, %v5553
    %5555 = vmatprep.mubr.bf16.mxu0 %v4678
    %5556 = vmatmul.mubr.bf16.gmra.mrb[0].mxu0 %v4677
    %v5557 = vpop.f32.mrb[0].mxu0
    %v5558 = vadd.f32 %v4826, %v5557
    %v5559 = vpop.f32.mrb[0].mxu0
    %v5560 = vadd.f32 %v4830, %v5559
    %v5561 = vpop.f32.mrb[0].mxu0
    %v5562 = vadd.f32 %v4826, %v5561
    %v5563 = vpop.f32.mrb[0].mxu0
    %v5564 = vadd.f32 %v4830, %v5563
    %5565 = vmatprep.mubr.bf16.mxu0 %v4682
    %5566 = vmatmul.mubr.bf16.gmra.mrb[0].mxu0 %v4681
    %v5567 = vpop.f32.mrb[0].mxu0
    %v5568 = vadd.f32 %v4826, %v5567
    %v5569 = vpop.f32.mrb[0].mxu0
    %v5570 = vadd.f32 %v4830, %v5569
    %v5571 = vpop.f32.mrb[0].mxu0
    %v5572 = vadd.f32 %v4826, %v5571
    %v5573 = vpop.f32.mrb[0].mxu0
    %v5574 = vadd.f32 %v4830, %v5573
    %5575 = vmatprep.mubr.bf16.mxu0 %v4686
    %5576 = vmatmul.mubr.bf16.gmra.mrb[0].mxu0 %v4685
    %v5577 = vpop.f32.mrb[0].mxu0
    %v5578 = vadd.f32 %v4826, %v5577
    %v5579 = vpop.f32.mrb[0].mxu0
    %v5580 = vadd.f32 %v4830, %v5579
    %v5581 = vpop.f32.mrb[0].mxu0
    %v5582 = vadd.f32 %v4826, %v5581
    %v5583 = vpop.f32.mrb[0].mxu0
    %v5584 = vadd.f32 %v4830, %v5583
    %5585 = vmatprep.mubr.bf16.mxu0 %v4690
    %5586 = vmatmul.mubr.bf16.gmra.mrb[0].mxu0 %v4689
    %v5587 = vpop.f32.mrb[0].mxu0
    %v5588 = vadd.f32 %v4826, %v5587
    %v5589 = vpop.f32.mrb[0].mxu0
    %v5590 = vadd.f32 %v4830, %v5589
    %v5591 = vpop.f32.mrb[0].mxu0
    %v5592 = vadd.f32 %v4826, %v5591
    %v5593 = vpop.f32.mrb[0].mxu0
    %v5594 = vadd.f32 %v4830, %v5593
    %5595 = vdwg.mxu0
    %5596 = vmatprep.subr.bf16.mxu0 %v5292
    %5597 = vmatpush1.bf16.msra.mxu0 %v5291
    %5598 = vmatprep.subr.bf16.mxu0 %v5296
    %5599 = vmatpush1.bf16.msra.mxu0 %v5295
    %5600 = vmatprep.subr.bf16.mxu0 %v5300
    %5601 = vmatpush1.bf16.msra.mxu0 %v5299
    %5602 = vmatprep.subr.bf16.mxu0 %v5304
    %5603 = vmatpush1.bf16.msra.mxu0 %v5303
    %5604 = vmatprep.subr.bf16.mxu0 %v5308
    %5605 = vmatpush1.bf16.msra.mxu0 %v5307
    %5606 = vmatprep.subr.bf16.mxu0 %v5312
    %5607 = vmatpush1.bf16.msra.mxu0 %v5311
    %5608 = vmatprep.subr.bf16.mxu0 %v5316
    %5609 = vmatpush1.bf16.msra.mxu0 %v5315
    %5610 = vmatprep.subr.bf16.mxu0 %v5320
    %5611 = vmatpush1.bf16.msra.mxu0 %v5319
    %5612 = vmatprep.subr.bf16.mxu0 %v5324
    %5613 = vmatpush1.bf16.msra.mxu0 %v5323
    %5614 = vmatprep.subr.bf16.mxu0 %v5328
    %5615 = vmatpush1.bf16.msra.mxu0 %v5327
    %5616 = vmatprep.subr.bf16.mxu0 %v5332
    %5617 = vmatpush1.bf16.msra.mxu0 %v5331
    %5618 = vmatprep.subr.bf16.mxu0 %v5336
    %5619 = vmatpush1.bf16.msra.mxu0 %v5335
    %5620 = vmatprep.subr.bf16.mxu0 %v5340
    %5621 = vmatpush1.bf16.msra.mxu0 %v5339
    %5622 = vmatprep.subr.bf16.mxu0 %v5344
    %5623 = vmatpush1.bf16.msra.mxu0 %v5343
    %5624 = vmatprep.subr.bf16.mxu0 %v5348
    %5625 = vmatpush1.bf16.msra.mxu0 %v5347
    %5626 = vmatprep.subr.bf16.mxu0 %v5352
    %5627 = vmatpush1.bf16.msra.mxu0 %v5351
    %5628 = vmatprep.mubr.bf16.mxu0 %v4664
    %5629 = vmatmul.mubr.bf16.gmra.mrb[0].mxu0 %v4663
    %v5630 = vpop.f32.mrb[0].mxu0
    %v5631 = vadd.f32 %v5518, %v5630
    %v5632 = vpop.f32.mrb[0].mxu0
    %v5633 = vadd.f32 %v5520, %v5632
    %v5634 = vpop.f32.mrb[0].mxu0
    %v5635 = vadd.f32 %v5522, %v5634
    %v5636 = vpop.f32.mrb[0].mxu0
    %v5637 = vadd.f32 %v5524, %v5636
    %5638 = vmatprep.mubr.bf16.mxu0 %v4668
    %5639 = vmatmul.mubr.bf16.gmra.mrb[0].mxu0 %v4667
    %v5640 = vpop.f32.mrb[0].mxu0
    %v5641 = vadd.f32 %v5528, %v5640
    %v5642 = vpop.f32.mrb[0].mxu0
    %v5643 = vadd.f32 %v5530, %v5642
    %v5644 = vpop.f32.mrb[0].mxu0
    %v5645 = vadd.f32 %v5532, %v5644
    %v5646 = vpop.f32.mrb[0].mxu0
    %v5647 = vadd.f32 %v5534, %v5646
    %5648 = vmatprep.mubr.bf16.mxu0 %v4672
    %5649 = vmatmul.mubr.bf16.gmra.mrb[0].mxu0 %v4671
    %v5650 = vpop.f32.mrb[0].mxu0
    %v5651 = vadd.f32 %v5538, %v5650
    %v5652 = vpop.f32.mrb[0].mxu0
    %v5653 = vadd.f32 %v5540, %v5652
    %v5654 = vpop.f32.mrb[0].mxu0
    %v5655 = vadd.f32 %v5542, %v5654
    %v5656 = vpop.f32.mrb[0].mxu0
    %v5657 = vadd.f32 %v5544, %v5656
    %5658 = vmatprep.mubr.bf16.mxu0 %v4676
    %5659 = vmatmul.mubr.bf16.gmra.mrb[0].mxu0 %v4675
    %v5660 = vpop.f32.mrb[0].mxu0
    %v5661 = vadd.f32 %v5548, %v5660
    %v5662 = vpop.f32.mrb[0].mxu0
    %v5663 = vadd.f32 %v5550, %v5662
    %v5664 = vpop.f32.mrb[0].mxu0
    %v5665 = vadd.f32 %v5552, %v5664
    %v5666 = vpop.f32.mrb[0].mxu0
    %v5667 = vadd.f32 %v5554, %v5666
    %5668 = vmatprep.mubr.bf16.mxu0 %v4680
    %5669 = vmatmul.mubr.bf16.gmra.mrb[0].mxu0 %v4679
    %v5670 = vpop.f32.mrb[0].mxu0
    %v5671 = vadd.f32 %v5558, %v5670
    %v5672 = vpop.f32.mrb[0].mxu0
    %v5673 = vadd.f32 %v5560, %v5672
    %v5674 = vpop.f32.mrb[0].mxu0
    %v5675 = vadd.f32 %v5562, %v5674
    %v5676 = vpop.f32.mrb[0].mxu0
    %v5677 = vadd.f32 %v5564, %v5676
    %5678 = vmatprep.mubr.bf16.mxu0 %v4684
    %5679 = vmatmul.mubr.bf16.gmra.mrb[0].mxu0 %v4683
    %v5680 = vpop.f32.mrb[0].mxu0
    %v5681 = vadd.f32 %v5568, %v5680
    %v5682 = vpop.f32.mrb[0].mxu0
    %v5683 = vadd.f32 %v5570, %v5682
    %v5684 = vpop.f32.mrb[0].mxu0
    %v5685 = vadd.f32 %v5572, %v5684
    %v5686 = vpop.f32.mrb[0].mxu0
    %v5687 = vadd.f32 %v5574, %v5686
    %5688 = vmatprep.mubr.bf16.mxu0 %v4688
    %5689 = vmatmul.mubr.bf16.gmra.mrb[0].mxu0 %v4687
    %v5690 = vpop.f32.mrb[0].mxu0
    %v5691 = vadd.f32 %v5578, %v5690
    %v5692 = vpop.f32.mrb[0].mxu0
    %v5693 = vadd.f32 %v5580, %v5692
    %v5694 = vpop.f32.mrb[0].mxu0
    %v5695 = vadd.f32 %v5582, %v5694
    %v5696 = vpop.f32.mrb[0].mxu0
    %v5697 = vadd.f32 %v5584, %v5696
    %5698 = vmatprep.mubr.bf16.mxu0 %v4692
    %5699 = vmatmul.mubr.bf16.gmra.mrb[0].mxu0 %v4691
    %v5700 = vpop.f32.mrb[0].mxu0
    %v5701 = vadd.f32 %v5588, %v5700
    %v5702 = vpop.f32.mrb[0].mxu0
    %v5703 = vadd.f32 %v5590, %v5702
    %v5704 = vpop.f32.mrb[0].mxu0
    %v5705 = vadd.f32 %v5592, %v5704
    %v5706 = vpop.f32.mrb[0].mxu0
    %v5707 = vadd.f32 %v5594, %v5706
    %5708 = vdwg.mxu0
    %5709 = vmatprep.subr.bf16.mxu0 %v5230
    %5710 = vmatpush1.bf16.msra.mxu0 %v5229
    %5711 = vmatprep.subr.bf16.mxu0 %v5234
    %5712 = vmatpush1.bf16.msra.mxu0 %v5233
    %5713 = vmatprep.subr.bf16.mxu0 %v5238
    %5714 = vmatpush1.bf16.msra.mxu0 %v5237
    %5715 = vmatprep.subr.bf16.mxu0 %v5242
    %5716 = vmatpush1.bf16.msra.mxu0 %v5241
    %5717 = vmatprep.subr.bf16.mxu0 %v5246
    %5718 = vmatpush1.bf16.msra.mxu0 %v5245
    %5719 = vmatprep.subr.bf16.mxu0 %v5250
    %5720 = vmatpush1.bf16.msra.mxu0 %v5249
    %5721 = vmatprep.subr.bf16.mxu0 %v5254
    %5722 = vmatpush1.bf16.msra.mxu0 %v5253
    %5723 = vmatprep.subr.bf16.mxu0 %v5258
    %5724 = vmatpush1.bf16.msra.mxu0 %v5257
    %5725 = vmatprep.subr.bf16.mxu0 %v5262
    %5726 = vmatpush1.bf16.msra.mxu0 %v5261
    %5727 = vmatprep.subr.bf16.mxu0 %v5266
    %5728 = vmatpush1.bf16.msra.mxu0 %v5265
    %5729 = vmatprep.subr.bf16.mxu0 %v5270
    %5730 = vmatpush1.bf16.msra.mxu0 %v5269
    %5731 = vmatprep.subr.bf16.mxu0 %v5274
    %5732 = vmatpush1.bf16.msra.mxu0 %v5273
    %5733 = vmatprep.subr.bf16.mxu0 %v5278
    %5734 = vmatpush1.bf16.msra.mxu0 %v5277
    %5735 = vmatprep.subr.bf16.mxu0 %v5282
    %5736 = vmatpush1.bf16.msra.mxu0 %v5281
    %5737 = vmatprep.subr.bf16.mxu0 %v5286
    %5738 = vmatpush1.bf16.msra.mxu0 %v5285
    %5739 = vmatprep.subr.bf16.mxu0 %v5290
    %5740 = vmatpush1.bf16.msra.mxu0 %v5289
    %5741 = vmatprep.mubr.bf16.mxu0 %v4662
    %5742 = vmatmul.mubr.bf16.gmra.mrb[0].mxu0 %v4661
    %v5743 = vpop.f32.mrb[0].mxu0
    %v5744 = vadd.f32 %v4834, %v5743
    %v5745 = vpop.f32.mrb[0].mxu0
    %v5746 = vadd.f32 %v4838, %v5745
    %v5747 = vpop.f32.mrb[0].mxu0
    %v5748 = vadd.f32 %v4834, %v5747
    %v5749 = vpop.f32.mrb[0].mxu0
    %v5750 = vadd.f32 %v4838, %v5749
    %5751 = vmatprep.mubr.bf16.mxu0 %v4666
    %5752 = vmatmul.mubr.bf16.gmra.mrb[0].mxu0 %v4665
    %v5753 = vpop.f32.mrb[0].mxu0
    %v5754 = vadd.f32 %v4834, %v5753
    %v5755 = vpop.f32.mrb[0].mxu0
    %v5756 = vadd.f32 %v4838, %v5755
    %v5757 = vpop.f32.mrb[0].mxu0
    %v5758 = vadd.f32 %v4834, %v5757
    %v5759 = vpop.f32.mrb[0].mxu0
    %v5760 = vadd.f32 %v4838, %v5759
    %5761 = vmatprep.mubr.bf16.mxu0 %v4670
    %5762 = vmatmul.mubr.bf16.gmra.mrb[0].mxu0 %v4669
    %v5763 = vpop.f32.mrb[0].mxu0
    %v5764 = vadd.f32 %v4834, %v5763
    %v5765 = vpop.f32.mrb[0].mxu0
    %v5766 = vadd.f32 %v4838, %v5765
    %v5767 = vpop.f32.mrb[0].mxu0
    %v5768 = vadd.f32 %v4834, %v5767
    %v5769 = vpop.f32.mrb[0].mxu0
    %v5770 = vadd.f32 %v4838, %v5769
    %5771 = vmatprep.mubr.bf16.mxu0 %v4674
    %5772 = vmatmul.mubr.bf16.gmra.mrb[0].mxu0 %v4673
    %v5773 = vpop.f32.mrb[0].mxu0
    %v5774 = vadd.f32 %v4834, %v5773
    %v5775 = vpop.f32.mrb[0].mxu0
    %v5776 = vadd.f32 %v4838, %v5775
    %v5777 = vpop.f32.mrb[0].mxu0
    %v5778 = vadd.f32 %v4834, %v5777
    %v5779 = vpop.f32.mrb[0].mxu0
    %v5780 = vadd.f32 %v4838, %v5779
    %5781 = vmatprep.mubr.bf16.mxu0 %v4678
    %5782 = vmatmul.mubr.bf16.gmra.mrb[0].mxu0 %v4677
    %v5783 = vpop.f32.mrb[0].mxu0
    %v5784 = vadd.f32 %v4834, %v5783
    %v5785 = vpop.f32.mrb[0].mxu0
    %v5786 = vadd.f32 %v4838, %v5785
    %v5787 = vpop.f32.mrb[0].mxu0
    %v5788 = vadd.f32 %v4834, %v5787
    %v5789 = vpop.f32.mrb[0].mxu0
    %v5790 = vadd.f32 %v4838, %v5789
    %5791 = vmatprep.mubr.bf16.mxu0 %v4682
    %5792 = vmatmul.mubr.bf16.gmra.mrb[0].mxu0 %v4681
    %v5793 = vpop.f32.mrb[0].mxu0
    %v5794 = vadd.f32 %v4834, %v5793
    %v5795 = vpop.f32.mrb[0].mxu0
    %v5796 = vadd.f32 %v4838, %v5795
    %v5797 = vpop.f32.mrb[0].mxu0
    %v5798 = vadd.f32 %v4834, %v5797
    %v5799 = vpop.f32.mrb[0].mxu0
    %v5800 = vadd.f32 %v4838, %v5799
    %5801 = vmatprep.mubr.bf16.mxu0 %v4686
    %5802 = vmatmul.mubr.bf16.gmra.mrb[0].mxu0 %v4685
    %v5803 = vpop.f32.mrb[0].mxu0
    %v5804 = vadd.f32 %v4834, %v5803
    %v5805 = vpop.f32.mrb[0].mxu0
    %v5806 = vadd.f32 %v4838, %v5805
    %v5807 = vpop.f32.mrb[0].mxu0
    %v5808 = vadd.f32 %v4834, %v5807
    %v5809 = vpop.f32.mrb[0].mxu0
    %v5810 = vadd.f32 %v4838, %v5809
    %5811 = vmatprep.mubr.bf16.mxu0 %v4690
    %5812 = vmatmul.mubr.bf16.gmra.mrb[0].mxu0 %v4689
    %v5813 = vpop.f32.mrb[0].mxu0
    %v5814 = vadd.f32 %v4834, %v5813
    %v5815 = vpop.f32.mrb[0].mxu0
    %v5816 = vadd.f32 %v4838, %v5815
    %v5817 = vpop.f32.mrb[0].mxu0
    %v5818 = vadd.f32 %v4834, %v5817
    %v5819 = vpop.f32.mrb[0].mxu0
    %v5820 = vadd.f32 %v4838, %v5819
    %5821 = vdwg.mxu0
    %5822 = vmatprep.subr.bf16.mxu0 %v5294
    %5823 = vmatpush1.bf16.msra.mxu0 %v5293
    %5824 = vmatprep.subr.bf16.mxu0 %v5298
    %5825 = vmatpush1.bf16.msra.mxu0 %v5297
    %5826 = vmatprep.subr.bf16.mxu0 %v5302
    %5827 = vmatpush1.bf16.msra.mxu0 %v5301
    %5828 = vmatprep.subr.bf16.mxu0 %v5306
    %5829 = vmatpush1.bf16.msra.mxu0 %v5305
    %5830 = vmatprep.subr.bf16.mxu0 %v5310
    %5831 = vmatpush1.bf16.msra.mxu0 %v5309
    %5832 = vmatprep.subr.bf16.mxu0 %v5314
    %5833 = vmatpush1.bf16.msra.mxu0 %v5313
    %5834 = vmatprep.subr.bf16.mxu0 %v5318
    %5835 = vmatpush1.bf16.msra.mxu0 %v5317
    %5836 = vmatprep.subr.bf16.mxu0 %v5322
    %5837 = vmatpush1.bf16.msra.mxu0 %v5321
    %5838 = vmatprep.subr.bf16.mxu0 %v5326
    %5839 = vmatpush1.bf16.msra.mxu0 %v5325
    %5840 = vmatprep.subr.bf16.mxu0 %v5330
    %5841 = vmatpush1.bf16.msra.mxu0 %v5329
    %5842 = vmatprep.subr.bf16.mxu0 %v5334
    %5843 = vmatpush1.bf16.msra.mxu0 %v5333
    %5844 = vmatprep.subr.bf16.mxu0 %v5338
    %5845 = vmatpush1.bf16.msra.mxu0 %v5337
    %5846 = vmatprep.subr.bf16.mxu0 %v5342
    %5847 = vmatpush1.bf16.msra.mxu0 %v5341
    %5848 = vmatprep.subr.bf16.mxu0 %v5346
    %5849 = vmatpush1.bf16.msra.mxu0 %v5345
    %5850 = vmatprep.subr.bf16.mxu0 %v5350
    %5851 = vmatpush1.bf16.msra.mxu0 %v5349
    %5852 = vmatprep.subr.bf16.mxu0 %v5354
    %5853 = vmatpush1.bf16.msra.mxu0 %v5353
    %5854 = vmatprep.mubr.bf16.mxu0 %v4664
    %5855 = vmatmul.mubr.bf16.gmra.mrb[0].mxu0 %v4663
    %v5856 = vpop.f32.mrb[0].mxu0
    %v5857 = vadd.f32 %v5744, %v5856
    %v5858 = vpop.f32.mrb[0].mxu0
    %v5859 = vadd.f32 %v5746, %v5858
    %v5860 = vpop.f32.mrb[0].mxu0
    %v5861 = vadd.f32 %v5748, %v5860
    %v5862 = vpop.f32.mrb[0].mxu0
    %v5863 = vadd.f32 %v5750, %v5862
    %5864 = vmatprep.mubr.bf16.mxu0 %v4668
    %5865 = vmatmul.mubr.bf16.gmra.mrb[0].mxu0 %v4667
    %v5866 = vpop.f32.mrb[0].mxu0
    %v5867 = vadd.f32 %v5754, %v5866
    %v5868 = vpop.f32.mrb[0].mxu0
    %v5869 = vadd.f32 %v5756, %v5868
    %v5870 = vpop.f32.mrb[0].mxu0
    %v5871 = vadd.f32 %v5758, %v5870
    %v5872 = vpop.f32.mrb[0].mxu0
    %v5873 = vadd.f32 %v5760, %v5872
    %5874 = vmatprep.mubr.bf16.mxu0 %v4672
    %5875 = vmatmul.mubr.bf16.gmra.mrb[0].mxu0 %v4671
    %v5876 = vpop.f32.mrb[0].mxu0
    %v5877 = vadd.f32 %v5764, %v5876
    %v5878 = vpop.f32.mrb[0].mxu0
    %v5879 = vadd.f32 %v5766, %v5878
    %v5880 = vpop.f32.mrb[0].mxu0
    %v5881 = vadd.f32 %v5768, %v5880
    %v5882 = vpop.f32.mrb[0].mxu0
    %v5883 = vadd.f32 %v5770, %v5882
    %5884 = vmatprep.mubr.bf16.mxu0 %v4676
    %5885 = vmatmul.mubr.bf16.gmra.mrb[0].mxu0 %v4675
    %v5886 = vpop.f32.mrb[0].mxu0
    %v5887 = vadd.f32 %v5774, %v5886
    %v5888 = vpop.f32.mrb[0].mxu0
    %v5889 = vadd.f32 %v5776, %v5888
    %v5890 = vpop.f32.mrb[0].mxu0
    %v5891 = vadd.f32 %v5778, %v5890
    %v5892 = vpop.f32.mrb[0].mxu0
    %v5893 = vadd.f32 %v5780, %v5892
    %5894 = vmatprep.mubr.bf16.mxu0 %v4680
    %5895 = vmatmul.mubr.bf16.gmra.mrb[0].mxu0 %v4679
    %v5896 = vpop.f32.mrb[0].mxu0
    %v5897 = vadd.f32 %v5784, %v5896
    %v5898 = vpop.f32.mrb[0].mxu0
    %v5899 = vadd.f32 %v5786, %v5898
    %v5900 = vpop.f32.mrb[0].mxu0
    %v5901 = vadd.f32 %v5788, %v5900
    %v5902 = vpop.f32.mrb[0].mxu0
    %v5903 = vadd.f32 %v5790, %v5902
    %5904 = vmatprep.mubr.bf16.mxu0 %v4684
    %5905 = vmatmul.mubr.bf16.gmra.mrb[0].mxu0 %v4683
    %v5906 = vpop.f32.mrb[0].mxu0
    %v5907 = vadd.f32 %v5794, %v5906
    %v5908 = vpop.f32.mrb[0].mxu0
    %v5909 = vadd.f32 %v5796, %v5908
    %v5910 = vpop.f32.mrb[0].mxu0
    %v5911 = vadd.f32 %v5798, %v5910
    %v5912 = vpop.f32.mrb[0].mxu0
    %v5913 = vadd.f32 %v5800, %v5912
    %5914 = vmatprep.mubr.bf16.mxu0 %v4688
    %5915 = vmatmul.mubr.bf16.gmra.mrb[0].mxu0 %v4687
    %v5916 = vpop.f32.mrb[0].mxu0
    %v5917 = vadd.f32 %v5804, %v5916
    %v5918 = vpop.f32.mrb[0].mxu0
    %v5919 = vadd.f32 %v5806, %v5918
    %v5920 = vpop.f32.mrb[0].mxu0
    %v5921 = vadd.f32 %v5808, %v5920
    %v5922 = vpop.f32.mrb[0].mxu0
    %v5923 = vadd.f32 %v5810, %v5922
    %5924 = vmatprep.mubr.bf16.mxu0 %v4692
    %5925 = vmatmul.mubr.bf16.gmra.mrb[0].mxu0 %v4691
    %v5926 = vpop.f32.mrb[0].mxu0
    %v5927 = vadd.f32 %v5814, %v5926
    %v5928 = vpop.f32.mrb[0].mxu0
    %v5929 = vadd.f32 %v5816, %v5928
    %v5930 = vpop.f32.mrb[0].mxu0
    %v5931 = vadd.f32 %v5818, %v5930
    %v5932 = vpop.f32.mrb[0].mxu0
    %v5933 = vadd.f32 %v5820, %v5932
    %5934 = vdwg.mxu0
    %v5935 = vmax.f32 %v5631, %v5857
    %v5936 = vmax.f32 %v5633, %v5859
    %v5937 = vmax.f32 %v5635, %v5861
    %v5938 = vmax.f32 %v5637, %v5863
    %v5939 = vmax.f32 %v5641, %v5867
    %v5940 = vmax.f32 %v5643, %v5869
    %v5941 = vmax.f32 %v5645, %v5871
    %v5942 = vmax.f32 %v5647, %v5873
    %v5943 = vmax.f32 %v5651, %v5877
    %v5944 = vmax.f32 %v5653, %v5879
    %v5945 = vmax.f32 %v5655, %v5881
    %v5946 = vmax.f32 %v5657, %v5883
    %v5947 = vmax.f32 %v5661, %v5887
    %v5948 = vmax.f32 %v5663, %v5889
    %v5949 = vmax.f32 %v5665, %v5891
    %v5950 = vmax.f32 %v5667, %v5893
    %v5951 = vmax.f32 %v5671, %v5897
    %v5952 = vmax.f32 %v5673, %v5899
    %v5953 = vmax.f32 %v5675, %v5901
    %v5954 = vmax.f32 %v5677, %v5903
    %v5955 = vmax.f32 %v5681, %v5907
    %v5956 = vmax.f32 %v5683, %v5909
    %v5957 = vmax.f32 %v5685, %v5911
    %v5958 = vmax.f32 %v5687, %v5913
    %v5959 = vmax.f32 %v5691, %v5917
    %v5960 = vmax.f32 %v5693, %v5919
    %v5961 = vmax.f32 %v5695, %v5921
    %v5962 = vmax.f32 %v5697, %v5923
    %v5963 = vmax.f32 %v5701, %v5927
    %v5964 = vmax.f32 %v5703, %v5929
    %v5965 = vmax.f32 %v5705, %v5931
    %v5966 = vmax.f32 %v5707, %v5933
    %v5967 = vmax.f32 %v5935, 0.0
    %v5968 = vmax.f32 %v5936, 0.0
    %v5969 = vmax.f32 %v5937, 0.0
    %v5970 = vmax.f32 %v5938, 0.0
    %v5971 = vmax.f32 %v5939, 0.0
    %v5972 = vmax.f32 %v5940, 0.0
    %v5973 = vmax.f32 %v5941, 0.0
    %v5974 = vmax.f32 %v5942, 0.0
    %v5975 = vmax.f32 %v5943, 0.0
    %v5976 = vmax.f32 %v5944, 0.0
    %v5977 = vmax.f32 %v5945, 0.0
    %v5978 = vmax.f32 %v5946, 0.0
    %v5979 = vmax.f32 %v5947, 0.0
    %v5980 = vmax.f32 %v5948, 0.0
    %v5981 = vmax.f32 %v5949, 0.0
    %v5982 = vmax.f32 %v5950, 0.0
    %v5983 = vmax.f32 %v5951, 0.0
    %v5984 = vmax.f32 %v5952, 0.0
    %v5985 = vmax.f32 %v5953, 0.0
    %v5986 = vmax.f32 %v5954, 0.0
    %v5987 = vmax.f32 %v5955, 0.0
    %v5988 = vmax.f32 %v5956, 0.0
    %v5989 = vmax.f32 %v5957, 0.0
    %v5990 = vmax.f32 %v5958, 0.0
    %v5991 = vmax.f32 %v5959, 0.0
    %v5992 = vmax.f32 %v5960, 0.0
    %v5993 = vmax.f32 %v5961, 0.0
    %v5994 = vmax.f32 %v5962, 0.0
    %v5995 = vmax.f32 %v5963, 0.0
    %v5996 = vmax.f32 %v5964, 0.0
    %v5997 = vmax.f32 %v5965, 0.0
    %v5998 = vmax.f32 %v5966, 0.0
    %v5999 = vpack.c.bf16 %v5969, %v5967
    %v6000 = vpack.c.bf16 %v5970, %v5968
    %v6001 = vpack.c.bf16 %v5973, %v5971
    %v6002 = vpack.c.bf16 %v5974, %v5972
    %v6003 = vpack.c.bf16 %v5977, %v5975
    %v6004 = vpack.c.bf16 %v5978, %v5976
    %v6005 = vpack.c.bf16 %v5981, %v5979
    %v6006 = vpack.c.bf16 %v5982, %v5980
    %v6007 = vpack.c.bf16 %v5985, %v5983
    %v6008 = vpack.c.bf16 %v5986, %v5984
    %v6009 = vpack.c.bf16 %v5989, %v5987
    %v6010 = vpack.c.bf16 %v5990, %v5988
    %v6011 = vpack.c.bf16 %v5993, %v5991
    %v6012 = vpack.c.bf16 %v5994, %v5992
    %v6013 = vpack.c.bf16 %v5997, %v5995
    %v6014 = vpack.c.bf16 %v5998, %v5996
    %v6015 = vld [vmem:[#allocation6] sm:$0xff]
    %v6016 = vld [vmem:[#allocation6 + $0x8] sm:$0xff]
    %v6017 = vld [vmem:[#allocation6 + $0x10] sm:$0xff]
    %v6018 = vld [vmem:[#allocation6 + $0x18] sm:$0xff]
    %v6019 = vld [vmem:[#allocation6 + $0x20] sm:$0xff]
    %v6020 = vld [vmem:[#allocation6 + $0x28] sm:$0xff]
    %v6021 = vld [vmem:[#allocation6 + $0x30] sm:$0xff]
    %v6022 = vld [vmem:[#allocation6 + $0x38] sm:$0xff]
    %v6023 = vld [vmem:[#allocation6 + $0x40] sm:$0xff]
    %v6024 = vld [vmem:[#allocation6 + $0x48] sm:$0xff]
    %v6025 = vld [vmem:[#allocation6 + $0x50] sm:$0xff]
    %v6026 = vld [vmem:[#allocation6 + $0x58] sm:$0xff]
    %v6027 = vld [vmem:[#allocation6 + $0x60] sm:$0xff]
    %v6028 = vld [vmem:[#allocation6 + $0x68] sm:$0xff]
    %v6029 = vld [vmem:[#allocation6 + $0x70] sm:$0xff]
    %v6030 = vld [vmem:[#allocation6 + $0x78] sm:$0xff]
    %v6031 = vld [vmem:[#allocation6 + $0x80] sm:$0xff]
    %v6032 = vld [vmem:[#allocation6 + $0x88] sm:$0xff]
    %v6033 = vld [vmem:[#allocation6 + $0x90] sm:$0xff]
    %v6034 = vld [vmem:[#allocation6 + $0x98] sm:$0xff]
    %v6035 = vld [vmem:[#allocation6 + $0xa0] sm:$0xff]
    %v6036 = vld [vmem:[#allocation6 + $0xa8] sm:$0xff]
    %v6037 = vld [vmem:[#allocation6 + $0xb0] sm:$0xff]
    %v6038 = vld [vmem:[#allocation6 + $0xb8] sm:$0xff]
    %v6039 = vld [vmem:[#allocation6 + $0xc0] sm:$0xff]
    %v6040 = vld [vmem:[#allocation6 + $0xc8] sm:$0xff]
    %v6041 = vld [vmem:[#allocation6 + $0xd0] sm:$0xff]
    %v6042 = vld [vmem:[#allocation6 + $0xd8] sm:$0xff]
    %v6043 = vld [vmem:[#allocation6 + $0xe0] sm:$0xff]
    %v6044 = vld [vmem:[#allocation6 + $0xe8] sm:$0xff]
    %v6045 = vld [vmem:[#allocation6 + $0xf0] sm:$0xff]
    %v6046 = vld [vmem:[#allocation6 + $0xf8] sm:$0xff]
    %v6047 = vld [vmem:[#allocation6 + $0x100] sm:$0xff]
    %v6048 = vld [vmem:[#allocation6 + $0x108] sm:$0xff]
    %v6049 = vld [vmem:[#allocation6 + $0x110] sm:$0xff]
    %v6050 = vld [vmem:[#allocation6 + $0x118] sm:$0xff]
    %v6051 = vld [vmem:[#allocation6 + $0x120] sm:$0xff]
    %v6052 = vld [vmem:[#allocation6 + $0x128] sm:$0xff]
    %v6053 = vld [vmem:[#allocation6 + $0x130] sm:$0xff]
    %v6054 = vld [vmem:[#allocation6 + $0x138] sm:$0xff]
    %v6055 = vld [vmem:[#allocation6 + $0x140] sm:$0xff]
    %v6056 = vld [vmem:[#allocation6 + $0x148] sm:$0xff]
    %v6057 = vld [vmem:[#allocation6 + $0x150] sm:$0xff]
    %v6058 = vld [vmem:[#allocation6 + $0x158] sm:$0xff]
    %v6059 = vld [vmem:[#allocation6 + $0x160] sm:$0xff]
    %v6060 = vld [vmem:[#allocation6 + $0x168] sm:$0xff]
    %v6061 = vld [vmem:[#allocation6 + $0x170] sm:$0xff]
    %v6062 = vld [vmem:[#allocation6 + $0x178] sm:$0xff]
    %v6063 = vld [vmem:[#allocation6 + $0x180] sm:$0xff]
    %v6064 = vld [vmem:[#allocation6 + $0x188] sm:$0xff]
    %v6065 = vld [vmem:[#allocation6 + $0x190] sm:$0xff]
    %v6066 = vld [vmem:[#allocation6 + $0x198] sm:$0xff]
    %v6067 = vld [vmem:[#allocation6 + $0x1a0] sm:$0xff]
    %v6068 = vld [vmem:[#allocation6 + $0x1a8] sm:$0xff]
    %v6069 = vld [vmem:[#allocation6 + $0x1b0] sm:$0xff]
    %v6070 = vld [vmem:[#allocation6 + $0x1b8] sm:$0xff]
    %v6071 = vld [vmem:[#allocation6 + $0x1c0] sm:$0xff]
    %v6072 = vld [vmem:[#allocation6 + $0x1c8] sm:$0xff]
    %v6073 = vld [vmem:[#allocation6 + $0x1d0] sm:$0xff]
    %v6074 = vld [vmem:[#allocation6 + $0x1d8] sm:$0xff]
    %v6075 = vld [vmem:[#allocation6 + $0x1e0] sm:$0xff]
    %v6076 = vld [vmem:[#allocation6 + $0x1e8] sm:$0xff]
    %v6077 = vld [vmem:[#allocation6 + $0x1f0] sm:$0xff]
    %v6078 = vld [vmem:[#allocation6 + $0x1f8] sm:$0xff]
    %v6079 = vld [vmem:[%s10] sm:$0xf]
    %v6081 = vlaneseq
    %v6082 = vshrl.u32 %v6081, 7
    %v6083 = vsub.s32 0, %v6082
    %v6084 = vrot.slane %v6079, %v6083
    %v6085 = vlaneseq
    %v6086 = vshrl.u32 %v6085, 7
    %v6087 = vsub.s32 1, %v6086
    %v6088 = vrot.slane %v6079, %v6087
    %v6089 = vlaneseq
    %v6090 = vshrl.u32 %v6089, 7
    %v6091 = vsub.s32 2, %v6090
    %v6092 = vrot.slane %v6079, %v6091
    %v6093 = vlaneseq
    %v6094 = vshrl.u32 %v6093, 7
    %v6095 = vsub.s32 3, %v6094
    %v6096 = vrot.slane %v6079, %v6095
    %v6165 = vunpack.c.l.b16 %v6015
    %v6166 = vunpack.c.h.b16 %v6015
    %v6167 = vunpack.c.l.b16 %v6016
    %v6168 = vunpack.c.h.b16 %v6016
    %v6169 = vunpack.c.l.b16 %v6017
    %v6170 = vunpack.c.h.b16 %v6017
    %v6171 = vunpack.c.l.b16 %v6018
    %v6172 = vunpack.c.h.b16 %v6018
    %v6173 = vunpack.c.l.b16 %v6019
    %v6174 = vunpack.c.h.b16 %v6019
    %v6175 = vunpack.c.l.b16 %v6020
    %v6176 = vunpack.c.h.b16 %v6020
    %v6177 = vunpack.c.l.b16 %v6021
    %v6178 = vunpack.c.h.b16 %v6021
    %v6179 = vunpack.c.l.b16 %v6022
    %v6180 = vunpack.c.h.b16 %v6022
    %v6181 = vunpack.c.l.b16 %v6023
    %v6182 = vunpack.c.h.b16 %v6023
    %v6183 = vunpack.c.l.b16 %v6024
    %v6184 = vunpack.c.h.b16 %v6024
    %v6185 = vunpack.c.l.b16 %v6025
    %v6186 = vunpack.c.h.b16 %v6025
    %v6187 = vunpack.c.l.b16 %v6026
    %v6188 = vunpack.c.h.b16 %v6026
    %v6189 = vunpack.c.l.b16 %v6027
    %v6190 = vunpack.c.h.b16 %v6027
    %v6191 = vunpack.c.l.b16 %v6028
    %v6192 = vunpack.c.h.b16 %v6028
    %v6193 = vunpack.c.l.b16 %v6029
    %v6194 = vunpack.c.h.b16 %v6029
    %v6195 = vunpack.c.l.b16 %v6030
    %v6196 = vunpack.c.h.b16 %v6030
    %v6197 = vunpack.c.l.b16 %v6031
    %v6198 = vunpack.c.h.b16 %v6031
    %v6199 = vunpack.c.l.b16 %v6032
    %v6200 = vunpack.c.h.b16 %v6032
    %v6201 = vunpack.c.l.b16 %v6033
    %v6202 = vunpack.c.h.b16 %v6033
    %v6203 = vunpack.c.l.b16 %v6034
    %v6204 = vunpack.c.h.b16 %v6034
    %v6205 = vunpack.c.l.b16 %v6035
    %v6206 = vunpack.c.h.b16 %v6035
    %v6207 = vunpack.c.l.b16 %v6036
    %v6208 = vunpack.c.h.b16 %v6036
    %v6209 = vunpack.c.l.b16 %v6037
    %v6210 = vunpack.c.h.b16 %v6037
    %v6211 = vunpack.c.l.b16 %v6038
    %v6212 = vunpack.c.h.b16 %v6038
    %v6213 = vunpack.c.l.b16 %v6039
    %v6214 = vunpack.c.h.b16 %v6039
    %v6215 = vunpack.c.l.b16 %v6040
    %v6216 = vunpack.c.h.b16 %v6040
    %v6217 = vunpack.c.l.b16 %v6041
    %v6218 = vunpack.c.h.b16 %v6041
    %v6219 = vunpack.c.l.b16 %v6042
    %v6220 = vunpack.c.h.b16 %v6042
    %v6221 = vunpack.c.l.b16 %v6043
    %v6222 = vunpack.c.h.b16 %v6043
    %v6223 = vunpack.c.l.b16 %v6044
    %v6224 = vunpack.c.h.b16 %v6044
    %v6225 = vunpack.c.l.b16 %v6045
    %v6226 = vunpack.c.h.b16 %v6045
    %v6227 = vunpack.c.l.b16 %v6046
    %v6228 = vunpack.c.h.b16 %v6046
    %v6229 = vunpack.c.l.b16 %v6047
    %v6230 = vunpack.c.h.b16 %v6047
    %v6231 = vunpack.c.l.b16 %v6048
    %v6232 = vunpack.c.h.b16 %v6048
    %v6233 = vunpack.c.l.b16 %v6049
    %v6234 = vunpack.c.h.b16 %v6049
    %v6235 = vunpack.c.l.b16 %v6050
    %v6236 = vunpack.c.h.b16 %v6050
    %v6237 = vunpack.c.l.b16 %v6051
    %v6238 = vunpack.c.h.b16 %v6051
    %v6239 = vunpack.c.l.b16 %v6052
    %v6240 = vunpack.c.h.b16 %v6052
    %v6241 = vunpack.c.l.b16 %v6053
    %v6242 = vunpack.c.h.b16 %v6053
    %v6243 = vunpack.c.l.b16 %v6054
    %v6244 = vunpack.c.h.b16 %v6054
    %v6245 = vunpack.c.l.b16 %v6055
    %v6246 = vunpack.c.h.b16 %v6055
    %v6247 = vunpack.c.l.b16 %v6056
    %v6248 = vunpack.c.h.b16 %v6056
    %v6249 = vunpack.c.l.b16 %v6057
    %v6250 = vunpack.c.h.b16 %v6057
    %v6251 = vunpack.c.l.b16 %v6058
    %v6252 = vunpack.c.h.b16 %v6058
    %v6253 = vunpack.c.l.b16 %v6059
    %v6254 = vunpack.c.h.b16 %v6059
    %v6255 = vunpack.c.l.b16 %v6060
    %v6256 = vunpack.c.h.b16 %v6060
    %v6257 = vunpack.c.l.b16 %v6061
    %v6258 = vunpack.c.h.b16 %v6061
    %v6259 = vunpack.c.l.b16 %v6062
    %v6260 = vunpack.c.h.b16 %v6062
    %v6261 = vunpack.c.l.b16 %v6063
    %v6262 = vunpack.c.h.b16 %v6063
    %v6263 = vunpack.c.l.b16 %v6064
    %v6264 = vunpack.c.h.b16 %v6064
    %v6265 = vunpack.c.l.b16 %v6065
    %v6266 = vunpack.c.h.b16 %v6065
    %v6267 = vunpack.c.l.b16 %v6066
    %v6268 = vunpack.c.h.b16 %v6066
    %v6269 = vunpack.c.l.b16 %v6067
    %v6270 = vunpack.c.h.b16 %v6067
    %v6271 = vunpack.c.l.b16 %v6068
    %v6272 = vunpack.c.h.b16 %v6068
    %v6273 = vunpack.c.l.b16 %v6069
    %v6274 = vunpack.c.h.b16 %v6069
    %v6275 = vunpack.c.l.b16 %v6070
    %v6276 = vunpack.c.h.b16 %v6070
    %v6277 = vunpack.c.l.b16 %v6071
    %v6278 = vunpack.c.h.b16 %v6071
    %v6279 = vunpack.c.l.b16 %v6072
    %v6280 = vunpack.c.h.b16 %v6072
    %v6281 = vunpack.c.l.b16 %v6073
    %v6282 = vunpack.c.h.b16 %v6073
    %v6283 = vunpack.c.l.b16 %v6074
    %v6284 = vunpack.c.h.b16 %v6074
    %v6285 = vunpack.c.l.b16 %v6075
    %v6286 = vunpack.c.h.b16 %v6075
    %v6287 = vunpack.c.l.b16 %v6076
    %v6288 = vunpack.c.h.b16 %v6076
    %v6289 = vunpack.c.l.b16 %v6077
    %v6290 = vunpack.c.h.b16 %v6077
    %v6291 = vunpack.c.l.b16 %v6078
    %v6292 = vunpack.c.h.b16 %v6078
    %v6293 = vpack.c.b16 %v6169, %v6165
    %v6294 = vpack.c.b16 %v6170, %v6166
    %v6295 = vpack.c.b16 %v6171, %v6167
    %v6296 = vpack.c.b16 %v6172, %v6168
    %v6297 = vpack.c.b16 %v6177, %v6173
    %v6298 = vpack.c.b16 %v6178, %v6174
    %v6299 = vpack.c.b16 %v6179, %v6175
    %v6300 = vpack.c.b16 %v6180, %v6176
    %v6301 = vpack.c.b16 %v6185, %v6181
    %v6302 = vpack.c.b16 %v6186, %v6182
    %v6303 = vpack.c.b16 %v6187, %v6183
    %v6304 = vpack.c.b16 %v6188, %v6184
    %v6305 = vpack.c.b16 %v6193, %v6189
    %v6306 = vpack.c.b16 %v6194, %v6190
    %v6307 = vpack.c.b16 %v6195, %v6191
    %v6308 = vpack.c.b16 %v6196, %v6192
    %v6309 = vpack.c.b16 %v6201, %v6197
    %v6310 = vpack.c.b16 %v6202, %v6198
    %v6311 = vpack.c.b16 %v6203, %v6199
    %v6312 = vpack.c.b16 %v6204, %v6200
    %v6313 = vpack.c.b16 %v6209, %v6205
    %v6314 = vpack.c.b16 %v6210, %v6206
    %v6315 = vpack.c.b16 %v6211, %v6207
    %v6316 = vpack.c.b16 %v6212, %v6208
    %v6317 = vpack.c.b16 %v6217, %v6213
    %v6318 = vpack.c.b16 %v6218, %v6214
    %v6319 = vpack.c.b16 %v6219, %v6215
    %v6320 = vpack.c.b16 %v6220, %v6216
    %v6321 = vpack.c.b16 %v6225, %v6221
    %v6322 = vpack.c.b16 %v6226, %v6222
    %v6323 = vpack.c.b16 %v6227, %v6223
    %v6324 = vpack.c.b16 %v6228, %v6224
    %v6325 = vpack.c.b16 %v6233, %v6229
    %v6326 = vpack.c.b16 %v6234, %v6230
    %v6327 = vpack.c.b16 %v6235, %v6231
    %v6328 = vpack.c.b16 %v6236, %v6232
    %v6329 = vpack.c.b16 %v6241, %v6237
    %v6330 = vpack.c.b16 %v6242, %v6238
    %v6331 = vpack.c.b16 %v6243, %v6239
    %v6332 = vpack.c.b16 %v6244, %v6240
    %v6333 = vpack.c.b16 %v6249, %v6245
    %v6334 = vpack.c.b16 %v6250, %v6246
    %v6335 = vpack.c.b16 %v6251, %v6247
    %v6336 = vpack.c.b16 %v6252, %v6248
    %v6337 = vpack.c.b16 %v6257, %v6253
    %v6338 = vpack.c.b16 %v6258, %v6254
    %v6339 = vpack.c.b16 %v6259, %v6255
    %v6340 = vpack.c.b16 %v6260, %v6256
    %v6341 = vpack.c.b16 %v6265, %v6261
    %v6342 = vpack.c.b16 %v6266, %v6262
    %v6343 = vpack.c.b16 %v6267, %v6263
    %v6344 = vpack.c.b16 %v6268, %v6264
    %v6345 = vpack.c.b16 %v6273, %v6269
    %v6346 = vpack.c.b16 %v6274, %v6270
    %v6347 = vpack.c.b16 %v6275, %v6271
    %v6348 = vpack.c.b16 %v6276, %v6272
    %v6349 = vpack.c.b16 %v6281, %v6277
    %v6350 = vpack.c.b16 %v6282, %v6278
    %v6351 = vpack.c.b16 %v6283, %v6279
    %v6352 = vpack.c.b16 %v6284, %v6280
    %v6353 = vpack.c.b16 %v6289, %v6285
    %v6354 = vpack.c.b16 %v6290, %v6286
    %v6355 = vpack.c.b16 %v6291, %v6287
    %v6356 = vpack.c.b16 %v6292, %v6288
    %6421 = vmatprep.subr.bf16.mxu0 %v6294
    %6422 = vmatpush1.bf16.msra.mxu0 %v6293
    %6423 = vmatprep.subr.bf16.mxu0 %v6298
    %6424 = vmatpush1.bf16.msra.mxu0 %v6297
    %6425 = vmatprep.subr.bf16.mxu0 %v6302
    %6426 = vmatpush1.bf16.msra.mxu0 %v6301
    %6427 = vmatprep.subr.bf16.mxu0 %v6306
    %6428 = vmatpush1.bf16.msra.mxu0 %v6305
    %6429 = vmatprep.subr.bf16.mxu0 %v6310
    %6430 = vmatpush1.bf16.msra.mxu0 %v6309
    %6431 = vmatprep.subr.bf16.mxu0 %v6314
    %6432 = vmatpush1.bf16.msra.mxu0 %v6313
    %6433 = vmatprep.subr.bf16.mxu0 %v6318
    %6434 = vmatpush1.bf16.msra.mxu0 %v6317
    %6435 = vmatprep.subr.bf16.mxu0 %v6322
    %6436 = vmatpush1.bf16.msra.mxu0 %v6321
    %6437 = vmatprep.subr.bf16.mxu0 %v6326
    %6438 = vmatpush1.bf16.msra.mxu0 %v6325
    %6439 = vmatprep.subr.bf16.mxu0 %v6330
    %6440 = vmatpush1.bf16.msra.mxu0 %v6329
    %6441 = vmatprep.subr.bf16.mxu0 %v6334
    %6442 = vmatpush1.bf16.msra.mxu0 %v6333
    %6443 = vmatprep.subr.bf16.mxu0 %v6338
    %6444 = vmatpush1.bf16.msra.mxu0 %v6337
    %6445 = vmatprep.subr.bf16.mxu0 %v6342
    %6446 = vmatpush1.bf16.msra.mxu0 %v6341
    %6447 = vmatprep.subr.bf16.mxu0 %v6346
    %6448 = vmatpush1.bf16.msra.mxu0 %v6345
    %6449 = vmatprep.subr.bf16.mxu0 %v6350
    %6450 = vmatpush1.bf16.msra.mxu0 %v6349
    %6451 = vmatprep.subr.bf16.mxu0 %v6354
    %6452 = vmatpush1.bf16.msra.mxu0 %v6353
    %6453 = vmatprep.mubr.bf16.mxu0 %v6000
    %6454 = vmatmul.mubr.bf16.gmra.mrb[0].mxu0 %v5999
    %v6455 = vpop.f32.mrb[0].mxu0
    %v6456 = vadd.f32 %v6084, %v6455
    %v6457 = vpop.f32.mrb[0].mxu0
    %v6458 = vadd.f32 %v6088, %v6457
    %v6459 = vpop.f32.mrb[0].mxu0
    %v6460 = vadd.f32 %v6084, %v6459
    %v6461 = vpop.f32.mrb[0].mxu0
    %v6462 = vadd.f32 %v6088, %v6461
    %6463 = vmatprep.mubr.bf16.mxu0 %v6002
    %6464 = vmatmul.mubr.bf16.gmra.mrb[0].mxu0 %v6001
    %v6465 = vpop.f32.mrb[0].mxu0
    %v6466 = vadd.f32 %v6084, %v6465
    %v6467 = vpop.f32.mrb[0].mxu0
    %v6468 = vadd.f32 %v6088, %v6467
    %v6469 = vpop.f32.mrb[0].mxu0
    %v6470 = vadd.f32 %v6084, %v6469
    %v6471 = vpop.f32.mrb[0].mxu0
    %v6472 = vadd.f32 %v6088, %v6471
    %6473 = vmatprep.mubr.bf16.mxu0 %v6004
    %6474 = vmatmul.mubr.bf16.gmra.mrb[0].mxu0 %v6003
    %v6475 = vpop.f32.mrb[0].mxu0
    %v6476 = vadd.f32 %v6084, %v6475
    %v6477 = vpop.f32.mrb[0].mxu0
    %v6478 = vadd.f32 %v6088, %v6477
    %v6479 = vpop.f32.mrb[0].mxu0
    %v6480 = vadd.f32 %v6084, %v6479
    %v6481 = vpop.f32.mrb[0].mxu0
    %v6482 = vadd.f32 %v6088, %v6481
    %6483 = vmatprep.mubr.bf16.mxu0 %v6006
    %6484 = vmatmul.mubr.bf16.gmra.mrb[0].mxu0 %v6005
    %v6485 = vpop.f32.mrb[0].mxu0
    %v6486 = vadd.f32 %v6084, %v6485
    %v6487 = vpop.f32.mrb[0].mxu0
    %v6488 = vadd.f32 %v6088, %v6487
    %v6489 = vpop.f32.mrb[0].mxu0
    %v6490 = vadd.f32 %v6084, %v6489
    %v6491 = vpop.f32.mrb[0].mxu0
    %v6492 = vadd.f32 %v6088, %v6491
    %6493 = vmatprep.mubr.bf16.mxu0 %v6008
    %6494 = vmatmul.mubr.bf16.gmra.mrb[0].mxu0 %v6007
    %v6495 = vpop.f32.mrb[0].mxu0
    %v6496 = vadd.f32 %v6084, %v6495
    %v6497 = vpop.f32.mrb[0].mxu0
    %v6498 = vadd.f32 %v6088, %v6497
    %v6499 = vpop.f32.mrb[0].mxu0
    %v6500 = vadd.f32 %v6084, %v6499
    %v6501 = vpop.f32.mrb[0].mxu0
    %v6502 = vadd.f32 %v6088, %v6501
    %6503 = vmatprep.mubr.bf16.mxu0 %v6010
    %6504 = vmatmul.mubr.bf16.gmra.mrb[0].mxu0 %v6009
    %v6505 = vpop.f32.mrb[0].mxu0
    %v6506 = vadd.f32 %v6084, %v6505
    %v6507 = vpop.f32.mrb[0].mxu0
    %v6508 = vadd.f32 %v6088, %v6507
    %v6509 = vpop.f32.mrb[0].mxu0
    %v6510 = vadd.f32 %v6084, %v6509
    %v6511 = vpop.f32.mrb[0].mxu0
    %v6512 = vadd.f32 %v6088, %v6511
    %6513 = vmatprep.mubr.bf16.mxu0 %v6012
    %6514 = vmatmul.mubr.bf16.gmra.mrb[0].mxu0 %v6011
    %v6515 = vpop.f32.mrb[0].mxu0
    %v6516 = vadd.f32 %v6084, %v6515
    %v6517 = vpop.f32.mrb[0].mxu0
    %v6518 = vadd.f32 %v6088, %v6517
    %v6519 = vpop.f32.mrb[0].mxu0
    %v6520 = vadd.f32 %v6084, %v6519
    %v6521 = vpop.f32.mrb[0].mxu0
    %v6522 = vadd.f32 %v6088, %v6521
    %6523 = vmatprep.mubr.bf16.mxu0 %v6014
    %6524 = vmatmul.mubr.bf16.gmra.mrb[0].mxu0 %v6013
    %v6525 = vpop.f32.mrb[0].mxu0
    %v6526 = vadd.f32 %v6084, %v6525
    %v6527 = vpop.f32.mrb[0].mxu0
    %v6528 = vadd.f32 %v6088, %v6527
    %v6529 = vpop.f32.mrb[0].mxu0
    %v6530 = vadd.f32 %v6084, %v6529
    %v6531 = vpop.f32.mrb[0].mxu0
    %v6532 = vadd.f32 %v6088, %v6531
    %6533 = vdwg.mxu0
    %6534 = vmatprep.subr.bf16.mxu0 %v6296
    %6535 = vmatpush1.bf16.msra.mxu0 %v6295
    %6536 = vmatprep.subr.bf16.mxu0 %v6300
    %6537 = vmatpush1.bf16.msra.mxu0 %v6299
    %6538 = vmatprep.subr.bf16.mxu0 %v6304
    %6539 = vmatpush1.bf16.msra.mxu0 %v6303
    %6540 = vmatprep.subr.bf16.mxu0 %v6308
    %6541 = vmatpush1.bf16.msra.mxu0 %v6307
    %6542 = vmatprep.subr.bf16.mxu0 %v6312
    %6543 = vmatpush1.bf16.msra.mxu0 %v6311
    %6544 = vmatprep.subr.bf16.mxu0 %v6316
    %6545 = vmatpush1.bf16.msra.mxu0 %v6315
    %6546 = vmatprep.subr.bf16.mxu0 %v6320
    %6547 = vmatpush1.bf16.msra.mxu0 %v6319
    %6548 = vmatprep.subr.bf16.mxu0 %v6324
    %6549 = vmatpush1.bf16.msra.mxu0 %v6323
    %6550 = vmatprep.subr.bf16.mxu0 %v6328
    %6551 = vmatpush1.bf16.msra.mxu0 %v6327
    %6552 = vmatprep.subr.bf16.mxu0 %v6332
    %6553 = vmatpush1.bf16.msra.mxu0 %v6331
    %6554 = vmatprep.subr.bf16.mxu0 %v6336
    %6555 = vmatpush1.bf16.msra.mxu0 %v6335
    %6556 = vmatprep.subr.bf16.mxu0 %v6340
    %6557 = vmatpush1.bf16.msra.mxu0 %v6339
    %6558 = vmatprep.subr.bf16.mxu0 %v6344
    %6559 = vmatpush1.bf16.msra.mxu0 %v6343
    %6560 = vmatprep.subr.bf16.mxu0 %v6348
    %6561 = vmatpush1.bf16.msra.mxu0 %v6347
    %6562 = vmatprep.subr.bf16.mxu0 %v6352
    %6563 = vmatpush1.bf16.msra.mxu0 %v6351
    %6564 = vmatprep.subr.bf16.mxu0 %v6356
    %6565 = vmatpush1.bf16.msra.mxu0 %v6355
    %6566 = vmatprep.mubr.bf16.mxu0 %v6000
    %6567 = vmatmul.mubr.bf16.gmra.mrb[0].mxu0 %v5999
    %v6568 = vpop.f32.mrb[0].mxu0
    %v6569 = vadd.f32 %v6092, %v6568
    %v6570 = vpop.f32.mrb[0].mxu0
    %v6571 = vadd.f32 %v6096, %v6570
    %v6572 = vpop.f32.mrb[0].mxu0
    %v6573 = vadd.f32 %v6092, %v6572
    %v6574 = vpop.f32.mrb[0].mxu0
    %v6575 = vadd.f32 %v6096, %v6574
    %6576 = vmatprep.mubr.bf16.mxu0 %v6002
    %6577 = vmatmul.mubr.bf16.gmra.mrb[0].mxu0 %v6001
    %v6578 = vpop.f32.mrb[0].mxu0
    %v6579 = vadd.f32 %v6092, %v6578
    %v6580 = vpop.f32.mrb[0].mxu0
    %v6581 = vadd.f32 %v6096, %v6580
    %v6582 = vpop.f32.mrb[0].mxu0
    %v6583 = vadd.f32 %v6092, %v6582
    %v6584 = vpop.f32.mrb[0].mxu0
    %v6585 = vadd.f32 %v6096, %v6584
    %6586 = vmatprep.mubr.bf16.mxu0 %v6004
    %6587 = vmatmul.mubr.bf16.gmra.mrb[0].mxu0 %v6003
    %v6588 = vpop.f32.mrb[0].mxu0
    %v6589 = vadd.f32 %v6092, %v6588
    %v6590 = vpop.f32.mrb[0].mxu0
    %v6591 = vadd.f32 %v6096, %v6590
    %v6592 = vpop.f32.mrb[0].mxu0
    %v6593 = vadd.f32 %v6092, %v6592
    %v6594 = vpop.f32.mrb[0].mxu0
    %v6595 = vadd.f32 %v6096, %v6594
    %6596 = vmatprep.mubr.bf16.mxu0 %v6006
    %6597 = vmatmul.mubr.bf16.gmra.mrb[0].mxu0 %v6005
    %v6598 = vpop.f32.mrb[0].mxu0
    %v6599 = vadd.f32 %v6092, %v6598
    %v6600 = vpop.f32.mrb[0].mxu0
    %v6601 = vadd.f32 %v6096, %v6600
    %v6602 = vpop.f32.mrb[0].mxu0
    %v6603 = vadd.f32 %v6092, %v6602
    %v6604 = vpop.f32.mrb[0].mxu0
    %v6605 = vadd.f32 %v6096, %v6604
    %6606 = vmatprep.mubr.bf16.mxu0 %v6008
    %6607 = vmatmul.mubr.bf16.gmra.mrb[0].mxu0 %v6007
    %v6608 = vpop.f32.mrb[0].mxu0
    %v6609 = vadd.f32 %v6092, %v6608
    %v6610 = vpop.f32.mrb[0].mxu0
    %v6611 = vadd.f32 %v6096, %v6610
    %v6612 = vpop.f32.mrb[0].mxu0
    %v6613 = vadd.f32 %v6092, %v6612
    %v6614 = vpop.f32.mrb[0].mxu0
    %v6615 = vadd.f32 %v6096, %v6614
    %6616 = vmatprep.mubr.bf16.mxu0 %v6010
    %6617 = vmatmul.mubr.bf16.gmra.mrb[0].mxu0 %v6009
    %v6618 = vpop.f32.mrb[0].mxu0
    %v6619 = vadd.f32 %v6092, %v6618
    %v6620 = vpop.f32.mrb[0].mxu0
    %v6621 = vadd.f32 %v6096, %v6620
    %v6622 = vpop.f32.mrb[0].mxu0
    %v6623 = vadd.f32 %v6092, %v6622
    %v6624 = vpop.f32.mrb[0].mxu0
    %v6625 = vadd.f32 %v6096, %v6624
    %6626 = vmatprep.mubr.bf16.mxu0 %v6012
    %6627 = vmatmul.mubr.bf16.gmra.mrb[0].mxu0 %v6011
    %v6628 = vpop.f32.mrb[0].mxu0
    %v6629 = vadd.f32 %v6092, %v6628
    %v6630 = vpop.f32.mrb[0].mxu0
    %v6631 = vadd.f32 %v6096, %v6630
    %v6632 = vpop.f32.mrb[0].mxu0
    %v6633 = vadd.f32 %v6092, %v6632
    %v6634 = vpop.f32.mrb[0].mxu0
    %v6635 = vadd.f32 %v6096, %v6634
    %6636 = vmatprep.mubr.bf16.mxu0 %v6014
    %6637 = vmatmul.mubr.bf16.gmra.mrb[0].mxu0 %v6013
    %v6638 = vpop.f32.mrb[0].mxu0
    %v6639 = vadd.f32 %v6092, %v6638
    %v6640 = vpop.f32.mrb[0].mxu0
    %v6641 = vadd.f32 %v6096, %v6640
    %v6642 = vpop.f32.mrb[0].mxu0
    %v6643 = vadd.f32 %v6092, %v6642
    %v6644 = vpop.f32.mrb[0].mxu0
    %v6645 = vadd.f32 %v6096, %v6644
    %6646 = vdwg.mxu0
    %v6647 = vmax.f32 %v6456, 0.0
    %v6648 = vmax.f32 %v6458, 0.0
    %v6649 = vmax.f32 %v6569, 0.0
    %v6650 = vmax.f32 %v6571, 0.0
    %v6651 = vmax.f32 %v6460, 0.0
    %v6652 = vmax.f32 %v6462, 0.0
    %v6653 = vmax.f32 %v6573, 0.0
    %v6654 = vmax.f32 %v6575, 0.0
    %v6655 = vmax.f32 %v6466, 0.0
    %v6656 = vmax.f32 %v6468, 0.0
    %v6657 = vmax.f32 %v6579, 0.0
    %v6658 = vmax.f32 %v6581, 0.0
    %v6659 = vmax.f32 %v6470, 0.0
    %v6660 = vmax.f32 %v6472, 0.0
    %v6661 = vmax.f32 %v6583, 0.0
    %v6662 = vmax.f32 %v6585, 0.0
    %v6663 = vmax.f32 %v6476, 0.0
    %v6664 = vmax.f32 %v6478, 0.0
    %v6665 = vmax.f32 %v6589, 0.0
    %v6666 = vmax.f32 %v6591, 0.0
    %v6667 = vmax.f32 %v6480, 0.0
    %v6668 = vmax.f32 %v6482, 0.0
    %v6669 = vmax.f32 %v6593, 0.0
    %v6670 = vmax.f32 %v6595, 0.0
    %v6671 = vmax.f32 %v6486, 0.0
    %v6672 = vmax.f32 %v6488, 0.0
    %v6673 = vmax.f32 %v6599, 0.0
    %v6674 = vmax.f32 %v6601, 0.0
    %v6675 = vmax.f32 %v6490, 0.0
    %v6676 = vmax.f32 %v6492, 0.0
    %v6677 = vmax.f32 %v6603, 0.0
    %v6678 = vmax.f32 %v6605, 0.0
    %v6679 = vmax.f32 %v6496, 0.0
    %v6680 = vmax.f32 %v6498, 0.0
    %v6681 = vmax.f32 %v6609, 0.0
    %v6682 = vmax.f32 %v6611, 0.0
    %v6683 = vmax.f32 %v6500, 0.0
    %v6684 = vmax.f32 %v6502, 0.0
    %v6685 = vmax.f32 %v6613, 0.0
    %v6686 = vmax.f32 %v6615, 0.0
    %v6687 = vmax.f32 %v6506, 0.0
    %v6688 = vmax.f32 %v6508, 0.0
    %v6689 = vmax.f32 %v6619, 0.0
    %v6690 = vmax.f32 %v6621, 0.0
    %v6691 = vmax.f32 %v6510, 0.0
    %v6692 = vmax.f32 %v6512, 0.0
    %v6693 = vmax.f32 %v6623, 0.0
    %v6694 = vmax.f32 %v6625, 0.0
    %v6695 = vmax.f32 %v6516, 0.0
    %v6696 = vmax.f32 %v6518, 0.0
    %v6697 = vmax.f32 %v6629, 0.0
    %v6698 = vmax.f32 %v6631, 0.0
    %v6699 = vmax.f32 %v6520, 0.0
    %v6700 = vmax.f32 %v6522, 0.0
    %v6701 = vmax.f32 %v6633, 0.0
    %v6702 = vmax.f32 %v6635, 0.0
    %v6703 = vmax.f32 %v6526, 0.0
    %v6704 = vmax.f32 %v6528, 0.0
    %v6705 = vmax.f32 %v6639, 0.0
    %v6706 = vmax.f32 %v6641, 0.0
    %v6707 = vmax.f32 %v6530, 0.0
    %v6708 = vmax.f32 %v6532, 0.0
    %v6709 = vmax.f32 %v6643, 0.0
    %v6710 = vmax.f32 %v6645, 0.0
    %v6711 = vld [vmem:[%s11] sm:$0xf]
    %v6712 = vpack.c.bf16 %v6651, %v6647
    %v6713 = vpack.c.bf16 %v6652, %v6648
    %v6714 = vpack.c.bf16 %v6653, %v6649
    %v6715 = vpack.c.bf16 %v6654, %v6650
    %v6716 = vpack.c.bf16 %v6659, %v6655
    %v6717 = vpack.c.bf16 %v6660, %v6656
    %v6718 = vpack.c.bf16 %v6661, %v6657
    %v6719 = vpack.c.bf16 %v6662, %v6658
    %v6720 = vpack.c.bf16 %v6667, %v6663
    %v6721 = vpack.c.bf16 %v6668, %v6664
    %v6722 = vpack.c.bf16 %v6669, %v6665
    %v6723 = vpack.c.bf16 %v6670, %v6666
    %v6724 = vpack.c.bf16 %v6675, %v6671
    %v6725 = vpack.c.bf16 %v6676, %v6672
    %v6726 = vpack.c.bf16 %v6677, %v6673
    %v6727 = vpack.c.bf16 %v6678, %v6674
    %v6728 = vpack.c.bf16 %v6683, %v6679
    %v6729 = vpack.c.bf16 %v6684, %v6680
    %v6730 = vpack.c.bf16 %v6685, %v6681
    %v6731 = vpack.c.bf16 %v6686, %v6682
    %v6732 = vpack.c.bf16 %v6691, %v6687
    %v6733 = vpack.c.bf16 %v6692, %v6688
    %v6734 = vpack.c.bf16 %v6693, %v6689
    %v6735 = vpack.c.bf16 %v6694, %v6690
    %v6736 = vpack.c.bf16 %v6699, %v6695
    %v6737 = vpack.c.bf16 %v6700, %v6696
    %v6738 = vpack.c.bf16 %v6701, %v6697
    %v6739 = vpack.c.bf16 %v6702, %v6698
    %v6740 = vpack.c.bf16 %v6707, %v6703
    %v6741 = vpack.c.bf16 %v6708, %v6704
    %v6742 = vpack.c.bf16 %v6709, %v6705
    %v6743 = vpack.c.bf16 %v6710, %v6706
    %v6744 = vld [vmem:[#allocation2] sm:$0x1]
    %6746 = vset.pattern.permute.xlu0 0
    %6747 = vperm.xlu0 %6746, %v6744
    %v6748 = vpop.permute.xlu0 %6747
    %v6750 = vlaneseq
    %v6751 = vshrl.u32 %v6750, 7
    %v6752 = vsub.s32 0, %v6751
    %v6753 = vrot.slane %v6748, %v6752
    %v6756 = vunpack.c.l.s4 1966171168
    %v6757 = vunpack.c.0.s8 %v6756
    %v6758 = vlaneseq
    %v6759 = vshrl.u32 %v6758, 7
    %v6760 = vsub.s32 %v6757, %v6759
    %v6761 = vrot.slane %v6711, %v6760
    %v6762 = vcombine.high %v6761, %v6761
    %v6764 = vunpack.c.l.s4 1966171168
    %v6765 = vunpack.c.0.s8 %v6764
    %v6766 = vlaneseq
    %v6767 = vshrl.u32 %v6766, 7
    %v6768 = vsub.s32 %v6765, %v6767
    %v6769 = vrot.slane %v6761, %v6768
    %v6771 = vunpack.c.l.s4 1966171168
    %v6772 = vunpack.c.0.s8 %v6771
    %v6773 = vlaneseq
    %v6774 = vshrl.u32 %v6773, 7
    %v6775 = vsub.s32 %v6772, %v6774
    %v6776 = vrot.slane %v6762, %v6775
    %v6777 = vcombine.high %v6769, %v6769
    %v6778 = vcombine.high %v6776, %v6776
    %6783 = vmatprep.subr.bf16.mxu0 %v6713
    %6784 = vmatpush1.bf16.xpose.msra.mxu0 %v6712
    %6785 = vmatprep.subr.bf16.mxu0 %v6717
    %6786 = vmatpush1.bf16.xpose.msra.mxu0 %v6716
    %6787 = vmatprep.subr.bf16.mxu0 %v6721
    %6788 = vmatpush1.bf16.xpose.msra.mxu0 %v6720
    %6789 = vmatprep.subr.bf16.mxu0 %v6725
    %6790 = vmatpush1.bf16.xpose.msra.mxu0 %v6724
    %6791 = vmatprep.subr.bf16.mxu0 %v6729
    %6792 = vmatpush1.bf16.xpose.msra.mxu0 %v6728
    %6793 = vmatprep.subr.bf16.mxu0 %v6733
    %6794 = vmatpush1.bf16.xpose.msra.mxu0 %v6732
    %6795 = vmatprep.subr.bf16.mxu0 %v6737
    %6796 = vmatpush1.bf16.xpose.msra.mxu0 %v6736
    %6797 = vmatprep.subr.bf16.mxu0 %v6741
    %6798 = vmatpush1.bf16.xpose.msra.mxu0 %v6740
    %6799 = vmatprep.subr.bf16.mxu0 0
    %6800 = vmatpush1.bf16.xpose.msra.mxu0 0
    %6801 = vmatprep.subr.bf16.mxu0 0
    %6802 = vmatpush1.bf16.xpose.msra.mxu0 0
    %6803 = vmatprep.subr.bf16.mxu0 0
    %6804 = vmatpush1.bf16.xpose.msra.mxu0 0
    %6805 = vmatprep.subr.bf16.mxu0 0
    %6806 = vmatpush1.bf16.xpose.msra.mxu0 0
    %6807 = vmatprep.subr.bf16.mxu0 0
    %6808 = vmatpush1.bf16.xpose.msra.mxu0 0
    %6809 = vmatprep.subr.bf16.mxu0 0
    %6810 = vmatpush1.bf16.xpose.msra.mxu0 0
    %6811 = vmatprep.subr.bf16.mxu0 0
    %6812 = vmatpush1.bf16.xpose.msra.mxu0 0
    %6813 = vmatprep.subr.bf16.mxu0 0
    %6814 = vmatpush1.bf16.xpose.msra.mxu0 0
    %6815 = vmatprep.mubr.bf16.mxu0 %v6776
    %6816 = vmatmul.mubr.bf16.gmra.mrb[0].mxu0 %v6769
    %v6817 = vpop.f32.mrb[0].mxu0
    %v6818 = vadd.f32 %v6753, %v6817
    %v6819 = vpop.f32.mrb[0].mxu0
    %v6820 = vpop.f32.mrb[0].mxu0
    %v6821 = vpop.f32.mrb[0].mxu0
    %6822 = vdwg.mxu0
    %6823 = vmatprep.subr.bf16.mxu0 %v6715
    %6824 = vmatpush1.bf16.xpose.msra.mxu0 %v6714
    %6825 = vmatprep.subr.bf16.mxu0 %v6719
    %6826 = vmatpush1.bf16.xpose.msra.mxu0 %v6718
    %6827 = vmatprep.subr.bf16.mxu0 %v6723
    %6828 = vmatpush1.bf16.xpose.msra.mxu0 %v6722
    %6829 = vmatprep.subr.bf16.mxu0 %v6727
    %6830 = vmatpush1.bf16.xpose.msra.mxu0 %v6726
    %6831 = vmatprep.subr.bf16.mxu0 %v6731
    %6832 = vmatpush1.bf16.xpose.msra.mxu0 %v6730
    %6833 = vmatprep.subr.bf16.mxu0 %v6735
    %6834 = vmatpush1.bf16.xpose.msra.mxu0 %v6734
    %6835 = vmatprep.subr.bf16.mxu0 %v6739
    %6836 = vmatpush1.bf16.xpose.msra.mxu0 %v6738
    %6837 = vmatprep.subr.bf16.mxu0 %v6743
    %6838 = vmatpush1.bf16.xpose.msra.mxu0 %v6742
    %6839 = vmatprep.subr.bf16.mxu0 0
    %6840 = vmatpush1.bf16.xpose.msra.mxu0 0
    %6841 = vmatprep.subr.bf16.mxu0 0
    %6842 = vmatpush1.bf16.xpose.msra.mxu0 0
    %6843 = vmatprep.subr.bf16.mxu0 0
    %6844 = vmatpush1.bf16.xpose.msra.mxu0 0
    %6845 = vmatprep.subr.bf16.mxu0 0
    %6846 = vmatpush1.bf16.xpose.msra.mxu0 0
    %6847 = vmatprep.subr.bf16.mxu0 0
    %6848 = vmatpush1.bf16.xpose.msra.mxu0 0
    %6849 = vmatprep.subr.bf16.mxu0 0
    %6850 = vmatpush1.bf16.xpose.msra.mxu0 0
    %6851 = vmatprep.subr.bf16.mxu0 0
    %6852 = vmatpush1.bf16.xpose.msra.mxu0 0
    %6853 = vmatprep.subr.bf16.mxu0 0
    %6854 = vmatpush1.bf16.xpose.msra.mxu0 0
    %6855 = vmatprep.mubr.bf16.mxu0 %v6778
    %6856 = vmatmul.mubr.bf16.gmra.mrb[0].mxu0 %v6777
    %v6857 = vpop.f32.mrb[0].mxu0
    %v6858 = vadd.f32 %v6818, %v6857
    %v6859 = vpop.f32.mrb[0].mxu0
    %v6860 = vpop.f32.mrb[0].mxu0
    %v6861 = vpop.f32.mrb[0].mxu0
    %6862 = vdwg.mxu0
    %v6863 = vxor.u32 %v6858, 2147483648
    %v6864 = vmul.f32 %v6863, 1.442695
    %v6865 = vpow.pop %v6864
    %v6866 = vadd.f32 %v6865, 1.0
    %v6867 = vrcp.pop %v6866
    %v6868 = vmul.f32 1.0, %v6867
    %6869 = vst [vmem:[#allocation8] sm:$0x1] %v6868
    // Predicated region
    $region62: #{tpu_custom_call.1} parent=1 // pred_check
      _
    $region63: #{tpu_custom_call.1} parent=1 // pred_check_branch
      %6871 = sbr.rel (0) target = $region65
    $region64: #{tpu_custom_call.1} parent=1 // pred_region
      %s6873 = ssub.s32 16, 16
      %6874 = vsyncadd [#allocation5], %s6873
      %s6876 = sshll.u32 [#allocation8], 4
      %s6877 = int_to_ptr.vmem [resolvable:$true] %s6876
      %6879 = dma.vmem_to_hbm [thread:$0]  %s6877, 16, %s13, [#allocation5]
    $region65: #{tpu_custom_call.1} parent=1 // pred_fallthru
      _
    // Predicated region
    $region66: #{tpu_custom_call.1} parent=1 // pred_check
      _
    $region67: #{tpu_custom_call.1} parent=1 // pred_check_branch
      %6881 = sbr.rel (0) target = $region69
    $region68: #{tpu_custom_call.1} parent=1 // pred_region
      %6882 = dma.done [#allocation5], 16
    $region69: #{tpu_custom_call.1} parent=1 // pred_fallthru
      _
    %6883 = vsyncpa [#allocation4], 1
    %6884 = vsyncpa [#allocation7], 1
    %6885 = vsyncpa [#allocation5], 1

</llo_original>
